<compile_context>
chip_gen: v7x
topology: tpu7x:2x2x1
jax: 0.10.0
libtpu: 0.0.40
codegen_flags: <defaults>
</compile_context>

<pallas_src>
import functools

import jax
import jax.numpy as jnp
import numpy as np
from jax.experimental import pallas as pl
from jax.experimental.pallas import tpu as pltpu


# ----------------------------------------------------------------------------
# Fused kernel: conv1 (3x3 SAME) -> conv2 (7x7 VALID, kp+jac fused) -> head
# One grid step per batch group of Bt elements.  Layout is
# (channels on sublanes, [batch x flattened-spatial] on lanes) everywhere.
# ----------------------------------------------------------------------------
def _make_fused_kernel(k2, wp, spad, swide, cf_p, num_kp, bt, inv_t):
    four_k = 4 * num_kp

    def kernel(r1_ref, w1t_ref, b1_ref, w2t_ref, b2_ref, mask_ref, cg_ref,
               out_ref, featw_ref, acc_ref):
        # ---- predictor stand-in: 3x3 SAME conv + ReLU (one bf16 MXU matmul) --
        # r1 (im2col of the input) was built in the wrapper; lanes are
        # [b0: swide | b1: swide | ...] so one dot covers the whole batch group.
        feat = jnp.dot(w1t_ref[...], r1_ref[0],
                       preferred_element_type=jnp.float32)     # (cf_p, bt*swide)
        feat = jnp.maximum(feat + b1_ref[...], 0.0)
        # Persist as bf16 in a VMEM scratch; the full swide width is written each
        # step (all lanes finite), so no zero-init / pl.when is needed and the
        # batch-group grid axis stays safely "parallel".
        featw_ref[...] = feat.astype(jnp.bfloat16)

        # ---- fused kp + jacobian 7x7 VALID conv, kh-chunked im2col ------------
        # 7 accumulated matmuls of (c2, 7*cf_p) @ (7*cf_p, bt*spad); the 280-row
        # slab is rebuilt per kh from ref slices (never the full 49-tap matrix).
        for kh in range(k2):
            taps = []
            for kw in range(k2):
                d = kh * wp + kw
                taps.append(jnp.concatenate(
                    [featw_ref[:, b * swide + d: b * swide + d + spad]
                     for b in range(bt)], axis=1))             # (cf_p, bt*spad)
            r2 = jnp.concatenate(taps, axis=0)                 # (7*cf_p, bt*spad) bf16
            w2k = w2t_ref[:, kh * k2 * cf_p:(kh + 1) * k2 * cf_p]   # (c2, 7*cf_p)
            part = jnp.dot(w2k, r2, preferred_element_type=jnp.float32)
            if kh == 0:
                acc_ref[...] = part
            else:
                acc_ref[...] += part
        # acc rows [0, 4K): jacobian maps grouped by component (row = j*K + k)
        # acc rows [4K, 5K): keypoint logits (bias not yet added)

        # ---- head: masked softmax + moments, per batch element ----------------
        b_jac = b2_ref[0:four_k, :]                            # (4K, 1) f32
        b_kp = b2_ref[four_k:four_k + num_kp, :]               # (K, 1)  f32
        mask = mask_ref[...]                                   # (1, spad): 0 / -1e30
        cg = cg_ref[...]                                       # (spad, 8): [1 | x | y | 0..]
        for b in range(bt):
            lo = b * spad
            logits = (acc_ref[four_k:four_k + num_kp, lo:lo + spad] + b_kp) \
                * inv_t + mask                                 # (K, spad) f32
            m = jnp.max(logits, axis=-1, keepdims=True)
            e = jnp.exp(logits - m)                            # exactly 0 at pad lanes

            # softmax denominator + value moments on the MXU (frees the XLU):
            red = jnp.dot(e, cg, preferred_element_type=jnp.float32)   # (K, 8)
            inv_den = pl.reciprocal(red[:, 0:1], approx=True)          # (K, 1)
            val2 = red[:, 1:3] * inv_den                               # (K, 2) = (x, y)

            # jacobian: ONE stacked cross-lane reduction over all 4 components.
            jmap = acc_ref[0:four_k, lo:lo + spad] + b_jac             # (4K, spad)
            e4 = jnp.concatenate([e, e, e, e], axis=0)                 # (4K, spad)
            jsum = jnp.sum(jmap * e4, axis=-1, keepdims=True)          # (4K, 1)
            jac4 = jnp.concatenate(
                [jsum[j * num_kp:(j + 1) * num_kp, :] for j in range(4)],
                axis=1) * inv_den                                      # (K, 4)

            out_ref[b] = jnp.concatenate(
                [val2, jac4, jnp.zeros((num_kp, 2), jnp.float32)], axis=1)

    return kernel


# ----------------------------------------------------------------------------
# Wrapper: layout / weight preparation + pallas_call
# ----------------------------------------------------------------------------
@functools.partial(jax.jit, static_argnums=(2, 3))
def stn_kp_detector_forward(params, x_nchw, num_kp, temperature):
    B, cin, H, W = x_nchw.shape
    k1 = params["pred_w"].shape[0]              # 3  (predictor stand-in)
    k2 = params["kp_w"].shape[0]                # 7  (kp / jacobian convs)
    cf = params["pred_w"].shape[-1]             # 35 (predictor out_filters)

    hp, wp = H + k1 - 1, W + k1 - 1             # padded grid for SAME 3x3 conv
    ho, wo = H - k2 + 1, W - k2 + 1             # 7x7 VALID output (pad=0)
    s = hp * wp                                 # flattened spatial (324)
    spad = ((s + 127) // 128) * 128             # lane-dense spatial (384)
    swide = spad + 128                          # widened segment (shifted taps stay inside)
    cin_p = ((cin + 7) // 8) * 8                # 4  -> 8
    cf_p = ((cf + 7) // 8) * 8                  # 35 -> 40
    c2 = 5 * num_kp                             # fused conv channels: 4K jac + K kp
    assert (k2 - 1) * (wp + 1) <= swide - spad  # conv2 taps stay inside a segment

    # ---- batch grouping: Bt elements per grid step (batch on the lane axis) ---
    bt = min(B, 4)
    g = -(-B // bt)
    bp = g * bt                                 # batch padded to a multiple of bt

    # ---- conv1 im2col hoisted to the wrapper (done once by XLA, bf16) ---------
    xp = jnp.pad(x_nchw.astype(jnp.float32),
                 ((0, bp - B), (0, 0), (1, 1), (1, 1)))          # SAME padding
    xflat = jnp.pad(xp.reshape(bp, cin, s),
                    ((0, 0), (0, cin_p - cin),
                     (0, swide + (k1 - 1) * (wp + 1) - s)))
    offs1 = [kh * wp + kw for kh in range(k1) for kw in range(k1)]
    r1 = jnp.concatenate([xflat[:, :, d:d + swide] for d in offs1], axis=1)
    r1 = r1.reshape(g, bt, k1 * k1 * cin_p, swide)
    r1 = jnp.transpose(r1, (0, 2, 1, 3)).reshape(g, k1 * k1 * cin_p, bt * swide)
    r1 = r1.astype(jnp.bfloat16)

    # ---- conv1 weights, im2col-transposed (Cout_pad, K*K*Cin_pad), bf16 -------
    w1t = jnp.pad(jnp.transpose(params["pred_w"], (3, 0, 1, 2)),
                  ((0, cf_p - cf), (0, 0), (0, 0), (0, cin_p - cin))
                  ).reshape(cf_p, k1 * k1 * cin_p).astype(jnp.bfloat16)
    b1 = jnp.pad(params["pred_b"], (0, cf_p - cf)).reshape(cf_p, 1).astype(jnp.float32)

    # ---- fused kp+jacobian conv: regroup jacobian out-channels (k, j) -> (j, k)
    #      so each 2x2 component's K maps are contiguous rows of the conv output.
    jw = params["jac_w"].reshape(k2, k2, cf, num_kp, 4)
    jw = jnp.transpose(jw, (0, 1, 2, 4, 3)).reshape(k2, k2, cf, 4 * num_kp)
    jb = params["jac_b"].reshape(num_kp, 4).T.reshape(4 * num_kp)
    w2 = jnp.concatenate([jw, params["kp_w"]], axis=-1)              # (7,7,cf,5K)
    w2t = jnp.pad(jnp.transpose(w2, (3, 0, 1, 2)),
                  ((0, 0), (0, 0), (0, 0), (0, cf_p - cf))
                  ).reshape(c2, k2 * k2 * cf_p).astype(jnp.bfloat16)
    b2 = jnp.concatenate([jb, params["kp_b"]]).reshape(c2, 1).astype(jnp.float32)

    # ---- head constants: softmax mask (f32, -1e30 stays f32) + coord matrix ---
    maskc = np.full((1, spad), -1e30, np.float32)     # finite: exp underflows to 0
    cgc = np.zeros((spad, 8), np.float32)
    for oh in range(ho):
        for ow in range(wo):
            l = oh * wp + ow
            maskc[0, l] = 0.0
            cgc[l, 0] = 1.0                               # denominator column
            cgc[l, 1] = 2.0 * ow / (wo - 1) - 1.0         # x coordinate
            cgc[l, 2] = 2.0 * oh / (ho - 1) - 1.0         # y coordinate
    maskc = jnp.asarray(maskc)
    cgc = jnp.asarray(cgc)

    kernel = _make_fused_kernel(k2, wp, spad, swide, cf_p, num_kp, bt,
                                1.0 / float(temperature))

    outh = pl.pallas_call(
        kernel,
        out_shape=jax.ShapeDtypeStruct((bp, num_kp, 8), jnp.float32),
        grid=(g,),
        in_specs=[
            pl.BlockSpec((1, k1 * k1 * cin_p, bt * swide), lambda i: (i, 0, 0)),
            pl.BlockSpec((cf_p, k1 * k1 * cin_p), lambda i: (0, 0)),
            pl.BlockSpec((cf_p, 1), lambda i: (0, 0)),
            pl.BlockSpec((c2, k2 * k2 * cf_p), lambda i: (0, 0)),
            pl.BlockSpec((c2, 1), lambda i: (0, 0)),
            pl.BlockSpec((1, spad), lambda i: (0, 0)),
            pl.BlockSpec((spad, 8), lambda i: (0, 0)),
        ],
        out_specs=pl.BlockSpec((bt, num_kp, 8), lambda i: (i, 0, 0)),
        scratch_shapes=[
            pltpu.VMEM((cf_p, bt * swide), jnp.bfloat16),   # persistent featw
            pltpu.VMEM((c2, bt * spad), jnp.float32),       # conv2 accumulator
        ],
        compiler_params=pltpu.CompilerParams(
            dimension_semantics=("parallel",),
            vmem_limit_bytes=32 * 1024 * 1024),
    )(r1, w1t, b1, w2t, b2, maskc, cgc)

    value = outh[:B, :, 0:2]
    jac = outh[:B, :, 2:6].reshape(B, num_kp, 2, 2)
    return {"value": value, "jacobian": jac}


# ----------------------------------------------------------------------------
# Parameter setup + pure-JAX reference (for verification)
# ----------------------------------------------------------------------------
def make_coordinate_grid(h, w):
    """FOMM's make_coordinate_grid: (h, w, 2) with (x, y) in [-1, 1]."""
    x = 2.0 * (jnp.arange(w, dtype=jnp.float32) / (w - 1)) - 1.0
    y = 2.0 * (jnp.arange(h, dtype=jnp.float32) / (h - 1)) - 1.0
    xx = jnp.tile(x[None, :], (h, 1))
    yy = jnp.tile(y[:, None], (1, w))
    return jnp.stack([xx, yy], axis=-1)


def init_params(key, num_channels, out_filters, num_kp):
    k1, k2, k3, k4, k5 = jax.random.split(key, 5)
    return {
        # Hourglass stand-in: 3x3 same-conv + ReLU
        "pred_w": 0.05 * jax.random.normal(k1, (3, 3, num_channels, out_filters), jnp.float32),
        "pred_b": 0.05 * jax.random.normal(k2, (out_filters,), jnp.float32),
        # self.kp: Conv2d(out_filters -> num_kp, kernel 7x7, pad 0)
        "kp_w": 0.02 * jax.random.normal(k3, (7, 7, out_filters, num_kp), jnp.float32),
        "kp_b": 0.02 * jax.random.normal(k4, (num_kp,), jnp.float32),
        # self.jacobian: Conv2d(out_filters -> 4*num_kp).  PyTorch zero-inits the
        # weight; we use small nonzero weights so the fused jacobian path is
        # exercised numerically.  Bias = [1, 0, 0, 1] * num_kp as in __init__.
        "jac_w": 0.01 * jax.random.normal(k5, (7, 7, out_filters, 4 * num_kp), jnp.float32),
        "jac_b": jnp.tile(jnp.array([1.0, 0.0, 0.0, 1.0], jnp.float32), num_kp),
    }


def reference_forward(params, x_nchw, num_kp, temperature):
    x = jnp.transpose(x_nchw, (0, 2, 3, 1))
    dn = ("NHWC", "HWIO", "NHWC")
    feature = jax.lax.conv_general_dilated(x, params["pred_w"], (1, 1), "SAME",
                                           dimension_numbers=dn) + params["pred_b"]
    feature = jnp.maximum(feature, 0.0)
    pred = jax.lax.conv_general_dilated(feature, params["kp_w"], (1, 1), "VALID",
                                        dimension_numbers=dn) + params["kp_b"]
    jacmap = jax.lax.conv_general_dilated(feature, params["jac_w"], (1, 1), "VALID",
                                          dimension_numbers=dn) + params["jac_b"]
    B, Hh, Ww, K = pred.shape
    pred_nchw = jnp.transpose(pred, (0, 3, 1, 2))
    heat = jax.nn.softmax(pred_nchw.reshape(B, K, -1) / temperature, axis=-1)
    heat = heat.reshape(B, K, Hh, Ww)
    grid = make_coordinate_grid(Hh, Ww)                              # (Hh, Ww, 2)
    value = jnp.sum(heat[..., None] * grid[None, None], axis=(2, 3))
    jacmap_nchw = jnp.transpose(jacmap, (0, 3, 1, 2)).reshape(B, num_kp, 4, Hh, Ww)
    jac = jnp.sum(heat[:, :, None] * jacmap_nchw, axis=(-2, -1)).reshape(B, K, 2, 2)
    return {"value": value, "jacobian": jac}


if __name__ == "__main__":
    # Module config (small / synthetic): num_channels=4, num_kp=10, temperature=0.1,
    # estimate_jacobian=True, scale_factor=1, pad=0, predictor.out_filters=35.
    num_channels, num_kp, out_filters, temperature = 4, 10, 35, 0.1

    key = jax.random.PRNGKey(0)
    kx, kparams = jax.random.split(key)
    x = jax.random.normal(kx, (2, num_channels, 16, 16), jnp.float32)   # NCHW like PyTorch
    params = init_params(kparams, num_channels, out_filters, num_kp)

    out = stn_kp_detector_forward(params, x, num_kp, temperature)
    out = jax.tree_util.tree_map(jax.block_until_ready, out)

    ref = reference_forward(params, x, num_kp, temperature)

    assert out["value"].shape == (2, num_kp, 2)
    assert out["jacobian"].shape == (2, num_kp, 2, 2)
    # Tolerance sized for bf16 MXU operands with f32 accumulation (softmax
    # logits are amplified by 1/temperature = 10), plus approx reciprocal.
    np.testing.assert_allclose(np.asarray(out["value"]), np.asarray(ref["value"]),
                               rtol=2e-2, atol=2e-2)
    np.testing.assert_allclose(np.asarray(out["jacobian"]), np.asarray(ref["jacobian"]),
                               rtol=2e-2, atol=2e-2)
    print("KERNEL_OK")
</pallas_src>

<mosaic_0001>
module attributes {stable_mosaic.version = 11 : i64} {
  func.func @kernel(%arg0: i32, %arg1: memref<1x72x1024xbf16, #tpu.memory_space<vmem>>, %arg2: memref<40x72xbf16, #tpu.memory_space<vmem>>, %arg3: memref<40x1xf32, #tpu.memory_space<vmem>>, %arg4: memref<50x1960xbf16, #tpu.memory_space<vmem>>, %arg5: memref<50x1xf32, #tpu.memory_space<vmem>>, %arg6: memref<1x384xf32, #tpu.memory_space<vmem>>, %arg7: memref<384x8xf32, #tpu.memory_space<vmem>>, %arg8: memref<2x10x8xf32, #tpu.memory_space<vmem>>, %arg9: memref<40x1024xbf16, #tpu.memory_space<vmem>>, %arg10: memref<50x768xf32, #tpu.memory_space<vmem>>) attributes {dimension_semantics = [#tpu.dimension_semantics<parallel>], iteration_bounds = array<i64: 1>, scalar_prefetch = 0 : i64, scratch_operands = 2 : i64, tpu.core_type = #tpu.core_type<tc>, window_params = [{transform_indices = @transform_0, window_bounds = array<i64: 1, 72, 1024>}, {pipeline_mode = #tpu.pipeline_mode<synchronous>, transform_indices = @transform_1, window_bounds = array<i64: 40, 72>}, {pipeline_mode = #tpu.pipeline_mode<synchronous>, transform_indices = @transform_2, window_bounds = array<i64: 40, 1>}, {pipeline_mode = #tpu.pipeline_mode<synchronous>, transform_indices = @transform_3, window_bounds = array<i64: 50, 1960>}, {pipeline_mode = #tpu.pipeline_mode<synchronous>, transform_indices = @transform_4, window_bounds = array<i64: 50, 1>}, {pipeline_mode = #tpu.pipeline_mode<synchronous>, transform_indices = @transform_5, window_bounds = array<i64: 1, 384>}, {pipeline_mode = #tpu.pipeline_mode<synchronous>, transform_indices = @transform_6, window_bounds = array<i64: 384, 8>}, {transform_indices = @transform_7, window_bounds = array<i64: 2, 10, 8>}]} {
    %c0 = arith.constant 0 : index
    %c0_0 = arith.constant 0 : index
    %0 = vector.load %arg2[%c0, %c0_0] : memref<40x72xbf16, #tpu.memory_space<vmem>>, vector<40x72xbf16>
    %c0_1 = arith.constant 0 : index
    %c0_2 = arith.constant 0 : index
    %c0_3 = arith.constant 0 : index
    %1 = vector.load %arg1[%c0_1, %c0_2, %c0_3] : memref<1x72x1024xbf16, #tpu.memory_space<vmem>>, vector<1x72x1024xbf16>
    %2 = vector.shape_cast %1 : vector<1x72x1024xbf16> to vector<72x1024xbf16>
    %cst = arith.constant dense<0.000000e+00> : vector<40x1024xf32>
    %3 = tpu.matmul %0, %2, %cst {dimension_numbers = #tpu.dot_dimension_numbers<[1], [0], [0], [1], [0, 0, 1, 1], [], []>} : vector<40x72xbf16>, vector<72x1024xbf16>, vector<40x1024xf32> -> vector<40x1024xf32>
    %c0_4 = arith.constant 0 : index
    %c0_5 = arith.constant 0 : index
    %4 = vector.load %arg3[%c0_4, %c0_5] : memref<40x1xf32, #tpu.memory_space<vmem>>, vector<40x1xf32>
    %5 = vector.broadcast %4 : vector<40x1xf32> to vector<40x1024xf32>
    %6 = arith.addf %3, %5 : vector<40x1024xf32>
    %cst_6 = arith.constant 0.000000e+00 : f32
    %7 = vector.broadcast %cst_6 : f32 to vector<40x1024xf32>
    %8 = arith.maximumf %6, %7 : vector<40x1024xf32>
    %9 = arith.truncf %8 : vector<40x1024xf32> to vector<40x1024xbf16>
    %c0_7 = arith.constant 0 : index
    %c0_8 = arith.constant 0 : index
    %10 = vector.load %arg9[%c0_7, %c0_8] : memref<40x1024xbf16, #tpu.memory_space<vmem>>, vector<40x1024xbf16>
    tpu.vector_store %arg9[%c0_7, %c0_8], %9 {strides = array<i32>} : memref<40x1024xbf16, #tpu.memory_space<vmem>>, vector<40x1024xbf16>,
    %c0_9 = arith.constant 0 : index
    %c0_10 = arith.constant 0 : index
    %11 = vector.load %arg9[%c0_9, %c0_10] : memref<40x1024xbf16, #tpu.memory_space<vmem>>, vector<40x384xbf16>
    %c0_11 = arith.constant 0 : index
    %c512 = arith.constant 512 : index
    %12 = vector.load %arg9[%c0_11, %c512] : memref<40x1024xbf16, #tpu.memory_space<vmem>>, vector<40x384xbf16>
    %13 = tpu.concatenate %11, %12 in 1 : vector<40x384xbf16>, vector<40x384xbf16> -> vector<40x768xbf16>
    %c0_12 = arith.constant 0 : index
    %c1 = arith.constant 1 : index
    %14 = vector.load %arg9[%c0_12, %c1] : memref<40x1024xbf16, #tpu.memory_space<vmem>>, vector<40x384xbf16>
    %c0_13 = arith.constant 0 : index
    %c513 = arith.constant 513 : index
    %15 = vector.load %arg9[%c0_13, %c513] : memref<40x1024xbf16, #tpu.memory_space<vmem>>, vector<40x384xbf16>
    %16 = tpu.concatenate %14, %15 in 1 : vector<40x384xbf16>, vector<40x384xbf16> -> vector<40x768xbf16>
    %c0_14 = arith.constant 0 : index
    %c2 = arith.constant 2 : index
    %17 = vector.load %arg9[%c0_14, %c2] : memref<40x1024xbf16, #tpu.memory_space<vmem>>, vector<40x384xbf16>
    %c0_15 = arith.constant 0 : index
    %c514 = arith.constant 514 : index
    %18 = vector.load %arg9[%c0_15, %c514] : memref<40x1024xbf16, #tpu.memory_space<vmem>>, vector<40x384xbf16>
    %19 = tpu.concatenate %17, %18 in 1 : vector<40x384xbf16>, vector<40x384xbf16> -> vector<40x768xbf16>
    %c0_16 = arith.constant 0 : index
    %c3 = arith.constant 3 : index
    %20 = vector.load %arg9[%c0_16, %c3] : memref<40x1024xbf16, #tpu.memory_space<vmem>>, vector<40x384xbf16>
    %c0_17 = arith.constant 0 : index
    %c515 = arith.constant 515 : index
    %21 = vector.load %arg9[%c0_17, %c515] : memref<40x1024xbf16, #tpu.memory_space<vmem>>, vector<40x384xbf16>
    %22 = tpu.concatenate %20, %21 in 1 : vector<40x384xbf16>, vector<40x384xbf16> -> vector<40x768xbf16>
    %c0_18 = arith.constant 0 : index
    %c4 = arith.constant 4 : index
    %23 = vector.load %arg9[%c0_18, %c4] : memref<40x1024xbf16, #tpu.memory_space<vmem>>, vector<40x384xbf16>
    %c0_19 = arith.constant 0 : index
    %c516 = arith.constant 516 : index
    %24 = vector.load %arg9[%c0_19, %c516] : memref<40x1024xbf16, #tpu.memory_space<vmem>>, vector<40x384xbf16>
    %25 = tpu.concatenate %23, %24 in 1 : vector<40x384xbf16>, vector<40x384xbf16> -> vector<40x768xbf16>
    %c0_20 = arith.constant 0 : index
    %c5 = arith.constant 5 : index
    %26 = vector.load %arg9[%c0_20, %c5] : memref<40x1024xbf16, #tpu.memory_space<vmem>>, vector<40x384xbf16>
    %c0_21 = arith.constant 0 : index
    %c517 = arith.constant 517 : index
    %27 = vector.load %arg9[%c0_21, %c517] : memref<40x1024xbf16, #tpu.memory_space<vmem>>, vector<40x384xbf16>
    %28 = tpu.concatenate %26, %27 in 1 : vector<40x384xbf16>, vector<40x384xbf16> -> vector<40x768xbf16>
    %c0_22 = arith.constant 0 : index
    %c6 = arith.constant 6 : index
    %29 = vector.load %arg9[%c0_22, %c6] : memref<40x1024xbf16, #tpu.memory_space<vmem>>, vector<40x384xbf16>
    %c0_23 = arith.constant 0 : index
    %c518 = arith.constant 518 : index
    %30 = vector.load %arg9[%c0_23, %c518] : memref<40x1024xbf16, #tpu.memory_space<vmem>>, vector<40x384xbf16>
    %31 = tpu.concatenate %29, %30 in 1 : vector<40x384xbf16>, vector<40x384xbf16> -> vector<40x768xbf16>
    %32 = tpu.concatenate %13, %16, %19, %22, %25, %28, %31 in 0 : vector<40x768xbf16>, vector<40x768xbf16>, vector<40x768xbf16>, vector<40x768xbf16>, vector<40x768xbf16>, vector<40x768xbf16>, vector<40x768xbf16> -> vector<280x768xbf16>
    %c0_24 = arith.constant 0 : index
    %c0_25 = arith.constant 0 : index
    %33 = vector.load %arg4[%c0_24, %c0_25] : memref<50x1960xbf16, #tpu.memory_space<vmem>>, vector<50x280xbf16>
    %cst_26 = arith.constant dense<0.000000e+00> : vector<50x768xf32>
    %34 = tpu.matmul %33, %32, %cst_26 {dimension_numbers = #tpu.dot_dimension_numbers<[1], [0], [0], [1], [0, 0, 1, 1], [], []>} : vector<50x280xbf16>, vector<280x768xbf16>, vector<50x768xf32> -> vector<50x768xf32>
    %c0_27 = arith.constant 0 : index
    %c0_28 = arith.constant 0 : index
    %35 = vector.load %arg10[%c0_27, %c0_28] : memref<50x768xf32, #tpu.memory_space<vmem>>, vector<50x768xf32>
    tpu.vector_store %arg10[%c0_27, %c0_28], %34 {strides = array<i32>} : memref<50x768xf32, #tpu.memory_space<vmem>>, vector<50x768xf32>,
    %c0_29 = arith.constant 0 : index
    %c18 = arith.constant 18 : index
    %36 = vector.load %arg9[%c0_29, %c18] : memref<40x1024xbf16, #tpu.memory_space<vmem>>, vector<40x384xbf16>
    %c0_30 = arith.constant 0 : index
    %c530 = arith.constant 530 : index
    %37 = vector.load %arg9[%c0_30, %c530] : memref<40x1024xbf16, #tpu.memory_space<vmem>>, vector<40x384xbf16>
    %38 = tpu.concatenate %36, %37 in 1 : vector<40x384xbf16>, vector<40x384xbf16> -> vector<40x768xbf16>
    %c0_31 = arith.constant 0 : index
    %c19 = arith.constant 19 : index
    %39 = vector.load %arg9[%c0_31, %c19] : memref<40x1024xbf16, #tpu.memory_space<vmem>>, vector<40x384xbf16>
    %c0_32 = arith.constant 0 : index
    %c531 = arith.constant 531 : index
    %40 = vector.load %arg9[%c0_32, %c531] : memref<40x1024xbf16, #tpu.memory_space<vmem>>, vector<40x384xbf16>
    %41 = tpu.concatenate %39, %40 in 1 : vector<40x384xbf16>, vector<40x384xbf16> -> vector<40x768xbf16>
    %c0_33 = arith.constant 0 : index
    %c20 = arith.constant 20 : index
    %42 = vector.load %arg9[%c0_33, %c20] : memref<40x1024xbf16, #tpu.memory_space<vmem>>, vector<40x384xbf16>
    %c0_34 = arith.constant 0 : index
    %c532 = arith.constant 532 : index
    %43 = vector.load %arg9[%c0_34, %c532] : memref<40x1024xbf16, #tpu.memory_space<vmem>>, vector<40x384xbf16>
    %44 = tpu.concatenate %42, %43 in 1 : vector<40x384xbf16>, vector<40x384xbf16> -> vector<40x768xbf16>
    %c0_35 = arith.constant 0 : index
    %c21 = arith.constant 21 : index
    %45 = vector.load %arg9[%c0_35, %c21] : memref<40x1024xbf16, #tpu.memory_space<vmem>>, vector<40x384xbf16>
    %c0_36 = arith.constant 0 : index
    %c533 = arith.constant 533 : index
    %46 = vector.load %arg9[%c0_36, %c533] : memref<40x1024xbf16, #tpu.memory_space<vmem>>, vector<40x384xbf16>
    %47 = tpu.concatenate %45, %46 in 1 : vector<40x384xbf16>, vector<40x384xbf16> -> vector<40x768xbf16>
    %c0_37 = arith.constant 0 : index
    %c22 = arith.constant 22 : index
    %48 = vector.load %arg9[%c0_37, %c22] : memref<40x1024xbf16, #tpu.memory_space<vmem>>, vector<40x384xbf16>
    %c0_38 = arith.constant 0 : index
    %c534 = arith.constant 534 : index
    %49 = vector.load %arg9[%c0_38, %c534] : memref<40x1024xbf16, #tpu.memory_space<vmem>>, vector<40x384xbf16>
    %50 = tpu.concatenate %48, %49 in 1 : vector<40x384xbf16>, vector<40x384xbf16> -> vector<40x768xbf16>
    %c0_39 = arith.constant 0 : index
    %c23 = arith.constant 23 : index
    %51 = vector.load %arg9[%c0_39, %c23] : memref<40x1024xbf16, #tpu.memory_space<vmem>>, vector<40x384xbf16>
    %c0_40 = arith.constant 0 : index
    %c535 = arith.constant 535 : index
    %52 = vector.load %arg9[%c0_40, %c535] : memref<40x1024xbf16, #tpu.memory_space<vmem>>, vector<40x384xbf16>
    %53 = tpu.concatenate %51, %52 in 1 : vector<40x384xbf16>, vector<40x384xbf16> -> vector<40x768xbf16>
    %c0_41 = arith.constant 0 : index
    %c24 = arith.constant 24 : index
    %54 = vector.load %arg9[%c0_41, %c24] : memref<40x1024xbf16, #tpu.memory_space<vmem>>, vector<40x384xbf16>
    %c0_42 = arith.constant 0 : index
    %c536 = arith.constant 536 : index
    %55 = vector.load %arg9[%c0_42, %c536] : memref<40x1024xbf16, #tpu.memory_space<vmem>>, vector<40x384xbf16>
    %56 = tpu.concatenate %54, %55 in 1 : vector<40x384xbf16>, vector<40x384xbf16> -> vector<40x768xbf16>
    %57 = tpu.concatenate %38, %41, %44, %47, %50, %53, %56 in 0 : vector<40x768xbf16>, vector<40x768xbf16>, vector<40x768xbf16>, vector<40x768xbf16>, vector<40x768xbf16>, vector<40x768xbf16>, vector<40x768xbf16> -> vector<280x768xbf16>
    %c0_43 = arith.constant 0 : index
    %c280 = arith.constant 280 : index
    %58 = vector.load %arg4[%c0_43, %c280] : memref<50x1960xbf16, #tpu.memory_space<vmem>>, vector<50x280xbf16>
    %cst_44 = arith.constant dense<0.000000e+00> : vector<50x768xf32>
    %59 = tpu.matmul %58, %57, %cst_44 {dimension_numbers = #tpu.dot_dimension_numbers<[1], [0], [0], [1], [0, 0, 1, 1], [], []>} : vector<50x280xbf16>, vector<280x768xbf16>, vector<50x768xf32> -> vector<50x768xf32>
    %c0_45 = arith.constant 0 : index
    %c0_46 = arith.constant 0 : index
    %60 = vector.load %arg10[%c0_45, %c0_46] : memref<50x768xf32, #tpu.memory_space<vmem>>, vector<50x768xf32>
    %61 = arith.addf %60, %59 : vector<50x768xf32>
    %c0_47 = arith.constant 0 : index
    %c0_48 = arith.constant 0 : index
    %62 = vector.load %arg10[%c0_47, %c0_48] : memref<50x768xf32, #tpu.memory_space<vmem>>, vector<50x768xf32>
    tpu.vector_store %arg10[%c0_47, %c0_48], %61 {strides = array<i32>} : memref<50x768xf32, #tpu.memory_space<vmem>>, vector<50x768xf32>,
    %c0_49 = arith.constant 0 : index
    %c36 = arith.constant 36 : index
    %63 = vector.load %arg9[%c0_49, %c36] : memref<40x1024xbf16, #tpu.memory_space<vmem>>, vector<40x384xbf16>
    %c0_50 = arith.constant 0 : index
    %c548 = arith.constant 548 : index
    %64 = vector.load %arg9[%c0_50, %c548] : memref<40x1024xbf16, #tpu.memory_space<vmem>>, vector<40x384xbf16>
    %65 = tpu.concatenate %63, %64 in 1 : vector<40x384xbf16>, vector<40x384xbf16> -> vector<40x768xbf16>
    %c0_51 = arith.constant 0 : index
    %c37 = arith.constant 37 : index
    %66 = vector.load %arg9[%c0_51, %c37] : memref<40x1024xbf16, #tpu.memory_space<vmem>>, vector<40x384xbf16>
    %c0_52 = arith.constant 0 : index
    %c549 = arith.constant 549 : index
    %67 = vector.load %arg9[%c0_52, %c549] : memref<40x1024xbf16, #tpu.memory_space<vmem>>, vector<40x384xbf16>
    %68 = tpu.concatenate %66, %67 in 1 : vector<40x384xbf16>, vector<40x384xbf16> -> vector<40x768xbf16>
    %c0_53 = arith.constant 0 : index
    %c38 = arith.constant 38 : index
    %69 = vector.load %arg9[%c0_53, %c38] : memref<40x1024xbf16, #tpu.memory_space<vmem>>, vector<40x384xbf16>
    %c0_54 = arith.constant 0 : index
    %c550 = arith.constant 550 : index
    %70 = vector.load %arg9[%c0_54, %c550] : memref<40x1024xbf16, #tpu.memory_space<vmem>>, vector<40x384xbf16>
    %71 = tpu.concatenate %69, %70 in 1 : vector<40x384xbf16>, vector<40x384xbf16> -> vector<40x768xbf16>
    %c0_55 = arith.constant 0 : index
    %c39 = arith.constant 39 : index
    %72 = vector.load %arg9[%c0_55, %c39] : memref<40x1024xbf16, #tpu.memory_space<vmem>>, vector<40x384xbf16>
    %c0_56 = arith.constant 0 : index
    %c551 = arith.constant 551 : index
    %73 = vector.load %arg9[%c0_56, %c551] : memref<40x1024xbf16, #tpu.memory_space<vmem>>, vector<40x384xbf16>
    %74 = tpu.concatenate %72, %73 in 1 : vector<40x384xbf16>, vector<40x384xbf16> -> vector<40x768xbf16>
    %c0_57 = arith.constant 0 : index
    %c40 = arith.constant 40 : index
    %75 = vector.load %arg9[%c0_57, %c40] : memref<40x1024xbf16, #tpu.memory_space<vmem>>, vector<40x384xbf16>
    %c0_58 = arith.constant 0 : index
    %c552 = arith.constant 552 : index
    %76 = vector.load %arg9[%c0_58, %c552] : memref<40x1024xbf16, #tpu.memory_space<vmem>>, vector<40x384xbf16>
    %77 = tpu.concatenate %75, %76 in 1 : vector<40x384xbf16>, vector<40x384xbf16> -> vector<40x768xbf16>
    %c0_59 = arith.constant 0 : index
    %c41 = arith.constant 41 : index
    %78 = vector.load %arg9[%c0_59, %c41] : memref<40x1024xbf16, #tpu.memory_space<vmem>>, vector<40x384xbf16>
    %c0_60 = arith.constant 0 : index
    %c553 = arith.constant 553 : index
    %79 = vector.load %arg9[%c0_60, %c553] : memref<40x1024xbf16, #tpu.memory_space<vmem>>, vector<40x384xbf16>
    %80 = tpu.concatenate %78, %79 in 1 : vector<40x384xbf16>, vector<40x384xbf16> -> vector<40x768xbf16>
    %c0_61 = arith.constant 0 : index
    %c42 = arith.constant 42 : index
    %81 = vector.load %arg9[%c0_61, %c42] : memref<40x1024xbf16, #tpu.memory_space<vmem>>, vector<40x384xbf16>
    %c0_62 = arith.constant 0 : index
    %c554 = arith.constant 554 : index
    %82 = vector.load %arg9[%c0_62, %c554] : memref<40x1024xbf16, #tpu.memory_space<vmem>>, vector<40x384xbf16>
    %83 = tpu.concatenate %81, %82 in 1 : vector<40x384xbf16>, vector<40x384xbf16> -> vector<40x768xbf16>
    %84 = tpu.concatenate %65, %68, %71, %74, %77, %80, %83 in 0 : vector<40x768xbf16>, vector<40x768xbf16>, vector<40x768xbf16>, vector<40x768xbf16>, vector<40x768xbf16>, vector<40x768xbf16>, vector<40x768xbf16> -> vector<280x768xbf16>
    %c0_63 = arith.constant 0 : index
    %c560 = arith.constant 560 : index
    %85 = vector.load %arg4[%c0_63, %c560] : memref<50x1960xbf16, #tpu.memory_space<vmem>>, vector<50x280xbf16>
    %cst_64 = arith.constant dense<0.000000e+00> : vector<50x768xf32>
    %86 = tpu.matmul %85, %84, %cst_64 {dimension_numbers = #tpu.dot_dimension_numbers<[1], [0], [0], [1], [0, 0, 1, 1], [], []>} : vector<50x280xbf16>, vector<280x768xbf16>, vector<50x768xf32> -> vector<50x768xf32>
    %c0_65 = arith.constant 0 : index
    %c0_66 = arith.constant 0 : index
    %87 = vector.load %arg10[%c0_65, %c0_66] : memref<50x768xf32, #tpu.memory_space<vmem>>, vector<50x768xf32>
    %88 = arith.addf %87, %86 : vector<50x768xf32>
    %c0_67 = arith.constant 0 : index
    %c0_68 = arith.constant 0 : index
    %89 = vector.load %arg10[%c0_67, %c0_68] : memref<50x768xf32, #tpu.memory_space<vmem>>, vector<50x768xf32>
    tpu.vector_store %arg10[%c0_67, %c0_68], %88 {strides = array<i32>} : memref<50x768xf32, #tpu.memory_space<vmem>>, vector<50x768xf32>,
    %c0_69 = arith.constant 0 : index
    %c54 = arith.constant 54 : index
    %90 = vector.load %arg9[%c0_69, %c54] : memref<40x1024xbf16, #tpu.memory_space<vmem>>, vector<40x384xbf16>
    %c0_70 = arith.constant 0 : index
    %c566 = arith.constant 566 : index
    %91 = vector.load %arg9[%c0_70, %c566] : memref<40x1024xbf16, #tpu.memory_space<vmem>>, vector<40x384xbf16>
    %92 = tpu.concatenate %90, %91 in 1 : vector<40x384xbf16>, vector<40x384xbf16> -> vector<40x768xbf16>
    %c0_71 = arith.constant 0 : index
    %c55 = arith.constant 55 : index
    %93 = vector.load %arg9[%c0_71, %c55] : memref<40x1024xbf16, #tpu.memory_space<vmem>>, vector<40x384xbf16>
    %c0_72 = arith.constant 0 : index
    %c567 = arith.constant 567 : index
    %94 = vector.load %arg9[%c0_72, %c567] : memref<40x1024xbf16, #tpu.memory_space<vmem>>, vector<40x384xbf16>
    %95 = tpu.concatenate %93, %94 in 1 : vector<40x384xbf16>, vector<40x384xbf16> -> vector<40x768xbf16>
    %c0_73 = arith.constant 0 : index
    %c56 = arith.constant 56 : index
    %96 = vector.load %arg9[%c0_73, %c56] : memref<40x1024xbf16, #tpu.memory_space<vmem>>, vector<40x384xbf16>
    %c0_74 = arith.constant 0 : index
    %c568 = arith.constant 568 : index
    %97 = vector.load %arg9[%c0_74, %c568] : memref<40x1024xbf16, #tpu.memory_space<vmem>>, vector<40x384xbf16>
    %98 = tpu.concatenate %96, %97 in 1 : vector<40x384xbf16>, vector<40x384xbf16> -> vector<40x768xbf16>
    %c0_75 = arith.constant 0 : index
    %c57 = arith.constant 57 : index
    %99 = vector.load %arg9[%c0_75, %c57] : memref<40x1024xbf16, #tpu.memory_space<vmem>>, vector<40x384xbf16>
    %c0_76 = arith.constant 0 : index
    %c569 = arith.constant 569 : index
    %100 = vector.load %arg9[%c0_76, %c569] : memref<40x1024xbf16, #tpu.memory_space<vmem>>, vector<40x384xbf16>
    %101 = tpu.concatenate %99, %100 in 1 : vector<40x384xbf16>, vector<40x384xbf16> -> vector<40x768xbf16>
    %c0_77 = arith.constant 0 : index
    %c58 = arith.constant 58 : index
    %102 = vector.load %arg9[%c0_77, %c58] : memref<40x1024xbf16, #tpu.memory_space<vmem>>, vector<40x384xbf16>
    %c0_78 = arith.constant 0 : index
    %c570 = arith.constant 570 : index
    %103 = vector.load %arg9[%c0_78, %c570] : memref<40x1024xbf16, #tpu.memory_space<vmem>>, vector<40x384xbf16>
    %104 = tpu.concatenate %102, %103 in 1 : vector<40x384xbf16>, vector<40x384xbf16> -> vector<40x768xbf16>
    %c0_79 = arith.constant 0 : index
    %c59 = arith.constant 59 : index
    %105 = vector.load %arg9[%c0_79, %c59] : memref<40x1024xbf16, #tpu.memory_space<vmem>>, vector<40x384xbf16>
    %c0_80 = arith.constant 0 : index
    %c571 = arith.constant 571 : index
    %106 = vector.load %arg9[%c0_80, %c571] : memref<40x1024xbf16, #tpu.memory_space<vmem>>, vector<40x384xbf16>
    %107 = tpu.concatenate %105, %106 in 1 : vector<40x384xbf16>, vector<40x384xbf16> -> vector<40x768xbf16>
    %c0_81 = arith.constant 0 : index
    %c60 = arith.constant 60 : index
    %108 = vector.load %arg9[%c0_81, %c60] : memref<40x1024xbf16, #tpu.memory_space<vmem>>, vector<40x384xbf16>
    %c0_82 = arith.constant 0 : index
    %c572 = arith.constant 572 : index
    %109 = vector.load %arg9[%c0_82, %c572] : memref<40x1024xbf16, #tpu.memory_space<vmem>>, vector<40x384xbf16>
    %110 = tpu.concatenate %108, %109 in 1 : vector<40x384xbf16>, vector<40x384xbf16> -> vector<40x768xbf16>
    %111 = tpu.concatenate %92, %95, %98, %101, %104, %107, %110 in 0 : vector<40x768xbf16>, vector<40x768xbf16>, vector<40x768xbf16>, vector<40x768xbf16>, vector<40x768xbf16>, vector<40x768xbf16>, vector<40x768xbf16> -> vector<280x768xbf16>
    %c0_83 = arith.constant 0 : index
    %c840 = arith.constant 840 : index
    %112 = vector.load %arg4[%c0_83, %c840] : memref<50x1960xbf16, #tpu.memory_space<vmem>>, vector<50x280xbf16>
    %cst_84 = arith.constant dense<0.000000e+00> : vector<50x768xf32>
    %113 = tpu.matmul %112, %111, %cst_84 {dimension_numbers = #tpu.dot_dimension_numbers<[1], [0], [0], [1], [0, 0, 1, 1], [], []>} : vector<50x280xbf16>, vector<280x768xbf16>, vector<50x768xf32> -> vector<50x768xf32>
    %c0_85 = arith.constant 0 : index
    %c0_86 = arith.constant 0 : index
    %114 = vector.load %arg10[%c0_85, %c0_86] : memref<50x768xf32, #tpu.memory_space<vmem>>, vector<50x768xf32>
    %115 = arith.addf %114, %113 : vector<50x768xf32>
    %c0_87 = arith.constant 0 : index
    %c0_88 = arith.constant 0 : index
    %116 = vector.load %arg10[%c0_87, %c0_88] : memref<50x768xf32, #tpu.memory_space<vmem>>, vector<50x768xf32>
    tpu.vector_store %arg10[%c0_87, %c0_88], %115 {strides = array<i32>} : memref<50x768xf32, #tpu.memory_space<vmem>>, vector<50x768xf32>,
    %c0_89 = arith.constant 0 : index
    %c72 = arith.constant 72 : index
    %117 = vector.load %arg9[%c0_89, %c72] : memref<40x1024xbf16, #tpu.memory_space<vmem>>, vector<40x384xbf16>
    %c0_90 = arith.constant 0 : index
    %c584 = arith.constant 584 : index
    %118 = vector.load %arg9[%c0_90, %c584] : memref<40x1024xbf16, #tpu.memory_space<vmem>>, vector<40x384xbf16>
    %119 = tpu.concatenate %117, %118 in 1 : vector<40x384xbf16>, vector<40x384xbf16> -> vector<40x768xbf16>
    %c0_91 = arith.constant 0 : index
    %c73 = arith.constant 73 : index
    %120 = vector.load %arg9[%c0_91, %c73] : memref<40x1024xbf16, #tpu.memory_space<vmem>>, vector<40x384xbf16>
    %c0_92 = arith.constant 0 : index
    %c585 = arith.constant 585 : index
    %121 = vector.load %arg9[%c0_92, %c585] : memref<40x1024xbf16, #tpu.memory_space<vmem>>, vector<40x384xbf16>
    %122 = tpu.concatenate %120, %121 in 1 : vector<40x384xbf16>, vector<40x384xbf16> -> vector<40x768xbf16>
    %c0_93 = arith.constant 0 : index
    %c74 = arith.constant 74 : index
    %123 = vector.load %arg9[%c0_93, %c74] : memref<40x1024xbf16, #tpu.memory_space<vmem>>, vector<40x384xbf16>
    %c0_94 = arith.constant 0 : index
    %c586 = arith.constant 586 : index
    %124 = vector.load %arg9[%c0_94, %c586] : memref<40x1024xbf16, #tpu.memory_space<vmem>>, vector<40x384xbf16>
    %125 = tpu.concatenate %123, %124 in 1 : vector<40x384xbf16>, vector<40x384xbf16> -> vector<40x768xbf16>
    %c0_95 = arith.constant 0 : index
    %c75 = arith.constant 75 : index
    %126 = vector.load %arg9[%c0_95, %c75] : memref<40x1024xbf16, #tpu.memory_space<vmem>>, vector<40x384xbf16>
    %c0_96 = arith.constant 0 : index
    %c587 = arith.constant 587 : index
    %127 = vector.load %arg9[%c0_96, %c587] : memref<40x1024xbf16, #tpu.memory_space<vmem>>, vector<40x384xbf16>
    %128 = tpu.concatenate %126, %127 in 1 : vector<40x384xbf16>, vector<40x384xbf16> -> vector<40x768xbf16>
    %c0_97 = arith.constant 0 : index
    %c76 = arith.constant 76 : index
    %129 = vector.load %arg9[%c0_97, %c76] : memref<40x1024xbf16, #tpu.memory_space<vmem>>, vector<40x384xbf16>
    %c0_98 = arith.constant 0 : index
    %c588 = arith.constant 588 : index
    %130 = vector.load %arg9[%c0_98, %c588] : memref<40x1024xbf16, #tpu.memory_space<vmem>>, vector<40x384xbf16>
    %131 = tpu.concatenate %129, %130 in 1 : vector<40x384xbf16>, vector<40x384xbf16> -> vector<40x768xbf16>
    %c0_99 = arith.constant 0 : index
    %c77 = arith.constant 77 : index
    %132 = vector.load %arg9[%c0_99, %c77] : memref<40x1024xbf16, #tpu.memory_space<vmem>>, vector<40x384xbf16>
    %c0_100 = arith.constant 0 : index
    %c589 = arith.constant 589 : index
    %133 = vector.load %arg9[%c0_100, %c589] : memref<40x1024xbf16, #tpu.memory_space<vmem>>, vector<40x384xbf16>
    %134 = tpu.concatenate %132, %133 in 1 : vector<40x384xbf16>, vector<40x384xbf16> -> vector<40x768xbf16>
    %c0_101 = arith.constant 0 : index
    %c78 = arith.constant 78 : index
    %135 = vector.load %arg9[%c0_101, %c78] : memref<40x1024xbf16, #tpu.memory_space<vmem>>, vector<40x384xbf16>
    %c0_102 = arith.constant 0 : index
    %c590 = arith.constant 590 : index
    %136 = vector.load %arg9[%c0_102, %c590] : memref<40x1024xbf16, #tpu.memory_space<vmem>>, vector<40x384xbf16>
    %137 = tpu.concatenate %135, %136 in 1 : vector<40x384xbf16>, vector<40x384xbf16> -> vector<40x768xbf16>
    %138 = tpu.concatenate %119, %122, %125, %128, %131, %134, %137 in 0 : vector<40x768xbf16>, vector<40x768xbf16>, vector<40x768xbf16>, vector<40x768xbf16>, vector<40x768xbf16>, vector<40x768xbf16>, vector<40x768xbf16> -> vector<280x768xbf16>
    %c0_103 = arith.constant 0 : index
    %c1120 = arith.constant 1120 : index
    %139 = vector.load %arg4[%c0_103, %c1120] : memref<50x1960xbf16, #tpu.memory_space<vmem>>, vector<50x280xbf16>
    %cst_104 = arith.constant dense<0.000000e+00> : vector<50x768xf32>
    %140 = tpu.matmul %139, %138, %cst_104 {dimension_numbers = #tpu.dot_dimension_numbers<[1], [0], [0], [1], [0, 0, 1, 1], [], []>} : vector<50x280xbf16>, vector<280x768xbf16>, vector<50x768xf32> -> vector<50x768xf32>
    %c0_105 = arith.constant 0 : index
    %c0_106 = arith.constant 0 : index
    %141 = vector.load %arg10[%c0_105, %c0_106] : memref<50x768xf32, #tpu.memory_space<vmem>>, vector<50x768xf32>
    %142 = arith.addf %141, %140 : vector<50x768xf32>
    %c0_107 = arith.constant 0 : index
    %c0_108 = arith.constant 0 : index
    %143 = vector.load %arg10[%c0_107, %c0_108] : memref<50x768xf32, #tpu.memory_space<vmem>>, vector<50x768xf32>
    tpu.vector_store %arg10[%c0_107, %c0_108], %142 {strides = array<i32>} : memref<50x768xf32, #tpu.memory_space<vmem>>, vector<50x768xf32>,
    %c0_109 = arith.constant 0 : index
    %c90 = arith.constant 90 : index
    %144 = vector.load %arg9[%c0_109, %c90] : memref<40x1024xbf16, #tpu.memory_space<vmem>>, vector<40x384xbf16>
    %c0_110 = arith.constant 0 : index
    %c602 = arith.constant 602 : index
    %145 = vector.load %arg9[%c0_110, %c602] : memref<40x1024xbf16, #tpu.memory_space<vmem>>, vector<40x384xbf16>
    %146 = tpu.concatenate %144, %145 in 1 : vector<40x384xbf16>, vector<40x384xbf16> -> vector<40x768xbf16>
    %c0_111 = arith.constant 0 : index
    %c91 = arith.constant 91 : index
    %147 = vector.load %arg9[%c0_111, %c91] : memref<40x1024xbf16, #tpu.memory_space<vmem>>, vector<40x384xbf16>
    %c0_112 = arith.constant 0 : index
    %c603 = arith.constant 603 : index
    %148 = vector.load %arg9[%c0_112, %c603] : memref<40x1024xbf16, #tpu.memory_space<vmem>>, vector<40x384xbf16>
    %149 = tpu.concatenate %147, %148 in 1 : vector<40x384xbf16>, vector<40x384xbf16> -> vector<40x768xbf16>
    %c0_113 = arith.constant 0 : index
    %c92 = arith.constant 92 : index
    %150 = vector.load %arg9[%c0_113, %c92] : memref<40x1024xbf16, #tpu.memory_space<vmem>>, vector<40x384xbf16>
    %c0_114 = arith.constant 0 : index
    %c604 = arith.constant 604 : index
    %151 = vector.load %arg9[%c0_114, %c604] : memref<40x1024xbf16, #tpu.memory_space<vmem>>, vector<40x384xbf16>
    %152 = tpu.concatenate %150, %151 in 1 : vector<40x384xbf16>, vector<40x384xbf16> -> vector<40x768xbf16>
    %c0_115 = arith.constant 0 : index
    %c93 = arith.constant 93 : index
    %153 = vector.load %arg9[%c0_115, %c93] : memref<40x1024xbf16, #tpu.memory_space<vmem>>, vector<40x384xbf16>
    %c0_116 = arith.constant 0 : index
    %c605 = arith.constant 605 : index
    %154 = vector.load %arg9[%c0_116, %c605] : memref<40x1024xbf16, #tpu.memory_space<vmem>>, vector<40x384xbf16>
    %155 = tpu.concatenate %153, %154 in 1 : vector<40x384xbf16>, vector<40x384xbf16> -> vector<40x768xbf16>
    %c0_117 = arith.constant 0 : index
    %c94 = arith.constant 94 : index
    %156 = vector.load %arg9[%c0_117, %c94] : memref<40x1024xbf16, #tpu.memory_space<vmem>>, vector<40x384xbf16>
    %c0_118 = arith.constant 0 : index
    %c606 = arith.constant 606 : index
    %157 = vector.load %arg9[%c0_118, %c606] : memref<40x1024xbf16, #tpu.memory_space<vmem>>, vector<40x384xbf16>
    %158 = tpu.concatenate %156, %157 in 1 : vector<40x384xbf16>, vector<40x384xbf16> -> vector<40x768xbf16>
    %c0_119 = arith.constant 0 : index
    %c95 = arith.constant 95 : index
    %159 = vector.load %arg9[%c0_119, %c95] : memref<40x1024xbf16, #tpu.memory_space<vmem>>, vector<40x384xbf16>
    %c0_120 = arith.constant 0 : index
    %c607 = arith.constant 607 : index
    %160 = vector.load %arg9[%c0_120, %c607] : memref<40x1024xbf16, #tpu.memory_space<vmem>>, vector<40x384xbf16>
    %161 = tpu.concatenate %159, %160 in 1 : vector<40x384xbf16>, vector<40x384xbf16> -> vector<40x768xbf16>
    %c0_121 = arith.constant 0 : index
    %c96 = arith.constant 96 : index
    %162 = vector.load %arg9[%c0_121, %c96] : memref<40x1024xbf16, #tpu.memory_space<vmem>>, vector<40x384xbf16>
    %c0_122 = arith.constant 0 : index
    %c608 = arith.constant 608 : index
    %163 = vector.load %arg9[%c0_122, %c608] : memref<40x1024xbf16, #tpu.memory_space<vmem>>, vector<40x384xbf16>
    %164 = tpu.concatenate %162, %163 in 1 : vector<40x384xbf16>, vector<40x384xbf16> -> vector<40x768xbf16>
    %165 = tpu.concatenate %146, %149, %152, %155, %158, %161, %164 in 0 : vector<40x768xbf16>, vector<40x768xbf16>, vector<40x768xbf16>, vector<40x768xbf16>, vector<40x768xbf16>, vector<40x768xbf16>, vector<40x768xbf16> -> vector<280x768xbf16>
    %c0_123 = arith.constant 0 : index
    %c1400 = arith.constant 1400 : index
    %166 = vector.load %arg4[%c0_123, %c1400] : memref<50x1960xbf16, #tpu.memory_space<vmem>>, vector<50x280xbf16>
    %cst_124 = arith.constant dense<0.000000e+00> : vector<50x768xf32>
    %167 = tpu.matmul %166, %165, %cst_124 {dimension_numbers = #tpu.dot_dimension_numbers<[1], [0], [0], [1], [0, 0, 1, 1], [], []>} : vector<50x280xbf16>, vector<280x768xbf16>, vector<50x768xf32> -> vector<50x768xf32>
    %c0_125 = arith.constant 0 : index
    %c0_126 = arith.constant 0 : index
    %168 = vector.load %arg10[%c0_125, %c0_126] : memref<50x768xf32, #tpu.memory_space<vmem>>, vector<50x768xf32>
    %169 = arith.addf %168, %167 : vector<50x768xf32>
    %c0_127 = arith.constant 0 : index
    %c0_128 = arith.constant 0 : index
    %170 = vector.load %arg10[%c0_127, %c0_128] : memref<50x768xf32, #tpu.memory_space<vmem>>, vector<50x768xf32>
    tpu.vector_store %arg10[%c0_127, %c0_128], %169 {strides = array<i32>} : memref<50x768xf32, #tpu.memory_space<vmem>>, vector<50x768xf32>,
    %c0_129 = arith.constant 0 : index
    %c108 = arith.constant 108 : index
    %171 = vector.load %arg9[%c0_129, %c108] : memref<40x1024xbf16, #tpu.memory_space<vmem>>, vector<40x384xbf16>
    %c0_130 = arith.constant 0 : index
    %c620 = arith.constant 620 : index
    %172 = vector.load %arg9[%c0_130, %c620] : memref<40x1024xbf16, #tpu.memory_space<vmem>>, vector<40x384xbf16>
    %173 = tpu.concatenate %171, %172 in 1 : vector<40x384xbf16>, vector<40x384xbf16> -> vector<40x768xbf16>
    %c0_131 = arith.constant 0 : index
    %c109 = arith.constant 109 : index
    %174 = vector.load %arg9[%c0_131, %c109] : memref<40x1024xbf16, #tpu.memory_space<vmem>>, vector<40x384xbf16>
    %c0_132 = arith.constant 0 : index
    %c621 = arith.constant 621 : index
    %175 = vector.load %arg9[%c0_132, %c621] : memref<40x1024xbf16, #tpu.memory_space<vmem>>, vector<40x384xbf16>
    %176 = tpu.concatenate %174, %175 in 1 : vector<40x384xbf16>, vector<40x384xbf16> -> vector<40x768xbf16>
    %c0_133 = arith.constant 0 : index
    %c110 = arith.constant 110 : index
    %177 = vector.load %arg9[%c0_133, %c110] : memref<40x1024xbf16, #tpu.memory_space<vmem>>, vector<40x384xbf16>
    %c0_134 = arith.constant 0 : index
    %c622 = arith.constant 622 : index
    %178 = vector.load %arg9[%c0_134, %c622] : memref<40x1024xbf16, #tpu.memory_space<vmem>>, vector<40x384xbf16>
    %179 = tpu.concatenate %177, %178 in 1 : vector<40x384xbf16>, vector<40x384xbf16> -> vector<40x768xbf16>
    %c0_135 = arith.constant 0 : index
    %c111 = arith.constant 111 : index
    %180 = vector.load %arg9[%c0_135, %c111] : memref<40x1024xbf16, #tpu.memory_space<vmem>>, vector<40x384xbf16>
    %c0_136 = arith.constant 0 : index
    %c623 = arith.constant 623 : index
    %181 = vector.load %arg9[%c0_136, %c623] : memref<40x1024xbf16, #tpu.memory_space<vmem>>, vector<40x384xbf16>
    %182 = tpu.concatenate %180, %181 in 1 : vector<40x384xbf16>, vector<40x384xbf16> -> vector<40x768xbf16>
    %c0_137 = arith.constant 0 : index
    %c112 = arith.constant 112 : index
    %183 = vector.load %arg9[%c0_137, %c112] : memref<40x1024xbf16, #tpu.memory_space<vmem>>, vector<40x384xbf16>
    %c0_138 = arith.constant 0 : index
    %c624 = arith.constant 624 : index
    %184 = vector.load %arg9[%c0_138, %c624] : memref<40x1024xbf16, #tpu.memory_space<vmem>>, vector<40x384xbf16>
    %185 = tpu.concatenate %183, %184 in 1 : vector<40x384xbf16>, vector<40x384xbf16> -> vector<40x768xbf16>
    %c0_139 = arith.constant 0 : index
    %c113 = arith.constant 113 : index
    %186 = vector.load %arg9[%c0_139, %c113] : memref<40x1024xbf16, #tpu.memory_space<vmem>>, vector<40x384xbf16>
    %c0_140 = arith.constant 0 : index
    %c625 = arith.constant 625 : index
    %187 = vector.load %arg9[%c0_140, %c625] : memref<40x1024xbf16, #tpu.memory_space<vmem>>, vector<40x384xbf16>
    %188 = tpu.concatenate %186, %187 in 1 : vector<40x384xbf16>, vector<40x384xbf16> -> vector<40x768xbf16>
    %c0_141 = arith.constant 0 : index
    %c114 = arith.constant 114 : index
    %189 = vector.load %arg9[%c0_141, %c114] : memref<40x1024xbf16, #tpu.memory_space<vmem>>, vector<40x384xbf16>
    %c0_142 = arith.constant 0 : index
    %c626 = arith.constant 626 : index
    %190 = vector.load %arg9[%c0_142, %c626] : memref<40x1024xbf16, #tpu.memory_space<vmem>>, vector<40x384xbf16>
    %191 = tpu.concatenate %189, %190 in 1 : vector<40x384xbf16>, vector<40x384xbf16> -> vector<40x768xbf16>
    %192 = tpu.concatenate %173, %176, %179, %182, %185, %188, %191 in 0 : vector<40x768xbf16>, vector<40x768xbf16>, vector<40x768xbf16>, vector<40x768xbf16>, vector<40x768xbf16>, vector<40x768xbf16>, vector<40x768xbf16> -> vector<280x768xbf16>
    %c0_143 = arith.constant 0 : index
    %c1680 = arith.constant 1680 : index
    %193 = vector.load %arg4[%c0_143, %c1680] : memref<50x1960xbf16, #tpu.memory_space<vmem>>, vector<50x280xbf16>
    %cst_144 = arith.constant dense<0.000000e+00> : vector<50x768xf32>
    %194 = tpu.matmul %193, %192, %cst_144 {dimension_numbers = #tpu.dot_dimension_numbers<[1], [0], [0], [1], [0, 0, 1, 1], [], []>} : vector<50x280xbf16>, vector<280x768xbf16>, vector<50x768xf32> -> vector<50x768xf32>
    %c0_145 = arith.constant 0 : index
    %c0_146 = arith.constant 0 : index
    %195 = vector.load %arg10[%c0_145, %c0_146] : memref<50x768xf32, #tpu.memory_space<vmem>>, vector<50x768xf32>
    %196 = arith.addf %195, %194 : vector<50x768xf32>
    %c0_147 = arith.constant 0 : index
    %c0_148 = arith.constant 0 : index
    %197 = vector.load %arg10[%c0_147, %c0_148] : memref<50x768xf32, #tpu.memory_space<vmem>>, vector<50x768xf32>
    tpu.vector_store %arg10[%c0_147, %c0_148], %196 {strides = array<i32>} : memref<50x768xf32, #tpu.memory_space<vmem>>, vector<50x768xf32>,
    %c0_149 = arith.constant 0 : index
    %c0_150 = arith.constant 0 : index
    %198 = vector.load %arg5[%c0_149, %c0_150] : memref<50x1xf32, #tpu.memory_space<vmem>>, vector<40x1xf32>
    %c40_151 = arith.constant 40 : index
    %c0_152 = arith.constant 0 : index
    %199 = vector.load %arg5[%c40_151, %c0_152] : memref<50x1xf32, #tpu.memory_space<vmem>>, vector<10x1xf32>
    %c0_153 = arith.constant 0 : index
    %c0_154 = arith.constant 0 : index
    %200 = vector.load %arg6[%c0_153, %c0_154] : memref<1x384xf32, #tpu.memory_space<vmem>>, vector<1x384xf32>
    %c0_155 = arith.constant 0 : index
    %c0_156 = arith.constant 0 : index
    %201 = vector.load %arg7[%c0_155, %c0_156] : memref<384x8xf32, #tpu.memory_space<vmem>>, vector<384x8xf32>
    %c40_157 = arith.constant 40 : index
    %c0_158 = arith.constant 0 : index
    %202 = vector.load %arg10[%c40_157, %c0_158] : memref<50x768xf32, #tpu.memory_space<vmem>>, vector<10x384xf32>
    %203 = vector.broadcast %199 : vector<10x1xf32> to vector<10x384xf32>
    %204 = arith.addf %202, %203 : vector<10x384xf32>
    %cst_159 = arith.constant 1.000000e+01 : f32
    %205 = vector.broadcast %cst_159 : f32 to vector<10x384xf32>
    %206 = arith.mulf %204, %205 : vector<10x384xf32>
    %207 = vector.broadcast %200 : vector<1x384xf32> to vector<10x384xf32>
    %208 = arith.addf %206, %207 : vector<10x384xf32>
    %cst_160 = arith.constant dense<0xFF800000> : vector<10xf32>
    %209 = vector.multi_reduction <maximumf>, %208, %cst_160 [1] : vector<10x384xf32> to vector<10xf32>
    %210 = vector.shape_cast %209 : vector<10xf32> to vector<10x1xf32>
    %211 = vector.broadcast %210 : vector<10x1xf32> to vector<10x384xf32>
    %212 = arith.subf %208, %211 : vector<10x384xf32>
    %213 = math.exp %212 : vector<10x384xf32>
    %cst_161 = arith.constant dense<0.000000e+00> : vector<10x8xf32>
    %214 = tpu.matmul %213, %201, %cst_161 {dimension_numbers = #tpu.dot_dimension_numbers<[1], [0], [0], [1], [0, 0, 1, 1], [], []>} : vector<10x384xf32>, vector<384x8xf32>, vector<10x8xf32> -> vector<10x8xf32>
    %215 = vector.extract_strided_slice %214 {offsets = [0, 0], sizes = [10, 1], strides = [1, 1]} : vector<10x8xf32> to vector<10x1xf32>
    %216 = tpu.reciprocal %215 {approx = true} : vector<10x1xf32> -> vector<10x1xf32>
    %217 = vector.extract_strided_slice %214 {offsets = [0, 1], sizes = [10, 2], strides = [1, 1]} : vector<10x8xf32> to vector<10x2xf32>
    %218 = vector.broadcast %216 : vector<10x1xf32> to vector<10x2xf32>
    %219 = arith.mulf %217, %218 : vector<10x2xf32>
    %c0_162 = arith.constant 0 : index
    %c0_163 = arith.constant 0 : index
    %220 = vector.load %arg10[%c0_162, %c0_163] : memref<50x768xf32, #tpu.memory_space<vmem>>, vector<40x384xf32>
    %221 = vector.broadcast %198 : vector<40x1xf32> to vector<40x384xf32>
    %222 = arith.addf %220, %221 : vector<40x384xf32>
    %223 = tpu.concatenate %213, %213, %213, %213 in 0 : vector<10x384xf32>, vector<10x384xf32>, vector<10x384xf32>, vector<10x384xf32> -> vector<40x384xf32>
    %224 = arith.mulf %222, %223 : vector<40x384xf32>
    %cst_164 = arith.constant dense<0.000000e+00> : vector<40xf32>
    %225 = vector.multi_reduction <add>, %224, %cst_164 [1] : vector<40x384xf32> to vector<40xf32>
    %226 = vector.shape_cast %225 : vector<40xf32> to vector<40x1xf32>
    %227 = vector.extract_strided_slice %226 {offsets = [0, 0], sizes = [10, 1], strides = [1, 1]} : vector<40x1xf32> to vector<10x1xf32>
    %228 = vector.extract_strided_slice %226 {offsets = [10, 0], sizes = [10, 1], strides = [1, 1]} : vector<40x1xf32> to vector<10x1xf32>
    %229 = vector.extract_strided_slice %226 {offsets = [20, 0], sizes = [10, 1], strides = [1, 1]} : vector<40x1xf32> to vector<10x1xf32>
    %230 = vector.extract_strided_slice %226 {offsets = [30, 0], sizes = [10, 1], strides = [1, 1]} : vector<40x1xf32> to vector<10x1xf32>
    %231 = tpu.concatenate %227, %228, %229, %230 in 1 : vector<10x1xf32>, vector<10x1xf32>, vector<10x1xf32>, vector<10x1xf32> -> vector<10x4xf32>
    %232 = vector.broadcast %216 : vector<10x1xf32> to vector<10x4xf32>
    %233 = arith.mulf %231, %232 : vector<10x4xf32>
    %cst_165 = arith.constant 0.000000e+00 : f32
    %234 = vector.broadcast %cst_165 : f32 to vector<10x2xf32>
    %235 = tpu.concatenate %219, %233, %234 in 1 : vector<10x2xf32>, vector<10x4xf32>, vector<10x2xf32> -> vector<10x8xf32>
    %c0_166 = arith.constant 0 : index
    %c0_167 = arith.constant 0 : index
    %c0_168 = arith.constant 0 : index
    %236 = vector.load %arg8[%c0_166, %c0_167, %c0_168] : memref<2x10x8xf32, #tpu.memory_space<vmem>>, vector<1x10x8xf32>
    %237 = vector.shape_cast %236 : vector<1x10x8xf32> to vector<10x8xf32>
    %238 = vector.shape_cast %235 : vector<10x8xf32> to vector<1x10x8xf32>
    tpu.vector_store %arg8[%c0_166, %c0_167, %c0_168], %238 {strides = array<i32>} : memref<2x10x8xf32, #tpu.memory_space<vmem>>, vector<1x10x8xf32>,
    %c40_169 = arith.constant 40 : index
    %c384 = arith.constant 384 : index
    %239 = vector.load %arg10[%c40_169, %c384] : memref<50x768xf32, #tpu.memory_space<vmem>>, vector<10x384xf32>
    %240 = vector.broadcast %199 : vector<10x1xf32> to vector<10x384xf32>
    %241 = arith.addf %239, %240 : vector<10x384xf32>
    %cst_170 = arith.constant 1.000000e+01 : f32
    %242 = vector.broadcast %cst_170 : f32 to vector<10x384xf32>
    %243 = arith.mulf %241, %242 : vector<10x384xf32>
    %244 = vector.broadcast %200 : vector<1x384xf32> to vector<10x384xf32>
    %245 = arith.addf %243, %244 : vector<10x384xf32>
    %cst_171 = arith.constant dense<0xFF800000> : vector<10xf32>
    %246 = vector.multi_reduction <maximumf>, %245, %cst_171 [1] : vector<10x384xf32> to vector<10xf32>
    %247 = vector.shape_cast %246 : vector<10xf32> to vector<10x1xf32>
    %248 = vector.broadcast %247 : vector<10x1xf32> to vector<10x384xf32>
    %249 = arith.subf %245, %248 : vector<10x384xf32>
    %250 = math.exp %249 : vector<10x384xf32>
    %cst_172 = arith.constant dense<0.000000e+00> : vector<10x8xf32>
    %251 = tpu.matmul %250, %201, %cst_172 {dimension_numbers = #tpu.dot_dimension_numbers<[1], [0], [0], [1], [0, 0, 1, 1], [], []>} : vector<10x384xf32>, vector<384x8xf32>, vector<10x8xf32> -> vector<10x8xf32>
    %252 = vector.extract_strided_slice %251 {offsets = [0, 0], sizes = [10, 1], strides = [1, 1]} : vector<10x8xf32> to vector<10x1xf32>
    %253 = tpu.reciprocal %252 {approx = true} : vector<10x1xf32> -> vector<10x1xf32>
    %254 = vector.extract_strided_slice %251 {offsets = [0, 1], sizes = [10, 2], strides = [1, 1]} : vector<10x8xf32> to vector<10x2xf32>
    %255 = vector.broadcast %253 : vector<10x1xf32> to vector<10x2xf32>
    %256 = arith.mulf %254, %255 : vector<10x2xf32>
    %c0_173 = arith.constant 0 : index
    %c384_174 = arith.constant 384 : index
    %257 = vector.load %arg10[%c0_173, %c384_174] : memref<50x768xf32, #tpu.memory_space<vmem>>, vector<40x384xf32>
    %258 = vector.broadcast %198 : vector<40x1xf32> to vector<40x384xf32>
    %259 = arith.addf %257, %258 : vector<40x384xf32>
    %260 = tpu.concatenate %250, %250, %250, %250 in 0 : vector<10x384xf32>, vector<10x384xf32>, vector<10x384xf32>, vector<10x384xf32> -> vector<40x384xf32>
    %261 = arith.mulf %259, %260 : vector<40x384xf32>
    %cst_175 = arith.constant dense<0.000000e+00> : vector<40xf32>
    %262 = vector.multi_reduction <add>, %261, %cst_175 [1] : vector<40x384xf32> to vector<40xf32>
    %263 = vector.shape_cast %262 : vector<40xf32> to vector<40x1xf32>
    %264 = vector.extract_strided_slice %263 {offsets = [0, 0], sizes = [10, 1], strides = [1, 1]} : vector<40x1xf32> to vector<10x1xf32>
    %265 = vector.extract_strided_slice %263 {offsets = [10, 0], sizes = [10, 1], strides = [1, 1]} : vector<40x1xf32> to vector<10x1xf32>
    %266 = vector.extract_strided_slice %263 {offsets = [20, 0], sizes = [10, 1], strides = [1, 1]} : vector<40x1xf32> to vector<10x1xf32>
    %267 = vector.extract_strided_slice %263 {offsets = [30, 0], sizes = [10, 1], strides = [1, 1]} : vector<40x1xf32> to vector<10x1xf32>
    %268 = tpu.concatenate %264, %265, %266, %267 in 1 : vector<10x1xf32>, vector<10x1xf32>, vector<10x1xf32>, vector<10x1xf32> -> vector<10x4xf32>
    %269 = vector.broadcast %253 : vector<10x1xf32> to vector<10x4xf32>
    %270 = arith.mulf %268, %269 : vector<10x4xf32>
    %cst_176 = arith.constant 0.000000e+00 : f32
    %271 = vector.broadcast %cst_176 : f32 to vector<10x2xf32>
    %272 = tpu.concatenate %256, %270, %271 in 1 : vector<10x2xf32>, vector<10x4xf32>, vector<10x2xf32> -> vector<10x8xf32>
    %c1_177 = arith.constant 1 : index
    %c0_178 = arith.constant 0 : index
    %c0_179 = arith.constant 0 : index
    %273 = vector.load %arg8[%c1_177, %c0_178, %c0_179] : memref<2x10x8xf32, #tpu.memory_space<vmem>>, vector<1x10x8xf32>
    %274 = vector.shape_cast %273 : vector<1x10x8xf32> to vector<10x8xf32>
    %275 = vector.shape_cast %272 : vector<10x8xf32> to vector<1x10x8xf32>
    tpu.vector_store %arg8[%c1_177, %c0_178, %c0_179], %275 {strides = array<i32>} : memref<2x10x8xf32, #tpu.memory_space<vmem>>, vector<1x10x8xf32>,
    return
  }
  func.func @transform_0(%arg0: i32) -> (i32, i32, i32) {
    %c0_i32 = arith.constant 0 : i32
    %c0_i32_0 = arith.constant 0 : i32
    %c0_i32_1 = arith.constant 0 : i32
    return %arg0, %c0_i32, %c0_i32_0 : i32, i32, i32
  }
  func.func @transform_1(%arg0: i32) -> (i32, i32) {
    %c0_i32 = arith.constant 0 : i32
    %c0_i32_0 = arith.constant 0 : i32
    %c0_i32_1 = arith.constant 0 : i32
    return %c0_i32, %c0_i32_0 : i32, i32
  }
  func.func @transform_2(%arg0: i32) -> (i32, i32) {
    %c0_i32 = arith.constant 0 : i32
    %c0_i32_0 = arith.constant 0 : i32
    %c0_i32_1 = arith.constant 0 : i32
    return %c0_i32, %c0_i32_0 : i32, i32
  }
  func.func @transform_3(%arg0: i32) -> (i32, i32) {
    %c0_i32 = arith.constant 0 : i32
    %c0_i32_0 = arith.constant 0 : i32
    %c0_i32_1 = arith.constant 0 : i32
    return %c0_i32, %c0_i32_0 : i32, i32
  }
  func.func @transform_4(%arg0: i32) -> (i32, i32) {
    %c0_i32 = arith.constant 0 : i32
    %c0_i32_0 = arith.constant 0 : i32
    %c0_i32_1 = arith.constant 0 : i32
    return %c0_i32, %c0_i32_0 : i32, i32
  }
  func.func @transform_5(%arg0: i32) -> (i32, i32) {
    %c0_i32 = arith.constant 0 : i32
    %c0_i32_0 = arith.constant 0 : i32
    %c0_i32_1 = arith.constant 0 : i32
    return %c0_i32, %c0_i32_0 : i32, i32
  }
  func.func @transform_6(%arg0: i32) -> (i32, i32) {
    %c0_i32 = arith.constant 0 : i32
    %c0_i32_0 = arith.constant 0 : i32
    %c0_i32_1 = arith.constant 0 : i32
    return %c0_i32, %c0_i32_0 : i32, i32
  }
  func.func @transform_7(%arg0: i32) -> (i32, i32, i32) {
    %c0_i32 = arith.constant 0 : i32
    %c0_i32_0 = arith.constant 0 : i32
    %c0_i32_1 = arith.constant 0 : i32
    return %arg0, %c0_i32, %c0_i32_0 : i32, i32, i32
  }
}

</mosaic_0001>

<llo_original>
// kernel: stn_kp_detector_forward.1
$region0: #{stn_kp_detector_forward.1}
  #allocation0 [shape = 'u32[]', space=smem, size = 0x4, offset = 0x4, fixed_abs, tag = 'smem constant byte address 0x4 - core index']
  #allocation1 [shape = 'u32[144,128]{1,0:T(1,128)}', space=vmem, size = 0x12000, scoped, tag = 'internal scratch']
  #allocation2 [shape = 'bf16[40,1024]{1,0:T(8,128)(2,1)}', space=vmem, size = 0x14000, scoped, tag = 'scratch operand']
  #allocation3 [shape = 'f32[50,768]{1,0:T(8,128)}', space=vmem, size = 0x2a000, scoped, tag = 'scratch operand']
  %s0 = inlined_call_operand.vmem [shape: bf16[1,72,1024], index: 0, kind: input, shape index: {}]
  %s1 = inlined_call_operand.vmem [shape: bf16[40,72], index: 1, kind: input, shape index: {}]
  %s2 = inlined_call_operand.vmem [shape: f32[40,1], index: 2, kind: input, shape index: {}]
  %s3 = inlined_call_operand.vmem [shape: bf16[50,1960], index: 3, kind: input, shape index: {}]
  %s4 = inlined_call_operand.vmem [shape: f32[50,1], index: 4, kind: input, shape index: {}]
  %s5 = inlined_call_operand.vmem [shape: f32[1,384], index: 5, kind: input, shape index: {}]
  %s6 = inlined_call_operand.vmem [shape: f32[384,8], index: 6, kind: input, shape index: {}]
  %s7 = inlined_call_operand.vmem [shape: f32[2,10,8], index: 7, kind: output, shape index: {}]
  %s8 = sld [smem:[#allocation0]]
  $region38: #{stn_kp_detector_forward.1} parent=0
    _
  %s10 = ssub.s32 1, %s8
  %s11 = scalar_select 0, %s10, %s8
  // Predicated region
  $region2: #{stn_kp_detector_forward.1} parent=0 // pred_check
    _
  $region3: #{stn_kp_detector_forward.1} parent=0 // pred_check_branch
    %13 = sbr.rel (0) target = $region5
  $region4: #{stn_kp_detector_forward.1} parent=0 // pred_region
    _
  $region5: #{stn_kp_detector_forward.1} parent=0 // pred_fallthru
    _
  // Predicated region
  $region6: #{stn_kp_detector_forward.1} parent=0 // pred_check
    _
  $region7: #{stn_kp_detector_forward.1} parent=0 // pred_check_branch
    %15 = sbr.rel (0) target = $region9
  $region8: #{stn_kp_detector_forward.1} parent=0 // pred_region
    _
  $region9: #{stn_kp_detector_forward.1} parent=0 // pred_fallthru
    _
  // Predicated region
  $region10: #{stn_kp_detector_forward.1} parent=0 // pred_check
    _
  $region11: #{stn_kp_detector_forward.1} parent=0 // pred_check_branch
    %17 = sbr.rel (0) target = $region13
  $region12: #{stn_kp_detector_forward.1} parent=0 // pred_region
    _
  $region13: #{stn_kp_detector_forward.1} parent=0 // pred_fallthru
    _
  // Predicated region
  $region14: #{stn_kp_detector_forward.1} parent=0 // pred_check
    _
  $region15: #{stn_kp_detector_forward.1} parent=0 // pred_check_branch
    %19 = sbr.rel (0) target = $region17
  $region16: #{stn_kp_detector_forward.1} parent=0 // pred_region
    _
  $region17: #{stn_kp_detector_forward.1} parent=0 // pred_fallthru
    _
  // Predicated region
  $region18: #{stn_kp_detector_forward.1} parent=0 // pred_check
    _
  $region19: #{stn_kp_detector_forward.1} parent=0 // pred_check_branch
    %21 = sbr.rel (0) target = $region21
  $region20: #{stn_kp_detector_forward.1} parent=0 // pred_region
    _
  $region21: #{stn_kp_detector_forward.1} parent=0 // pred_fallthru
    _
  // Predicated region
  $region22: #{stn_kp_detector_forward.1} parent=0 // pred_check
    _
  $region23: #{stn_kp_detector_forward.1} parent=0 // pred_check_branch
    %23 = sbr.rel (0) target = $region25
  $region24: #{stn_kp_detector_forward.1} parent=0 // pred_region
    _
  $region25: #{stn_kp_detector_forward.1} parent=0 // pred_fallthru
    _
  // Predicated region
  $region26: #{stn_kp_detector_forward.1} parent=0 // pred_check
    _
  $region27: #{stn_kp_detector_forward.1} parent=0 // pred_check_branch
    %25 = sbr.rel (0) target = $region29
  $region28: #{stn_kp_detector_forward.1} parent=0 // pred_region
    _
  $region29: #{stn_kp_detector_forward.1} parent=0 // pred_fallthru
    _
  %v27 = vld [vmem:[%s1] sm:$0xf]
  %v28 = vld [vmem:[%s1 + $0x4] sm:$0xf]
  %v29 = vld [vmem:[%s1 + $0x8] sm:$0xf]
  %v30 = vld [vmem:[%s1 + $0xc] sm:$0xf]
  %v31 = vld [vmem:[%s1 + $0x10] sm:$0xf]
  %v32 = vld [vmem:[%s0] sm:$0xff]
  %v33 = vld [vmem:[%s0 + $0x8] sm:$0xff]
  %v34 = vld [vmem:[%s0 + $0x10] sm:$0xff]
  %v35 = vld [vmem:[%s0 + $0x18] sm:$0xff]
  %v36 = vld [vmem:[%s0 + $0x20] sm:$0xff]
  %v37 = vld [vmem:[%s0 + $0x28] sm:$0xff]
  %v38 = vld [vmem:[%s0 + $0x30] sm:$0xff]
  %v39 = vld [vmem:[%s0 + $0x38] sm:$0xff]
  %v40 = vld [vmem:[%s0 + $0x40] sm:$0xff]
  %v41 = vld [vmem:[%s0 + $0x48] sm:$0xff]
  %v42 = vld [vmem:[%s0 + $0x50] sm:$0xff]
  %v43 = vld [vmem:[%s0 + $0x58] sm:$0xff]
  %v44 = vld [vmem:[%s0 + $0x60] sm:$0xff]
  %v45 = vld [vmem:[%s0 + $0x68] sm:$0xff]
  %v46 = vld [vmem:[%s0 + $0x70] sm:$0xff]
  %v47 = vld [vmem:[%s0 + $0x78] sm:$0xff]
  %v48 = vld [vmem:[%s0 + $0x80] sm:$0xff]
  %v49 = vld [vmem:[%s0 + $0x88] sm:$0xff]
  %v50 = vld [vmem:[%s0 + $0x90] sm:$0xff]
  %v51 = vld [vmem:[%s0 + $0x98] sm:$0xff]
  %v52 = vld [vmem:[%s0 + $0xa0] sm:$0xff]
  %v53 = vld [vmem:[%s0 + $0xa8] sm:$0xff]
  %v54 = vld [vmem:[%s0 + $0xb0] sm:$0xff]
  %v55 = vld [vmem:[%s0 + $0xb8] sm:$0xff]
  %v56 = vld [vmem:[%s0 + $0xc0] sm:$0xff]
  %v57 = vld [vmem:[%s0 + $0xc8] sm:$0xff]
  %v58 = vld [vmem:[%s0 + $0xd0] sm:$0xff]
  %v59 = vld [vmem:[%s0 + $0xd8] sm:$0xff]
  %v60 = vld [vmem:[%s0 + $0xe0] sm:$0xff]
  %v61 = vld [vmem:[%s0 + $0xe8] sm:$0xff]
  %v62 = vld [vmem:[%s0 + $0xf0] sm:$0xff]
  %v63 = vld [vmem:[%s0 + $0xf8] sm:$0xff]
  %v64 = vld [vmem:[%s0 + $0x100] sm:$0xff]
  %v65 = vld [vmem:[%s0 + $0x108] sm:$0xff]
  %v66 = vld [vmem:[%s0 + $0x110] sm:$0xff]
  %v67 = vld [vmem:[%s0 + $0x118] sm:$0xff]
  %v68 = vld [vmem:[%s2] sm:$0xff]
  %v69 = vld [vmem:[%s2 + $0x8] sm:$0xff]
  %v70 = vld [vmem:[%s2 + $0x10] sm:$0xff]
  %v71 = vld [vmem:[%s2 + $0x18] sm:$0xff]
  %v72 = vld [vmem:[%s2 + $0x20] sm:$0xff]
  %74 = vset.pattern.permute.xlu0 0
  %75 = vperm.xlu0 %74, %v68
  %v76 = vpop.permute.xlu0 %75
  %79 = vset.pattern.permute.xlu0 0
  %80 = vperm.xlu0 %79, %v69
  %v81 = vpop.permute.xlu0 %80
  %84 = vset.pattern.permute.xlu0 0
  %85 = vperm.xlu0 %84, %v70
  %v86 = vpop.permute.xlu0 %85
  %89 = vset.pattern.permute.xlu0 0
  %90 = vperm.xlu0 %89, %v71
  %v91 = vpop.permute.xlu0 %90
  %94 = vset.pattern.permute.xlu0 0
  %95 = vperm.xlu0 %94, %v72
  %v96 = vpop.permute.xlu0 %95
  %v103 = vunpack.c.l.b16 %v27
  %v104 = vunpack.c.l.b16 %v28
  %v105 = vunpack.c.l.b16 %v29
  %v106 = vunpack.c.l.b16 %v30
  %v107 = vunpack.c.l.b16 %v31
  %v108 = vpack.c.b16 %v104, %v103
  %v109 = vpack.c.b16 %v106, %v105
  %v110 = vpack.c.b16 %v107, %v107
  %v147 = vunpack.c.l.b16 %v32
  %v148 = vunpack.c.h.b16 %v32
  %v149 = vunpack.c.l.b16 %v33
  %v150 = vunpack.c.h.b16 %v33
  %v151 = vunpack.c.l.b16 %v34
  %v152 = vunpack.c.h.b16 %v34
  %v153 = vunpack.c.l.b16 %v35
  %v154 = vunpack.c.h.b16 %v35
  %v155 = vunpack.c.l.b16 %v36
  %v156 = vunpack.c.h.b16 %v36
  %v157 = vunpack.c.l.b16 %v37
  %v158 = vunpack.c.h.b16 %v37
  %v159 = vunpack.c.l.b16 %v38
  %v160 = vunpack.c.h.b16 %v38
  %v161 = vunpack.c.l.b16 %v39
  %v162 = vunpack.c.h.b16 %v39
  %v163 = vunpack.c.l.b16 %v40
  %v164 = vunpack.c.h.b16 %v40
  %v165 = vunpack.c.l.b16 %v41
  %v166 = vunpack.c.h.b16 %v41
  %v167 = vunpack.c.l.b16 %v42
  %v168 = vunpack.c.h.b16 %v42
  %v169 = vunpack.c.l.b16 %v43
  %v170 = vunpack.c.h.b16 %v43
  %v171 = vunpack.c.l.b16 %v44
  %v172 = vunpack.c.h.b16 %v44
  %v173 = vunpack.c.l.b16 %v45
  %v174 = vunpack.c.h.b16 %v45
  %v175 = vunpack.c.l.b16 %v46
  %v176 = vunpack.c.h.b16 %v46
  %v177 = vunpack.c.l.b16 %v47
  %v178 = vunpack.c.h.b16 %v47
  %v179 = vunpack.c.l.b16 %v48
  %v180 = vunpack.c.h.b16 %v48
  %v181 = vunpack.c.l.b16 %v49
  %v182 = vunpack.c.h.b16 %v49
  %v183 = vunpack.c.l.b16 %v50
  %v184 = vunpack.c.h.b16 %v50
  %v185 = vunpack.c.l.b16 %v51
  %v186 = vunpack.c.h.b16 %v51
  %v187 = vunpack.c.l.b16 %v52
  %v188 = vunpack.c.h.b16 %v52
  %v189 = vunpack.c.l.b16 %v53
  %v190 = vunpack.c.h.b16 %v53
  %v191 = vunpack.c.l.b16 %v54
  %v192 = vunpack.c.h.b16 %v54
  %v193 = vunpack.c.l.b16 %v55
  %v194 = vunpack.c.h.b16 %v55
  %v195 = vunpack.c.l.b16 %v56
  %v196 = vunpack.c.h.b16 %v56
  %v197 = vunpack.c.l.b16 %v57
  %v198 = vunpack.c.h.b16 %v57
  %v199 = vunpack.c.l.b16 %v58
  %v200 = vunpack.c.h.b16 %v58
  %v201 = vunpack.c.l.b16 %v59
  %v202 = vunpack.c.h.b16 %v59
  %v203 = vunpack.c.l.b16 %v60
  %v204 = vunpack.c.h.b16 %v60
  %v205 = vunpack.c.l.b16 %v61
  %v206 = vunpack.c.h.b16 %v61
  %v207 = vunpack.c.l.b16 %v62
  %v208 = vunpack.c.h.b16 %v62
  %v209 = vunpack.c.l.b16 %v63
  %v210 = vunpack.c.h.b16 %v63
  %v211 = vunpack.c.l.b16 %v64
  %v212 = vunpack.c.h.b16 %v64
  %v213 = vunpack.c.l.b16 %v65
  %v214 = vunpack.c.h.b16 %v65
  %v215 = vunpack.c.l.b16 %v66
  %v216 = vunpack.c.h.b16 %v66
  %v217 = vunpack.c.l.b16 %v67
  %v218 = vunpack.c.h.b16 %v67
  %v219 = vpack.c.b16 %v155, %v147
  %v220 = vpack.c.b16 %v156, %v148
  %v221 = vpack.c.b16 %v157, %v149
  %v222 = vpack.c.b16 %v158, %v150
  %v223 = vpack.c.b16 %v159, %v151
  %v224 = vpack.c.b16 %v160, %v152
  %v225 = vpack.c.b16 %v161, %v153
  %v226 = vpack.c.b16 %v162, %v154
  %v227 = vpack.c.b16 %v171, %v163
  %v228 = vpack.c.b16 %v172, %v164
  %v229 = vpack.c.b16 %v173, %v165
  %v230 = vpack.c.b16 %v174, %v166
  %v231 = vpack.c.b16 %v175, %v167
  %v232 = vpack.c.b16 %v176, %v168
  %v233 = vpack.c.b16 %v177, %v169
  %v234 = vpack.c.b16 %v178, %v170
  %v235 = vpack.c.b16 %v187, %v179
  %v236 = vpack.c.b16 %v188, %v180
  %v237 = vpack.c.b16 %v189, %v181
  %v238 = vpack.c.b16 %v190, %v182
  %v239 = vpack.c.b16 %v191, %v183
  %v240 = vpack.c.b16 %v192, %v184
  %v241 = vpack.c.b16 %v193, %v185
  %v242 = vpack.c.b16 %v194, %v186
  %v243 = vpack.c.b16 %v203, %v195
  %v244 = vpack.c.b16 %v204, %v196
  %v245 = vpack.c.b16 %v205, %v197
  %v246 = vpack.c.b16 %v206, %v198
  %v247 = vpack.c.b16 %v207, %v199
  %v248 = vpack.c.b16 %v208, %v200
  %v249 = vpack.c.b16 %v209, %v201
  %v250 = vpack.c.b16 %v210, %v202
  %v251 = vpack.c.b16 %v211, %v211
  %v252 = vpack.c.b16 %v212, %v212
  %v253 = vpack.c.b16 %v213, %v213
  %v254 = vpack.c.b16 %v214, %v214
  %v255 = vpack.c.b16 %v215, %v215
  %v256 = vpack.c.b16 %v216, %v216
  %v257 = vpack.c.b16 %v217, %v217
  %v258 = vpack.c.b16 %v218, %v218
  %vm291 = vcmask 588800
  %v293 = vsel %vm291, %v108, 0
  %v296 = vsel %vm291, %v109, 0
  %v299 = vsel %vm291, %v110, 0
  %vm301 = vcmask 1043456
  %v303 = vsel %vm301, %v251, 0
  %v306 = vsel %vm301, %v252, 0
  %v309 = vsel %vm301, %v253, 0
  %v312 = vsel %vm301, %v254, 0
  %v315 = vsel %vm301, %v255, 0
  %v318 = vsel %vm301, %v256, 0
  %v321 = vsel %vm301, %v257, 0
  %v324 = vsel %vm301, %v258, 0
  %326 = vmatprep.subr.bf16.mxu0 %v220
  %327 = vmatpush1.bf16.msra.mxu0 %v219
  %328 = vmatprep.subr.bf16.mxu0 %v228
  %329 = vmatpush1.bf16.msra.mxu0 %v227
  %330 = vmatprep.subr.bf16.mxu0 %v236
  %331 = vmatpush1.bf16.msra.mxu0 %v235
  %332 = vmatprep.subr.bf16.mxu0 %v244
  %333 = vmatpush1.bf16.msra.mxu0 %v243
  %334 = vmatprep.subr.bf16.mxu0 %v306
  %335 = vmatpush1.bf16.msra.mxu0 %v303
  %336 = vmatprep.subr.bf16.mxu0 0
  %337 = vmatpush1.bf16.msra.mxu0 0
  %338 = vmatprep.subr.bf16.mxu0 0
  %339 = vmatpush1.bf16.msra.mxu0 0
  %340 = vmatprep.subr.bf16.mxu0 0
  %341 = vmatpush1.bf16.msra.mxu0 0
  %342 = vmatprep.subr.bf16.mxu0 0
  %343 = vmatpush1.bf16.msra.mxu0 0
  %344 = vmatprep.subr.bf16.mxu0 0
  %345 = vmatpush1.bf16.msra.mxu0 0
  %346 = vmatprep.subr.bf16.mxu0 0
  %347 = vmatpush1.bf16.msra.mxu0 0
  %348 = vmatprep.subr.bf16.mxu0 0
  %349 = vmatpush1.bf16.msra.mxu0 0
  %350 = vmatprep.subr.bf16.mxu0 0
  %351 = vmatpush1.bf16.msra.mxu0 0
  %352 = vmatprep.subr.bf16.mxu0 0
  %353 = vmatpush1.bf16.msra.mxu0 0
  %354 = vmatprep.subr.bf16.mxu0 0
  %355 = vmatpush1.bf16.msra.mxu0 0
  %356 = vmatprep.subr.bf16.mxu0 0
  %357 = vmatpush1.bf16.msra.mxu0 0
  %358 = vmatprep.mubr.bf16.mxu0 0
  %359 = vmatmul.mubr.bf16.gmra.mrb[0].mxu0 %v293
  %v360 = vpop.f32.mrb[0].mxu0
  %v361 = vadd.f32 %v76, %v360
  %v362 = vpop.f32.mrb[0].mxu0
  %v363 = vadd.f32 %v76, %v362
  %v364 = vpop.f32.mrb[0].mxu0
  %v365 = vadd.f32 %v81, %v364
  %v366 = vpop.f32.mrb[0].mxu0
  %v367 = vadd.f32 %v81, %v366
  %368 = vmatprep.mubr.bf16.mxu0 0
  %369 = vmatmul.mubr.bf16.gmra.mrb[0].mxu0 %v296
  %v370 = vpop.f32.mrb[0].mxu0
  %v371 = vadd.f32 %v86, %v370
  %v372 = vpop.f32.mrb[0].mxu0
  %v373 = vadd.f32 %v86, %v372
  %v374 = vpop.f32.mrb[0].mxu0
  %v375 = vadd.f32 %v91, %v374
  %v376 = vpop.f32.mrb[0].mxu0
  %v377 = vadd.f32 %v91, %v376
  %378 = vmatprep.mubr.bf16.mxu0 0
  %379 = vmatmul.mubr.bf16.gmra.mrb[0].mxu0 %v299
  %v380 = vpop.f32.mrb[0].mxu0
  %v381 = vadd.f32 %v96, %v380
  %v382 = vpop.f32.mrb[0].mxu0
  %v383 = vadd.f32 %v96, %v382
  %v384 = vpop.f32.mrb[0].mxu0
  %v385 = vpop.f32.mrb[0].mxu0
  %386 = vdwg.mxu0
  %387 = vmatprep.subr.bf16.mxu0 %v222
  %388 = vmatpush1.bf16.msra.mxu0 %v221
  %389 = vmatprep.subr.bf16.mxu0 %v230
  %390 = vmatpush1.bf16.msra.mxu0 %v229
  %391 = vmatprep.subr.bf16.mxu0 %v238
  %392 = vmatpush1.bf16.msra.mxu0 %v237
  %393 = vmatprep.subr.bf16.mxu0 %v246
  %394 = vmatpush1.bf16.msra.mxu0 %v245
  %395 = vmatprep.subr.bf16.mxu0 %v312
  %396 = vmatpush1.bf16.msra.mxu0 %v309
  %397 = vmatprep.subr.bf16.mxu0 0
  %398 = vmatpush1.bf16.msra.mxu0 0
  %399 = vmatprep.subr.bf16.mxu0 0
  %400 = vmatpush1.bf16.msra.mxu0 0
  %401 = vmatprep.subr.bf16.mxu0 0
  %402 = vmatpush1.bf16.msra.mxu0 0
  %403 = vmatprep.subr.bf16.mxu0 0
  %404 = vmatpush1.bf16.msra.mxu0 0
  %405 = vmatprep.subr.bf16.mxu0 0
  %406 = vmatpush1.bf16.msra.mxu0 0
  %407 = vmatprep.subr.bf16.mxu0 0
  %408 = vmatpush1.bf16.msra.mxu0 0
  %409 = vmatprep.subr.bf16.mxu0 0
  %410 = vmatpush1.bf16.msra.mxu0 0
  %411 = vmatprep.subr.bf16.mxu0 0
  %412 = vmatpush1.bf16.msra.mxu0 0
  %413 = vmatprep.subr.bf16.mxu0 0
  %414 = vmatpush1.bf16.msra.mxu0 0
  %415 = vmatprep.subr.bf16.mxu0 0
  %416 = vmatpush1.bf16.msra.mxu0 0
  %417 = vmatprep.subr.bf16.mxu0 0
  %418 = vmatpush1.bf16.msra.mxu0 0
  %419 = vmatprep.mubr.bf16.mxu0 0
  %420 = vmatmul.mubr.bf16.gmra.mrb[0].mxu0 %v293
  %v421 = vpop.f32.mrb[0].mxu0
  %v422 = vadd.f32 %v76, %v421
  %v423 = vpop.f32.mrb[0].mxu0
  %v424 = vadd.f32 %v76, %v423
  %v425 = vpop.f32.mrb[0].mxu0
  %v426 = vadd.f32 %v81, %v425
  %v427 = vpop.f32.mrb[0].mxu0
  %v428 = vadd.f32 %v81, %v427
  %429 = vmatprep.mubr.bf16.mxu0 0
  %430 = vmatmul.mubr.bf16.gmra.mrb[0].mxu0 %v296
  %v431 = vpop.f32.mrb[0].mxu0
  %v432 = vadd.f32 %v86, %v431
  %v433 = vpop.f32.mrb[0].mxu0
  %v434 = vadd.f32 %v86, %v433
  %v435 = vpop.f32.mrb[0].mxu0
  %v436 = vadd.f32 %v91, %v435
  %v437 = vpop.f32.mrb[0].mxu0
  %v438 = vadd.f32 %v91, %v437
  %439 = vmatprep.mubr.bf16.mxu0 0
  %440 = vmatmul.mubr.bf16.gmra.mrb[0].mxu0 %v299
  %v441 = vpop.f32.mrb[0].mxu0
  %v442 = vadd.f32 %v96, %v441
  %v443 = vpop.f32.mrb[0].mxu0
  %v444 = vadd.f32 %v96, %v443
  %v445 = vpop.f32.mrb[0].mxu0
  %v446 = vpop.f32.mrb[0].mxu0
  %447 = vdwg.mxu0
  %448 = vmatprep.subr.bf16.mxu0 %v224
  %449 = vmatpush1.bf16.msra.mxu0 %v223
  %450 = vmatprep.subr.bf16.mxu0 %v232
  %451 = vmatpush1.bf16.msra.mxu0 %v231
  %452 = vmatprep.subr.bf16.mxu0 %v240
  %453 = vmatpush1.bf16.msra.mxu0 %v239
  %454 = vmatprep.subr.bf16.mxu0 %v248
  %455 = vmatpush1.bf16.msra.mxu0 %v247
  %456 = vmatprep.subr.bf16.mxu0 %v318
  %457 = vmatpush1.bf16.msra.mxu0 %v315
  %458 = vmatprep.subr.bf16.mxu0 0
  %459 = vmatpush1.bf16.msra.mxu0 0
  %460 = vmatprep.subr.bf16.mxu0 0
  %461 = vmatpush1.bf16.msra.mxu0 0
  %462 = vmatprep.subr.bf16.mxu0 0
  %463 = vmatpush1.bf16.msra.mxu0 0
  %464 = vmatprep.subr.bf16.mxu0 0
  %465 = vmatpush1.bf16.msra.mxu0 0
  %466 = vmatprep.subr.bf16.mxu0 0
  %467 = vmatpush1.bf16.msra.mxu0 0
  %468 = vmatprep.subr.bf16.mxu0 0
  %469 = vmatpush1.bf16.msra.mxu0 0
  %470 = vmatprep.subr.bf16.mxu0 0
  %471 = vmatpush1.bf16.msra.mxu0 0
  %472 = vmatprep.subr.bf16.mxu0 0
  %473 = vmatpush1.bf16.msra.mxu0 0
  %474 = vmatprep.subr.bf16.mxu0 0
  %475 = vmatpush1.bf16.msra.mxu0 0
  %476 = vmatprep.subr.bf16.mxu0 0
  %477 = vmatpush1.bf16.msra.mxu0 0
  %478 = vmatprep.subr.bf16.mxu0 0
  %479 = vmatpush1.bf16.msra.mxu0 0
  %480 = vmatprep.mubr.bf16.mxu0 0
  %481 = vmatmul.mubr.bf16.gmra.mrb[0].mxu0 %v293
  %v482 = vpop.f32.mrb[0].mxu0
  %v483 = vadd.f32 %v76, %v482
  %v484 = vpop.f32.mrb[0].mxu0
  %v485 = vadd.f32 %v76, %v484
  %v486 = vpop.f32.mrb[0].mxu0
  %v487 = vadd.f32 %v81, %v486
  %v488 = vpop.f32.mrb[0].mxu0
  %v489 = vadd.f32 %v81, %v488
  %490 = vmatprep.mubr.bf16.mxu0 0
  %491 = vmatmul.mubr.bf16.gmra.mrb[0].mxu0 %v296
  %v492 = vpop.f32.mrb[0].mxu0
  %v493 = vadd.f32 %v86, %v492
  %v494 = vpop.f32.mrb[0].mxu0
  %v495 = vadd.f32 %v86, %v494
  %v496 = vpop.f32.mrb[0].mxu0
  %v497 = vadd.f32 %v91, %v496
  %v498 = vpop.f32.mrb[0].mxu0
  %v499 = vadd.f32 %v91, %v498
  %500 = vmatprep.mubr.bf16.mxu0 0
  %501 = vmatmul.mubr.bf16.gmra.mrb[0].mxu0 %v299
  %v502 = vpop.f32.mrb[0].mxu0
  %v503 = vadd.f32 %v96, %v502
  %v504 = vpop.f32.mrb[0].mxu0
  %v505 = vadd.f32 %v96, %v504
  %v506 = vpop.f32.mrb[0].mxu0
  %v507 = vpop.f32.mrb[0].mxu0
  %508 = vdwg.mxu0
  %509 = vmatprep.subr.bf16.mxu0 %v226
  %510 = vmatpush1.bf16.msra.mxu0 %v225
  %511 = vmatprep.subr.bf16.mxu0 %v234
  %512 = vmatpush1.bf16.msra.mxu0 %v233
  %513 = vmatprep.subr.bf16.mxu0 %v242
  %514 = vmatpush1.bf16.msra.mxu0 %v241
  %515 = vmatprep.subr.bf16.mxu0 %v250
  %516 = vmatpush1.bf16.msra.mxu0 %v249
  %517 = vmatprep.subr.bf16.mxu0 %v324
  %518 = vmatpush1.bf16.msra.mxu0 %v321
  %519 = vmatprep.subr.bf16.mxu0 0
  %520 = vmatpush1.bf16.msra.mxu0 0
  %521 = vmatprep.subr.bf16.mxu0 0
  %522 = vmatpush1.bf16.msra.mxu0 0
  %523 = vmatprep.subr.bf16.mxu0 0
  %524 = vmatpush1.bf16.msra.mxu0 0
  %525 = vmatprep.subr.bf16.mxu0 0
  %526 = vmatpush1.bf16.msra.mxu0 0
  %527 = vmatprep.subr.bf16.mxu0 0
  %528 = vmatpush1.bf16.msra.mxu0 0
  %529 = vmatprep.subr.bf16.mxu0 0
  %530 = vmatpush1.bf16.msra.mxu0 0
  %531 = vmatprep.subr.bf16.mxu0 0
  %532 = vmatpush1.bf16.msra.mxu0 0
  %533 = vmatprep.subr.bf16.mxu0 0
  %534 = vmatpush1.bf16.msra.mxu0 0
  %535 = vmatprep.subr.bf16.mxu0 0
  %536 = vmatpush1.bf16.msra.mxu0 0
  %537 = vmatprep.subr.bf16.mxu0 0
  %538 = vmatpush1.bf16.msra.mxu0 0
  %539 = vmatprep.subr.bf16.mxu0 0
  %540 = vmatpush1.bf16.msra.mxu0 0
  %541 = vmatprep.mubr.bf16.mxu0 0
  %542 = vmatmul.mubr.bf16.gmra.mrb[0].mxu0 %v293
  %v543 = vpop.f32.mrb[0].mxu0
  %v544 = vadd.f32 %v76, %v543
  %v545 = vpop.f32.mrb[0].mxu0
  %v546 = vadd.f32 %v76, %v545
  %v547 = vpop.f32.mrb[0].mxu0
  %v548 = vadd.f32 %v81, %v547
  %v549 = vpop.f32.mrb[0].mxu0
  %v550 = vadd.f32 %v81, %v549
  %551 = vmatprep.mubr.bf16.mxu0 0
  %552 = vmatmul.mubr.bf16.gmra.mrb[0].mxu0 %v296
  %v553 = vpop.f32.mrb[0].mxu0
  %v554 = vadd.f32 %v86, %v553
  %v555 = vpop.f32.mrb[0].mxu0
  %v556 = vadd.f32 %v86, %v555
  %v557 = vpop.f32.mrb[0].mxu0
  %v558 = vadd.f32 %v91, %v557
  %v559 = vpop.f32.mrb[0].mxu0
  %v560 = vadd.f32 %v91, %v559
  %561 = vmatprep.mubr.bf16.mxu0 0
  %562 = vmatmul.mubr.bf16.gmra.mrb[0].mxu0 %v299
  %v563 = vpop.f32.mrb[0].mxu0
  %v564 = vadd.f32 %v96, %v563
  %v565 = vpop.f32.mrb[0].mxu0
  %v566 = vadd.f32 %v96, %v565
  %v567 = vpop.f32.mrb[0].mxu0
  %v568 = vpop.f32.mrb[0].mxu0
  %569 = vdwg.mxu0
  %v570 = vmax.f32 %v361, 0.0
  %v571 = vmax.f32 %v363, 0.0
  %v572 = vmax.f32 %v422, 0.0
  %v573 = vmax.f32 %v424, 0.0
  %v574 = vmax.f32 %v483, 0.0
  %v575 = vmax.f32 %v485, 0.0
  %v576 = vmax.f32 %v544, 0.0
  %v577 = vmax.f32 %v546, 0.0
  %v578 = vmax.f32 %v365, 0.0
  %v579 = vmax.f32 %v367, 0.0
  %v580 = vmax.f32 %v426, 0.0
  %v581 = vmax.f32 %v428, 0.0
  %v582 = vmax.f32 %v487, 0.0
  %v583 = vmax.f32 %v489, 0.0
  %v584 = vmax.f32 %v548, 0.0
  %v585 = vmax.f32 %v550, 0.0
  %v586 = vmax.f32 %v371, 0.0
  %v587 = vmax.f32 %v373, 0.0
  %v588 = vmax.f32 %v432, 0.0
  %v589 = vmax.f32 %v434, 0.0
  %v590 = vmax.f32 %v493, 0.0
  %v591 = vmax.f32 %v495, 0.0
  %v592 = vmax.f32 %v554, 0.0
  %v593 = vmax.f32 %v556, 0.0
  %v594 = vmax.f32 %v375, 0.0
  %v595 = vmax.f32 %v377, 0.0
  %v596 = vmax.f32 %v436, 0.0
  %v597 = vmax.f32 %v438, 0.0
  %v598 = vmax.f32 %v497, 0.0
  %v599 = vmax.f32 %v499, 0.0
  %v600 = vmax.f32 %v558, 0.0
  %v601 = vmax.f32 %v560, 0.0
  %v602 = vmax.f32 %v381, 0.0
  %v603 = vmax.f32 %v383, 0.0
  %v604 = vmax.f32 %v442, 0.0
  %v605 = vmax.f32 %v444, 0.0
  %v606 = vmax.f32 %v503, 0.0
  %v607 = vmax.f32 %v505, 0.0
  %v608 = vmax.f32 %v564, 0.0
  %v609 = vmax.f32 %v566, 0.0
  %v610 = vpack.c.bf16 %v578, %v570
  %v611 = vpack.c.bf16 %v579, %v571
  %v612 = vpack.c.bf16 %v580, %v572
  %v613 = vpack.c.bf16 %v581, %v573
  %v614 = vpack.c.bf16 %v582, %v574
  %v615 = vpack.c.bf16 %v583, %v575
  %v616 = vpack.c.bf16 %v584, %v576
  %v617 = vpack.c.bf16 %v585, %v577
  %v618 = vpack.c.bf16 %v594, %v586
  %v619 = vpack.c.bf16 %v595, %v587
  %v620 = vpack.c.bf16 %v596, %v588
  %v621 = vpack.c.bf16 %v597, %v589
  %v622 = vpack.c.bf16 %v598, %v590
  %v623 = vpack.c.bf16 %v599, %v591
  %v624 = vpack.c.bf16 %v600, %v592
  %v625 = vpack.c.bf16 %v601, %v593
  %v626 = vpack.c.bf16 %v602, %v602
  %v627 = vpack.c.bf16 %v603, %v603
  %v628 = vpack.c.bf16 %v604, %v604
  %v629 = vpack.c.bf16 %v605, %v605
  %v630 = vpack.c.bf16 %v606, %v606
  %v631 = vpack.c.bf16 %v607, %v607
  %v632 = vpack.c.bf16 %v608, %v608
  %v633 = vpack.c.bf16 %v609, %v609
  %v658 = vunpack.c.l.b16 %v610
  %v659 = vunpack.c.l.b16 %v611
  %v660 = vunpack.c.l.b16 %v612
  %v661 = vunpack.c.l.b16 %v613
  %v662 = vunpack.c.l.b16 %v614
  %v663 = vunpack.c.l.b16 %v615
  %v664 = vunpack.c.l.b16 %v616
  %v665 = vunpack.c.l.b16 %v617
  %v666 = vunpack.c.h.b16 %v610
  %v667 = vunpack.c.h.b16 %v611
  %v668 = vunpack.c.h.b16 %v612
  %v669 = vunpack.c.h.b16 %v613
  %v670 = vunpack.c.h.b16 %v614
  %v671 = vunpack.c.h.b16 %v615
  %v672 = vunpack.c.h.b16 %v616
  %v673 = vunpack.c.h.b16 %v617
  %v674 = vunpack.c.l.b16 %v618
  %v675 = vunpack.c.l.b16 %v619
  %v676 = vunpack.c.l.b16 %v620
  %v677 = vunpack.c.l.b16 %v621
  %v678 = vunpack.c.l.b16 %v622
  %v679 = vunpack.c.l.b16 %v623
  %v680 = vunpack.c.l.b16 %v624
  %v681 = vunpack.c.l.b16 %v625
  %v682 = vunpack.c.h.b16 %v618
  %v683 = vunpack.c.h.b16 %v619
  %v684 = vunpack.c.h.b16 %v620
  %v685 = vunpack.c.h.b16 %v621
  %v686 = vunpack.c.h.b16 %v622
  %v687 = vunpack.c.h.b16 %v623
  %v688 = vunpack.c.h.b16 %v624
  %v689 = vunpack.c.h.b16 %v625
  %v690 = vunpack.c.l.b16 %v626
  %v691 = vunpack.c.l.b16 %v627
  %v692 = vunpack.c.l.b16 %v628
  %v693 = vunpack.c.l.b16 %v629
  %v694 = vunpack.c.l.b16 %v630
  %v695 = vunpack.c.l.b16 %v631
  %v696 = vunpack.c.l.b16 %v632
  %v697 = vunpack.c.l.b16 %v633
  %v698 = vpack.c.b16 %v659, %v658
  %v699 = vpack.c.b16 %v661, %v660
  %v700 = vpack.c.b16 %v663, %v662
  %v701 = vpack.c.b16 %v665, %v664
  %v702 = vpack.c.b16 %v667, %v666
  %v703 = vpack.c.b16 %v669, %v668
  %v704 = vpack.c.b16 %v671, %v670
  %v705 = vpack.c.b16 %v673, %v672
  %v706 = vpack.c.b16 %v675, %v674
  %v707 = vpack.c.b16 %v677, %v676
  %v708 = vpack.c.b16 %v679, %v678
  %v709 = vpack.c.b16 %v681, %v680
  %v710 = vpack.c.b16 %v683, %v682
  %v711 = vpack.c.b16 %v685, %v684
  %v712 = vpack.c.b16 %v687, %v686
  %v713 = vpack.c.b16 %v689, %v688
  %v714 = vpack.c.b16 %v691, %v690
  %v715 = vpack.c.b16 %v693, %v692
  %v716 = vpack.c.b16 %v695, %v694
  %v717 = vpack.c.b16 %v697, %v696
  %738 = vst [vmem:[#allocation2] sm:$0xff] %v698
  %739 = vst [vmem:[#allocation2 + $0x8] sm:$0xff] %v699
  %740 = vst [vmem:[#allocation2 + $0x10] sm:$0xff] %v700
  %741 = vst [vmem:[#allocation2 + $0x18] sm:$0xff] %v701
  %742 = vst [vmem:[#allocation2 + $0x20] sm:$0xff] %v702
  %743 = vst [vmem:[#allocation2 + $0x28] sm:$0xff] %v703
  %744 = vst [vmem:[#allocation2 + $0x30] sm:$0xff] %v704
  %745 = vst [vmem:[#allocation2 + $0x38] sm:$0xff] %v705
  %746 = vst [vmem:[#allocation2 + $0x40] sm:$0xff] %v706
  %747 = vst [vmem:[#allocation2 + $0x48] sm:$0xff] %v707
  %748 = vst [vmem:[#allocation2 + $0x50] sm:$0xff] %v708
  %749 = vst [vmem:[#allocation2 + $0x58] sm:$0xff] %v709
  %750 = vst [vmem:[#allocation2 + $0x60] sm:$0xff] %v710
  %751 = vst [vmem:[#allocation2 + $0x68] sm:$0xff] %v711
  %752 = vst [vmem:[#allocation2 + $0x70] sm:$0xff] %v712
  %753 = vst [vmem:[#allocation2 + $0x78] sm:$0xff] %v713
  %754 = vst [vmem:[#allocation2 + $0x80] sm:$0xff] %v714
  %755 = vst [vmem:[#allocation2 + $0x88] sm:$0xff] %v715
  %756 = vst [vmem:[#allocation2 + $0x90] sm:$0xff] %v716
  %757 = vst [vmem:[#allocation2 + $0x98] sm:$0xff] %v717
  %v758 = vld [vmem:[#allocation2] sm:$0xff]
  %v759 = vld [vmem:[#allocation2 + $0x8] sm:$0xf]
  %v760 = vld [vmem:[#allocation2 + $0x20] sm:$0xff]
  %v761 = vld [vmem:[#allocation2 + $0x28] sm:$0xf]
  %v762 = vld [vmem:[#allocation2 + $0x40] sm:$0xff]
  %v763 = vld [vmem:[#allocation2 + $0x48] sm:$0xf]
  %v764 = vld [vmem:[#allocation2 + $0x60] sm:$0xff]
  %v765 = vld [vmem:[#allocation2 + $0x68] sm:$0xf]
  %v766 = vld [vmem:[#allocation2 + $0x80] sm:$0xff]
  %v767 = vld [vmem:[#allocation2 + $0x88] sm:$0xf]
  %v768 = vld [vmem:[#allocation2 + $0x10] sm:$0xff]
  %v769 = vld [vmem:[#allocation2 + $0x18] sm:$0xf]
  %v770 = vld [vmem:[#allocation2 + $0x30] sm:$0xff]
  %v771 = vld [vmem:[#allocation2 + $0x38] sm:$0xf]
  %v772 = vld [vmem:[#allocation2 + $0x50] sm:$0xff]
  %v773 = vld [vmem:[#allocation2 + $0x58] sm:$0xf]
  %v774 = vld [vmem:[#allocation2 + $0x70] sm:$0xff]
  %v775 = vld [vmem:[#allocation2 + $0x78] sm:$0xf]
  %v776 = vld [vmem:[#allocation2 + $0x90] sm:$0xff]
  %v777 = vld [vmem:[#allocation2 + $0x98] sm:$0xf]
  %v788 = vunpack.c.l.b16 %v758
  %v789 = vunpack.c.h.b16 %v758
  %v790 = vunpack.c.l.b16 %v759
  %v791 = vunpack.c.l.b16 %v760
  %v792 = vunpack.c.h.b16 %v760
  %v793 = vunpack.c.l.b16 %v761
  %v794 = vunpack.c.l.b16 %v762
  %v795 = vunpack.c.h.b16 %v762
  %v796 = vunpack.c.l.b16 %v763
  %v797 = vunpack.c.l.b16 %v764
  %v798 = vunpack.c.h.b16 %v764
  %v799 = vunpack.c.l.b16 %v765
  %v800 = vunpack.c.l.b16 %v766
  %v801 = vunpack.c.h.b16 %v766
  %v802 = vunpack.c.l.b16 %v767
  %v803 = vpack.c.b16 %v791, %v788
  %v804 = vpack.c.b16 %v792, %v789
  %v805 = vpack.c.b16 %v793, %v790
  %v806 = vpack.c.b16 %v797, %v794
  %v807 = vpack.c.b16 %v798, %v795
  %v808 = vpack.c.b16 %v799, %v796
  %v809 = vpack.c.b16 %v800, %v800
  %v810 = vpack.c.b16 %v801, %v801
  %v811 = vpack.c.b16 %v802, %v802
  %v828 = vunpack.c.l.b16 %v768
  %v829 = vunpack.c.h.b16 %v768
  %v830 = vunpack.c.l.b16 %v769
  %v831 = vunpack.c.l.b16 %v770
  %v832 = vunpack.c.h.b16 %v770
  %v833 = vunpack.c.l.b16 %v771
  %v834 = vunpack.c.l.b16 %v772
  %v835 = vunpack.c.h.b16 %v772
  %v836 = vunpack.c.l.b16 %v773
  %v837 = vunpack.c.l.b16 %v774
  %v838 = vunpack.c.h.b16 %v774
  %v839 = vunpack.c.l.b16 %v775
  %v840 = vunpack.c.l.b16 %v776
  %v841 = vunpack.c.h.b16 %v776
  %v842 = vunpack.c.l.b16 %v777
  %v843 = vpack.c.b16 %v831, %v828
  %v844 = vpack.c.b16 %v832, %v829
  %v845 = vpack.c.b16 %v833, %v830
  %v846 = vpack.c.b16 %v837, %v834
  %v847 = vpack.c.b16 %v838, %v835
  %v848 = vpack.c.b16 %v839, %v836
  %v849 = vpack.c.b16 %v840, %v840
  %v850 = vpack.c.b16 %v841, %v841
  %v851 = vpack.c.b16 %v842, %v842
  %v858 = vld [vmem:[#allocation2 + $0x8] sm:$0xff]
  %v859 = vld [vmem:[#allocation2 + $0x28] sm:$0xff]
  %v860 = vld [vmem:[#allocation2 + $0x48] sm:$0xff]
  %v861 = vld [vmem:[#allocation2 + $0x68] sm:$0xff]
  %v862 = vld [vmem:[#allocation2 + $0x88] sm:$0xff]
  %v863 = vld [vmem:[#allocation2 + $0x10] sm:$0xff]
  %v864 = vld [vmem:[#allocation2 + $0x18] sm:$0xff]
  %v865 = vld [vmem:[#allocation2 + $0x30] sm:$0xff]
  %v866 = vld [vmem:[#allocation2 + $0x38] sm:$0xff]
  %v867 = vld [vmem:[#allocation2 + $0x50] sm:$0xff]
  %v868 = vld [vmem:[#allocation2 + $0x58] sm:$0xff]
  %v869 = vld [vmem:[#allocation2 + $0x70] sm:$0xff]
  %v870 = vld [vmem:[#allocation2 + $0x78] sm:$0xff]
  %v871 = vld [vmem:[#allocation2 + $0x90] sm:$0xff]
  %v872 = vld [vmem:[#allocation2 + $0x98] sm:$0xff]
  %v878 = vunpack.c.l.b16 %v858
  %v879 = vunpack.c.h.b16 %v858
  %v880 = vunpack.c.l.b16 %v859
  %v881 = vunpack.c.h.b16 %v859
  %v882 = vunpack.c.l.b16 %v860
  %v883 = vunpack.c.h.b16 %v860
  %v884 = vunpack.c.l.b16 %v861
  %v885 = vunpack.c.h.b16 %v861
  %v886 = vunpack.c.l.b16 %v862
  %v887 = vunpack.c.h.b16 %v862
  %v888 = vpack.c.b16 %v880, %v878
  %v889 = vpack.c.b16 %v881, %v879
  %v890 = vpack.c.b16 %v884, %v882
  %v891 = vpack.c.b16 %v885, %v883
  %v892 = vpack.c.b16 %v886, %v886
  %v893 = vpack.c.b16 %v887, %v887
  %894 = vrot.lane.b32.xlu0 %v803, 127
  %v895 = vpop.permute.xlu0 %894
  %896 = vrot.lane.b32.xlu0 %v804, 127
  %v897 = vpop.permute.xlu0 %896
  %898 = vrot.lane.b32.xlu0 %v888, 127
  %v899 = vpop.permute.xlu0 %898
  %900 = vrot.lane.b32.xlu0 %v889, 127
  %v901 = vpop.permute.xlu0 %900
  %902 = vrot.lane.b32.xlu0 %v806, 127
  %v903 = vpop.permute.xlu0 %902
  %904 = vrot.lane.b32.xlu0 %v807, 127
  %v905 = vpop.permute.xlu0 %904
  %906 = vrot.lane.b32.xlu0 %v890, 127
  %v907 = vpop.permute.xlu0 %906
  %908 = vrot.lane.b32.xlu0 %v891, 127
  %v909 = vpop.permute.xlu0 %908
  %910 = vrot.lane.b32.xlu0 %v809, 127
  %v911 = vpop.permute.xlu0 %910
  %912 = vrot.lane.b32.xlu0 %v810, 127
  %v913 = vpop.permute.xlu0 %912
  %914 = vrot.lane.b32.xlu0 %v892, 127
  %v915 = vpop.permute.xlu0 %914
  %916 = vrot.lane.b32.xlu0 %v893, 127
  %v917 = vpop.permute.xlu0 %916
  %vm918 = vcmask 1039360
  %v919 = vsel %vm918, %v895, %v897
  %v920 = vsel %vm918, %v897, %v899
  %v921 = vsel %vm918, %v899, %v901
  %v922 = vsel %vm918, %v903, %v905
  %v923 = vsel %vm918, %v905, %v907
  %v924 = vsel %vm918, %v907, %v909
  %v925 = vsel %vm918, %v911, %v913
  %v926 = vsel %vm918, %v913, %v915
  %v927 = vsel %vm918, %v915, %v917
  %v938 = vunpack.c.l.b16 %v863
  %v939 = vunpack.c.h.b16 %v863
  %v940 = vunpack.c.l.b16 %v864
  %v941 = vunpack.c.h.b16 %v864
  %v942 = vunpack.c.l.b16 %v865
  %v943 = vunpack.c.h.b16 %v865
  %v944 = vunpack.c.l.b16 %v866
  %v945 = vunpack.c.h.b16 %v866
  %v946 = vunpack.c.l.b16 %v867
  %v947 = vunpack.c.h.b16 %v867
  %v948 = vunpack.c.l.b16 %v868
  %v949 = vunpack.c.h.b16 %v868
  %v950 = vunpack.c.l.b16 %v869
  %v951 = vunpack.c.h.b16 %v869
  %v952 = vunpack.c.l.b16 %v870
  %v953 = vunpack.c.h.b16 %v870
  %v954 = vunpack.c.l.b16 %v871
  %v955 = vunpack.c.h.b16 %v871
  %v956 = vunpack.c.l.b16 %v872
  %v957 = vunpack.c.h.b16 %v872
  %v958 = vpack.c.b16 %v942, %v938
  %v959 = vpack.c.b16 %v943, %v939
  %v960 = vpack.c.b16 %v944, %v940
  %v961 = vpack.c.b16 %v945, %v941
  %v962 = vpack.c.b16 %v950, %v946
  %v963 = vpack.c.b16 %v951, %v947
  %v964 = vpack.c.b16 %v952, %v948
  %v965 = vpack.c.b16 %v953, %v949
  %v966 = vpack.c.b16 %v954, %v954
  %v967 = vpack.c.b16 %v955, %v955
  %v968 = vpack.c.b16 %v956, %v956
  %v969 = vpack.c.b16 %v957, %v957
  %970 = vrot.lane.b32.xlu0 %v958, 127
  %v971 = vpop.permute.xlu0 %970
  %972 = vrot.lane.b32.xlu0 %v959, 127
  %v973 = vpop.permute.xlu0 %972
  %974 = vrot.lane.b32.xlu0 %v960, 127
  %v975 = vpop.permute.xlu0 %974
  %976 = vrot.lane.b32.xlu0 %v961, 127
  %v977 = vpop.permute.xlu0 %976
  %978 = vrot.lane.b32.xlu0 %v962, 127
  %v979 = vpop.permute.xlu0 %978
  %980 = vrot.lane.b32.xlu0 %v963, 127
  %v981 = vpop.permute.xlu0 %980
  %982 = vrot.lane.b32.xlu0 %v964, 127
  %v983 = vpop.permute.xlu0 %982
  %984 = vrot.lane.b32.xlu0 %v965, 127
  %v985 = vpop.permute.xlu0 %984
  %986 = vrot.lane.b32.xlu0 %v966, 127
  %v987 = vpop.permute.xlu0 %986
  %988 = vrot.lane.b32.xlu0 %v967, 127
  %v989 = vpop.permute.xlu0 %988
  %990 = vrot.lane.b32.xlu0 %v968, 127
  %v991 = vpop.permute.xlu0 %990
  %992 = vrot.lane.b32.xlu0 %v969, 127
  %v993 = vpop.permute.xlu0 %992
  %v994 = vsel %vm918, %v971, %v973
  %v995 = vsel %vm918, %v973, %v975
  %v996 = vsel %vm918, %v975, %v977
  %v997 = vsel %vm918, %v979, %v981
  %v998 = vsel %vm918, %v981, %v983
  %v999 = vsel %vm918, %v983, %v985
  %v1000 = vsel %vm918, %v987, %v989
  %v1001 = vsel %vm918, %v989, %v991
  %v1002 = vsel %vm918, %v991, %v993
  %1003 = vrot.lane.b32.xlu0 %v803, 126
  %v1004 = vpop.permute.xlu0 %1003
  %1005 = vrot.lane.b32.xlu0 %v804, 126
  %v1006 = vpop.permute.xlu0 %1005
  %1007 = vrot.lane.b32.xlu0 %v888, 126
  %v1008 = vpop.permute.xlu0 %1007
  %1009 = vrot.lane.b32.xlu0 %v889, 126
  %v1010 = vpop.permute.xlu0 %1009
  %1011 = vrot.lane.b32.xlu0 %v806, 126
  %v1012 = vpop.permute.xlu0 %1011
  %1013 = vrot.lane.b32.xlu0 %v807, 126
  %v1014 = vpop.permute.xlu0 %1013
  %1015 = vrot.lane.b32.xlu0 %v890, 126
  %v1016 = vpop.permute.xlu0 %1015
  %1017 = vrot.lane.b32.xlu0 %v891, 126
  %v1018 = vpop.permute.xlu0 %1017
  %1019 = vrot.lane.b32.xlu0 %v809, 126
  %v1020 = vpop.permute.xlu0 %1019
  %1021 = vrot.lane.b32.xlu0 %v810, 126
  %v1022 = vpop.permute.xlu0 %1021
  %1023 = vrot.lane.b32.xlu0 %v892, 126
  %v1024 = vpop.permute.xlu0 %1023
  %1025 = vrot.lane.b32.xlu0 %v893, 126
  %v1026 = vpop.permute.xlu0 %1025
  %vm1027 = vcmask 1031168
  %v1028 = vsel %vm1027, %v1004, %v1006
  %v1029 = vsel %vm1027, %v1006, %v1008
  %v1030 = vsel %vm1027, %v1008, %v1010
  %v1031 = vsel %vm1027, %v1012, %v1014
  %v1032 = vsel %vm1027, %v1014, %v1016
  %v1033 = vsel %vm1027, %v1016, %v1018
  %v1034 = vsel %vm1027, %v1020, %v1022
  %v1035 = vsel %vm1027, %v1022, %v1024
  %v1036 = vsel %vm1027, %v1024, %v1026
  %1043 = vrot.lane.b32.xlu0 %v958, 126
  %v1044 = vpop.permute.xlu0 %1043
  %1045 = vrot.lane.b32.xlu0 %v959, 126
  %v1046 = vpop.permute.xlu0 %1045
  %1047 = vrot.lane.b32.xlu0 %v960, 126
  %v1048 = vpop.permute.xlu0 %1047
  %1049 = vrot.lane.b32.xlu0 %v961, 126
  %v1050 = vpop.permute.xlu0 %1049
  %1051 = vrot.lane.b32.xlu0 %v962, 126
  %v1052 = vpop.permute.xlu0 %1051
  %1053 = vrot.lane.b32.xlu0 %v963, 126
  %v1054 = vpop.permute.xlu0 %1053
  %1055 = vrot.lane.b32.xlu0 %v964, 126
  %v1056 = vpop.permute.xlu0 %1055
  %1057 = vrot.lane.b32.xlu0 %v965, 126
  %v1058 = vpop.permute.xlu0 %1057
  %1059 = vrot.lane.b32.xlu0 %v966, 126
  %v1060 = vpop.permute.xlu0 %1059
  %1061 = vrot.lane.b32.xlu0 %v967, 126
  %v1062 = vpop.permute.xlu0 %1061
  %1063 = vrot.lane.b32.xlu0 %v968, 126
  %v1064 = vpop.permute.xlu0 %1063
  %1065 = vrot.lane.b32.xlu0 %v969, 126
  %v1066 = vpop.permute.xlu0 %1065
  %v1067 = vsel %vm1027, %v1044, %v1046
  %v1068 = vsel %vm1027, %v1046, %v1048
  %v1069 = vsel %vm1027, %v1048, %v1050
  %v1070 = vsel %vm1027, %v1052, %v1054
  %v1071 = vsel %vm1027, %v1054, %v1056
  %v1072 = vsel %vm1027, %v1056, %v1058
  %v1073 = vsel %vm1027, %v1060, %v1062
  %v1074 = vsel %vm1027, %v1062, %v1064
  %v1075 = vsel %vm1027, %v1064, %v1066
  %1082 = vrot.lane.b32.xlu0 %v803, 125
  %v1083 = vpop.permute.xlu0 %1082
  %1084 = vrot.lane.b32.xlu0 %v804, 125
  %v1085 = vpop.permute.xlu0 %1084
  %1086 = vrot.lane.b32.xlu0 %v888, 125
  %v1087 = vpop.permute.xlu0 %1086
  %1088 = vrot.lane.b32.xlu0 %v889, 125
  %v1089 = vpop.permute.xlu0 %1088
  %1090 = vrot.lane.b32.xlu0 %v806, 125
  %v1091 = vpop.permute.xlu0 %1090
  %1092 = vrot.lane.b32.xlu0 %v807, 125
  %v1093 = vpop.permute.xlu0 %1092
  %1094 = vrot.lane.b32.xlu0 %v890, 125
  %v1095 = vpop.permute.xlu0 %1094
  %1096 = vrot.lane.b32.xlu0 %v891, 125
  %v1097 = vpop.permute.xlu0 %1096
  %1098 = vrot.lane.b32.xlu0 %v809, 125
  %v1099 = vpop.permute.xlu0 %1098
  %1100 = vrot.lane.b32.xlu0 %v810, 125
  %v1101 = vpop.permute.xlu0 %1100
  %1102 = vrot.lane.b32.xlu0 %v892, 125
  %v1103 = vpop.permute.xlu0 %1102
  %1104 = vrot.lane.b32.xlu0 %v893, 125
  %v1105 = vpop.permute.xlu0 %1104
  %vm1106 = vcmask 1022976
  %v1107 = vsel %vm1106, %v1083, %v1085
  %v1108 = vsel %vm1106, %v1085, %v1087
  %v1109 = vsel %vm1106, %v1087, %v1089
  %v1110 = vsel %vm1106, %v1091, %v1093
  %v1111 = vsel %vm1106, %v1093, %v1095
  %v1112 = vsel %vm1106, %v1095, %v1097
  %v1113 = vsel %vm1106, %v1099, %v1101
  %v1114 = vsel %vm1106, %v1101, %v1103
  %v1115 = vsel %vm1106, %v1103, %v1105
  %1116 = vrot.lane.b32.xlu0 %v958, 125
  %v1117 = vpop.permute.xlu0 %1116
  %1118 = vrot.lane.b32.xlu0 %v959, 125
  %v1119 = vpop.permute.xlu0 %1118
  %1120 = vrot.lane.b32.xlu0 %v960, 125
  %v1121 = vpop.permute.xlu0 %1120
  %1122 = vrot.lane.b32.xlu0 %v961, 125
  %v1123 = vpop.permute.xlu0 %1122
  %1124 = vrot.lane.b32.xlu0 %v962, 125
  %v1125 = vpop.permute.xlu0 %1124
  %1126 = vrot.lane.b32.xlu0 %v963, 125
  %v1127 = vpop.permute.xlu0 %1126
  %1128 = vrot.lane.b32.xlu0 %v964, 125
  %v1129 = vpop.permute.xlu0 %1128
  %1130 = vrot.lane.b32.xlu0 %v965, 125
  %v1131 = vpop.permute.xlu0 %1130
  %1132 = vrot.lane.b32.xlu0 %v966, 125
  %v1133 = vpop.permute.xlu0 %1132
  %1134 = vrot.lane.b32.xlu0 %v967, 125
  %v1135 = vpop.permute.xlu0 %1134
  %1136 = vrot.lane.b32.xlu0 %v968, 125
  %v1137 = vpop.permute.xlu0 %1136
  %1138 = vrot.lane.b32.xlu0 %v969, 125
  %v1139 = vpop.permute.xlu0 %1138
  %v1140 = vsel %vm1106, %v1117, %v1119
  %v1141 = vsel %vm1106, %v1119, %v1121
  %v1142 = vsel %vm1106, %v1121, %v1123
  %v1143 = vsel %vm1106, %v1125, %v1127
  %v1144 = vsel %vm1106, %v1127, %v1129
  %v1145 = vsel %vm1106, %v1129, %v1131
  %v1146 = vsel %vm1106, %v1133, %v1135
  %v1147 = vsel %vm1106, %v1135, %v1137
  %v1148 = vsel %vm1106, %v1137, %v1139
  %1149 = vrot.lane.b32.xlu0 %v803, 124
  %v1150 = vpop.permute.xlu0 %1149
  %1151 = vrot.lane.b32.xlu0 %v804, 124
  %v1152 = vpop.permute.xlu0 %1151
  %1153 = vrot.lane.b32.xlu0 %v888, 124
  %v1154 = vpop.permute.xlu0 %1153
  %1155 = vrot.lane.b32.xlu0 %v889, 124
  %v1156 = vpop.permute.xlu0 %1155
  %1157 = vrot.lane.b32.xlu0 %v806, 124
  %v1158 = vpop.permute.xlu0 %1157
  %1159 = vrot.lane.b32.xlu0 %v807, 124
  %v1160 = vpop.permute.xlu0 %1159
  %1161 = vrot.lane.b32.xlu0 %v890, 124
  %v1162 = vpop.permute.xlu0 %1161
  %1163 = vrot.lane.b32.xlu0 %v891, 124
  %v1164 = vpop.permute.xlu0 %1163
  %1165 = vrot.lane.b32.xlu0 %v809, 124
  %v1166 = vpop.permute.xlu0 %1165
  %1167 = vrot.lane.b32.xlu0 %v810, 124
  %v1168 = vpop.permute.xlu0 %1167
  %1169 = vrot.lane.b32.xlu0 %v892, 124
  %v1170 = vpop.permute.xlu0 %1169
  %1171 = vrot.lane.b32.xlu0 %v893, 124
  %v1172 = vpop.permute.xlu0 %1171
  %vm1173 = vcmask 1014784
  %v1174 = vsel %vm1173, %v1150, %v1152
  %v1175 = vsel %vm1173, %v1152, %v1154
  %v1176 = vsel %vm1173, %v1154, %v1156
  %v1177 = vsel %vm1173, %v1158, %v1160
  %v1178 = vsel %vm1173, %v1160, %v1162
  %v1179 = vsel %vm1173, %v1162, %v1164
  %v1180 = vsel %vm1173, %v1166, %v1168
  %v1181 = vsel %vm1173, %v1168, %v1170
  %v1182 = vsel %vm1173, %v1170, %v1172
  %1189 = vrot.lane.b32.xlu0 %v958, 124
  %v1190 = vpop.permute.xlu0 %1189
  %1191 = vrot.lane.b32.xlu0 %v959, 124
  %v1192 = vpop.permute.xlu0 %1191
  %1193 = vrot.lane.b32.xlu0 %v960, 124
  %v1194 = vpop.permute.xlu0 %1193
  %1195 = vrot.lane.b32.xlu0 %v961, 124
  %v1196 = vpop.permute.xlu0 %1195
  %1197 = vrot.lane.b32.xlu0 %v962, 124
  %v1198 = vpop.permute.xlu0 %1197
  %1199 = vrot.lane.b32.xlu0 %v963, 124
  %v1200 = vpop.permute.xlu0 %1199
  %1201 = vrot.lane.b32.xlu0 %v964, 124
  %v1202 = vpop.permute.xlu0 %1201
  %1203 = vrot.lane.b32.xlu0 %v965, 124
  %v1204 = vpop.permute.xlu0 %1203
  %1205 = vrot.lane.b32.xlu0 %v966, 124
  %v1206 = vpop.permute.xlu0 %1205
  %1207 = vrot.lane.b32.xlu0 %v967, 124
  %v1208 = vpop.permute.xlu0 %1207
  %1209 = vrot.lane.b32.xlu0 %v968, 124
  %v1210 = vpop.permute.xlu0 %1209
  %1211 = vrot.lane.b32.xlu0 %v969, 124
  %v1212 = vpop.permute.xlu0 %1211
  %v1213 = vsel %vm1173, %v1190, %v1192
  %v1214 = vsel %vm1173, %v1192, %v1194
  %v1215 = vsel %vm1173, %v1194, %v1196
  %v1216 = vsel %vm1173, %v1198, %v1200
  %v1217 = vsel %vm1173, %v1200, %v1202
  %v1218 = vsel %vm1173, %v1202, %v1204
  %v1219 = vsel %vm1173, %v1206, %v1208
  %v1220 = vsel %vm1173, %v1208, %v1210
  %v1221 = vsel %vm1173, %v1210, %v1212
  %1228 = vrot.lane.b32.xlu0 %v803, 123
  %v1229 = vpop.permute.xlu0 %1228
  %1230 = vrot.lane.b32.xlu0 %v804, 123
  %v1231 = vpop.permute.xlu0 %1230
  %1232 = vrot.lane.b32.xlu0 %v888, 123
  %v1233 = vpop.permute.xlu0 %1232
  %1234 = vrot.lane.b32.xlu0 %v889, 123
  %v1235 = vpop.permute.xlu0 %1234
  %1236 = vrot.lane.b32.xlu0 %v806, 123
  %v1237 = vpop.permute.xlu0 %1236
  %1238 = vrot.lane.b32.xlu0 %v807, 123
  %v1239 = vpop.permute.xlu0 %1238
  %1240 = vrot.lane.b32.xlu0 %v890, 123
  %v1241 = vpop.permute.xlu0 %1240
  %1242 = vrot.lane.b32.xlu0 %v891, 123
  %v1243 = vpop.permute.xlu0 %1242
  %1244 = vrot.lane.b32.xlu0 %v809, 123
  %v1245 = vpop.permute.xlu0 %1244
  %1246 = vrot.lane.b32.xlu0 %v810, 123
  %v1247 = vpop.permute.xlu0 %1246
  %1248 = vrot.lane.b32.xlu0 %v892, 123
  %v1249 = vpop.permute.xlu0 %1248
  %1250 = vrot.lane.b32.xlu0 %v893, 123
  %v1251 = vpop.permute.xlu0 %1250
  %vm1252 = vcmask 1006592
  %v1253 = vsel %vm1252, %v1229, %v1231
  %v1254 = vsel %vm1252, %v1231, %v1233
  %v1255 = vsel %vm1252, %v1233, %v1235
  %v1256 = vsel %vm1252, %v1237, %v1239
  %v1257 = vsel %vm1252, %v1239, %v1241
  %v1258 = vsel %vm1252, %v1241, %v1243
  %v1259 = vsel %vm1252, %v1245, %v1247
  %v1260 = vsel %vm1252, %v1247, %v1249
  %v1261 = vsel %vm1252, %v1249, %v1251
  %1262 = vrot.lane.b32.xlu0 %v958, 123
  %v1263 = vpop.permute.xlu0 %1262
  %1264 = vrot.lane.b32.xlu0 %v959, 123
  %v1265 = vpop.permute.xlu0 %1264
  %1266 = vrot.lane.b32.xlu0 %v960, 123
  %v1267 = vpop.permute.xlu0 %1266
  %1268 = vrot.lane.b32.xlu0 %v961, 123
  %v1269 = vpop.permute.xlu0 %1268
  %1270 = vrot.lane.b32.xlu0 %v962, 123
  %v1271 = vpop.permute.xlu0 %1270
  %1272 = vrot.lane.b32.xlu0 %v963, 123
  %v1273 = vpop.permute.xlu0 %1272
  %1274 = vrot.lane.b32.xlu0 %v964, 123
  %v1275 = vpop.permute.xlu0 %1274
  %1276 = vrot.lane.b32.xlu0 %v965, 123
  %v1277 = vpop.permute.xlu0 %1276
  %1278 = vrot.lane.b32.xlu0 %v966, 123
  %v1279 = vpop.permute.xlu0 %1278
  %1280 = vrot.lane.b32.xlu0 %v967, 123
  %v1281 = vpop.permute.xlu0 %1280
  %1282 = vrot.lane.b32.xlu0 %v968, 123
  %v1283 = vpop.permute.xlu0 %1282
  %1284 = vrot.lane.b32.xlu0 %v969, 123
  %v1285 = vpop.permute.xlu0 %1284
  %v1286 = vsel %vm1252, %v1263, %v1265
  %v1287 = vsel %vm1252, %v1265, %v1267
  %v1288 = vsel %vm1252, %v1267, %v1269
  %v1289 = vsel %vm1252, %v1271, %v1273
  %v1290 = vsel %vm1252, %v1273, %v1275
  %v1291 = vsel %vm1252, %v1275, %v1277
  %v1292 = vsel %vm1252, %v1279, %v1281
  %v1293 = vsel %vm1252, %v1281, %v1283
  %v1294 = vsel %vm1252, %v1283, %v1285
  %1295 = vrot.lane.b32.xlu0 %v803, 122
  %v1296 = vpop.permute.xlu0 %1295
  %1297 = vrot.lane.b32.xlu0 %v804, 122
  %v1298 = vpop.permute.xlu0 %1297
  %1299 = vrot.lane.b32.xlu0 %v888, 122
  %v1300 = vpop.permute.xlu0 %1299
  %1301 = vrot.lane.b32.xlu0 %v889, 122
  %v1302 = vpop.permute.xlu0 %1301
  %1303 = vrot.lane.b32.xlu0 %v806, 122
  %v1304 = vpop.permute.xlu0 %1303
  %1305 = vrot.lane.b32.xlu0 %v807, 122
  %v1306 = vpop.permute.xlu0 %1305
  %1307 = vrot.lane.b32.xlu0 %v890, 122
  %v1308 = vpop.permute.xlu0 %1307
  %1309 = vrot.lane.b32.xlu0 %v891, 122
  %v1310 = vpop.permute.xlu0 %1309
  %1311 = vrot.lane.b32.xlu0 %v809, 122
  %v1312 = vpop.permute.xlu0 %1311
  %1313 = vrot.lane.b32.xlu0 %v810, 122
  %v1314 = vpop.permute.xlu0 %1313
  %1315 = vrot.lane.b32.xlu0 %v892, 122
  %v1316 = vpop.permute.xlu0 %1315
  %1317 = vrot.lane.b32.xlu0 %v893, 122
  %v1318 = vpop.permute.xlu0 %1317
  %vm1319 = vcmask 998400
  %v1320 = vsel %vm1319, %v1296, %v1298
  %v1321 = vsel %vm1319, %v1298, %v1300
  %v1322 = vsel %vm1319, %v1300, %v1302
  %v1323 = vsel %vm1319, %v1304, %v1306
  %v1324 = vsel %vm1319, %v1306, %v1308
  %v1325 = vsel %vm1319, %v1308, %v1310
  %v1326 = vsel %vm1319, %v1312, %v1314
  %v1327 = vsel %vm1319, %v1314, %v1316
  %v1328 = vsel %vm1319, %v1316, %v1318
  %1335 = vrot.lane.b32.xlu0 %v958, 122
  %v1336 = vpop.permute.xlu0 %1335
  %1337 = vrot.lane.b32.xlu0 %v959, 122
  %v1338 = vpop.permute.xlu0 %1337
  %1339 = vrot.lane.b32.xlu0 %v960, 122
  %v1340 = vpop.permute.xlu0 %1339
  %1341 = vrot.lane.b32.xlu0 %v961, 122
  %v1342 = vpop.permute.xlu0 %1341
  %1343 = vrot.lane.b32.xlu0 %v962, 122
  %v1344 = vpop.permute.xlu0 %1343
  %1345 = vrot.lane.b32.xlu0 %v963, 122
  %v1346 = vpop.permute.xlu0 %1345
  %1347 = vrot.lane.b32.xlu0 %v964, 122
  %v1348 = vpop.permute.xlu0 %1347
  %1349 = vrot.lane.b32.xlu0 %v965, 122
  %v1350 = vpop.permute.xlu0 %1349
  %1351 = vrot.lane.b32.xlu0 %v966, 122
  %v1352 = vpop.permute.xlu0 %1351
  %1353 = vrot.lane.b32.xlu0 %v967, 122
  %v1354 = vpop.permute.xlu0 %1353
  %1355 = vrot.lane.b32.xlu0 %v968, 122
  %v1356 = vpop.permute.xlu0 %1355
  %1357 = vrot.lane.b32.xlu0 %v969, 122
  %v1358 = vpop.permute.xlu0 %1357
  %v1359 = vsel %vm1319, %v1336, %v1338
  %v1360 = vsel %vm1319, %v1338, %v1340
  %v1361 = vsel %vm1319, %v1340, %v1342
  %v1362 = vsel %vm1319, %v1344, %v1346
  %v1363 = vsel %vm1319, %v1346, %v1348
  %v1364 = vsel %vm1319, %v1348, %v1350
  %v1365 = vsel %vm1319, %v1352, %v1354
  %v1366 = vsel %vm1319, %v1354, %v1356
  %v1367 = vsel %vm1319, %v1356, %v1358
  %vm1374 = vcmask 1043456
  %v1375 = vrot.slane %v919, 4
  %v1376 = vrot.slane %v920, 4
  %v1377 = vrot.slane %v921, 4
  %v1378 = vrot.slane %v994, 4
  %v1379 = vrot.slane %v995, 4
  %v1380 = vrot.slane %v996, 4
  %v1381 = vrot.slane %v922, 4
  %v1382 = vsel %vm1374, %v1375, %v1381
  %v1383 = vrot.slane %v923, 4
  %v1384 = vsel %vm1374, %v1376, %v1383
  %v1385 = vrot.slane %v924, 4
  %v1386 = vsel %vm1374, %v1377, %v1385
  %v1387 = vrot.slane %v997, 4
  %v1388 = vsel %vm1374, %v1378, %v1387
  %v1389 = vrot.slane %v998, 4
  %v1390 = vsel %vm1374, %v1379, %v1389
  %v1391 = vrot.slane %v999, 4
  %v1392 = vsel %vm1374, %v1380, %v1391
  %v1393 = vrot.slane %v925, 4
  %v1394 = vsel %vm1374, %v1381, %v1393
  %v1395 = vrot.slane %v926, 4
  %v1396 = vsel %vm1374, %v1383, %v1395
  %v1397 = vrot.slane %v927, 4
  %v1398 = vsel %vm1374, %v1385, %v1397
  %v1399 = vrot.slane %v1000, 4
  %v1400 = vsel %vm1374, %v1387, %v1399
  %v1401 = vrot.slane %v1001, 4
  %v1402 = vsel %vm1374, %v1389, %v1401
  %v1403 = vrot.slane %v1002, 4
  %v1404 = vsel %vm1374, %v1391, %v1403
  %v1417 = vrot.slane %v1107, 4
  %v1418 = vrot.slane %v1108, 4
  %v1419 = vrot.slane %v1109, 4
  %v1420 = vrot.slane %v1140, 4
  %v1421 = vrot.slane %v1141, 4
  %v1422 = vrot.slane %v1142, 4
  %v1423 = vrot.slane %v1110, 4
  %v1424 = vsel %vm1374, %v1417, %v1423
  %v1425 = vrot.slane %v1111, 4
  %v1426 = vsel %vm1374, %v1418, %v1425
  %v1427 = vrot.slane %v1112, 4
  %v1428 = vsel %vm1374, %v1419, %v1427
  %v1429 = vrot.slane %v1143, 4
  %v1430 = vsel %vm1374, %v1420, %v1429
  %v1431 = vrot.slane %v1144, 4
  %v1432 = vsel %vm1374, %v1421, %v1431
  %v1433 = vrot.slane %v1145, 4
  %v1434 = vsel %vm1374, %v1422, %v1433
  %v1435 = vrot.slane %v1113, 4
  %v1436 = vsel %vm1374, %v1423, %v1435
  %v1437 = vrot.slane %v1114, 4
  %v1438 = vsel %vm1374, %v1425, %v1437
  %v1439 = vrot.slane %v1115, 4
  %v1440 = vsel %vm1374, %v1427, %v1439
  %v1441 = vrot.slane %v1146, 4
  %v1442 = vsel %vm1374, %v1429, %v1441
  %v1443 = vrot.slane %v1147, 4
  %v1444 = vsel %vm1374, %v1431, %v1443
  %v1445 = vrot.slane %v1148, 4
  %v1446 = vsel %vm1374, %v1433, %v1445
  %v1459 = vrot.slane %v1253, 4
  %v1460 = vrot.slane %v1254, 4
  %v1461 = vrot.slane %v1255, 4
  %v1462 = vrot.slane %v1286, 4
  %v1463 = vrot.slane %v1287, 4
  %v1464 = vrot.slane %v1288, 4
  %v1465 = vrot.slane %v1256, 4
  %v1466 = vsel %vm1374, %v1459, %v1465
  %v1467 = vrot.slane %v1257, 4
  %v1468 = vsel %vm1374, %v1460, %v1467
  %v1469 = vrot.slane %v1258, 4
  %v1470 = vsel %vm1374, %v1461, %v1469
  %v1471 = vrot.slane %v1289, 4
  %v1472 = vsel %vm1374, %v1462, %v1471
  %v1473 = vrot.slane %v1290, 4
  %v1474 = vsel %vm1374, %v1463, %v1473
  %v1475 = vrot.slane %v1291, 4
  %v1476 = vsel %vm1374, %v1464, %v1475
  %v1477 = vrot.slane %v1259, 4
  %v1478 = vsel %vm1374, %v1465, %v1477
  %v1479 = vrot.slane %v1260, 4
  %v1480 = vsel %vm1374, %v1467, %v1479
  %v1481 = vrot.slane %v1261, 4
  %v1482 = vsel %vm1374, %v1469, %v1481
  %v1483 = vrot.slane %v1292, 4
  %v1484 = vsel %vm1374, %v1471, %v1483
  %v1485 = vrot.slane %v1293, 4
  %v1486 = vsel %vm1374, %v1473, %v1485
  %v1487 = vrot.slane %v1294, 4
  %v1488 = vsel %vm1374, %v1475, %v1487
  %v1503 = vsel %vm301, %v809, %v1375
  %v1507 = vsel %vm301, %v810, %v1376
  %v1511 = vsel %vm301, %v811, %v1377
  %v1515 = vsel %vm301, %v849, %v1378
  %v1519 = vsel %vm301, %v850, %v1379
  %v1523 = vsel %vm301, %v851, %v1380
  %v1527 = vsel %vm301, %v1034, %v1417
  %v1531 = vsel %vm301, %v1035, %v1418
  %v1535 = vsel %vm301, %v1036, %v1419
  %v1539 = vsel %vm301, %v1073, %v1420
  %v1543 = vsel %vm301, %v1074, %v1421
  %v1547 = vsel %vm301, %v1075, %v1422
  %v1551 = vsel %vm301, %v1180, %v1459
  %v1555 = vsel %vm301, %v1181, %v1460
  %v1559 = vsel %vm301, %v1182, %v1461
  %v1563 = vsel %vm301, %v1219, %v1462
  %v1567 = vsel %vm301, %v1220, %v1463
  %v1571 = vsel %vm301, %v1221, %v1464
  %v1573 = vld [vmem:[%s3] sm:$0xff]
  %v1574 = vld [vmem:[%s3 + $0x8] sm:$0xf]
  %v1575 = vld [vmem:[%s3 + $0x40] sm:$0xff]
  %v1576 = vld [vmem:[%s3 + $0x48] sm:$0xf]
  %v1577 = vld [vmem:[%s3 + $0x80] sm:$0xff]
  %v1578 = vld [vmem:[%s3 + $0x88] sm:$0xf]
  %v1579 = vld [vmem:[%s3 + $0xc0] sm:$0xff]
  %v1580 = vld [vmem:[%s3 + $0xc8] sm:$0xf]
  %v1581 = vld [vmem:[%s3 + $0x100] sm:$0xff]
  %v1582 = vld [vmem:[%s3 + $0x108] sm:$0xf]
  %v1583 = vld [vmem:[%s3 + $0x140] sm:$0xff]
  %v1584 = vld [vmem:[%s3 + $0x148] sm:$0xf]
  %v1585 = vld [vmem:[%s3 + $0x180] sm:$0x11]
  %v1586 = vld [vmem:[%s3 + $0x188] sm:$0x1]
  %v1601 = vunpack.c.l.b16 %v1573
  %v1602 = vunpack.c.h.b16 %v1573
  %v1603 = vunpack.c.l.b16 %v1574
  %v1604 = vunpack.c.l.b16 %v1575
  %v1605 = vunpack.c.h.b16 %v1575
  %v1606 = vunpack.c.l.b16 %v1576
  %v1607 = vunpack.c.l.b16 %v1577
  %v1608 = vunpack.c.h.b16 %v1577
  %v1609 = vunpack.c.l.b16 %v1578
  %v1610 = vunpack.c.l.b16 %v1579
  %v1611 = vunpack.c.h.b16 %v1579
  %v1612 = vunpack.c.l.b16 %v1580
  %v1613 = vunpack.c.l.b16 %v1581
  %v1614 = vunpack.c.h.b16 %v1581
  %v1615 = vunpack.c.l.b16 %v1582
  %v1616 = vunpack.c.l.b16 %v1583
  %v1617 = vunpack.c.h.b16 %v1583
  %v1618 = vunpack.c.l.b16 %v1584
  %v1619 = vunpack.c.l.b16 %v1585
  %v1620 = vunpack.c.h.b16 %v1585
  %v1621 = vunpack.c.l.b16 %v1586
  %v1622 = vpack.c.b16 %v1604, %v1601
  %v1623 = vpack.c.b16 %v1605, %v1602
  %v1624 = vpack.c.b16 %v1606, %v1603
  %v1625 = vpack.c.b16 %v1610, %v1607
  %v1626 = vpack.c.b16 %v1611, %v1608
  %v1627 = vpack.c.b16 %v1612, %v1609
  %v1628 = vpack.c.b16 %v1616, %v1613
  %v1629 = vpack.c.b16 %v1617, %v1614
  %v1630 = vpack.c.b16 %v1618, %v1615
  %v1631 = vpack.c.b16 %v1619, %v1619
  %v1632 = vpack.c.b16 %v1620, %v1620
  %v1633 = vpack.c.b16 %v1621, %v1621
  %vm1642 = vcmask 195584
  %v1644 = vsel %vm1642, %v1624, 0
  %v1647 = vsel %vm1642, %v1627, 0
  %v1650 = vsel %vm1642, %v1630, 0
  %v1653 = vsel %vm1642, %v1633, 0
  %v1656 = vsel %vm301, %v1326, 0
  %v1659 = vsel %vm301, %v1327, 0
  %v1662 = vsel %vm301, %v1328, 0
  %v1665 = vsel %vm301, %v1365, 0
  %v1668 = vsel %vm301, %v1366, 0
  %v1671 = vsel %vm301, %v1367, 0
  %1673 = vmatprep.subr.bf16.mxu0 %v804
  %1674 = vmatpush1.bf16.msra.mxu0 %v803
  %1675 = vmatprep.subr.bf16.mxu0 %v807
  %1676 = vmatpush1.bf16.msra.mxu0 %v806
  %1677 = vmatprep.subr.bf16.mxu0 %v1507
  %1678 = vmatpush1.bf16.msra.mxu0 %v1503
  %1679 = vmatprep.subr.bf16.mxu0 %v1384
  %1680 = vmatpush1.bf16.msra.mxu0 %v1382
  %1681 = vmatprep.subr.bf16.mxu0 %v1396
  %1682 = vmatpush1.bf16.msra.mxu0 %v1394
  %1683 = vmatprep.subr.bf16.mxu0 %v1029
  %1684 = vmatpush1.bf16.msra.mxu0 %v1028
  %1685 = vmatprep.subr.bf16.mxu0 %v1032
  %1686 = vmatpush1.bf16.msra.mxu0 %v1031
  %1687 = vmatprep.subr.bf16.mxu0 %v1531
  %1688 = vmatpush1.bf16.msra.mxu0 %v1527
  %1689 = vmatprep.subr.bf16.mxu0 %v1426
  %1690 = vmatpush1.bf16.msra.mxu0 %v1424
  %1691 = vmatprep.subr.bf16.mxu0 %v1438
  %1692 = vmatpush1.bf16.msra.mxu0 %v1436
  %1693 = vmatprep.subr.bf16.mxu0 %v1175
  %1694 = vmatpush1.bf16.msra.mxu0 %v1174
  %1695 = vmatprep.subr.bf16.mxu0 %v1178
  %1696 = vmatpush1.bf16.msra.mxu0 %v1177
  %1697 = vmatprep.subr.bf16.mxu0 %v1555
  %1698 = vmatpush1.bf16.msra.mxu0 %v1551
  %1699 = vmatprep.subr.bf16.mxu0 %v1468
  %1700 = vmatpush1.bf16.msra.mxu0 %v1466
  %1701 = vmatprep.subr.bf16.mxu0 %v1480
  %1702 = vmatpush1.bf16.msra.mxu0 %v1478
  %1703 = vmatprep.subr.bf16.mxu0 %v1321
  %1704 = vmatpush1.bf16.msra.mxu0 %v1320
  %1705 = vmatprep.mubr.bf16.mxu0 %v1623
  %1706 = vmatmul.mubr.bf16.gmra.mrb[0].mxu0 %v1622
  %v1707 = vpop.f32.mrb[0].mxu0
  %v1708 = vadd.f32 0.0, %v1707
  %v1709 = vpop.f32.mrb[0].mxu0
  %v1710 = vadd.f32 0.0, %v1709
  %v1711 = vpop.f32.mrb[0].mxu0
  %v1712 = vadd.f32 0.0, %v1711
  %v1713 = vpop.f32.mrb[0].mxu0
  %v1714 = vadd.f32 0.0, %v1713
  %1715 = vmatprep.mubr.bf16.mxu0 %v1626
  %1716 = vmatmul.mubr.bf16.gmra.mrb[0].mxu0 %v1625
  %v1717 = vpop.f32.mrb[0].mxu0
  %v1718 = vadd.f32 0.0, %v1717
  %v1719 = vpop.f32.mrb[0].mxu0
  %v1720 = vadd.f32 0.0, %v1719
  %v1721 = vpop.f32.mrb[0].mxu0
  %v1722 = vadd.f32 0.0, %v1721
  %v1723 = vpop.f32.mrb[0].mxu0
  %v1724 = vadd.f32 0.0, %v1723
  %1725 = vmatprep.mubr.bf16.mxu0 %v1629
  %1726 = vmatmul.mubr.bf16.gmra.mrb[0].mxu0 %v1628
  %v1727 = vpop.f32.mrb[0].mxu0
  %v1728 = vadd.f32 0.0, %v1727
  %v1729 = vpop.f32.mrb[0].mxu0
  %v1730 = vadd.f32 0.0, %v1729
  %v1731 = vpop.f32.mrb[0].mxu0
  %v1732 = vadd.f32 0.0, %v1731
  %v1733 = vpop.f32.mrb[0].mxu0
  %v1734 = vadd.f32 0.0, %v1733
  %1735 = vmatprep.mubr.bf16.mxu0 %v1632
  %1736 = vmatmul.mubr.bf16.gmra.mrb[0].mxu0 %v1631
  %v1737 = vpop.f32.mrb[0].mxu0
  %v1738 = vadd.f32 0.0, %v1737
  %v1739 = vpop.f32.mrb[0].mxu0
  %v1740 = vadd.f32 0.0, %v1739
  %v1741 = vpop.f32.mrb[0].mxu0
  %v1742 = vpop.f32.mrb[0].mxu0
  %1743 = vdwg.mxu0
  %1744 = vmatprep.subr.bf16.mxu0 %v1324
  %1745 = vmatpush1.bf16.msra.mxu0 %v1323
  %1746 = vmatprep.subr.bf16.mxu0 %v1659
  %1747 = vmatpush1.bf16.msra.mxu0 %v1656
  %1748 = vmatprep.subr.bf16.mxu0 0
  %1749 = vmatpush1.bf16.msra.mxu0 0
  %1750 = vmatprep.subr.bf16.mxu0 0
  %1751 = vmatpush1.bf16.msra.mxu0 0
  %1752 = vmatprep.subr.bf16.mxu0 0
  %1753 = vmatpush1.bf16.msra.mxu0 0
  %1754 = vmatprep.subr.bf16.mxu0 0
  %1755 = vmatpush1.bf16.msra.mxu0 0
  %1756 = vmatprep.subr.bf16.mxu0 0
  %1757 = vmatpush1.bf16.msra.mxu0 0
  %1758 = vmatprep.subr.bf16.mxu0 0
  %1759 = vmatpush1.bf16.msra.mxu0 0
  %1760 = vmatprep.subr.bf16.mxu0 0
  %1761 = vmatpush1.bf16.msra.mxu0 0
  %1762 = vmatprep.subr.bf16.mxu0 0
  %1763 = vmatpush1.bf16.msra.mxu0 0
  %1764 = vmatprep.subr.bf16.mxu0 0
  %1765 = vmatpush1.bf16.msra.mxu0 0
  %1766 = vmatprep.subr.bf16.mxu0 0
  %1767 = vmatpush1.bf16.msra.mxu0 0
  %1768 = vmatprep.subr.bf16.mxu0 0
  %1769 = vmatpush1.bf16.msra.mxu0 0
  %1770 = vmatprep.subr.bf16.mxu0 0
  %1771 = vmatpush1.bf16.msra.mxu0 0
  %1772 = vmatprep.subr.bf16.mxu0 0
  %1773 = vmatpush1.bf16.msra.mxu0 0
  %1774 = vmatprep.subr.bf16.mxu0 0
  %1775 = vmatpush1.bf16.msra.mxu0 0
  %1776 = vmatprep.mubr.bf16.mxu0 0
  %1777 = vmatmul.mubr.bf16.gmra.mrb[0].mxu0 %v1644
  %v1778 = vpop.f32.mrb[0].mxu0
  %v1779 = vadd.f32 %v1708, %v1778
  %v1780 = vpop.f32.mrb[0].mxu0
  %v1781 = vadd.f32 %v1710, %v1780
  %v1782 = vpop.f32.mrb[0].mxu0
  %v1783 = vadd.f32 %v1712, %v1782
  %v1784 = vpop.f32.mrb[0].mxu0
  %v1785 = vadd.f32 %v1714, %v1784
  %1786 = vmatprep.mubr.bf16.mxu0 0
  %1787 = vmatmul.mubr.bf16.gmra.mrb[0].mxu0 %v1647
  %v1788 = vpop.f32.mrb[0].mxu0
  %v1789 = vadd.f32 %v1718, %v1788
  %v1790 = vpop.f32.mrb[0].mxu0
  %v1791 = vadd.f32 %v1720, %v1790
  %v1792 = vpop.f32.mrb[0].mxu0
  %v1793 = vadd.f32 %v1722, %v1792
  %v1794 = vpop.f32.mrb[0].mxu0
  %v1795 = vadd.f32 %v1724, %v1794
  %1796 = vmatprep.mubr.bf16.mxu0 0
  %1797 = vmatmul.mubr.bf16.gmra.mrb[0].mxu0 %v1650
  %v1798 = vpop.f32.mrb[0].mxu0
  %v1799 = vadd.f32 %v1728, %v1798
  %v1800 = vpop.f32.mrb[0].mxu0
  %v1801 = vadd.f32 %v1730, %v1800
  %v1802 = vpop.f32.mrb[0].mxu0
  %v1803 = vadd.f32 %v1732, %v1802
  %v1804 = vpop.f32.mrb[0].mxu0
  %v1805 = vadd.f32 %v1734, %v1804
  %1806 = vmatprep.mubr.bf16.mxu0 0
  %1807 = vmatmul.mubr.bf16.gmra.mrb[0].mxu0 %v1653
  %v1808 = vpop.f32.mrb[0].mxu0
  %v1809 = vadd.f32 %v1738, %v1808
  %v1810 = vpop.f32.mrb[0].mxu0
  %v1811 = vadd.f32 %v1740, %v1810
  %v1812 = vpop.f32.mrb[0].mxu0
  %v1813 = vpop.f32.mrb[0].mxu0
  %1814 = vdwg.mxu0
  %1815 = vmatprep.subr.bf16.mxu0 %v843
  %1816 = vmatpush1.bf16.msra.mxu0 %v805
  %1817 = vmatprep.subr.bf16.mxu0 %v846
  %1818 = vmatpush1.bf16.msra.mxu0 %v808
  %1819 = vmatprep.subr.bf16.mxu0 %v1515
  %1820 = vmatpush1.bf16.msra.mxu0 %v1511
  %1821 = vmatprep.subr.bf16.mxu0 %v1388
  %1822 = vmatpush1.bf16.msra.mxu0 %v1386
  %1823 = vmatprep.subr.bf16.mxu0 %v1400
  %1824 = vmatpush1.bf16.msra.mxu0 %v1398
  %1825 = vmatprep.subr.bf16.mxu0 %v1067
  %1826 = vmatpush1.bf16.msra.mxu0 %v1030
  %1827 = vmatprep.subr.bf16.mxu0 %v1070
  %1828 = vmatpush1.bf16.msra.mxu0 %v1033
  %1829 = vmatprep.subr.bf16.mxu0 %v1539
  %1830 = vmatpush1.bf16.msra.mxu0 %v1535
  %1831 = vmatprep.subr.bf16.mxu0 %v1430
  %1832 = vmatpush1.bf16.msra.mxu0 %v1428
  %1833 = vmatprep.subr.bf16.mxu0 %v1442
  %1834 = vmatpush1.bf16.msra.mxu0 %v1440
  %1835 = vmatprep.subr.bf16.mxu0 %v1213
  %1836 = vmatpush1.bf16.msra.mxu0 %v1176
  %1837 = vmatprep.subr.bf16.mxu0 %v1216
  %1838 = vmatpush1.bf16.msra.mxu0 %v1179
  %1839 = vmatprep.subr.bf16.mxu0 %v1563
  %1840 = vmatpush1.bf16.msra.mxu0 %v1559
  %1841 = vmatprep.subr.bf16.mxu0 %v1472
  %1842 = vmatpush1.bf16.msra.mxu0 %v1470
  %1843 = vmatprep.subr.bf16.mxu0 %v1484
  %1844 = vmatpush1.bf16.msra.mxu0 %v1482
  %1845 = vmatprep.subr.bf16.mxu0 %v1359
  %1846 = vmatpush1.bf16.msra.mxu0 %v1322
  %1847 = vmatprep.mubr.bf16.mxu0 %v1623
  %1848 = vmatmul.mubr.bf16.gmra.mrb[0].mxu0 %v1622
  %v1849 = vpop.f32.mrb[0].mxu0
  %v1850 = vadd.f32 0.0, %v1849
  %v1851 = vpop.f32.mrb[0].mxu0
  %v1852 = vadd.f32 0.0, %v1851
  %v1853 = vpop.f32.mrb[0].mxu0
  %v1854 = vadd.f32 0.0, %v1853
  %v1855 = vpop.f32.mrb[0].mxu0
  %v1856 = vadd.f32 0.0, %v1855
  %1857 = vmatprep.mubr.bf16.mxu0 %v1626
  %1858 = vmatmul.mubr.bf16.gmra.mrb[0].mxu0 %v1625
  %v1859 = vpop.f32.mrb[0].mxu0
  %v1860 = vadd.f32 0.0, %v1859
  %v1861 = vpop.f32.mrb[0].mxu0
  %v1862 = vadd.f32 0.0, %v1861
  %v1863 = vpop.f32.mrb[0].mxu0
  %v1864 = vadd.f32 0.0, %v1863
  %v1865 = vpop.f32.mrb[0].mxu0
  %v1866 = vadd.f32 0.0, %v1865
  %1867 = vmatprep.mubr.bf16.mxu0 %v1629
  %1868 = vmatmul.mubr.bf16.gmra.mrb[0].mxu0 %v1628
  %v1869 = vpop.f32.mrb[0].mxu0
  %v1870 = vadd.f32 0.0, %v1869
  %v1871 = vpop.f32.mrb[0].mxu0
  %v1872 = vadd.f32 0.0, %v1871
  %v1873 = vpop.f32.mrb[0].mxu0
  %v1874 = vadd.f32 0.0, %v1873
  %v1875 = vpop.f32.mrb[0].mxu0
  %v1876 = vadd.f32 0.0, %v1875
  %1877 = vmatprep.mubr.bf16.mxu0 %v1632
  %1878 = vmatmul.mubr.bf16.gmra.mrb[0].mxu0 %v1631
  %v1879 = vpop.f32.mrb[0].mxu0
  %v1880 = vadd.f32 0.0, %v1879
  %v1881 = vpop.f32.mrb[0].mxu0
  %v1882 = vadd.f32 0.0, %v1881
  %v1883 = vpop.f32.mrb[0].mxu0
  %v1884 = vpop.f32.mrb[0].mxu0
  %1885 = vdwg.mxu0
  %1886 = vmatprep.subr.bf16.mxu0 %v1362
  %1887 = vmatpush1.bf16.msra.mxu0 %v1325
  %1888 = vmatprep.subr.bf16.mxu0 %v1665
  %1889 = vmatpush1.bf16.msra.mxu0 %v1662
  %1890 = vmatprep.subr.bf16.mxu0 0
  %1891 = vmatpush1.bf16.msra.mxu0 0
  %1892 = vmatprep.subr.bf16.mxu0 0
  %1893 = vmatpush1.bf16.msra.mxu0 0
  %1894 = vmatprep.subr.bf16.mxu0 0
  %1895 = vmatpush1.bf16.msra.mxu0 0
  %1896 = vmatprep.subr.bf16.mxu0 0
  %1897 = vmatpush1.bf16.msra.mxu0 0
  %1898 = vmatprep.subr.bf16.mxu0 0
  %1899 = vmatpush1.bf16.msra.mxu0 0
  %1900 = vmatprep.subr.bf16.mxu0 0
  %1901 = vmatpush1.bf16.msra.mxu0 0
  %1902 = vmatprep.subr.bf16.mxu0 0
  %1903 = vmatpush1.bf16.msra.mxu0 0
  %1904 = vmatprep.subr.bf16.mxu0 0
  %1905 = vmatpush1.bf16.msra.mxu0 0
  %1906 = vmatprep.subr.bf16.mxu0 0
  %1907 = vmatpush1.bf16.msra.mxu0 0
  %1908 = vmatprep.subr.bf16.mxu0 0
  %1909 = vmatpush1.bf16.msra.mxu0 0
  %1910 = vmatprep.subr.bf16.mxu0 0
  %1911 = vmatpush1.bf16.msra.mxu0 0
  %1912 = vmatprep.subr.bf16.mxu0 0
  %1913 = vmatpush1.bf16.msra.mxu0 0
  %1914 = vmatprep.subr.bf16.mxu0 0
  %1915 = vmatpush1.bf16.msra.mxu0 0
  %1916 = vmatprep.subr.bf16.mxu0 0
  %1917 = vmatpush1.bf16.msra.mxu0 0
  %1918 = vmatprep.mubr.bf16.mxu0 0
  %1919 = vmatmul.mubr.bf16.gmra.mrb[0].mxu0 %v1644
  %v1920 = vpop.f32.mrb[0].mxu0
  %v1921 = vadd.f32 %v1850, %v1920
  %v1922 = vpop.f32.mrb[0].mxu0
  %v1923 = vadd.f32 %v1852, %v1922
  %v1924 = vpop.f32.mrb[0].mxu0
  %v1925 = vadd.f32 %v1854, %v1924
  %v1926 = vpop.f32.mrb[0].mxu0
  %v1927 = vadd.f32 %v1856, %v1926
  %1928 = vmatprep.mubr.bf16.mxu0 0
  %1929 = vmatmul.mubr.bf16.gmra.mrb[0].mxu0 %v1647
  %v1930 = vpop.f32.mrb[0].mxu0
  %v1931 = vadd.f32 %v1860, %v1930
  %v1932 = vpop.f32.mrb[0].mxu0
  %v1933 = vadd.f32 %v1862, %v1932
  %v1934 = vpop.f32.mrb[0].mxu0
  %v1935 = vadd.f32 %v1864, %v1934
  %v1936 = vpop.f32.mrb[0].mxu0
  %v1937 = vadd.f32 %v1866, %v1936
  %1938 = vmatprep.mubr.bf16.mxu0 0
  %1939 = vmatmul.mubr.bf16.gmra.mrb[0].mxu0 %v1650
  %v1940 = vpop.f32.mrb[0].mxu0
  %v1941 = vadd.f32 %v1870, %v1940
  %v1942 = vpop.f32.mrb[0].mxu0
  %v1943 = vadd.f32 %v1872, %v1942
  %v1944 = vpop.f32.mrb[0].mxu0
  %v1945 = vadd.f32 %v1874, %v1944
  %v1946 = vpop.f32.mrb[0].mxu0
  %v1947 = vadd.f32 %v1876, %v1946
  %1948 = vmatprep.mubr.bf16.mxu0 0
  %1949 = vmatmul.mubr.bf16.gmra.mrb[0].mxu0 %v1653
  %v1950 = vpop.f32.mrb[0].mxu0
  %v1951 = vadd.f32 %v1880, %v1950
  %v1952 = vpop.f32.mrb[0].mxu0
  %v1953 = vadd.f32 %v1882, %v1952
  %v1954 = vpop.f32.mrb[0].mxu0
  %v1955 = vpop.f32.mrb[0].mxu0
  %1956 = vdwg.mxu0
  %1957 = vmatprep.subr.bf16.mxu0 %v845
  %1958 = vmatpush1.bf16.msra.mxu0 %v844
  %1959 = vmatprep.subr.bf16.mxu0 %v848
  %1960 = vmatpush1.bf16.msra.mxu0 %v847
  %1961 = vmatprep.subr.bf16.mxu0 %v1523
  %1962 = vmatpush1.bf16.msra.mxu0 %v1519
  %1963 = vmatprep.subr.bf16.mxu0 %v1392
  %1964 = vmatpush1.bf16.msra.mxu0 %v1390
  %1965 = vmatprep.subr.bf16.mxu0 %v1404
  %1966 = vmatpush1.bf16.msra.mxu0 %v1402
  %1967 = vmatprep.subr.bf16.mxu0 %v1069
  %1968 = vmatpush1.bf16.msra.mxu0 %v1068
  %1969 = vmatprep.subr.bf16.mxu0 %v1072
  %1970 = vmatpush1.bf16.msra.mxu0 %v1071
  %1971 = vmatprep.subr.bf16.mxu0 %v1547
  %1972 = vmatpush1.bf16.msra.mxu0 %v1543
  %1973 = vmatprep.subr.bf16.mxu0 %v1434
  %1974 = vmatpush1.bf16.msra.mxu0 %v1432
  %1975 = vmatprep.subr.bf16.mxu0 %v1446
  %1976 = vmatpush1.bf16.msra.mxu0 %v1444
  %1977 = vmatprep.subr.bf16.mxu0 %v1215
  %1978 = vmatpush1.bf16.msra.mxu0 %v1214
  %1979 = vmatprep.subr.bf16.mxu0 %v1218
  %1980 = vmatpush1.bf16.msra.mxu0 %v1217
  %1981 = vmatprep.subr.bf16.mxu0 %v1571
  %1982 = vmatpush1.bf16.msra.mxu0 %v1567
  %1983 = vmatprep.subr.bf16.mxu0 %v1476
  %1984 = vmatpush1.bf16.msra.mxu0 %v1474
  %1985 = vmatprep.subr.bf16.mxu0 %v1488
  %1986 = vmatpush1.bf16.msra.mxu0 %v1486
  %1987 = vmatprep.subr.bf16.mxu0 %v1361
  %1988 = vmatpush1.bf16.msra.mxu0 %v1360
  %1989 = vmatprep.mubr.bf16.mxu0 %v1623
  %1990 = vmatmul.mubr.bf16.gmra.mrb[0].mxu0 %v1622
  %v1991 = vpop.f32.mrb[0].mxu0
  %v1992 = vadd.f32 0.0, %v1991
  %v1993 = vpop.f32.mrb[0].mxu0
  %v1994 = vadd.f32 0.0, %v1993
  %v1995 = vpop.f32.mrb[0].mxu0
  %v1996 = vadd.f32 0.0, %v1995
  %v1997 = vpop.f32.mrb[0].mxu0
  %v1998 = vadd.f32 0.0, %v1997
  %1999 = vmatprep.mubr.bf16.mxu0 %v1626
  %2000 = vmatmul.mubr.bf16.gmra.mrb[0].mxu0 %v1625
  %v2001 = vpop.f32.mrb[0].mxu0
  %v2002 = vadd.f32 0.0, %v2001
  %v2003 = vpop.f32.mrb[0].mxu0
  %v2004 = vadd.f32 0.0, %v2003
  %v2005 = vpop.f32.mrb[0].mxu0
  %v2006 = vadd.f32 0.0, %v2005
  %v2007 = vpop.f32.mrb[0].mxu0
  %v2008 = vadd.f32 0.0, %v2007
  %2009 = vmatprep.mubr.bf16.mxu0 %v1629
  %2010 = vmatmul.mubr.bf16.gmra.mrb[0].mxu0 %v1628
  %v2011 = vpop.f32.mrb[0].mxu0
  %v2012 = vadd.f32 0.0, %v2011
  %v2013 = vpop.f32.mrb[0].mxu0
  %v2014 = vadd.f32 0.0, %v2013
  %v2015 = vpop.f32.mrb[0].mxu0
  %v2016 = vadd.f32 0.0, %v2015
  %v2017 = vpop.f32.mrb[0].mxu0
  %v2018 = vadd.f32 0.0, %v2017
  %2019 = vmatprep.mubr.bf16.mxu0 %v1632
  %2020 = vmatmul.mubr.bf16.gmra.mrb[0].mxu0 %v1631
  %v2021 = vpop.f32.mrb[0].mxu0
  %v2022 = vadd.f32 0.0, %v2021
  %v2023 = vpop.f32.mrb[0].mxu0
  %v2024 = vadd.f32 0.0, %v2023
  %v2025 = vpop.f32.mrb[0].mxu0
  %v2026 = vpop.f32.mrb[0].mxu0
  %2027 = vdwg.mxu0
  %2028 = vmatprep.subr.bf16.mxu0 %v1364
  %2029 = vmatpush1.bf16.msra.mxu0 %v1363
  %2030 = vmatprep.subr.bf16.mxu0 %v1671
  %2031 = vmatpush1.bf16.msra.mxu0 %v1668
  %2032 = vmatprep.subr.bf16.mxu0 0
  %2033 = vmatpush1.bf16.msra.mxu0 0
  %2034 = vmatprep.subr.bf16.mxu0 0
  %2035 = vmatpush1.bf16.msra.mxu0 0
  %2036 = vmatprep.subr.bf16.mxu0 0
  %2037 = vmatpush1.bf16.msra.mxu0 0
  %2038 = vmatprep.subr.bf16.mxu0 0
  %2039 = vmatpush1.bf16.msra.mxu0 0
  %2040 = vmatprep.subr.bf16.mxu0 0
  %2041 = vmatpush1.bf16.msra.mxu0 0
  %2042 = vmatprep.subr.bf16.mxu0 0
  %2043 = vmatpush1.bf16.msra.mxu0 0
  %2044 = vmatprep.subr.bf16.mxu0 0
  %2045 = vmatpush1.bf16.msra.mxu0 0
  %2046 = vmatprep.subr.bf16.mxu0 0
  %2047 = vmatpush1.bf16.msra.mxu0 0
  %2048 = vmatprep.subr.bf16.mxu0 0
  %2049 = vmatpush1.bf16.msra.mxu0 0
  %2050 = vmatprep.subr.bf16.mxu0 0
  %2051 = vmatpush1.bf16.msra.mxu0 0
  %2052 = vmatprep.subr.bf16.mxu0 0
  %2053 = vmatpush1.bf16.msra.mxu0 0
  %2054 = vmatprep.subr.bf16.mxu0 0
  %2055 = vmatpush1.bf16.msra.mxu0 0
  %2056 = vmatprep.subr.bf16.mxu0 0
  %2057 = vmatpush1.bf16.msra.mxu0 0
  %2058 = vmatprep.subr.bf16.mxu0 0
  %2059 = vmatpush1.bf16.msra.mxu0 0
  %2060 = vmatprep.mubr.bf16.mxu0 0
  %2061 = vmatmul.mubr.bf16.gmra.mrb[0].mxu0 %v1644
  %v2062 = vpop.f32.mrb[0].mxu0
  %v2063 = vadd.f32 %v1992, %v2062
  %v2064 = vpop.f32.mrb[0].mxu0
  %v2065 = vadd.f32 %v1994, %v2064
  %v2066 = vpop.f32.mrb[0].mxu0
  %v2067 = vadd.f32 %v1996, %v2066
  %v2068 = vpop.f32.mrb[0].mxu0
  %v2069 = vadd.f32 %v1998, %v2068
  %2070 = vmatprep.mubr.bf16.mxu0 0
  %2071 = vmatmul.mubr.bf16.gmra.mrb[0].mxu0 %v1647
  %v2072 = vpop.f32.mrb[0].mxu0
  %v2073 = vadd.f32 %v2002, %v2072
  %v2074 = vpop.f32.mrb[0].mxu0
  %v2075 = vadd.f32 %v2004, %v2074
  %v2076 = vpop.f32.mrb[0].mxu0
  %v2077 = vadd.f32 %v2006, %v2076
  %v2078 = vpop.f32.mrb[0].mxu0
  %v2079 = vadd.f32 %v2008, %v2078
  %2080 = vmatprep.mubr.bf16.mxu0 0
  %2081 = vmatmul.mubr.bf16.gmra.mrb[0].mxu0 %v1650
  %v2082 = vpop.f32.mrb[0].mxu0
  %v2083 = vadd.f32 %v2012, %v2082
  %v2084 = vpop.f32.mrb[0].mxu0
  %v2085 = vadd.f32 %v2014, %v2084
  %v2086 = vpop.f32.mrb[0].mxu0
  %v2087 = vadd.f32 %v2016, %v2086
  %v2088 = vpop.f32.mrb[0].mxu0
  %v2089 = vadd.f32 %v2018, %v2088
  %2090 = vmatprep.mubr.bf16.mxu0 0
  %2091 = vmatmul.mubr.bf16.gmra.mrb[0].mxu0 %v1653
  %v2092 = vpop.f32.mrb[0].mxu0
  %v2093 = vadd.f32 %v2022, %v2092
  %v2094 = vpop.f32.mrb[0].mxu0
  %v2095 = vadd.f32 %v2024, %v2094
  %v2096 = vpop.f32.mrb[0].mxu0
  %v2097 = vpop.f32.mrb[0].mxu0
  %2098 = vdwg.mxu0
  %2099 = vst [vmem:[#allocation3] sm:$0xff] %v1779
  %2100 = vst [vmem:[#allocation3 + $0x8] sm:$0xff] %v1781
  %2101 = vst [vmem:[#allocation3 + $0x10] sm:$0xff] %v1921
  %2102 = vst [vmem:[#allocation3 + $0x18] sm:$0xff] %v1923
  %2103 = vst [vmem:[#allocation3 + $0x20] sm:$0xff] %v2063
  %2104 = vst [vmem:[#allocation3 + $0x28] sm:$0xff] %v2065
  %2105 = vst [vmem:[#allocation3 + $0x30] sm:$0xff] %v1783
  %2106 = vst [vmem:[#allocation3 + $0x38] sm:$0xff] %v1785
  %2107 = vst [vmem:[#allocation3 + $0x40] sm:$0xff] %v1925
  %2108 = vst [vmem:[#allocation3 + $0x48] sm:$0xff] %v1927
  %2109 = vst [vmem:[#allocation3 + $0x50] sm:$0xff] %v2067
  %2110 = vst [vmem:[#allocation3 + $0x58] sm:$0xff] %v2069
  %2111 = vst [vmem:[#allocation3 + $0x60] sm:$0xff] %v1789
  %2112 = vst [vmem:[#allocation3 + $0x68] sm:$0xff] %v1791
  %2113 = vst [vmem:[#allocation3 + $0x70] sm:$0xff] %v1931
  %2114 = vst [vmem:[#allocation3 + $0x78] sm:$0xff] %v1933
  %2115 = vst [vmem:[#allocation3 + $0x80] sm:$0xff] %v2073
  %2116 = vst [vmem:[#allocation3 + $0x88] sm:$0xff] %v2075
  %2117 = vst [vmem:[#allocation3 + $0x90] sm:$0xff] %v1793
  %2118 = vst [vmem:[#allocation3 + $0x98] sm:$0xff] %v1795
  %2119 = vst [vmem:[#allocation3 + $0xa0] sm:$0xff] %v1935
  %2120 = vst [vmem:[#allocation3 + $0xa8] sm:$0xff] %v1937
  %2121 = vst [vmem:[#allocation3 + $0xb0] sm:$0xff] %v2077
  %2122 = vst [vmem:[#allocation3 + $0xb8] sm:$0xff] %v2079
  %2123 = vst [vmem:[#allocation3 + $0xc0] sm:$0xff] %v1799
  %2124 = vst [vmem:[#allocation3 + $0xc8] sm:$0xff] %v1801
  %2125 = vst [vmem:[#allocation3 + $0xd0] sm:$0xff] %v1941
  %2126 = vst [vmem:[#allocation3 + $0xd8] sm:$0xff] %v1943
  %2127 = vst [vmem:[#allocation3 + $0xe0] sm:$0xff] %v2083
  %2128 = vst [vmem:[#allocation3 + $0xe8] sm:$0xff] %v2085
  %2129 = vst [vmem:[#allocation3 + $0xf0] sm:$0xff] %v1803
  %2130 = vst [vmem:[#allocation3 + $0xf8] sm:$0xff] %v1805
  %2131 = vst [vmem:[#allocation3 + $0x100] sm:$0xff] %v1945
  %2132 = vst [vmem:[#allocation3 + $0x108] sm:$0xff] %v1947
  %2133 = vst [vmem:[#allocation3 + $0x110] sm:$0xff] %v2087
  %2134 = vst [vmem:[#allocation3 + $0x118] sm:$0xff] %v2089
  %2135 = vst [vmem:[#allocation3 + $0x120] sm:$0x3] %v1809
  %2136 = vst [vmem:[#allocation3 + $0x128] sm:$0x3] %v1811
  %2137 = vst [vmem:[#allocation3 + $0x130] sm:$0x3] %v1951
  %2138 = vst [vmem:[#allocation3 + $0x138] sm:$0x3] %v1953
  %2139 = vst [vmem:[#allocation3 + $0x140] sm:$0x3] %v2093
  %2140 = vst [vmem:[#allocation3 + $0x148] sm:$0x3] %v2095
  %v2141 = vld [vmem:[#allocation2] sm:$0xff]
  %v2142 = vld [vmem:[#allocation2 + $0x8] sm:$0xff]
  %v2143 = vld [vmem:[#allocation2 + $0x20] sm:$0xff]
  %v2144 = vld [vmem:[#allocation2 + $0x28] sm:$0xff]
  %v2145 = vld [vmem:[#allocation2 + $0x40] sm:$0xff]
  %v2146 = vld [vmem:[#allocation2 + $0x48] sm:$0xff]
  %v2147 = vld [vmem:[#allocation2 + $0x60] sm:$0xff]
  %v2148 = vld [vmem:[#allocation2 + $0x68] sm:$0xff]
  %v2149 = vld [vmem:[#allocation2 + $0x80] sm:$0xff]
  %v2150 = vld [vmem:[#allocation2 + $0x88] sm:$0xff]
  %v2151 = vld [vmem:[#allocation2 + $0x10] sm:$0xff]
  %v2152 = vld [vmem:[#allocation2 + $0x18] sm:$0xff]
  %v2153 = vld [vmem:[#allocation2 + $0x30] sm:$0xff]
  %v2154 = vld [vmem:[#allocation2 + $0x38] sm:$0xff]
  %v2155 = vld [vmem:[#allocation2 + $0x50] sm:$0xff]
  %v2156 = vld [vmem:[#allocation2 + $0x58] sm:$0xff]
  %v2157 = vld [vmem:[#allocation2 + $0x70] sm:$0xff]
  %v2158 = vld [vmem:[#allocation2 + $0x78] sm:$0xff]
  %v2159 = vld [vmem:[#allocation2 + $0x90] sm:$0xff]
  %v2160 = vld [vmem:[#allocation2 + $0x98] sm:$0xff]
  %v2171 = vunpack.c.l.b16 %v2141
  %v2172 = vunpack.c.h.b16 %v2141
  %v2173 = vunpack.c.l.b16 %v2142
  %v2174 = vunpack.c.h.b16 %v2142
  %v2175 = vunpack.c.l.b16 %v2143
  %v2176 = vunpack.c.h.b16 %v2143
  %v2177 = vunpack.c.l.b16 %v2144
  %v2178 = vunpack.c.h.b16 %v2144
  %v2179 = vunpack.c.l.b16 %v2145
  %v2180 = vunpack.c.h.b16 %v2145
  %v2181 = vunpack.c.l.b16 %v2146
  %v2182 = vunpack.c.h.b16 %v2146
  %v2183 = vunpack.c.l.b16 %v2147
  %v2184 = vunpack.c.h.b16 %v2147
  %v2185 = vunpack.c.l.b16 %v2148
  %v2186 = vunpack.c.h.b16 %v2148
  %v2187 = vunpack.c.l.b16 %v2149
  %v2188 = vunpack.c.h.b16 %v2149
  %v2189 = vunpack.c.l.b16 %v2150
  %v2190 = vunpack.c.h.b16 %v2150
  %v2191 = vpack.c.b16 %v2175, %v2171
  %v2192 = vpack.c.b16 %v2176, %v2172
  %v2193 = vpack.c.b16 %v2177, %v2173
  %v2194 = vpack.c.b16 %v2178, %v2174
  %v2195 = vpack.c.b16 %v2183, %v2179
  %v2196 = vpack.c.b16 %v2184, %v2180
  %v2197 = vpack.c.b16 %v2185, %v2181
  %v2198 = vpack.c.b16 %v2186, %v2182
  %v2199 = vpack.c.b16 %v2187, %v2187
  %v2200 = vpack.c.b16 %v2188, %v2188
  %v2201 = vpack.c.b16 %v2189, %v2189
  %v2202 = vpack.c.b16 %v2190, %v2190
  %2203 = vrot.lane.b32.xlu0 %v2191, 110
  %v2204 = vpop.permute.xlu0 %2203
  %2205 = vrot.lane.b32.xlu0 %v2192, 110
  %v2206 = vpop.permute.xlu0 %2205
  %2207 = vrot.lane.b32.xlu0 %v2193, 110
  %v2208 = vpop.permute.xlu0 %2207
  %2209 = vrot.lane.b32.xlu0 %v2194, 110
  %v2210 = vpop.permute.xlu0 %2209
  %2211 = vrot.lane.b32.xlu0 %v2195, 110
  %v2212 = vpop.permute.xlu0 %2211
  %2213 = vrot.lane.b32.xlu0 %v2196, 110
  %v2214 = vpop.permute.xlu0 %2213
  %2215 = vrot.lane.b32.xlu0 %v2197, 110
  %v2216 = vpop.permute.xlu0 %2215
  %2217 = vrot.lane.b32.xlu0 %v2198, 110
  %v2218 = vpop.permute.xlu0 %2217
  %2219 = vrot.lane.b32.xlu0 %v2199, 110
  %v2220 = vpop.permute.xlu0 %2219
  %2221 = vrot.lane.b32.xlu0 %v2200, 110
  %v2222 = vpop.permute.xlu0 %2221
  %2223 = vrot.lane.b32.xlu0 %v2201, 110
  %v2224 = vpop.permute.xlu0 %2223
  %2225 = vrot.lane.b32.xlu0 %v2202, 110
  %v2226 = vpop.permute.xlu0 %2225
  %vm2227 = vcmask 900096
  %v2228 = vsel %vm2227, %v2204, %v2206
  %v2229 = vsel %vm2227, %v2206, %v2208
  %v2230 = vsel %vm2227, %v2208, %v2210
  %v2231 = vsel %vm2227, %v2212, %v2214
  %v2232 = vsel %vm2227, %v2214, %v2216
  %v2233 = vsel %vm2227, %v2216, %v2218
  %v2234 = vsel %vm2227, %v2220, %v2222
  %v2235 = vsel %vm2227, %v2222, %v2224
  %v2236 = vsel %vm2227, %v2224, %v2226
  %v2253 = vunpack.c.l.b16 %v2151
  %v2254 = vunpack.c.h.b16 %v2151
  %v2255 = vunpack.c.l.b16 %v2152
  %v2256 = vunpack.c.h.b16 %v2152
  %v2257 = vunpack.c.l.b16 %v2153
  %v2258 = vunpack.c.h.b16 %v2153
  %v2259 = vunpack.c.l.b16 %v2154
  %v2260 = vunpack.c.h.b16 %v2154
  %v2261 = vunpack.c.l.b16 %v2155
  %v2262 = vunpack.c.h.b16 %v2155
  %v2263 = vunpack.c.l.b16 %v2156
  %v2264 = vunpack.c.h.b16 %v2156
  %v2265 = vunpack.c.l.b16 %v2157
  %v2266 = vunpack.c.h.b16 %v2157
  %v2267 = vunpack.c.l.b16 %v2158
  %v2268 = vunpack.c.h.b16 %v2158
  %v2269 = vunpack.c.l.b16 %v2159
  %v2270 = vunpack.c.h.b16 %v2159
  %v2271 = vunpack.c.l.b16 %v2160
  %v2272 = vunpack.c.h.b16 %v2160
  %v2273 = vpack.c.b16 %v2257, %v2253
  %v2274 = vpack.c.b16 %v2258, %v2254
  %v2275 = vpack.c.b16 %v2259, %v2255
  %v2276 = vpack.c.b16 %v2260, %v2256
  %v2277 = vpack.c.b16 %v2265, %v2261
  %v2278 = vpack.c.b16 %v2266, %v2262
  %v2279 = vpack.c.b16 %v2267, %v2263
  %v2280 = vpack.c.b16 %v2268, %v2264
  %v2281 = vpack.c.b16 %v2269, %v2269
  %v2282 = vpack.c.b16 %v2270, %v2270
  %v2283 = vpack.c.b16 %v2271, %v2271
  %v2284 = vpack.c.b16 %v2272, %v2272
  %2285 = vrot.lane.b32.xlu0 %v2273, 110
  %v2286 = vpop.permute.xlu0 %2285
  %2287 = vrot.lane.b32.xlu0 %v2274, 110
  %v2288 = vpop.permute.xlu0 %2287
  %2289 = vrot.lane.b32.xlu0 %v2275, 110
  %v2290 = vpop.permute.xlu0 %2289
  %2291 = vrot.lane.b32.xlu0 %v2276, 110
  %v2292 = vpop.permute.xlu0 %2291
  %2293 = vrot.lane.b32.xlu0 %v2277, 110
  %v2294 = vpop.permute.xlu0 %2293
  %2295 = vrot.lane.b32.xlu0 %v2278, 110
  %v2296 = vpop.permute.xlu0 %2295
  %2297 = vrot.lane.b32.xlu0 %v2279, 110
  %v2298 = vpop.permute.xlu0 %2297
  %2299 = vrot.lane.b32.xlu0 %v2280, 110
  %v2300 = vpop.permute.xlu0 %2299
  %2301 = vrot.lane.b32.xlu0 %v2281, 110
  %v2302 = vpop.permute.xlu0 %2301
  %2303 = vrot.lane.b32.xlu0 %v2282, 110
  %v2304 = vpop.permute.xlu0 %2303
  %2305 = vrot.lane.b32.xlu0 %v2283, 110
  %v2306 = vpop.permute.xlu0 %2305
  %2307 = vrot.lane.b32.xlu0 %v2284, 110
  %v2308 = vpop.permute.xlu0 %2307
  %v2309 = vsel %vm2227, %v2286, %v2288
  %v2310 = vsel %vm2227, %v2288, %v2290
  %v2311 = vsel %vm2227, %v2290, %v2292
  %v2312 = vsel %vm2227, %v2294, %v2296
  %v2313 = vsel %vm2227, %v2296, %v2298
  %v2314 = vsel %vm2227, %v2298, %v2300
  %v2315 = vsel %vm2227, %v2302, %v2304
  %v2316 = vsel %vm2227, %v2304, %v2306
  %v2317 = vsel %vm2227, %v2306, %v2308
  %2324 = vrot.lane.b32.xlu0 %v2191, 109
  %v2325 = vpop.permute.xlu0 %2324
  %2326 = vrot.lane.b32.xlu0 %v2192, 109
  %v2327 = vpop.permute.xlu0 %2326
  %2328 = vrot.lane.b32.xlu0 %v2193, 109
  %v2329 = vpop.permute.xlu0 %2328
  %2330 = vrot.lane.b32.xlu0 %v2194, 109
  %v2331 = vpop.permute.xlu0 %2330
  %2332 = vrot.lane.b32.xlu0 %v2195, 109
  %v2333 = vpop.permute.xlu0 %2332
  %2334 = vrot.lane.b32.xlu0 %v2196, 109
  %v2335 = vpop.permute.xlu0 %2334
  %2336 = vrot.lane.b32.xlu0 %v2197, 109
  %v2337 = vpop.permute.xlu0 %2336
  %2338 = vrot.lane.b32.xlu0 %v2198, 109
  %v2339 = vpop.permute.xlu0 %2338
  %2340 = vrot.lane.b32.xlu0 %v2199, 109
  %v2341 = vpop.permute.xlu0 %2340
  %2342 = vrot.lane.b32.xlu0 %v2200, 109
  %v2343 = vpop.permute.xlu0 %2342
  %2344 = vrot.lane.b32.xlu0 %v2201, 109
  %v2345 = vpop.permute.xlu0 %2344
  %2346 = vrot.lane.b32.xlu0 %v2202, 109
  %v2347 = vpop.permute.xlu0 %2346
  %vm2348 = vcmask 891904
  %v2349 = vsel %vm2348, %v2325, %v2327
  %v2350 = vsel %vm2348, %v2327, %v2329
  %v2351 = vsel %vm2348, %v2329, %v2331
  %v2352 = vsel %vm2348, %v2333, %v2335
  %v2353 = vsel %vm2348, %v2335, %v2337
  %v2354 = vsel %vm2348, %v2337, %v2339
  %v2355 = vsel %vm2348, %v2341, %v2343
  %v2356 = vsel %vm2348, %v2343, %v2345
  %v2357 = vsel %vm2348, %v2345, %v2347
  %2358 = vrot.lane.b32.xlu0 %v2273, 109
  %v2359 = vpop.permute.xlu0 %2358
  %2360 = vrot.lane.b32.xlu0 %v2274, 109
  %v2361 = vpop.permute.xlu0 %2360
  %2362 = vrot.lane.b32.xlu0 %v2275, 109
  %v2363 = vpop.permute.xlu0 %2362
  %2364 = vrot.lane.b32.xlu0 %v2276, 109
  %v2365 = vpop.permute.xlu0 %2364
  %2366 = vrot.lane.b32.xlu0 %v2277, 109
  %v2367 = vpop.permute.xlu0 %2366
  %2368 = vrot.lane.b32.xlu0 %v2278, 109
  %v2369 = vpop.permute.xlu0 %2368
  %2370 = vrot.lane.b32.xlu0 %v2279, 109
  %v2371 = vpop.permute.xlu0 %2370
  %2372 = vrot.lane.b32.xlu0 %v2280, 109
  %v2373 = vpop.permute.xlu0 %2372
  %2374 = vrot.lane.b32.xlu0 %v2281, 109
  %v2375 = vpop.permute.xlu0 %2374
  %2376 = vrot.lane.b32.xlu0 %v2282, 109
  %v2377 = vpop.permute.xlu0 %2376
  %2378 = vrot.lane.b32.xlu0 %v2283, 109
  %v2379 = vpop.permute.xlu0 %2378
  %2380 = vrot.lane.b32.xlu0 %v2284, 109
  %v2381 = vpop.permute.xlu0 %2380
  %v2382 = vsel %vm2348, %v2359, %v2361
  %v2383 = vsel %vm2348, %v2361, %v2363
  %v2384 = vsel %vm2348, %v2363, %v2365
  %v2385 = vsel %vm2348, %v2367, %v2369
  %v2386 = vsel %vm2348, %v2369, %v2371
  %v2387 = vsel %vm2348, %v2371, %v2373
  %v2388 = vsel %vm2348, %v2375, %v2377
  %v2389 = vsel %vm2348, %v2377, %v2379
  %v2390 = vsel %vm2348, %v2379, %v2381
  %2391 = vrot.lane.b32.xlu0 %v2191, 108
  %v2392 = vpop.permute.xlu0 %2391
  %2393 = vrot.lane.b32.xlu0 %v2192, 108
  %v2394 = vpop.permute.xlu0 %2393
  %2395 = vrot.lane.b32.xlu0 %v2193, 108
  %v2396 = vpop.permute.xlu0 %2395
  %2397 = vrot.lane.b32.xlu0 %v2194, 108
  %v2398 = vpop.permute.xlu0 %2397
  %2399 = vrot.lane.b32.xlu0 %v2195, 108
  %v2400 = vpop.permute.xlu0 %2399
  %2401 = vrot.lane.b32.xlu0 %v2196, 108
  %v2402 = vpop.permute.xlu0 %2401
  %2403 = vrot.lane.b32.xlu0 %v2197, 108
  %v2404 = vpop.permute.xlu0 %2403
  %2405 = vrot.lane.b32.xlu0 %v2198, 108
  %v2406 = vpop.permute.xlu0 %2405
  %2407 = vrot.lane.b32.xlu0 %v2199, 108
  %v2408 = vpop.permute.xlu0 %2407
  %2409 = vrot.lane.b32.xlu0 %v2200, 108
  %v2410 = vpop.permute.xlu0 %2409
  %2411 = vrot.lane.b32.xlu0 %v2201, 108
  %v2412 = vpop.permute.xlu0 %2411
  %2413 = vrot.lane.b32.xlu0 %v2202, 108
  %v2414 = vpop.permute.xlu0 %2413
  %vm2415 = vcmask 883712
  %v2416 = vsel %vm2415, %v2392, %v2394
  %v2417 = vsel %vm2415, %v2394, %v2396
  %v2418 = vsel %vm2415, %v2396, %v2398
  %v2419 = vsel %vm2415, %v2400, %v2402
  %v2420 = vsel %vm2415, %v2402, %v2404
  %v2421 = vsel %vm2415, %v2404, %v2406
  %v2422 = vsel %vm2415, %v2408, %v2410
  %v2423 = vsel %vm2415, %v2410, %v2412
  %v2424 = vsel %vm2415, %v2412, %v2414
  %2431 = vrot.lane.b32.xlu0 %v2273, 108
  %v2432 = vpop.permute.xlu0 %2431
  %2433 = vrot.lane.b32.xlu0 %v2274, 108
  %v2434 = vpop.permute.xlu0 %2433
  %2435 = vrot.lane.b32.xlu0 %v2275, 108
  %v2436 = vpop.permute.xlu0 %2435
  %2437 = vrot.lane.b32.xlu0 %v2276, 108
  %v2438 = vpop.permute.xlu0 %2437
  %2439 = vrot.lane.b32.xlu0 %v2277, 108
  %v2440 = vpop.permute.xlu0 %2439
  %2441 = vrot.lane.b32.xlu0 %v2278, 108
  %v2442 = vpop.permute.xlu0 %2441
  %2443 = vrot.lane.b32.xlu0 %v2279, 108
  %v2444 = vpop.permute.xlu0 %2443
  %2445 = vrot.lane.b32.xlu0 %v2280, 108
  %v2446 = vpop.permute.xlu0 %2445
  %2447 = vrot.lane.b32.xlu0 %v2281, 108
  %v2448 = vpop.permute.xlu0 %2447
  %2449 = vrot.lane.b32.xlu0 %v2282, 108
  %v2450 = vpop.permute.xlu0 %2449
  %2451 = vrot.lane.b32.xlu0 %v2283, 108
  %v2452 = vpop.permute.xlu0 %2451
  %2453 = vrot.lane.b32.xlu0 %v2284, 108
  %v2454 = vpop.permute.xlu0 %2453
  %v2455 = vsel %vm2415, %v2432, %v2434
  %v2456 = vsel %vm2415, %v2434, %v2436
  %v2457 = vsel %vm2415, %v2436, %v2438
  %v2458 = vsel %vm2415, %v2440, %v2442
  %v2459 = vsel %vm2415, %v2442, %v2444
  %v2460 = vsel %vm2415, %v2444, %v2446
  %v2461 = vsel %vm2415, %v2448, %v2450
  %v2462 = vsel %vm2415, %v2450, %v2452
  %v2463 = vsel %vm2415, %v2452, %v2454
  %2470 = vrot.lane.b32.xlu0 %v2191, 107
  %v2471 = vpop.permute.xlu0 %2470
  %2472 = vrot.lane.b32.xlu0 %v2192, 107
  %v2473 = vpop.permute.xlu0 %2472
  %2474 = vrot.lane.b32.xlu0 %v2193, 107
  %v2475 = vpop.permute.xlu0 %2474
  %2476 = vrot.lane.b32.xlu0 %v2194, 107
  %v2477 = vpop.permute.xlu0 %2476
  %2478 = vrot.lane.b32.xlu0 %v2195, 107
  %v2479 = vpop.permute.xlu0 %2478
  %2480 = vrot.lane.b32.xlu0 %v2196, 107
  %v2481 = vpop.permute.xlu0 %2480
  %2482 = vrot.lane.b32.xlu0 %v2197, 107
  %v2483 = vpop.permute.xlu0 %2482
  %2484 = vrot.lane.b32.xlu0 %v2198, 107
  %v2485 = vpop.permute.xlu0 %2484
  %2486 = vrot.lane.b32.xlu0 %v2199, 107
  %v2487 = vpop.permute.xlu0 %2486
  %2488 = vrot.lane.b32.xlu0 %v2200, 107
  %v2489 = vpop.permute.xlu0 %2488
  %2490 = vrot.lane.b32.xlu0 %v2201, 107
  %v2491 = vpop.permute.xlu0 %2490
  %2492 = vrot.lane.b32.xlu0 %v2202, 107
  %v2493 = vpop.permute.xlu0 %2492
  %vm2494 = vcmask 875520
  %v2495 = vsel %vm2494, %v2471, %v2473
  %v2496 = vsel %vm2494, %v2473, %v2475
  %v2497 = vsel %vm2494, %v2475, %v2477
  %v2498 = vsel %vm2494, %v2479, %v2481
  %v2499 = vsel %vm2494, %v2481, %v2483
  %v2500 = vsel %vm2494, %v2483, %v2485
  %v2501 = vsel %vm2494, %v2487, %v2489
  %v2502 = vsel %vm2494, %v2489, %v2491
  %v2503 = vsel %vm2494, %v2491, %v2493
  %2504 = vrot.lane.b32.xlu0 %v2273, 107
  %v2505 = vpop.permute.xlu0 %2504
  %2506 = vrot.lane.b32.xlu0 %v2274, 107
  %v2507 = vpop.permute.xlu0 %2506
  %2508 = vrot.lane.b32.xlu0 %v2275, 107
  %v2509 = vpop.permute.xlu0 %2508
  %2510 = vrot.lane.b32.xlu0 %v2276, 107
  %v2511 = vpop.permute.xlu0 %2510
  %2512 = vrot.lane.b32.xlu0 %v2277, 107
  %v2513 = vpop.permute.xlu0 %2512
  %2514 = vrot.lane.b32.xlu0 %v2278, 107
  %v2515 = vpop.permute.xlu0 %2514
  %2516 = vrot.lane.b32.xlu0 %v2279, 107
  %v2517 = vpop.permute.xlu0 %2516
  %2518 = vrot.lane.b32.xlu0 %v2280, 107
  %v2519 = vpop.permute.xlu0 %2518
  %2520 = vrot.lane.b32.xlu0 %v2281, 107
  %v2521 = vpop.permute.xlu0 %2520
  %2522 = vrot.lane.b32.xlu0 %v2282, 107
  %v2523 = vpop.permute.xlu0 %2522
  %2524 = vrot.lane.b32.xlu0 %v2283, 107
  %v2525 = vpop.permute.xlu0 %2524
  %2526 = vrot.lane.b32.xlu0 %v2284, 107
  %v2527 = vpop.permute.xlu0 %2526
  %v2528 = vsel %vm2494, %v2505, %v2507
  %v2529 = vsel %vm2494, %v2507, %v2509
  %v2530 = vsel %vm2494, %v2509, %v2511
  %v2531 = vsel %vm2494, %v2513, %v2515
  %v2532 = vsel %vm2494, %v2515, %v2517
  %v2533 = vsel %vm2494, %v2517, %v2519
  %v2534 = vsel %vm2494, %v2521, %v2523
  %v2535 = vsel %vm2494, %v2523, %v2525
  %v2536 = vsel %vm2494, %v2525, %v2527
  %2537 = vrot.lane.b32.xlu0 %v2191, 106
  %v2538 = vpop.permute.xlu0 %2537
  %2539 = vrot.lane.b32.xlu0 %v2192, 106
  %v2540 = vpop.permute.xlu0 %2539
  %2541 = vrot.lane.b32.xlu0 %v2193, 106
  %v2542 = vpop.permute.xlu0 %2541
  %2543 = vrot.lane.b32.xlu0 %v2194, 106
  %v2544 = vpop.permute.xlu0 %2543
  %2545 = vrot.lane.b32.xlu0 %v2195, 106
  %v2546 = vpop.permute.xlu0 %2545
  %2547 = vrot.lane.b32.xlu0 %v2196, 106
  %v2548 = vpop.permute.xlu0 %2547
  %2549 = vrot.lane.b32.xlu0 %v2197, 106
  %v2550 = vpop.permute.xlu0 %2549
  %2551 = vrot.lane.b32.xlu0 %v2198, 106
  %v2552 = vpop.permute.xlu0 %2551
  %2553 = vrot.lane.b32.xlu0 %v2199, 106
  %v2554 = vpop.permute.xlu0 %2553
  %2555 = vrot.lane.b32.xlu0 %v2200, 106
  %v2556 = vpop.permute.xlu0 %2555
  %2557 = vrot.lane.b32.xlu0 %v2201, 106
  %v2558 = vpop.permute.xlu0 %2557
  %2559 = vrot.lane.b32.xlu0 %v2202, 106
  %v2560 = vpop.permute.xlu0 %2559
  %vm2561 = vcmask 867328
  %v2562 = vsel %vm2561, %v2538, %v2540
  %v2563 = vsel %vm2561, %v2540, %v2542
  %v2564 = vsel %vm2561, %v2542, %v2544
  %v2565 = vsel %vm2561, %v2546, %v2548
  %v2566 = vsel %vm2561, %v2548, %v2550
  %v2567 = vsel %vm2561, %v2550, %v2552
  %v2568 = vsel %vm2561, %v2554, %v2556
  %v2569 = vsel %vm2561, %v2556, %v2558
  %v2570 = vsel %vm2561, %v2558, %v2560
  %2577 = vrot.lane.b32.xlu0 %v2273, 106
  %v2578 = vpop.permute.xlu0 %2577
  %2579 = vrot.lane.b32.xlu0 %v2274, 106
  %v2580 = vpop.permute.xlu0 %2579
  %2581 = vrot.lane.b32.xlu0 %v2275, 106
  %v2582 = vpop.permute.xlu0 %2581
  %2583 = vrot.lane.b32.xlu0 %v2276, 106
  %v2584 = vpop.permute.xlu0 %2583
  %2585 = vrot.lane.b32.xlu0 %v2277, 106
  %v2586 = vpop.permute.xlu0 %2585
  %2587 = vrot.lane.b32.xlu0 %v2278, 106
  %v2588 = vpop.permute.xlu0 %2587
  %2589 = vrot.lane.b32.xlu0 %v2279, 106
  %v2590 = vpop.permute.xlu0 %2589
  %2591 = vrot.lane.b32.xlu0 %v2280, 106
  %v2592 = vpop.permute.xlu0 %2591
  %2593 = vrot.lane.b32.xlu0 %v2281, 106
  %v2594 = vpop.permute.xlu0 %2593
  %2595 = vrot.lane.b32.xlu0 %v2282, 106
  %v2596 = vpop.permute.xlu0 %2595
  %2597 = vrot.lane.b32.xlu0 %v2283, 106
  %v2598 = vpop.permute.xlu0 %2597
  %2599 = vrot.lane.b32.xlu0 %v2284, 106
  %v2600 = vpop.permute.xlu0 %2599
  %v2601 = vsel %vm2561, %v2578, %v2580
  %v2602 = vsel %vm2561, %v2580, %v2582
  %v2603 = vsel %vm2561, %v2582, %v2584
  %v2604 = vsel %vm2561, %v2586, %v2588
  %v2605 = vsel %vm2561, %v2588, %v2590
  %v2606 = vsel %vm2561, %v2590, %v2592
  %v2607 = vsel %vm2561, %v2594, %v2596
  %v2608 = vsel %vm2561, %v2596, %v2598
  %v2609 = vsel %vm2561, %v2598, %v2600
  %2616 = vrot.lane.b32.xlu0 %v2191, 105
  %v2617 = vpop.permute.xlu0 %2616
  %2618 = vrot.lane.b32.xlu0 %v2192, 105
  %v2619 = vpop.permute.xlu0 %2618
  %2620 = vrot.lane.b32.xlu0 %v2193, 105
  %v2621 = vpop.permute.xlu0 %2620
  %2622 = vrot.lane.b32.xlu0 %v2194, 105
  %v2623 = vpop.permute.xlu0 %2622
  %2624 = vrot.lane.b32.xlu0 %v2195, 105
  %v2625 = vpop.permute.xlu0 %2624
  %2626 = vrot.lane.b32.xlu0 %v2196, 105
  %v2627 = vpop.permute.xlu0 %2626
  %2628 = vrot.lane.b32.xlu0 %v2197, 105
  %v2629 = vpop.permute.xlu0 %2628
  %2630 = vrot.lane.b32.xlu0 %v2198, 105
  %v2631 = vpop.permute.xlu0 %2630
  %2632 = vrot.lane.b32.xlu0 %v2199, 105
  %v2633 = vpop.permute.xlu0 %2632
  %2634 = vrot.lane.b32.xlu0 %v2200, 105
  %v2635 = vpop.permute.xlu0 %2634
  %2636 = vrot.lane.b32.xlu0 %v2201, 105
  %v2637 = vpop.permute.xlu0 %2636
  %2638 = vrot.lane.b32.xlu0 %v2202, 105
  %v2639 = vpop.permute.xlu0 %2638
  %vm2640 = vcmask 859136
  %v2641 = vsel %vm2640, %v2617, %v2619
  %v2642 = vsel %vm2640, %v2619, %v2621
  %v2643 = vsel %vm2640, %v2621, %v2623
  %v2644 = vsel %vm2640, %v2625, %v2627
  %v2645 = vsel %vm2640, %v2627, %v2629
  %v2646 = vsel %vm2640, %v2629, %v2631
  %v2647 = vsel %vm2640, %v2633, %v2635
  %v2648 = vsel %vm2640, %v2635, %v2637
  %v2649 = vsel %vm2640, %v2637, %v2639
  %2650 = vrot.lane.b32.xlu0 %v2273, 105
  %v2651 = vpop.permute.xlu0 %2650
  %2652 = vrot.lane.b32.xlu0 %v2274, 105
  %v2653 = vpop.permute.xlu0 %2652
  %2654 = vrot.lane.b32.xlu0 %v2275, 105
  %v2655 = vpop.permute.xlu0 %2654
  %2656 = vrot.lane.b32.xlu0 %v2276, 105
  %v2657 = vpop.permute.xlu0 %2656
  %2658 = vrot.lane.b32.xlu0 %v2277, 105
  %v2659 = vpop.permute.xlu0 %2658
  %2660 = vrot.lane.b32.xlu0 %v2278, 105
  %v2661 = vpop.permute.xlu0 %2660
  %2662 = vrot.lane.b32.xlu0 %v2279, 105
  %v2663 = vpop.permute.xlu0 %2662
  %2664 = vrot.lane.b32.xlu0 %v2280, 105
  %v2665 = vpop.permute.xlu0 %2664
  %2666 = vrot.lane.b32.xlu0 %v2281, 105
  %v2667 = vpop.permute.xlu0 %2666
  %2668 = vrot.lane.b32.xlu0 %v2282, 105
  %v2669 = vpop.permute.xlu0 %2668
  %2670 = vrot.lane.b32.xlu0 %v2283, 105
  %v2671 = vpop.permute.xlu0 %2670
  %2672 = vrot.lane.b32.xlu0 %v2284, 105
  %v2673 = vpop.permute.xlu0 %2672
  %v2674 = vsel %vm2640, %v2651, %v2653
  %v2675 = vsel %vm2640, %v2653, %v2655
  %v2676 = vsel %vm2640, %v2655, %v2657
  %v2677 = vsel %vm2640, %v2659, %v2661
  %v2678 = vsel %vm2640, %v2661, %v2663
  %v2679 = vsel %vm2640, %v2663, %v2665
  %v2680 = vsel %vm2640, %v2667, %v2669
  %v2681 = vsel %vm2640, %v2669, %v2671
  %v2682 = vsel %vm2640, %v2671, %v2673
  %2683 = vrot.lane.b32.xlu0 %v2191, 104
  %v2684 = vpop.permute.xlu0 %2683
  %2685 = vrot.lane.b32.xlu0 %v2192, 104
  %v2686 = vpop.permute.xlu0 %2685
  %2687 = vrot.lane.b32.xlu0 %v2193, 104
  %v2688 = vpop.permute.xlu0 %2687
  %2689 = vrot.lane.b32.xlu0 %v2194, 104
  %v2690 = vpop.permute.xlu0 %2689
  %2691 = vrot.lane.b32.xlu0 %v2195, 104
  %v2692 = vpop.permute.xlu0 %2691
  %2693 = vrot.lane.b32.xlu0 %v2196, 104
  %v2694 = vpop.permute.xlu0 %2693
  %2695 = vrot.lane.b32.xlu0 %v2197, 104
  %v2696 = vpop.permute.xlu0 %2695
  %2697 = vrot.lane.b32.xlu0 %v2198, 104
  %v2698 = vpop.permute.xlu0 %2697
  %2699 = vrot.lane.b32.xlu0 %v2199, 104
  %v2700 = vpop.permute.xlu0 %2699
  %2701 = vrot.lane.b32.xlu0 %v2200, 104
  %v2702 = vpop.permute.xlu0 %2701
  %2703 = vrot.lane.b32.xlu0 %v2201, 104
  %v2704 = vpop.permute.xlu0 %2703
  %2705 = vrot.lane.b32.xlu0 %v2202, 104
  %v2706 = vpop.permute.xlu0 %2705
  %vm2707 = vcmask 850944
  %v2708 = vsel %vm2707, %v2684, %v2686
  %v2709 = vsel %vm2707, %v2686, %v2688
  %v2710 = vsel %vm2707, %v2688, %v2690
  %v2711 = vsel %vm2707, %v2692, %v2694
  %v2712 = vsel %vm2707, %v2694, %v2696
  %v2713 = vsel %vm2707, %v2696, %v2698
  %v2714 = vsel %vm2707, %v2700, %v2702
  %v2715 = vsel %vm2707, %v2702, %v2704
  %v2716 = vsel %vm2707, %v2704, %v2706
  %2723 = vrot.lane.b32.xlu0 %v2273, 104
  %v2724 = vpop.permute.xlu0 %2723
  %2725 = vrot.lane.b32.xlu0 %v2274, 104
  %v2726 = vpop.permute.xlu0 %2725
  %2727 = vrot.lane.b32.xlu0 %v2275, 104
  %v2728 = vpop.permute.xlu0 %2727
  %2729 = vrot.lane.b32.xlu0 %v2276, 104
  %v2730 = vpop.permute.xlu0 %2729
  %2731 = vrot.lane.b32.xlu0 %v2277, 104
  %v2732 = vpop.permute.xlu0 %2731
  %2733 = vrot.lane.b32.xlu0 %v2278, 104
  %v2734 = vpop.permute.xlu0 %2733
  %2735 = vrot.lane.b32.xlu0 %v2279, 104
  %v2736 = vpop.permute.xlu0 %2735
  %2737 = vrot.lane.b32.xlu0 %v2280, 104
  %v2738 = vpop.permute.xlu0 %2737
  %2739 = vrot.lane.b32.xlu0 %v2281, 104
  %v2740 = vpop.permute.xlu0 %2739
  %2741 = vrot.lane.b32.xlu0 %v2282, 104
  %v2742 = vpop.permute.xlu0 %2741
  %2743 = vrot.lane.b32.xlu0 %v2283, 104
  %v2744 = vpop.permute.xlu0 %2743
  %2745 = vrot.lane.b32.xlu0 %v2284, 104
  %v2746 = vpop.permute.xlu0 %2745
  %v2747 = vsel %vm2707, %v2724, %v2726
  %v2748 = vsel %vm2707, %v2726, %v2728
  %v2749 = vsel %vm2707, %v2728, %v2730
  %v2750 = vsel %vm2707, %v2732, %v2734
  %v2751 = vsel %vm2707, %v2734, %v2736
  %v2752 = vsel %vm2707, %v2736, %v2738
  %v2753 = vsel %vm2707, %v2740, %v2742
  %v2754 = vsel %vm2707, %v2742, %v2744
  %v2755 = vsel %vm2707, %v2744, %v2746
  %v2762 = vrot.slane %v2349, 4
  %v2763 = vrot.slane %v2350, 4
  %v2764 = vrot.slane %v2351, 4
  %v2765 = vrot.slane %v2382, 4
  %v2766 = vrot.slane %v2383, 4
  %v2767 = vrot.slane %v2384, 4
  %v2768 = vrot.slane %v2352, 4
  %v2769 = vsel %vm1374, %v2762, %v2768
  %v2770 = vrot.slane %v2353, 4
  %v2771 = vsel %vm1374, %v2763, %v2770
  %v2772 = vrot.slane %v2354, 4
  %v2773 = vsel %vm1374, %v2764, %v2772
  %v2774 = vrot.slane %v2385, 4
  %v2775 = vsel %vm1374, %v2765, %v2774
  %v2776 = vrot.slane %v2386, 4
  %v2777 = vsel %vm1374, %v2766, %v2776
  %v2778 = vrot.slane %v2387, 4
  %v2779 = vsel %vm1374, %v2767, %v2778
  %v2780 = vrot.slane %v2355, 4
  %v2781 = vsel %vm1374, %v2768, %v2780
  %v2782 = vrot.slane %v2356, 4
  %v2783 = vsel %vm1374, %v2770, %v2782
  %v2784 = vrot.slane %v2357, 4
  %v2785 = vsel %vm1374, %v2772, %v2784
  %v2786 = vrot.slane %v2388, 4
  %v2787 = vsel %vm1374, %v2774, %v2786
  %v2788 = vrot.slane %v2389, 4
  %v2789 = vsel %vm1374, %v2776, %v2788
  %v2790 = vrot.slane %v2390, 4
  %v2791 = vsel %vm1374, %v2778, %v2790
  %v2804 = vrot.slane %v2495, 4
  %v2805 = vrot.slane %v2496, 4
  %v2806 = vrot.slane %v2497, 4
  %v2807 = vrot.slane %v2528, 4
  %v2808 = vrot.slane %v2529, 4
  %v2809 = vrot.slane %v2530, 4
  %v2810 = vrot.slane %v2498, 4
  %v2811 = vsel %vm1374, %v2804, %v2810
  %v2812 = vrot.slane %v2499, 4
  %v2813 = vsel %vm1374, %v2805, %v2812
  %v2814 = vrot.slane %v2500, 4
  %v2815 = vsel %vm1374, %v2806, %v2814
  %v2816 = vrot.slane %v2531, 4
  %v2817 = vsel %vm1374, %v2807, %v2816
  %v2818 = vrot.slane %v2532, 4
  %v2819 = vsel %vm1374, %v2808, %v2818
  %v2820 = vrot.slane %v2533, 4
  %v2821 = vsel %vm1374, %v2809, %v2820
  %v2822 = vrot.slane %v2501, 4
  %v2823 = vsel %vm1374, %v2810, %v2822
  %v2824 = vrot.slane %v2502, 4
  %v2825 = vsel %vm1374, %v2812, %v2824
  %v2826 = vrot.slane %v2503, 4
  %v2827 = vsel %vm1374, %v2814, %v2826
  %v2828 = vrot.slane %v2534, 4
  %v2829 = vsel %vm1374, %v2816, %v2828
  %v2830 = vrot.slane %v2535, 4
  %v2831 = vsel %vm1374, %v2818, %v2830
  %v2832 = vrot.slane %v2536, 4
  %v2833 = vsel %vm1374, %v2820, %v2832
  %v2846 = vrot.slane %v2641, 4
  %v2847 = vrot.slane %v2642, 4
  %v2848 = vrot.slane %v2643, 4
  %v2849 = vrot.slane %v2674, 4
  %v2850 = vrot.slane %v2675, 4
  %v2851 = vrot.slane %v2676, 4
  %v2852 = vrot.slane %v2644, 4
  %v2853 = vsel %vm1374, %v2846, %v2852
  %v2854 = vrot.slane %v2645, 4
  %v2855 = vsel %vm1374, %v2847, %v2854
  %v2856 = vrot.slane %v2646, 4
  %v2857 = vsel %vm1374, %v2848, %v2856
  %v2858 = vrot.slane %v2677, 4
  %v2859 = vsel %vm1374, %v2849, %v2858
  %v2860 = vrot.slane %v2678, 4
  %v2861 = vsel %vm1374, %v2850, %v2860
  %v2862 = vrot.slane %v2679, 4
  %v2863 = vsel %vm1374, %v2851, %v2862
  %v2864 = vrot.slane %v2647, 4
  %v2865 = vsel %vm1374, %v2852, %v2864
  %v2866 = vrot.slane %v2648, 4
  %v2867 = vsel %vm1374, %v2854, %v2866
  %v2868 = vrot.slane %v2649, 4
  %v2869 = vsel %vm1374, %v2856, %v2868
  %v2870 = vrot.slane %v2680, 4
  %v2871 = vsel %vm1374, %v2858, %v2870
  %v2872 = vrot.slane %v2681, 4
  %v2873 = vsel %vm1374, %v2860, %v2872
  %v2874 = vrot.slane %v2682, 4
  %v2875 = vsel %vm1374, %v2862, %v2874
  %v2890 = vsel %vm301, %v2234, %v2762
  %v2894 = vsel %vm301, %v2235, %v2763
  %v2898 = vsel %vm301, %v2236, %v2764
  %v2902 = vsel %vm301, %v2315, %v2765
  %v2906 = vsel %vm301, %v2316, %v2766
  %v2910 = vsel %vm301, %v2317, %v2767
  %v2914 = vsel %vm301, %v2422, %v2804
  %v2918 = vsel %vm301, %v2423, %v2805
  %v2922 = vsel %vm301, %v2424, %v2806
  %v2926 = vsel %vm301, %v2461, %v2807
  %v2930 = vsel %vm301, %v2462, %v2808
  %v2934 = vsel %vm301, %v2463, %v2809
  %v2938 = vsel %vm301, %v2568, %v2846
  %v2942 = vsel %vm301, %v2569, %v2847
  %v2946 = vsel %vm301, %v2570, %v2848
  %v2950 = vsel %vm301, %v2607, %v2849
  %v2954 = vsel %vm301, %v2608, %v2850
  %v2958 = vsel %vm301, %v2609, %v2851
  %v2960 = vld [vmem:[%s3 + $0x8] sm:$0xff]
  %v2961 = vld [vmem:[%s3 + $0x10] sm:$0xf]
  %v2962 = vld [vmem:[%s3 + $0x48] sm:$0xff]
  %v2963 = vld [vmem:[%s3 + $0x50] sm:$0xf]
  %v2964 = vld [vmem:[%s3 + $0x88] sm:$0xff]
  %v2965 = vld [vmem:[%s3 + $0x90] sm:$0xf]
  %v2966 = vld [vmem:[%s3 + $0xc8] sm:$0xff]
  %v2967 = vld [vmem:[%s3 + $0xd0] sm:$0xf]
  %v2968 = vld [vmem:[%s3 + $0x108] sm:$0xff]
  %v2969 = vld [vmem:[%s3 + $0x110] sm:$0xf]
  %v2970 = vld [vmem:[%s3 + $0x148] sm:$0xff]
  %v2971 = vld [vmem:[%s3 + $0x150] sm:$0xf]
  %v2972 = vld [vmem:[%s3 + $0x188] sm:$0x11]
  %v2973 = vld [vmem:[%s3 + $0x190] sm:$0x1]
  %v2988 = vunpack.c.l.b16 %v2960
  %v2989 = vunpack.c.h.b16 %v2960
  %v2990 = vunpack.c.l.b16 %v2961
  %v2991 = vunpack.c.l.b16 %v2962
  %v2992 = vunpack.c.h.b16 %v2962
  %v2993 = vunpack.c.l.b16 %v2963
  %v2994 = vunpack.c.l.b16 %v2964
  %v2995 = vunpack.c.h.b16 %v2964
  %v2996 = vunpack.c.l.b16 %v2965
  %v2997 = vunpack.c.l.b16 %v2966
  %v2998 = vunpack.c.h.b16 %v2966
  %v2999 = vunpack.c.l.b16 %v2967
  %v3000 = vunpack.c.l.b16 %v2968
  %v3001 = vunpack.c.h.b16 %v2968
  %v3002 = vunpack.c.l.b16 %v2969
  %v3003 = vunpack.c.l.b16 %v2970
  %v3004 = vunpack.c.h.b16 %v2970
  %v3005 = vunpack.c.l.b16 %v2971
  %v3006 = vunpack.c.l.b16 %v2972
  %v3007 = vunpack.c.h.b16 %v2972
  %v3008 = vunpack.c.l.b16 %v2973
  %v3009 = vpack.c.b16 %v2991, %v2988
  %v3010 = vpack.c.b16 %v2992, %v2989
  %v3011 = vpack.c.b16 %v2993, %v2990
  %v3012 = vpack.c.b16 %v2997, %v2994
  %v3013 = vpack.c.b16 %v2998, %v2995
  %v3014 = vpack.c.b16 %v2999, %v2996
  %v3015 = vpack.c.b16 %v3003, %v3000
  %v3016 = vpack.c.b16 %v3004, %v3001
  %v3017 = vpack.c.b16 %v3005, %v3002
  %v3018 = vpack.c.b16 %v3006, %v3006
  %v3019 = vpack.c.b16 %v3007, %v3007
  %v3020 = vpack.c.b16 %v3008, %v3008
  %3021 = vrot.lane.b32.xlu0 %v3009, 104
  %v3022 = vpop.permute.xlu0 %3021
  %3023 = vrot.lane.b32.xlu0 %v3010, 104
  %v3024 = vpop.permute.xlu0 %3023
  %3025 = vrot.lane.b32.xlu0 %v3011, 104
  %v3026 = vpop.permute.xlu0 %3025
  %3027 = vrot.lane.b32.xlu0 %v3012, 104
  %v3028 = vpop.permute.xlu0 %3027
  %3029 = vrot.lane.b32.xlu0 %v3013, 104
  %v3030 = vpop.permute.xlu0 %3029
  %3031 = vrot.lane.b32.xlu0 %v3014, 104
  %v3032 = vpop.permute.xlu0 %3031
  %3033 = vrot.lane.b32.xlu0 %v3015, 104
  %v3034 = vpop.permute.xlu0 %3033
  %3035 = vrot.lane.b32.xlu0 %v3016, 104
  %v3036 = vpop.permute.xlu0 %3035
  %3037 = vrot.lane.b32.xlu0 %v3017, 104
  %v3038 = vpop.permute.xlu0 %3037
  %3039 = vrot.lane.b32.xlu0 %v3018, 104
  %v3040 = vpop.permute.xlu0 %3039
  %3041 = vrot.lane.b32.xlu0 %v3019, 104
  %v3042 = vpop.permute.xlu0 %3041
  %3043 = vrot.lane.b32.xlu0 %v3020, 104
  %v3044 = vpop.permute.xlu0 %3043
  %v3045 = vsel %vm2707, %v3022, %v3024
  %v3046 = vsel %vm2707, %v3024, %v3026
  %v3047 = vsel %vm2707, %v3028, %v3030
  %v3048 = vsel %vm2707, %v3030, %v3032
  %v3049 = vsel %vm2707, %v3034, %v3036
  %v3050 = vsel %vm2707, %v3036, %v3038
  %v3051 = vsel %vm2707, %v3040, %v3042
  %v3052 = vsel %vm2707, %v3042, %v3044
  %v3062 = vsel %vm1642, %v3026, 0
  %v3065 = vsel %vm1642, %v3032, 0
  %v3068 = vsel %vm1642, %v3038, 0
  %v3071 = vsel %vm1642, %v3044, 0
  %v3074 = vsel %vm301, %v2714, 0
  %v3077 = vsel %vm301, %v2715, 0
  %v3080 = vsel %vm301, %v2716, 0
  %v3083 = vsel %vm301, %v2753, 0
  %v3086 = vsel %vm301, %v2754, 0
  %v3089 = vsel %vm301, %v2755, 0
  %3091 = vmatprep.subr.bf16.mxu0 %v2229
  %3092 = vmatpush1.bf16.msra.mxu0 %v2228
  %3093 = vmatprep.subr.bf16.mxu0 %v2232
  %3094 = vmatpush1.bf16.msra.mxu0 %v2231
  %3095 = vmatprep.subr.bf16.mxu0 %v2894
  %3096 = vmatpush1.bf16.msra.mxu0 %v2890
  %3097 = vmatprep.subr.bf16.mxu0 %v2771
  %3098 = vmatpush1.bf16.msra.mxu0 %v2769
  %3099 = vmatprep.subr.bf16.mxu0 %v2783
  %3100 = vmatpush1.bf16.msra.mxu0 %v2781
  %3101 = vmatprep.subr.bf16.mxu0 %v2417
  %3102 = vmatpush1.bf16.msra.mxu0 %v2416
  %3103 = vmatprep.subr.bf16.mxu0 %v2420
  %3104 = vmatpush1.bf16.msra.mxu0 %v2419
  %3105 = vmatprep.subr.bf16.mxu0 %v2918
  %3106 = vmatpush1.bf16.msra.mxu0 %v2914
  %3107 = vmatprep.subr.bf16.mxu0 %v2813
  %3108 = vmatpush1.bf16.msra.mxu0 %v2811
  %3109 = vmatprep.subr.bf16.mxu0 %v2825
  %3110 = vmatpush1.bf16.msra.mxu0 %v2823
  %3111 = vmatprep.subr.bf16.mxu0 %v2563
  %3112 = vmatpush1.bf16.msra.mxu0 %v2562
  %3113 = vmatprep.subr.bf16.mxu0 %v2566
  %3114 = vmatpush1.bf16.msra.mxu0 %v2565
  %3115 = vmatprep.subr.bf16.mxu0 %v2942
  %3116 = vmatpush1.bf16.msra.mxu0 %v2938
  %3117 = vmatprep.subr.bf16.mxu0 %v2855
  %3118 = vmatpush1.bf16.msra.mxu0 %v2853
  %3119 = vmatprep.subr.bf16.mxu0 %v2867
  %3120 = vmatpush1.bf16.msra.mxu0 %v2865
  %3121 = vmatprep.subr.bf16.mxu0 %v2709
  %3122 = vmatpush1.bf16.msra.mxu0 %v2708
  %3123 = vmatprep.mubr.bf16.mxu0 %v3046
  %3124 = vmatmul.mubr.bf16.gmra.mrb[0].mxu0 %v3045
  %v3125 = vpop.f32.mrb[0].mxu0
  %v3126 = vadd.f32 0.0, %v3125
  %v3127 = vpop.f32.mrb[0].mxu0
  %v3128 = vadd.f32 0.0, %v3127
  %v3129 = vpop.f32.mrb[0].mxu0
  %v3130 = vadd.f32 0.0, %v3129
  %v3131 = vpop.f32.mrb[0].mxu0
  %v3132 = vadd.f32 0.0, %v3131
  %3133 = vmatprep.mubr.bf16.mxu0 %v3048
  %3134 = vmatmul.mubr.bf16.gmra.mrb[0].mxu0 %v3047
  %v3135 = vpop.f32.mrb[0].mxu0
  %v3136 = vadd.f32 0.0, %v3135
  %v3137 = vpop.f32.mrb[0].mxu0
  %v3138 = vadd.f32 0.0, %v3137
  %v3139 = vpop.f32.mrb[0].mxu0
  %v3140 = vadd.f32 0.0, %v3139
  %v3141 = vpop.f32.mrb[0].mxu0
  %v3142 = vadd.f32 0.0, %v3141
  %3143 = vmatprep.mubr.bf16.mxu0 %v3050
  %3144 = vmatmul.mubr.bf16.gmra.mrb[0].mxu0 %v3049
  %v3145 = vpop.f32.mrb[0].mxu0
  %v3146 = vadd.f32 0.0, %v3145
  %v3147 = vpop.f32.mrb[0].mxu0
  %v3148 = vadd.f32 0.0, %v3147
  %v3149 = vpop.f32.mrb[0].mxu0
  %v3150 = vadd.f32 0.0, %v3149
  %v3151 = vpop.f32.mrb[0].mxu0
  %v3152 = vadd.f32 0.0, %v3151
  %3153 = vmatprep.mubr.bf16.mxu0 %v3052
  %3154 = vmatmul.mubr.bf16.gmra.mrb[0].mxu0 %v3051
  %v3155 = vpop.f32.mrb[0].mxu0
  %v3156 = vadd.f32 0.0, %v3155
  %v3157 = vpop.f32.mrb[0].mxu0
  %v3158 = vadd.f32 0.0, %v3157
  %v3159 = vpop.f32.mrb[0].mxu0
  %v3160 = vpop.f32.mrb[0].mxu0
  %3161 = vdwg.mxu0
  %3162 = vmatprep.subr.bf16.mxu0 %v2712
  %3163 = vmatpush1.bf16.msra.mxu0 %v2711
  %3164 = vmatprep.subr.bf16.mxu0 %v3077
  %3165 = vmatpush1.bf16.msra.mxu0 %v3074
  %3166 = vmatprep.subr.bf16.mxu0 0
  %3167 = vmatpush1.bf16.msra.mxu0 0
  %3168 = vmatprep.subr.bf16.mxu0 0
  %3169 = vmatpush1.bf16.msra.mxu0 0
  %3170 = vmatprep.subr.bf16.mxu0 0
  %3171 = vmatpush1.bf16.msra.mxu0 0
  %3172 = vmatprep.subr.bf16.mxu0 0
  %3173 = vmatpush1.bf16.msra.mxu0 0
  %3174 = vmatprep.subr.bf16.mxu0 0
  %3175 = vmatpush1.bf16.msra.mxu0 0
  %3176 = vmatprep.subr.bf16.mxu0 0
  %3177 = vmatpush1.bf16.msra.mxu0 0
  %3178 = vmatprep.subr.bf16.mxu0 0
  %3179 = vmatpush1.bf16.msra.mxu0 0
  %3180 = vmatprep.subr.bf16.mxu0 0
  %3181 = vmatpush1.bf16.msra.mxu0 0
  %3182 = vmatprep.subr.bf16.mxu0 0
  %3183 = vmatpush1.bf16.msra.mxu0 0
  %3184 = vmatprep.subr.bf16.mxu0 0
  %3185 = vmatpush1.bf16.msra.mxu0 0
  %3186 = vmatprep.subr.bf16.mxu0 0
  %3187 = vmatpush1.bf16.msra.mxu0 0
  %3188 = vmatprep.subr.bf16.mxu0 0
  %3189 = vmatpush1.bf16.msra.mxu0 0
  %3190 = vmatprep.subr.bf16.mxu0 0
  %3191 = vmatpush1.bf16.msra.mxu0 0
  %3192 = vmatprep.subr.bf16.mxu0 0
  %3193 = vmatpush1.bf16.msra.mxu0 0
  %3194 = vmatprep.mubr.bf16.mxu0 0
  %3195 = vmatmul.mubr.bf16.gmra.mrb[0].mxu0 %v3062
  %v3196 = vpop.f32.mrb[0].mxu0
  %v3197 = vadd.f32 %v3126, %v3196
  %v3198 = vpop.f32.mrb[0].mxu0
  %v3199 = vadd.f32 %v3128, %v3198
  %v3200 = vpop.f32.mrb[0].mxu0
  %v3201 = vadd.f32 %v3130, %v3200
  %v3202 = vpop.f32.mrb[0].mxu0
  %v3203 = vadd.f32 %v3132, %v3202
  %3204 = vmatprep.mubr.bf16.mxu0 0
  %3205 = vmatmul.mubr.bf16.gmra.mrb[0].mxu0 %v3065
  %v3206 = vpop.f32.mrb[0].mxu0
  %v3207 = vadd.f32 %v3136, %v3206
  %v3208 = vpop.f32.mrb[0].mxu0
  %v3209 = vadd.f32 %v3138, %v3208
  %v3210 = vpop.f32.mrb[0].mxu0
  %v3211 = vadd.f32 %v3140, %v3210
  %v3212 = vpop.f32.mrb[0].mxu0
  %v3213 = vadd.f32 %v3142, %v3212
  %3214 = vmatprep.mubr.bf16.mxu0 0
  %3215 = vmatmul.mubr.bf16.gmra.mrb[0].mxu0 %v3068
  %v3216 = vpop.f32.mrb[0].mxu0
  %v3217 = vadd.f32 %v3146, %v3216
  %v3218 = vpop.f32.mrb[0].mxu0
  %v3219 = vadd.f32 %v3148, %v3218
  %v3220 = vpop.f32.mrb[0].mxu0
  %v3221 = vadd.f32 %v3150, %v3220
  %v3222 = vpop.f32.mrb[0].mxu0
  %v3223 = vadd.f32 %v3152, %v3222
  %3224 = vmatprep.mubr.bf16.mxu0 0
  %3225 = vmatmul.mubr.bf16.gmra.mrb[0].mxu0 %v3071
  %v3226 = vpop.f32.mrb[0].mxu0
  %v3227 = vadd.f32 %v3156, %v3226
  %v3228 = vpop.f32.mrb[0].mxu0
  %v3229 = vadd.f32 %v3158, %v3228
  %v3230 = vpop.f32.mrb[0].mxu0
  %v3231 = vpop.f32.mrb[0].mxu0
  %3232 = vdwg.mxu0
  %3233 = vmatprep.subr.bf16.mxu0 %v2309
  %3234 = vmatpush1.bf16.msra.mxu0 %v2230
  %3235 = vmatprep.subr.bf16.mxu0 %v2312
  %3236 = vmatpush1.bf16.msra.mxu0 %v2233
  %3237 = vmatprep.subr.bf16.mxu0 %v2902
  %3238 = vmatpush1.bf16.msra.mxu0 %v2898
  %3239 = vmatprep.subr.bf16.mxu0 %v2775
  %3240 = vmatpush1.bf16.msra.mxu0 %v2773
  %3241 = vmatprep.subr.bf16.mxu0 %v2787
  %3242 = vmatpush1.bf16.msra.mxu0 %v2785
  %3243 = vmatprep.subr.bf16.mxu0 %v2455
  %3244 = vmatpush1.bf16.msra.mxu0 %v2418
  %3245 = vmatprep.subr.bf16.mxu0 %v2458
  %3246 = vmatpush1.bf16.msra.mxu0 %v2421
  %3247 = vmatprep.subr.bf16.mxu0 %v2926
  %3248 = vmatpush1.bf16.msra.mxu0 %v2922
  %3249 = vmatprep.subr.bf16.mxu0 %v2817
  %3250 = vmatpush1.bf16.msra.mxu0 %v2815
  %3251 = vmatprep.subr.bf16.mxu0 %v2829
  %3252 = vmatpush1.bf16.msra.mxu0 %v2827
  %3253 = vmatprep.subr.bf16.mxu0 %v2601
  %3254 = vmatpush1.bf16.msra.mxu0 %v2564
  %3255 = vmatprep.subr.bf16.mxu0 %v2604
  %3256 = vmatpush1.bf16.msra.mxu0 %v2567
  %3257 = vmatprep.subr.bf16.mxu0 %v2950
  %3258 = vmatpush1.bf16.msra.mxu0 %v2946
  %3259 = vmatprep.subr.bf16.mxu0 %v2859
  %3260 = vmatpush1.bf16.msra.mxu0 %v2857
  %3261 = vmatprep.subr.bf16.mxu0 %v2871
  %3262 = vmatpush1.bf16.msra.mxu0 %v2869
  %3263 = vmatprep.subr.bf16.mxu0 %v2747
  %3264 = vmatpush1.bf16.msra.mxu0 %v2710
  %3265 = vmatprep.mubr.bf16.mxu0 %v3046
  %3266 = vmatmul.mubr.bf16.gmra.mrb[0].mxu0 %v3045
  %v3267 = vpop.f32.mrb[0].mxu0
  %v3268 = vadd.f32 0.0, %v3267
  %v3269 = vpop.f32.mrb[0].mxu0
  %v3270 = vadd.f32 0.0, %v3269
  %v3271 = vpop.f32.mrb[0].mxu0
  %v3272 = vadd.f32 0.0, %v3271
  %v3273 = vpop.f32.mrb[0].mxu0
  %v3274 = vadd.f32 0.0, %v3273
  %3275 = vmatprep.mubr.bf16.mxu0 %v3048
  %3276 = vmatmul.mubr.bf16.gmra.mrb[0].mxu0 %v3047
  %v3277 = vpop.f32.mrb[0].mxu0
  %v3278 = vadd.f32 0.0, %v3277
  %v3279 = vpop.f32.mrb[0].mxu0
  %v3280 = vadd.f32 0.0, %v3279
  %v3281 = vpop.f32.mrb[0].mxu0
  %v3282 = vadd.f32 0.0, %v3281
  %v3283 = vpop.f32.mrb[0].mxu0
  %v3284 = vadd.f32 0.0, %v3283
  %3285 = vmatprep.mubr.bf16.mxu0 %v3050
  %3286 = vmatmul.mubr.bf16.gmra.mrb[0].mxu0 %v3049
  %v3287 = vpop.f32.mrb[0].mxu0
  %v3288 = vadd.f32 0.0, %v3287
  %v3289 = vpop.f32.mrb[0].mxu0
  %v3290 = vadd.f32 0.0, %v3289
  %v3291 = vpop.f32.mrb[0].mxu0
  %v3292 = vadd.f32 0.0, %v3291
  %v3293 = vpop.f32.mrb[0].mxu0
  %v3294 = vadd.f32 0.0, %v3293
  %3295 = vmatprep.mubr.bf16.mxu0 %v3052
  %3296 = vmatmul.mubr.bf16.gmra.mrb[0].mxu0 %v3051
  %v3297 = vpop.f32.mrb[0].mxu0
  %v3298 = vadd.f32 0.0, %v3297
  %v3299 = vpop.f32.mrb[0].mxu0
  %v3300 = vadd.f32 0.0, %v3299
  %v3301 = vpop.f32.mrb[0].mxu0
  %v3302 = vpop.f32.mrb[0].mxu0
  %3303 = vdwg.mxu0
  %3304 = vmatprep.subr.bf16.mxu0 %v2750
  %3305 = vmatpush1.bf16.msra.mxu0 %v2713
  %3306 = vmatprep.subr.bf16.mxu0 %v3083
  %3307 = vmatpush1.bf16.msra.mxu0 %v3080
  %3308 = vmatprep.subr.bf16.mxu0 0
  %3309 = vmatpush1.bf16.msra.mxu0 0
  %3310 = vmatprep.subr.bf16.mxu0 0
  %3311 = vmatpush1.bf16.msra.mxu0 0
  %3312 = vmatprep.subr.bf16.mxu0 0
  %3313 = vmatpush1.bf16.msra.mxu0 0
  %3314 = vmatprep.subr.bf16.mxu0 0
  %3315 = vmatpush1.bf16.msra.mxu0 0
  %3316 = vmatprep.subr.bf16.mxu0 0
  %3317 = vmatpush1.bf16.msra.mxu0 0
  %3318 = vmatprep.subr.bf16.mxu0 0
  %3319 = vmatpush1.bf16.msra.mxu0 0
  %3320 = vmatprep.subr.bf16.mxu0 0
  %3321 = vmatpush1.bf16.msra.mxu0 0
  %3322 = vmatprep.subr.bf16.mxu0 0
  %3323 = vmatpush1.bf16.msra.mxu0 0
  %3324 = vmatprep.subr.bf16.mxu0 0
  %3325 = vmatpush1.bf16.msra.mxu0 0
  %3326 = vmatprep.subr.bf16.mxu0 0
  %3327 = vmatpush1.bf16.msra.mxu0 0
  %3328 = vmatprep.subr.bf16.mxu0 0
  %3329 = vmatpush1.bf16.msra.mxu0 0
  %3330 = vmatprep.subr.bf16.mxu0 0
  %3331 = vmatpush1.bf16.msra.mxu0 0
  %3332 = vmatprep.subr.bf16.mxu0 0
  %3333 = vmatpush1.bf16.msra.mxu0 0
  %3334 = vmatprep.subr.bf16.mxu0 0
  %3335 = vmatpush1.bf16.msra.mxu0 0
  %3336 = vmatprep.mubr.bf16.mxu0 0
  %3337 = vmatmul.mubr.bf16.gmra.mrb[0].mxu0 %v3062
  %v3338 = vpop.f32.mrb[0].mxu0
  %v3339 = vadd.f32 %v3268, %v3338
  %v3340 = vpop.f32.mrb[0].mxu0
  %v3341 = vadd.f32 %v3270, %v3340
  %v3342 = vpop.f32.mrb[0].mxu0
  %v3343 = vadd.f32 %v3272, %v3342
  %v3344 = vpop.f32.mrb[0].mxu0
  %v3345 = vadd.f32 %v3274, %v3344
  %3346 = vmatprep.mubr.bf16.mxu0 0
  %3347 = vmatmul.mubr.bf16.gmra.mrb[0].mxu0 %v3065
  %v3348 = vpop.f32.mrb[0].mxu0
  %v3349 = vadd.f32 %v3278, %v3348
  %v3350 = vpop.f32.mrb[0].mxu0
  %v3351 = vadd.f32 %v3280, %v3350
  %v3352 = vpop.f32.mrb[0].mxu0
  %v3353 = vadd.f32 %v3282, %v3352
  %v3354 = vpop.f32.mrb[0].mxu0
  %v3355 = vadd.f32 %v3284, %v3354
  %3356 = vmatprep.mubr.bf16.mxu0 0
  %3357 = vmatmul.mubr.bf16.gmra.mrb[0].mxu0 %v3068
  %v3358 = vpop.f32.mrb[0].mxu0
  %v3359 = vadd.f32 %v3288, %v3358
  %v3360 = vpop.f32.mrb[0].mxu0
  %v3361 = vadd.f32 %v3290, %v3360
  %v3362 = vpop.f32.mrb[0].mxu0
  %v3363 = vadd.f32 %v3292, %v3362
  %v3364 = vpop.f32.mrb[0].mxu0
  %v3365 = vadd.f32 %v3294, %v3364
  %3366 = vmatprep.mubr.bf16.mxu0 0
  %3367 = vmatmul.mubr.bf16.gmra.mrb[0].mxu0 %v3071
  %v3368 = vpop.f32.mrb[0].mxu0
  %v3369 = vadd.f32 %v3298, %v3368
  %v3370 = vpop.f32.mrb[0].mxu0
  %v3371 = vadd.f32 %v3300, %v3370
  %v3372 = vpop.f32.mrb[0].mxu0
  %v3373 = vpop.f32.mrb[0].mxu0
  %3374 = vdwg.mxu0
  %3375 = vmatprep.subr.bf16.mxu0 %v2311
  %3376 = vmatpush1.bf16.msra.mxu0 %v2310
  %3377 = vmatprep.subr.bf16.mxu0 %v2314
  %3378 = vmatpush1.bf16.msra.mxu0 %v2313
  %3379 = vmatprep.subr.bf16.mxu0 %v2910
  %3380 = vmatpush1.bf16.msra.mxu0 %v2906
  %3381 = vmatprep.subr.bf16.mxu0 %v2779
  %3382 = vmatpush1.bf16.msra.mxu0 %v2777
  %3383 = vmatprep.subr.bf16.mxu0 %v2791
  %3384 = vmatpush1.bf16.msra.mxu0 %v2789
  %3385 = vmatprep.subr.bf16.mxu0 %v2457
  %3386 = vmatpush1.bf16.msra.mxu0 %v2456
  %3387 = vmatprep.subr.bf16.mxu0 %v2460
  %3388 = vmatpush1.bf16.msra.mxu0 %v2459
  %3389 = vmatprep.subr.bf16.mxu0 %v2934
  %3390 = vmatpush1.bf16.msra.mxu0 %v2930
  %3391 = vmatprep.subr.bf16.mxu0 %v2821
  %3392 = vmatpush1.bf16.msra.mxu0 %v2819
  %3393 = vmatprep.subr.bf16.mxu0 %v2833
  %3394 = vmatpush1.bf16.msra.mxu0 %v2831
  %3395 = vmatprep.subr.bf16.mxu0 %v2603
  %3396 = vmatpush1.bf16.msra.mxu0 %v2602
  %3397 = vmatprep.subr.bf16.mxu0 %v2606
  %3398 = vmatpush1.bf16.msra.mxu0 %v2605
  %3399 = vmatprep.subr.bf16.mxu0 %v2958
  %3400 = vmatpush1.bf16.msra.mxu0 %v2954
  %3401 = vmatprep.subr.bf16.mxu0 %v2863
  %3402 = vmatpush1.bf16.msra.mxu0 %v2861
  %3403 = vmatprep.subr.bf16.mxu0 %v2875
  %3404 = vmatpush1.bf16.msra.mxu0 %v2873
  %3405 = vmatprep.subr.bf16.mxu0 %v2749
  %3406 = vmatpush1.bf16.msra.mxu0 %v2748
  %3407 = vmatprep.mubr.bf16.mxu0 %v3046
  %3408 = vmatmul.mubr.bf16.gmra.mrb[0].mxu0 %v3045
  %v3409 = vpop.f32.mrb[0].mxu0
  %v3410 = vadd.f32 0.0, %v3409
  %v3411 = vpop.f32.mrb[0].mxu0
  %v3412 = vadd.f32 0.0, %v3411
  %v3413 = vpop.f32.mrb[0].mxu0
  %v3414 = vadd.f32 0.0, %v3413
  %v3415 = vpop.f32.mrb[0].mxu0
  %v3416 = vadd.f32 0.0, %v3415
  %3417 = vmatprep.mubr.bf16.mxu0 %v3048
  %3418 = vmatmul.mubr.bf16.gmra.mrb[0].mxu0 %v3047
  %v3419 = vpop.f32.mrb[0].mxu0
  %v3420 = vadd.f32 0.0, %v3419
  %v3421 = vpop.f32.mrb[0].mxu0
  %v3422 = vadd.f32 0.0, %v3421
  %v3423 = vpop.f32.mrb[0].mxu0
  %v3424 = vadd.f32 0.0, %v3423
  %v3425 = vpop.f32.mrb[0].mxu0
  %v3426 = vadd.f32 0.0, %v3425
  %3427 = vmatprep.mubr.bf16.mxu0 %v3050
  %3428 = vmatmul.mubr.bf16.gmra.mrb[0].mxu0 %v3049
  %v3429 = vpop.f32.mrb[0].mxu0
  %v3430 = vadd.f32 0.0, %v3429
  %v3431 = vpop.f32.mrb[0].mxu0
  %v3432 = vadd.f32 0.0, %v3431
  %v3433 = vpop.f32.mrb[0].mxu0
  %v3434 = vadd.f32 0.0, %v3433
  %v3435 = vpop.f32.mrb[0].mxu0
  %v3436 = vadd.f32 0.0, %v3435
  %3437 = vmatprep.mubr.bf16.mxu0 %v3052
  %3438 = vmatmul.mubr.bf16.gmra.mrb[0].mxu0 %v3051
  %v3439 = vpop.f32.mrb[0].mxu0
  %v3440 = vadd.f32 0.0, %v3439
  %v3441 = vpop.f32.mrb[0].mxu0
  %v3442 = vadd.f32 0.0, %v3441
  %v3443 = vpop.f32.mrb[0].mxu0
  %v3444 = vpop.f32.mrb[0].mxu0
  %3445 = vdwg.mxu0
  %3446 = vmatprep.subr.bf16.mxu0 %v2752
  %3447 = vmatpush1.bf16.msra.mxu0 %v2751
  %3448 = vmatprep.subr.bf16.mxu0 %v3089
  %3449 = vmatpush1.bf16.msra.mxu0 %v3086
  %3450 = vmatprep.subr.bf16.mxu0 0
  %3451 = vmatpush1.bf16.msra.mxu0 0
  %3452 = vmatprep.subr.bf16.mxu0 0
  %3453 = vmatpush1.bf16.msra.mxu0 0
  %3454 = vmatprep.subr.bf16.mxu0 0
  %3455 = vmatpush1.bf16.msra.mxu0 0
  %3456 = vmatprep.subr.bf16.mxu0 0
  %3457 = vmatpush1.bf16.msra.mxu0 0
  %3458 = vmatprep.subr.bf16.mxu0 0
  %3459 = vmatpush1.bf16.msra.mxu0 0
  %3460 = vmatprep.subr.bf16.mxu0 0
  %3461 = vmatpush1.bf16.msra.mxu0 0
  %3462 = vmatprep.subr.bf16.mxu0 0
  %3463 = vmatpush1.bf16.msra.mxu0 0
  %3464 = vmatprep.subr.bf16.mxu0 0
  %3465 = vmatpush1.bf16.msra.mxu0 0
  %3466 = vmatprep.subr.bf16.mxu0 0
  %3467 = vmatpush1.bf16.msra.mxu0 0
  %3468 = vmatprep.subr.bf16.mxu0 0
  %3469 = vmatpush1.bf16.msra.mxu0 0
  %3470 = vmatprep.subr.bf16.mxu0 0
  %3471 = vmatpush1.bf16.msra.mxu0 0
  %3472 = vmatprep.subr.bf16.mxu0 0
  %3473 = vmatpush1.bf16.msra.mxu0 0
  %3474 = vmatprep.subr.bf16.mxu0 0
  %3475 = vmatpush1.bf16.msra.mxu0 0
  %3476 = vmatprep.subr.bf16.mxu0 0
  %3477 = vmatpush1.bf16.msra.mxu0 0
  %3478 = vmatprep.mubr.bf16.mxu0 0
  %3479 = vmatmul.mubr.bf16.gmra.mrb[0].mxu0 %v3062
  %v3480 = vpop.f32.mrb[0].mxu0
  %v3481 = vadd.f32 %v3410, %v3480
  %v3482 = vpop.f32.mrb[0].mxu0
  %v3483 = vadd.f32 %v3412, %v3482
  %v3484 = vpop.f32.mrb[0].mxu0
  %v3485 = vadd.f32 %v3414, %v3484
  %v3486 = vpop.f32.mrb[0].mxu0
  %v3487 = vadd.f32 %v3416, %v3486
  %3488 = vmatprep.mubr.bf16.mxu0 0
  %3489 = vmatmul.mubr.bf16.gmra.mrb[0].mxu0 %v3065
  %v3490 = vpop.f32.mrb[0].mxu0
  %v3491 = vadd.f32 %v3420, %v3490
  %v3492 = vpop.f32.mrb[0].mxu0
  %v3493 = vadd.f32 %v3422, %v3492
  %v3494 = vpop.f32.mrb[0].mxu0
  %v3495 = vadd.f32 %v3424, %v3494
  %v3496 = vpop.f32.mrb[0].mxu0
  %v3497 = vadd.f32 %v3426, %v3496
  %3498 = vmatprep.mubr.bf16.mxu0 0
  %3499 = vmatmul.mubr.bf16.gmra.mrb[0].mxu0 %v3068
  %v3500 = vpop.f32.mrb[0].mxu0
  %v3501 = vadd.f32 %v3430, %v3500
  %v3502 = vpop.f32.mrb[0].mxu0
  %v3503 = vadd.f32 %v3432, %v3502
  %v3504 = vpop.f32.mrb[0].mxu0
  %v3505 = vadd.f32 %v3434, %v3504
  %v3506 = vpop.f32.mrb[0].mxu0
  %v3507 = vadd.f32 %v3436, %v3506
  %3508 = vmatprep.mubr.bf16.mxu0 0
  %3509 = vmatmul.mubr.bf16.gmra.mrb[0].mxu0 %v3071
  %v3510 = vpop.f32.mrb[0].mxu0
  %v3511 = vadd.f32 %v3440, %v3510
  %v3512 = vpop.f32.mrb[0].mxu0
  %v3513 = vadd.f32 %v3442, %v3512
  %v3514 = vpop.f32.mrb[0].mxu0
  %v3515 = vpop.f32.mrb[0].mxu0
  %3516 = vdwg.mxu0
  %v3517 = vld [vmem:[#allocation3] sm:$0xff]
  %v3518 = vld [vmem:[#allocation3 + $0x8] sm:$0xff]
  %v3519 = vld [vmem:[#allocation3 + $0x10] sm:$0xff]
  %v3520 = vld [vmem:[#allocation3 + $0x18] sm:$0xff]
  %v3521 = vld [vmem:[#allocation3 + $0x20] sm:$0xff]
  %v3522 = vld [vmem:[#allocation3 + $0x28] sm:$0xff]
  %v3523 = vld [vmem:[#allocation3 + $0x30] sm:$0xff]
  %v3524 = vld [vmem:[#allocation3 + $0x38] sm:$0xff]
  %v3525 = vld [vmem:[#allocation3 + $0x40] sm:$0xff]
  %v3526 = vld [vmem:[#allocation3 + $0x48] sm:$0xff]
  %v3527 = vld [vmem:[#allocation3 + $0x50] sm:$0xff]
  %v3528 = vld [vmem:[#allocation3 + $0x58] sm:$0xff]
  %v3529 = vld [vmem:[#allocation3 + $0x60] sm:$0xff]
  %v3530 = vld [vmem:[#allocation3 + $0x68] sm:$0xff]
  %v3531 = vld [vmem:[#allocation3 + $0x70] sm:$0xff]
  %v3532 = vld [vmem:[#allocation3 + $0x78] sm:$0xff]
  %v3533 = vld [vmem:[#allocation3 + $0x80] sm:$0xff]
  %v3534 = vld [vmem:[#allocation3 + $0x88] sm:$0xff]
  %v3535 = vld [vmem:[#allocation3 + $0x90] sm:$0xff]
  %v3536 = vld [vmem:[#allocation3 + $0x98] sm:$0xff]
  %v3537 = vld [vmem:[#allocation3 + $0xa0] sm:$0xff]
  %v3538 = vld [vmem:[#allocation3 + $0xa8] sm:$0xff]
  %v3539 = vld [vmem:[#allocation3 + $0xb0] sm:$0xff]
  %v3540 = vld [vmem:[#allocation3 + $0xb8] sm:$0xff]
  %v3541 = vld [vmem:[#allocation3 + $0xc0] sm:$0xff]
  %v3542 = vld [vmem:[#allocation3 + $0xc8] sm:$0xff]
  %v3543 = vld [vmem:[#allocation3 + $0xd0] sm:$0xff]
  %v3544 = vld [vmem:[#allocation3 + $0xd8] sm:$0xff]
  %v3545 = vld [vmem:[#allocation3 + $0xe0] sm:$0xff]
  %v3546 = vld [vmem:[#allocation3 + $0xe8] sm:$0xff]
  %v3547 = vld [vmem:[#allocation3 + $0xf0] sm:$0xff]
  %v3548 = vld [vmem:[#allocation3 + $0xf8] sm:$0xff]
  %v3549 = vld [vmem:[#allocation3 + $0x100] sm:$0xff]
  %v3550 = vld [vmem:[#allocation3 + $0x108] sm:$0xff]
  %v3551 = vld [vmem:[#allocation3 + $0x110] sm:$0xff]
  %v3552 = vld [vmem:[#allocation3 + $0x118] sm:$0xff]
  %v3553 = vld [vmem:[#allocation3 + $0x120] sm:$0x3]
  %v3554 = vld [vmem:[#allocation3 + $0x128] sm:$0x3]
  %v3555 = vld [vmem:[#allocation3 + $0x130] sm:$0x3]
  %v3556 = vld [vmem:[#allocation3 + $0x138] sm:$0x3]
  %v3557 = vld [vmem:[#allocation3 + $0x140] sm:$0x3]
  %v3558 = vld [vmem:[#allocation3 + $0x148] sm:$0x3]
  %v3559 = vadd.f32 %v3517, %v3197
  %v3560 = vadd.f32 %v3518, %v3199
  %v3561 = vadd.f32 %v3519, %v3339
  %v3562 = vadd.f32 %v3520, %v3341
  %v3563 = vadd.f32 %v3521, %v3481
  %v3564 = vadd.f32 %v3522, %v3483
  %v3565 = vadd.f32 %v3523, %v3201
  %v3566 = vadd.f32 %v3524, %v3203
  %v3567 = vadd.f32 %v3525, %v3343
  %v3568 = vadd.f32 %v3526, %v3345
  %v3569 = vadd.f32 %v3527, %v3485
  %v3570 = vadd.f32 %v3528, %v3487
  %v3571 = vadd.f32 %v3529, %v3207
  %v3572 = vadd.f32 %v3530, %v3209
  %v3573 = vadd.f32 %v3531, %v3349
  %v3574 = vadd.f32 %v3532, %v3351
  %v3575 = vadd.f32 %v3533, %v3491
  %v3576 = vadd.f32 %v3534, %v3493
  %v3577 = vadd.f32 %v3535, %v3211
  %v3578 = vadd.f32 %v3536, %v3213
  %v3579 = vadd.f32 %v3537, %v3353
  %v3580 = vadd.f32 %v3538, %v3355
  %v3581 = vadd.f32 %v3539, %v3495
  %v3582 = vadd.f32 %v3540, %v3497
  %v3583 = vadd.f32 %v3541, %v3217
  %v3584 = vadd.f32 %v3542, %v3219
  %v3585 = vadd.f32 %v3543, %v3359
  %v3586 = vadd.f32 %v3544, %v3361
  %v3587 = vadd.f32 %v3545, %v3501
  %v3588 = vadd.f32 %v3546, %v3503
  %v3589 = vadd.f32 %v3547, %v3221
  %v3590 = vadd.f32 %v3548, %v3223
  %v3591 = vadd.f32 %v3549, %v3363
  %v3592 = vadd.f32 %v3550, %v3365
  %v3593 = vadd.f32 %v3551, %v3505
  %v3594 = vadd.f32 %v3552, %v3507
  %v3595 = vadd.f32 %v3553, %v3227
  %v3596 = vadd.f32 %v3554, %v3229
  %v3597 = vadd.f32 %v3555, %v3369
  %v3598 = vadd.f32 %v3556, %v3371
  %v3599 = vadd.f32 %v3557, %v3511
  %v3600 = vadd.f32 %v3558, %v3513
  %3601 = vst [vmem:[#allocation3] sm:$0xff] %v3559
  %3602 = vst [vmem:[#allocation3 + $0x8] sm:$0xff] %v3560
  %3603 = vst [vmem:[#allocation3 + $0x10] sm:$0xff] %v3561
  %3604 = vst [vmem:[#allocation3 + $0x18] sm:$0xff] %v3562
  %3605 = vst [vmem:[#allocation3 + $0x20] sm:$0xff] %v3563
  %3606 = vst [vmem:[#allocation3 + $0x28] sm:$0xff] %v3564
  %3607 = vst [vmem:[#allocation3 + $0x30] sm:$0xff] %v3565
  %3608 = vst [vmem:[#allocation3 + $0x38] sm:$0xff] %v3566
  %3609 = vst [vmem:[#allocation3 + $0x40] sm:$0xff] %v3567
  %3610 = vst [vmem:[#allocation3 + $0x48] sm:$0xff] %v3568
  %3611 = vst [vmem:[#allocation3 + $0x50] sm:$0xff] %v3569
  %3612 = vst [vmem:[#allocation3 + $0x58] sm:$0xff] %v3570
  %3613 = vst [vmem:[#allocation3 + $0x60] sm:$0xff] %v3571
  %3614 = vst [vmem:[#allocation3 + $0x68] sm:$0xff] %v3572
  %3615 = vst [vmem:[#allocation3 + $0x70] sm:$0xff] %v3573
  %3616 = vst [vmem:[#allocation3 + $0x78] sm:$0xff] %v3574
  %3617 = vst [vmem:[#allocation3 + $0x80] sm:$0xff] %v3575
  %3618 = vst [vmem:[#allocation3 + $0x88] sm:$0xff] %v3576
  %3619 = vst [vmem:[#allocation3 + $0x90] sm:$0xff] %v3577
  %3620 = vst [vmem:[#allocation3 + $0x98] sm:$0xff] %v3578
  %3621 = vst [vmem:[#allocation3 + $0xa0] sm:$0xff] %v3579
  %3622 = vst [vmem:[#allocation3 + $0xa8] sm:$0xff] %v3580
  %3623 = vst [vmem:[#allocation3 + $0xb0] sm:$0xff] %v3581
  %3624 = vst [vmem:[#allocation3 + $0xb8] sm:$0xff] %v3582
  %3625 = vst [vmem:[#allocation3 + $0xc0] sm:$0xff] %v3583
  %3626 = vst [vmem:[#allocation3 + $0xc8] sm:$0xff] %v3584
  %3627 = vst [vmem:[#allocation3 + $0xd0] sm:$0xff] %v3585
  %3628 = vst [vmem:[#allocation3 + $0xd8] sm:$0xff] %v3586
  %3629 = vst [vmem:[#allocation3 + $0xe0] sm:$0xff] %v3587
  %3630 = vst [vmem:[#allocation3 + $0xe8] sm:$0xff] %v3588
  %3631 = vst [vmem:[#allocation3 + $0xf0] sm:$0xff] %v3589
  %3632 = vst [vmem:[#allocation3 + $0xf8] sm:$0xff] %v3590
  %3633 = vst [vmem:[#allocation3 + $0x100] sm:$0xff] %v3591
  %3634 = vst [vmem:[#allocation3 + $0x108] sm:$0xff] %v3592
  %3635 = vst [vmem:[#allocation3 + $0x110] sm:$0xff] %v3593
  %3636 = vst [vmem:[#allocation3 + $0x118] sm:$0xff] %v3594
  %3637 = vst [vmem:[#allocation3 + $0x120] sm:$0x3] %v3595
  %3638 = vst [vmem:[#allocation3 + $0x128] sm:$0x3] %v3596
  %3639 = vst [vmem:[#allocation3 + $0x130] sm:$0x3] %v3597
  %3640 = vst [vmem:[#allocation3 + $0x138] sm:$0x3] %v3598
  %3641 = vst [vmem:[#allocation3 + $0x140] sm:$0x3] %v3599
  %3642 = vst [vmem:[#allocation3 + $0x148] sm:$0x3] %v3600
  %v3643 = vld [vmem:[#allocation2] sm:$0xff]
  %v3644 = vld [vmem:[#allocation2 + $0x8] sm:$0xff]
  %v3645 = vld [vmem:[#allocation2 + $0x20] sm:$0xff]
  %v3646 = vld [vmem:[#allocation2 + $0x28] sm:$0xff]
  %v3647 = vld [vmem:[#allocation2 + $0x40] sm:$0xff]
  %v3648 = vld [vmem:[#allocation2 + $0x48] sm:$0xff]
  %v3649 = vld [vmem:[#allocation2 + $0x60] sm:$0xff]
  %v3650 = vld [vmem:[#allocation2 + $0x68] sm:$0xff]
  %v3651 = vld [vmem:[#allocation2 + $0x80] sm:$0xff]
  %v3652 = vld [vmem:[#allocation2 + $0x88] sm:$0xff]
  %v3653 = vld [vmem:[#allocation2 + $0x10] sm:$0xff]
  %v3654 = vld [vmem:[#allocation2 + $0x18] sm:$0xff]
  %v3655 = vld [vmem:[#allocation2 + $0x30] sm:$0xff]
  %v3656 = vld [vmem:[#allocation2 + $0x38] sm:$0xff]
  %v3657 = vld [vmem:[#allocation2 + $0x50] sm:$0xff]
  %v3658 = vld [vmem:[#allocation2 + $0x58] sm:$0xff]
  %v3659 = vld [vmem:[#allocation2 + $0x70] sm:$0xff]
  %v3660 = vld [vmem:[#allocation2 + $0x78] sm:$0xff]
  %v3661 = vld [vmem:[#allocation2 + $0x90] sm:$0xff]
  %v3662 = vld [vmem:[#allocation2 + $0x98] sm:$0xff]
  %v3673 = vunpack.c.l.b16 %v3643
  %v3674 = vunpack.c.h.b16 %v3643
  %v3675 = vunpack.c.l.b16 %v3644
  %v3676 = vunpack.c.h.b16 %v3644
  %v3677 = vunpack.c.l.b16 %v3645
  %v3678 = vunpack.c.h.b16 %v3645
  %v3679 = vunpack.c.l.b16 %v3646
  %v3680 = vunpack.c.h.b16 %v3646
  %v3681 = vunpack.c.l.b16 %v3647
  %v3682 = vunpack.c.h.b16 %v3647
  %v3683 = vunpack.c.l.b16 %v3648
  %v3684 = vunpack.c.h.b16 %v3648
  %v3685 = vunpack.c.l.b16 %v3649
  %v3686 = vunpack.c.h.b16 %v3649
  %v3687 = vunpack.c.l.b16 %v3650
  %v3688 = vunpack.c.h.b16 %v3650
  %v3689 = vunpack.c.l.b16 %v3651
  %v3690 = vunpack.c.h.b16 %v3651
  %v3691 = vunpack.c.l.b16 %v3652
  %v3692 = vunpack.c.h.b16 %v3652
  %v3693 = vpack.c.b16 %v3677, %v3673
  %v3694 = vpack.c.b16 %v3678, %v3674
  %v3695 = vpack.c.b16 %v3679, %v3675
  %v3696 = vpack.c.b16 %v3680, %v3676
  %v3697 = vpack.c.b16 %v3685, %v3681
  %v3698 = vpack.c.b16 %v3686, %v3682
  %v3699 = vpack.c.b16 %v3687, %v3683
  %v3700 = vpack.c.b16 %v3688, %v3684
  %v3701 = vpack.c.b16 %v3689, %v3689
  %v3702 = vpack.c.b16 %v3690, %v3690
  %v3703 = vpack.c.b16 %v3691, %v3691
  %v3704 = vpack.c.b16 %v3692, %v3692
  %3705 = vrot.lane.b32.xlu0 %v3693, 92
  %v3706 = vpop.permute.xlu0 %3705
  %3707 = vrot.lane.b32.xlu0 %v3694, 92
  %v3708 = vpop.permute.xlu0 %3707
  %3709 = vrot.lane.b32.xlu0 %v3695, 92
  %v3710 = vpop.permute.xlu0 %3709
  %3711 = vrot.lane.b32.xlu0 %v3696, 92
  %v3712 = vpop.permute.xlu0 %3711
  %3713 = vrot.lane.b32.xlu0 %v3697, 92
  %v3714 = vpop.permute.xlu0 %3713
  %3715 = vrot.lane.b32.xlu0 %v3698, 92
  %v3716 = vpop.permute.xlu0 %3715
  %3717 = vrot.lane.b32.xlu0 %v3699, 92
  %v3718 = vpop.permute.xlu0 %3717
  %3719 = vrot.lane.b32.xlu0 %v3700, 92
  %v3720 = vpop.permute.xlu0 %3719
  %3721 = vrot.lane.b32.xlu0 %v3701, 92
  %v3722 = vpop.permute.xlu0 %3721
  %3723 = vrot.lane.b32.xlu0 %v3702, 92
  %v3724 = vpop.permute.xlu0 %3723
  %3725 = vrot.lane.b32.xlu0 %v3703, 92
  %v3726 = vpop.permute.xlu0 %3725
  %3727 = vrot.lane.b32.xlu0 %v3704, 92
  %v3728 = vpop.permute.xlu0 %3727
  %vm3729 = vcmask 752640
  %v3730 = vsel %vm3729, %v3706, %v3708
  %v3731 = vsel %vm3729, %v3708, %v3710
  %v3732 = vsel %vm3729, %v3710, %v3712
  %v3733 = vsel %vm3729, %v3714, %v3716
  %v3734 = vsel %vm3729, %v3716, %v3718
  %v3735 = vsel %vm3729, %v3718, %v3720
  %v3736 = vsel %vm3729, %v3722, %v3724
  %v3737 = vsel %vm3729, %v3724, %v3726
  %v3738 = vsel %vm3729, %v3726, %v3728
  %v3755 = vunpack.c.l.b16 %v3653
  %v3756 = vunpack.c.h.b16 %v3653
  %v3757 = vunpack.c.l.b16 %v3654
  %v3758 = vunpack.c.h.b16 %v3654
  %v3759 = vunpack.c.l.b16 %v3655
  %v3760 = vunpack.c.h.b16 %v3655
  %v3761 = vunpack.c.l.b16 %v3656
  %v3762 = vunpack.c.h.b16 %v3656
  %v3763 = vunpack.c.l.b16 %v3657
  %v3764 = vunpack.c.h.b16 %v3657
  %v3765 = vunpack.c.l.b16 %v3658
  %v3766 = vunpack.c.h.b16 %v3658
  %v3767 = vunpack.c.l.b16 %v3659
  %v3768 = vunpack.c.h.b16 %v3659
  %v3769 = vunpack.c.l.b16 %v3660
  %v3770 = vunpack.c.h.b16 %v3660
  %v3771 = vunpack.c.l.b16 %v3661
  %v3772 = vunpack.c.h.b16 %v3661
  %v3773 = vunpack.c.l.b16 %v3662
  %v3774 = vunpack.c.h.b16 %v3662
  %v3775 = vpack.c.b16 %v3759, %v3755
  %v3776 = vpack.c.b16 %v3760, %v3756
  %v3777 = vpack.c.b16 %v3761, %v3757
  %v3778 = vpack.c.b16 %v3762, %v3758
  %v3779 = vpack.c.b16 %v3767, %v3763
  %v3780 = vpack.c.b16 %v3768, %v3764
  %v3781 = vpack.c.b16 %v3769, %v3765
  %v3782 = vpack.c.b16 %v3770, %v3766
  %v3783 = vpack.c.b16 %v3771, %v3771
  %v3784 = vpack.c.b16 %v3772, %v3772
  %v3785 = vpack.c.b16 %v3773, %v3773
  %v3786 = vpack.c.b16 %v3774, %v3774
  %3787 = vrot.lane.b32.xlu0 %v3775, 92
  %v3788 = vpop.permute.xlu0 %3787
  %3789 = vrot.lane.b32.xlu0 %v3776, 92
  %v3790 = vpop.permute.xlu0 %3789
  %3791 = vrot.lane.b32.xlu0 %v3777, 92
  %v3792 = vpop.permute.xlu0 %3791
  %3793 = vrot.lane.b32.xlu0 %v3778, 92
  %v3794 = vpop.permute.xlu0 %3793
  %3795 = vrot.lane.b32.xlu0 %v3779, 92
  %v3796 = vpop.permute.xlu0 %3795
  %3797 = vrot.lane.b32.xlu0 %v3780, 92
  %v3798 = vpop.permute.xlu0 %3797
  %3799 = vrot.lane.b32.xlu0 %v3781, 92
  %v3800 = vpop.permute.xlu0 %3799
  %3801 = vrot.lane.b32.xlu0 %v3782, 92
  %v3802 = vpop.permute.xlu0 %3801
  %3803 = vrot.lane.b32.xlu0 %v3783, 92
  %v3804 = vpop.permute.xlu0 %3803
  %3805 = vrot.lane.b32.xlu0 %v3784, 92
  %v3806 = vpop.permute.xlu0 %3805
  %3807 = vrot.lane.b32.xlu0 %v3785, 92
  %v3808 = vpop.permute.xlu0 %3807
  %3809 = vrot.lane.b32.xlu0 %v3786, 92
  %v3810 = vpop.permute.xlu0 %3809
  %v3811 = vsel %vm3729, %v3788, %v3790
  %v3812 = vsel %vm3729, %v3790, %v3792
  %v3813 = vsel %vm3729, %v3792, %v3794
  %v3814 = vsel %vm3729, %v3796, %v3798
  %v3815 = vsel %vm3729, %v3798, %v3800
  %v3816 = vsel %vm3729, %v3800, %v3802
  %v3817 = vsel %vm3729, %v3804, %v3806
  %v3818 = vsel %vm3729, %v3806, %v3808
  %v3819 = vsel %vm3729, %v3808, %v3810
  %3826 = vrot.lane.b32.xlu0 %v3693, 91
  %v3827 = vpop.permute.xlu0 %3826
  %3828 = vrot.lane.b32.xlu0 %v3694, 91
  %v3829 = vpop.permute.xlu0 %3828
  %3830 = vrot.lane.b32.xlu0 %v3695, 91
  %v3831 = vpop.permute.xlu0 %3830
  %3832 = vrot.lane.b32.xlu0 %v3696, 91
  %v3833 = vpop.permute.xlu0 %3832
  %3834 = vrot.lane.b32.xlu0 %v3697, 91
  %v3835 = vpop.permute.xlu0 %3834
  %3836 = vrot.lane.b32.xlu0 %v3698, 91
  %v3837 = vpop.permute.xlu0 %3836
  %3838 = vrot.lane.b32.xlu0 %v3699, 91
  %v3839 = vpop.permute.xlu0 %3838
  %3840 = vrot.lane.b32.xlu0 %v3700, 91
  %v3841 = vpop.permute.xlu0 %3840
  %3842 = vrot.lane.b32.xlu0 %v3701, 91
  %v3843 = vpop.permute.xlu0 %3842
  %3844 = vrot.lane.b32.xlu0 %v3702, 91
  %v3845 = vpop.permute.xlu0 %3844
  %3846 = vrot.lane.b32.xlu0 %v3703, 91
  %v3847 = vpop.permute.xlu0 %3846
  %3848 = vrot.lane.b32.xlu0 %v3704, 91
  %v3849 = vpop.permute.xlu0 %3848
  %vm3850 = vcmask 744448
  %v3851 = vsel %vm3850, %v3827, %v3829
  %v3852 = vsel %vm3850, %v3829, %v3831
  %v3853 = vsel %vm3850, %v3831, %v3833
  %v3854 = vsel %vm3850, %v3835, %v3837
  %v3855 = vsel %vm3850, %v3837, %v3839
  %v3856 = vsel %vm3850, %v3839, %v3841
  %v3857 = vsel %vm3850, %v3843, %v3845
  %v3858 = vsel %vm3850, %v3845, %v3847
  %v3859 = vsel %vm3850, %v3847, %v3849
  %3860 = vrot.lane.b32.xlu0 %v3775, 91
  %v3861 = vpop.permute.xlu0 %3860
  %3862 = vrot.lane.b32.xlu0 %v3776, 91
  %v3863 = vpop.permute.xlu0 %3862
  %3864 = vrot.lane.b32.xlu0 %v3777, 91
  %v3865 = vpop.permute.xlu0 %3864
  %3866 = vrot.lane.b32.xlu0 %v3778, 91
  %v3867 = vpop.permute.xlu0 %3866
  %3868 = vrot.lane.b32.xlu0 %v3779, 91
  %v3869 = vpop.permute.xlu0 %3868
  %3870 = vrot.lane.b32.xlu0 %v3780, 91
  %v3871 = vpop.permute.xlu0 %3870
  %3872 = vrot.lane.b32.xlu0 %v3781, 91
  %v3873 = vpop.permute.xlu0 %3872
  %3874 = vrot.lane.b32.xlu0 %v3782, 91
  %v3875 = vpop.permute.xlu0 %3874
  %3876 = vrot.lane.b32.xlu0 %v3783, 91
  %v3877 = vpop.permute.xlu0 %3876
  %3878 = vrot.lane.b32.xlu0 %v3784, 91
  %v3879 = vpop.permute.xlu0 %3878
  %3880 = vrot.lane.b32.xlu0 %v3785, 91
  %v3881 = vpop.permute.xlu0 %3880
  %3882 = vrot.lane.b32.xlu0 %v3786, 91
  %v3883 = vpop.permute.xlu0 %3882
  %v3884 = vsel %vm3850, %v3861, %v3863
  %v3885 = vsel %vm3850, %v3863, %v3865
  %v3886 = vsel %vm3850, %v3865, %v3867
  %v3887 = vsel %vm3850, %v3869, %v3871
  %v3888 = vsel %vm3850, %v3871, %v3873
  %v3889 = vsel %vm3850, %v3873, %v3875
  %v3890 = vsel %vm3850, %v3877, %v3879
  %v3891 = vsel %vm3850, %v3879, %v3881
  %v3892 = vsel %vm3850, %v3881, %v3883
  %3893 = vrot.lane.b32.xlu0 %v3693, 90
  %v3894 = vpop.permute.xlu0 %3893
  %3895 = vrot.lane.b32.xlu0 %v3694, 90
  %v3896 = vpop.permute.xlu0 %3895
  %3897 = vrot.lane.b32.xlu0 %v3695, 90
  %v3898 = vpop.permute.xlu0 %3897
  %3899 = vrot.lane.b32.xlu0 %v3696, 90
  %v3900 = vpop.permute.xlu0 %3899
  %3901 = vrot.lane.b32.xlu0 %v3697, 90
  %v3902 = vpop.permute.xlu0 %3901
  %3903 = vrot.lane.b32.xlu0 %v3698, 90
  %v3904 = vpop.permute.xlu0 %3903
  %3905 = vrot.lane.b32.xlu0 %v3699, 90
  %v3906 = vpop.permute.xlu0 %3905
  %3907 = vrot.lane.b32.xlu0 %v3700, 90
  %v3908 = vpop.permute.xlu0 %3907
  %3909 = vrot.lane.b32.xlu0 %v3701, 90
  %v3910 = vpop.permute.xlu0 %3909
  %3911 = vrot.lane.b32.xlu0 %v3702, 90
  %v3912 = vpop.permute.xlu0 %3911
  %3913 = vrot.lane.b32.xlu0 %v3703, 90
  %v3914 = vpop.permute.xlu0 %3913
  %3915 = vrot.lane.b32.xlu0 %v3704, 90
  %v3916 = vpop.permute.xlu0 %3915
  %vm3917 = vcmask 736256
  %v3918 = vsel %vm3917, %v3894, %v3896
  %v3919 = vsel %vm3917, %v3896, %v3898
  %v3920 = vsel %vm3917, %v3898, %v3900
  %v3921 = vsel %vm3917, %v3902, %v3904
  %v3922 = vsel %vm3917, %v3904, %v3906
  %v3923 = vsel %vm3917, %v3906, %v3908
  %v3924 = vsel %vm3917, %v3910, %v3912
  %v3925 = vsel %vm3917, %v3912, %v3914
  %v3926 = vsel %vm3917, %v3914, %v3916
  %3933 = vrot.lane.b32.xlu0 %v3775, 90
  %v3934 = vpop.permute.xlu0 %3933
  %3935 = vrot.lane.b32.xlu0 %v3776, 90
  %v3936 = vpop.permute.xlu0 %3935
  %3937 = vrot.lane.b32.xlu0 %v3777, 90
  %v3938 = vpop.permute.xlu0 %3937
  %3939 = vrot.lane.b32.xlu0 %v3778, 90
  %v3940 = vpop.permute.xlu0 %3939
  %3941 = vrot.lane.b32.xlu0 %v3779, 90
  %v3942 = vpop.permute.xlu0 %3941
  %3943 = vrot.lane.b32.xlu0 %v3780, 90
  %v3944 = vpop.permute.xlu0 %3943
  %3945 = vrot.lane.b32.xlu0 %v3781, 90
  %v3946 = vpop.permute.xlu0 %3945
  %3947 = vrot.lane.b32.xlu0 %v3782, 90
  %v3948 = vpop.permute.xlu0 %3947
  %3949 = vrot.lane.b32.xlu0 %v3783, 90
  %v3950 = vpop.permute.xlu0 %3949
  %3951 = vrot.lane.b32.xlu0 %v3784, 90
  %v3952 = vpop.permute.xlu0 %3951
  %3953 = vrot.lane.b32.xlu0 %v3785, 90
  %v3954 = vpop.permute.xlu0 %3953
  %3955 = vrot.lane.b32.xlu0 %v3786, 90
  %v3956 = vpop.permute.xlu0 %3955
  %v3957 = vsel %vm3917, %v3934, %v3936
  %v3958 = vsel %vm3917, %v3936, %v3938
  %v3959 = vsel %vm3917, %v3938, %v3940
  %v3960 = vsel %vm3917, %v3942, %v3944
  %v3961 = vsel %vm3917, %v3944, %v3946
  %v3962 = vsel %vm3917, %v3946, %v3948
  %v3963 = vsel %vm3917, %v3950, %v3952
  %v3964 = vsel %vm3917, %v3952, %v3954
  %v3965 = vsel %vm3917, %v3954, %v3956
  %3972 = vrot.lane.b32.xlu0 %v3693, 89
  %v3973 = vpop.permute.xlu0 %3972
  %3974 = vrot.lane.b32.xlu0 %v3694, 89
  %v3975 = vpop.permute.xlu0 %3974
  %3976 = vrot.lane.b32.xlu0 %v3695, 89
  %v3977 = vpop.permute.xlu0 %3976
  %3978 = vrot.lane.b32.xlu0 %v3696, 89
  %v3979 = vpop.permute.xlu0 %3978
  %3980 = vrot.lane.b32.xlu0 %v3697, 89
  %v3981 = vpop.permute.xlu0 %3980
  %3982 = vrot.lane.b32.xlu0 %v3698, 89
  %v3983 = vpop.permute.xlu0 %3982
  %3984 = vrot.lane.b32.xlu0 %v3699, 89
  %v3985 = vpop.permute.xlu0 %3984
  %3986 = vrot.lane.b32.xlu0 %v3700, 89
  %v3987 = vpop.permute.xlu0 %3986
  %3988 = vrot.lane.b32.xlu0 %v3701, 89
  %v3989 = vpop.permute.xlu0 %3988
  %3990 = vrot.lane.b32.xlu0 %v3702, 89
  %v3991 = vpop.permute.xlu0 %3990
  %3992 = vrot.lane.b32.xlu0 %v3703, 89
  %v3993 = vpop.permute.xlu0 %3992
  %3994 = vrot.lane.b32.xlu0 %v3704, 89
  %v3995 = vpop.permute.xlu0 %3994
  %vm3996 = vcmask 728064
  %v3997 = vsel %vm3996, %v3973, %v3975
  %v3998 = vsel %vm3996, %v3975, %v3977
  %v3999 = vsel %vm3996, %v3977, %v3979
  %v4000 = vsel %vm3996, %v3981, %v3983
  %v4001 = vsel %vm3996, %v3983, %v3985
  %v4002 = vsel %vm3996, %v3985, %v3987
  %v4003 = vsel %vm3996, %v3989, %v3991
  %v4004 = vsel %vm3996, %v3991, %v3993
  %v4005 = vsel %vm3996, %v3993, %v3995
  %4006 = vrot.lane.b32.xlu0 %v3775, 89
  %v4007 = vpop.permute.xlu0 %4006
  %4008 = vrot.lane.b32.xlu0 %v3776, 89
  %v4009 = vpop.permute.xlu0 %4008
  %4010 = vrot.lane.b32.xlu0 %v3777, 89
  %v4011 = vpop.permute.xlu0 %4010
  %4012 = vrot.lane.b32.xlu0 %v3778, 89
  %v4013 = vpop.permute.xlu0 %4012
  %4014 = vrot.lane.b32.xlu0 %v3779, 89
  %v4015 = vpop.permute.xlu0 %4014
  %4016 = vrot.lane.b32.xlu0 %v3780, 89
  %v4017 = vpop.permute.xlu0 %4016
  %4018 = vrot.lane.b32.xlu0 %v3781, 89
  %v4019 = vpop.permute.xlu0 %4018
  %4020 = vrot.lane.b32.xlu0 %v3782, 89
  %v4021 = vpop.permute.xlu0 %4020
  %4022 = vrot.lane.b32.xlu0 %v3783, 89
  %v4023 = vpop.permute.xlu0 %4022
  %4024 = vrot.lane.b32.xlu0 %v3784, 89
  %v4025 = vpop.permute.xlu0 %4024
  %4026 = vrot.lane.b32.xlu0 %v3785, 89
  %v4027 = vpop.permute.xlu0 %4026
  %4028 = vrot.lane.b32.xlu0 %v3786, 89
  %v4029 = vpop.permute.xlu0 %4028
  %v4030 = vsel %vm3996, %v4007, %v4009
  %v4031 = vsel %vm3996, %v4009, %v4011
  %v4032 = vsel %vm3996, %v4011, %v4013
  %v4033 = vsel %vm3996, %v4015, %v4017
  %v4034 = vsel %vm3996, %v4017, %v4019
  %v4035 = vsel %vm3996, %v4019, %v4021
  %v4036 = vsel %vm3996, %v4023, %v4025
  %v4037 = vsel %vm3996, %v4025, %v4027
  %v4038 = vsel %vm3996, %v4027, %v4029
  %4039 = vrot.lane.b32.xlu0 %v3693, 88
  %v4040 = vpop.permute.xlu0 %4039
  %4041 = vrot.lane.b32.xlu0 %v3694, 88
  %v4042 = vpop.permute.xlu0 %4041
  %4043 = vrot.lane.b32.xlu0 %v3695, 88
  %v4044 = vpop.permute.xlu0 %4043
  %4045 = vrot.lane.b32.xlu0 %v3696, 88
  %v4046 = vpop.permute.xlu0 %4045
  %4047 = vrot.lane.b32.xlu0 %v3697, 88
  %v4048 = vpop.permute.xlu0 %4047
  %4049 = vrot.lane.b32.xlu0 %v3698, 88
  %v4050 = vpop.permute.xlu0 %4049
  %4051 = vrot.lane.b32.xlu0 %v3699, 88
  %v4052 = vpop.permute.xlu0 %4051
  %4053 = vrot.lane.b32.xlu0 %v3700, 88
  %v4054 = vpop.permute.xlu0 %4053
  %4055 = vrot.lane.b32.xlu0 %v3701, 88
  %v4056 = vpop.permute.xlu0 %4055
  %4057 = vrot.lane.b32.xlu0 %v3702, 88
  %v4058 = vpop.permute.xlu0 %4057
  %4059 = vrot.lane.b32.xlu0 %v3703, 88
  %v4060 = vpop.permute.xlu0 %4059
  %4061 = vrot.lane.b32.xlu0 %v3704, 88
  %v4062 = vpop.permute.xlu0 %4061
  %vm4063 = vcmask 719872
  %v4064 = vsel %vm4063, %v4040, %v4042
  %v4065 = vsel %vm4063, %v4042, %v4044
  %v4066 = vsel %vm4063, %v4044, %v4046
  %v4067 = vsel %vm4063, %v4048, %v4050
  %v4068 = vsel %vm4063, %v4050, %v4052
  %v4069 = vsel %vm4063, %v4052, %v4054
  %v4070 = vsel %vm4063, %v4056, %v4058
  %v4071 = vsel %vm4063, %v4058, %v4060
  %v4072 = vsel %vm4063, %v4060, %v4062
  %4079 = vrot.lane.b32.xlu0 %v3775, 88
  %v4080 = vpop.permute.xlu0 %4079
  %4081 = vrot.lane.b32.xlu0 %v3776, 88
  %v4082 = vpop.permute.xlu0 %4081
  %4083 = vrot.lane.b32.xlu0 %v3777, 88
  %v4084 = vpop.permute.xlu0 %4083
  %4085 = vrot.lane.b32.xlu0 %v3778, 88
  %v4086 = vpop.permute.xlu0 %4085
  %4087 = vrot.lane.b32.xlu0 %v3779, 88
  %v4088 = vpop.permute.xlu0 %4087
  %4089 = vrot.lane.b32.xlu0 %v3780, 88
  %v4090 = vpop.permute.xlu0 %4089
  %4091 = vrot.lane.b32.xlu0 %v3781, 88
  %v4092 = vpop.permute.xlu0 %4091
  %4093 = vrot.lane.b32.xlu0 %v3782, 88
  %v4094 = vpop.permute.xlu0 %4093
  %4095 = vrot.lane.b32.xlu0 %v3783, 88
  %v4096 = vpop.permute.xlu0 %4095
  %4097 = vrot.lane.b32.xlu0 %v3784, 88
  %v4098 = vpop.permute.xlu0 %4097
  %4099 = vrot.lane.b32.xlu0 %v3785, 88
  %v4100 = vpop.permute.xlu0 %4099
  %4101 = vrot.lane.b32.xlu0 %v3786, 88
  %v4102 = vpop.permute.xlu0 %4101
  %v4103 = vsel %vm4063, %v4080, %v4082
  %v4104 = vsel %vm4063, %v4082, %v4084
  %v4105 = vsel %vm4063, %v4084, %v4086
  %v4106 = vsel %vm4063, %v4088, %v4090
  %v4107 = vsel %vm4063, %v4090, %v4092
  %v4108 = vsel %vm4063, %v4092, %v4094
  %v4109 = vsel %vm4063, %v4096, %v4098
  %v4110 = vsel %vm4063, %v4098, %v4100
  %v4111 = vsel %vm4063, %v4100, %v4102
  %4118 = vrot.lane.b32.xlu0 %v3693, 87
  %v4119 = vpop.permute.xlu0 %4118
  %4120 = vrot.lane.b32.xlu0 %v3694, 87
  %v4121 = vpop.permute.xlu0 %4120
  %4122 = vrot.lane.b32.xlu0 %v3695, 87
  %v4123 = vpop.permute.xlu0 %4122
  %4124 = vrot.lane.b32.xlu0 %v3696, 87
  %v4125 = vpop.permute.xlu0 %4124
  %4126 = vrot.lane.b32.xlu0 %v3697, 87
  %v4127 = vpop.permute.xlu0 %4126
  %4128 = vrot.lane.b32.xlu0 %v3698, 87
  %v4129 = vpop.permute.xlu0 %4128
  %4130 = vrot.lane.b32.xlu0 %v3699, 87
  %v4131 = vpop.permute.xlu0 %4130
  %4132 = vrot.lane.b32.xlu0 %v3700, 87
  %v4133 = vpop.permute.xlu0 %4132
  %4134 = vrot.lane.b32.xlu0 %v3701, 87
  %v4135 = vpop.permute.xlu0 %4134
  %4136 = vrot.lane.b32.xlu0 %v3702, 87
  %v4137 = vpop.permute.xlu0 %4136
  %4138 = vrot.lane.b32.xlu0 %v3703, 87
  %v4139 = vpop.permute.xlu0 %4138
  %4140 = vrot.lane.b32.xlu0 %v3704, 87
  %v4141 = vpop.permute.xlu0 %4140
  %vm4142 = vcmask 711680
  %v4143 = vsel %vm4142, %v4119, %v4121
  %v4144 = vsel %vm4142, %v4121, %v4123
  %v4145 = vsel %vm4142, %v4123, %v4125
  %v4146 = vsel %vm4142, %v4127, %v4129
  %v4147 = vsel %vm4142, %v4129, %v4131
  %v4148 = vsel %vm4142, %v4131, %v4133
  %v4149 = vsel %vm4142, %v4135, %v4137
  %v4150 = vsel %vm4142, %v4137, %v4139
  %v4151 = vsel %vm4142, %v4139, %v4141
  %4152 = vrot.lane.b32.xlu0 %v3775, 87
  %v4153 = vpop.permute.xlu0 %4152
  %4154 = vrot.lane.b32.xlu0 %v3776, 87
  %v4155 = vpop.permute.xlu0 %4154
  %4156 = vrot.lane.b32.xlu0 %v3777, 87
  %v4157 = vpop.permute.xlu0 %4156
  %4158 = vrot.lane.b32.xlu0 %v3778, 87
  %v4159 = vpop.permute.xlu0 %4158
  %4160 = vrot.lane.b32.xlu0 %v3779, 87
  %v4161 = vpop.permute.xlu0 %4160
  %4162 = vrot.lane.b32.xlu0 %v3780, 87
  %v4163 = vpop.permute.xlu0 %4162
  %4164 = vrot.lane.b32.xlu0 %v3781, 87
  %v4165 = vpop.permute.xlu0 %4164
  %4166 = vrot.lane.b32.xlu0 %v3782, 87
  %v4167 = vpop.permute.xlu0 %4166
  %4168 = vrot.lane.b32.xlu0 %v3783, 87
  %v4169 = vpop.permute.xlu0 %4168
  %4170 = vrot.lane.b32.xlu0 %v3784, 87
  %v4171 = vpop.permute.xlu0 %4170
  %4172 = vrot.lane.b32.xlu0 %v3785, 87
  %v4173 = vpop.permute.xlu0 %4172
  %4174 = vrot.lane.b32.xlu0 %v3786, 87
  %v4175 = vpop.permute.xlu0 %4174
  %v4176 = vsel %vm4142, %v4153, %v4155
  %v4177 = vsel %vm4142, %v4155, %v4157
  %v4178 = vsel %vm4142, %v4157, %v4159
  %v4179 = vsel %vm4142, %v4161, %v4163
  %v4180 = vsel %vm4142, %v4163, %v4165
  %v4181 = vsel %vm4142, %v4165, %v4167
  %v4182 = vsel %vm4142, %v4169, %v4171
  %v4183 = vsel %vm4142, %v4171, %v4173
  %v4184 = vsel %vm4142, %v4173, %v4175
  %4185 = vrot.lane.b32.xlu0 %v3693, 86
  %v4186 = vpop.permute.xlu0 %4185
  %4187 = vrot.lane.b32.xlu0 %v3694, 86
  %v4188 = vpop.permute.xlu0 %4187
  %4189 = vrot.lane.b32.xlu0 %v3695, 86
  %v4190 = vpop.permute.xlu0 %4189
  %4191 = vrot.lane.b32.xlu0 %v3696, 86
  %v4192 = vpop.permute.xlu0 %4191
  %4193 = vrot.lane.b32.xlu0 %v3697, 86
  %v4194 = vpop.permute.xlu0 %4193
  %4195 = vrot.lane.b32.xlu0 %v3698, 86
  %v4196 = vpop.permute.xlu0 %4195
  %4197 = vrot.lane.b32.xlu0 %v3699, 86
  %v4198 = vpop.permute.xlu0 %4197
  %4199 = vrot.lane.b32.xlu0 %v3700, 86
  %v4200 = vpop.permute.xlu0 %4199
  %4201 = vrot.lane.b32.xlu0 %v3701, 86
  %v4202 = vpop.permute.xlu0 %4201
  %4203 = vrot.lane.b32.xlu0 %v3702, 86
  %v4204 = vpop.permute.xlu0 %4203
  %4205 = vrot.lane.b32.xlu0 %v3703, 86
  %v4206 = vpop.permute.xlu0 %4205
  %4207 = vrot.lane.b32.xlu0 %v3704, 86
  %v4208 = vpop.permute.xlu0 %4207
  %vm4209 = vcmask 703488
  %v4210 = vsel %vm4209, %v4186, %v4188
  %v4211 = vsel %vm4209, %v4188, %v4190
  %v4212 = vsel %vm4209, %v4190, %v4192
  %v4213 = vsel %vm4209, %v4194, %v4196
  %v4214 = vsel %vm4209, %v4196, %v4198
  %v4215 = vsel %vm4209, %v4198, %v4200
  %v4216 = vsel %vm4209, %v4202, %v4204
  %v4217 = vsel %vm4209, %v4204, %v4206
  %v4218 = vsel %vm4209, %v4206, %v4208
  %4225 = vrot.lane.b32.xlu0 %v3775, 86
  %v4226 = vpop.permute.xlu0 %4225
  %4227 = vrot.lane.b32.xlu0 %v3776, 86
  %v4228 = vpop.permute.xlu0 %4227
  %4229 = vrot.lane.b32.xlu0 %v3777, 86
  %v4230 = vpop.permute.xlu0 %4229
  %4231 = vrot.lane.b32.xlu0 %v3778, 86
  %v4232 = vpop.permute.xlu0 %4231
  %4233 = vrot.lane.b32.xlu0 %v3779, 86
  %v4234 = vpop.permute.xlu0 %4233
  %4235 = vrot.lane.b32.xlu0 %v3780, 86
  %v4236 = vpop.permute.xlu0 %4235
  %4237 = vrot.lane.b32.xlu0 %v3781, 86
  %v4238 = vpop.permute.xlu0 %4237
  %4239 = vrot.lane.b32.xlu0 %v3782, 86
  %v4240 = vpop.permute.xlu0 %4239
  %4241 = vrot.lane.b32.xlu0 %v3783, 86
  %v4242 = vpop.permute.xlu0 %4241
  %4243 = vrot.lane.b32.xlu0 %v3784, 86
  %v4244 = vpop.permute.xlu0 %4243
  %4245 = vrot.lane.b32.xlu0 %v3785, 86
  %v4246 = vpop.permute.xlu0 %4245
  %4247 = vrot.lane.b32.xlu0 %v3786, 86
  %v4248 = vpop.permute.xlu0 %4247
  %v4249 = vsel %vm4209, %v4226, %v4228
  %v4250 = vsel %vm4209, %v4228, %v4230
  %v4251 = vsel %vm4209, %v4230, %v4232
  %v4252 = vsel %vm4209, %v4234, %v4236
  %v4253 = vsel %vm4209, %v4236, %v4238
  %v4254 = vsel %vm4209, %v4238, %v4240
  %v4255 = vsel %vm4209, %v4242, %v4244
  %v4256 = vsel %vm4209, %v4244, %v4246
  %v4257 = vsel %vm4209, %v4246, %v4248
  %v4264 = vrot.slane %v3851, 4
  %v4265 = vrot.slane %v3852, 4
  %v4266 = vrot.slane %v3853, 4
  %v4267 = vrot.slane %v3884, 4
  %v4268 = vrot.slane %v3885, 4
  %v4269 = vrot.slane %v3886, 4
  %v4270 = vrot.slane %v3854, 4
  %v4271 = vsel %vm1374, %v4264, %v4270
  %v4272 = vrot.slane %v3855, 4
  %v4273 = vsel %vm1374, %v4265, %v4272
  %v4274 = vrot.slane %v3856, 4
  %v4275 = vsel %vm1374, %v4266, %v4274
  %v4276 = vrot.slane %v3887, 4
  %v4277 = vsel %vm1374, %v4267, %v4276
  %v4278 = vrot.slane %v3888, 4
  %v4279 = vsel %vm1374, %v4268, %v4278
  %v4280 = vrot.slane %v3889, 4
  %v4281 = vsel %vm1374, %v4269, %v4280
  %v4282 = vrot.slane %v3857, 4
  %v4283 = vsel %vm1374, %v4270, %v4282
  %v4284 = vrot.slane %v3858, 4
  %v4285 = vsel %vm1374, %v4272, %v4284
  %v4286 = vrot.slane %v3859, 4
  %v4287 = vsel %vm1374, %v4274, %v4286
  %v4288 = vrot.slane %v3890, 4
  %v4289 = vsel %vm1374, %v4276, %v4288
  %v4290 = vrot.slane %v3891, 4
  %v4291 = vsel %vm1374, %v4278, %v4290
  %v4292 = vrot.slane %v3892, 4
  %v4293 = vsel %vm1374, %v4280, %v4292
  %v4306 = vrot.slane %v3997, 4
  %v4307 = vrot.slane %v3998, 4
  %v4308 = vrot.slane %v3999, 4
  %v4309 = vrot.slane %v4030, 4
  %v4310 = vrot.slane %v4031, 4
  %v4311 = vrot.slane %v4032, 4
  %v4312 = vrot.slane %v4000, 4
  %v4313 = vsel %vm1374, %v4306, %v4312
  %v4314 = vrot.slane %v4001, 4
  %v4315 = vsel %vm1374, %v4307, %v4314
  %v4316 = vrot.slane %v4002, 4
  %v4317 = vsel %vm1374, %v4308, %v4316
  %v4318 = vrot.slane %v4033, 4
  %v4319 = vsel %vm1374, %v4309, %v4318
  %v4320 = vrot.slane %v4034, 4
  %v4321 = vsel %vm1374, %v4310, %v4320
  %v4322 = vrot.slane %v4035, 4
  %v4323 = vsel %vm1374, %v4311, %v4322
  %v4324 = vrot.slane %v4003, 4
  %v4325 = vsel %vm1374, %v4312, %v4324
  %v4326 = vrot.slane %v4004, 4
  %v4327 = vsel %vm1374, %v4314, %v4326
  %v4328 = vrot.slane %v4005, 4
  %v4329 = vsel %vm1374, %v4316, %v4328
  %v4330 = vrot.slane %v4036, 4
  %v4331 = vsel %vm1374, %v4318, %v4330
  %v4332 = vrot.slane %v4037, 4
  %v4333 = vsel %vm1374, %v4320, %v4332
  %v4334 = vrot.slane %v4038, 4
  %v4335 = vsel %vm1374, %v4322, %v4334
  %v4348 = vrot.slane %v4143, 4
  %v4349 = vrot.slane %v4144, 4
  %v4350 = vrot.slane %v4145, 4
  %v4351 = vrot.slane %v4176, 4
  %v4352 = vrot.slane %v4177, 4
  %v4353 = vrot.slane %v4178, 4
  %v4354 = vrot.slane %v4146, 4
  %v4355 = vsel %vm1374, %v4348, %v4354
  %v4356 = vrot.slane %v4147, 4
  %v4357 = vsel %vm1374, %v4349, %v4356
  %v4358 = vrot.slane %v4148, 4
  %v4359 = vsel %vm1374, %v4350, %v4358
  %v4360 = vrot.slane %v4179, 4
  %v4361 = vsel %vm1374, %v4351, %v4360
  %v4362 = vrot.slane %v4180, 4
  %v4363 = vsel %vm1374, %v4352, %v4362
  %v4364 = vrot.slane %v4181, 4
  %v4365 = vsel %vm1374, %v4353, %v4364
  %v4366 = vrot.slane %v4149, 4
  %v4367 = vsel %vm1374, %v4354, %v4366
  %v4368 = vrot.slane %v4150, 4
  %v4369 = vsel %vm1374, %v4356, %v4368
  %v4370 = vrot.slane %v4151, 4
  %v4371 = vsel %vm1374, %v4358, %v4370
  %v4372 = vrot.slane %v4182, 4
  %v4373 = vsel %vm1374, %v4360, %v4372
  %v4374 = vrot.slane %v4183, 4
  %v4375 = vsel %vm1374, %v4362, %v4374
  %v4376 = vrot.slane %v4184, 4
  %v4377 = vsel %vm1374, %v4364, %v4376
  %v4392 = vsel %vm301, %v3736, %v4264
  %v4396 = vsel %vm301, %v3737, %v4265
  %v4400 = vsel %vm301, %v3738, %v4266
  %v4404 = vsel %vm301, %v3817, %v4267
  %v4408 = vsel %vm301, %v3818, %v4268
  %v4412 = vsel %vm301, %v3819, %v4269
  %v4416 = vsel %vm301, %v3924, %v4306
  %v4420 = vsel %vm301, %v3925, %v4307
  %v4424 = vsel %vm301, %v3926, %v4308
  %v4428 = vsel %vm301, %v3963, %v4309
  %v4432 = vsel %vm301, %v3964, %v4310
  %v4436 = vsel %vm301, %v3965, %v4311
  %v4440 = vsel %vm301, %v4070, %v4348
  %v4444 = vsel %vm301, %v4071, %v4349
  %v4448 = vsel %vm301, %v4072, %v4350
  %v4452 = vsel %vm301, %v4109, %v4351
  %v4456 = vsel %vm301, %v4110, %v4352
  %v4460 = vsel %vm301, %v4111, %v4353
  %v4462 = vld [vmem:[%s3 + $0x10] sm:$0xff]
  %v4463 = vld [vmem:[%s3 + $0x18] sm:$0xf]
  %v4464 = vld [vmem:[%s3 + $0x50] sm:$0xff]
  %v4465 = vld [vmem:[%s3 + $0x58] sm:$0xf]
  %v4466 = vld [vmem:[%s3 + $0x90] sm:$0xff]
  %v4467 = vld [vmem:[%s3 + $0x98] sm:$0xf]
  %v4468 = vld [vmem:[%s3 + $0xd0] sm:$0xff]
  %v4469 = vld [vmem:[%s3 + $0xd8] sm:$0xf]
  %v4470 = vld [vmem:[%s3 + $0x110] sm:$0xff]
  %v4471 = vld [vmem:[%s3 + $0x118] sm:$0xf]
  %v4472 = vld [vmem:[%s3 + $0x150] sm:$0xff]
  %v4473 = vld [vmem:[%s3 + $0x158] sm:$0xf]
  %v4474 = vld [vmem:[%s3 + $0x190] sm:$0x11]
  %v4475 = vld [vmem:[%s3 + $0x198] sm:$0x1]
  %v4490 = vunpack.c.l.b16 %v4462
  %v4491 = vunpack.c.h.b16 %v4462
  %v4492 = vunpack.c.l.b16 %v4463
  %v4493 = vunpack.c.l.b16 %v4464
  %v4494 = vunpack.c.h.b16 %v4464
  %v4495 = vunpack.c.l.b16 %v4465
  %v4496 = vunpack.c.l.b16 %v4466
  %v4497 = vunpack.c.h.b16 %v4466
  %v4498 = vunpack.c.l.b16 %v4467
  %v4499 = vunpack.c.l.b16 %v4468
  %v4500 = vunpack.c.h.b16 %v4468
  %v4501 = vunpack.c.l.b16 %v4469
  %v4502 = vunpack.c.l.b16 %v4470
  %v4503 = vunpack.c.h.b16 %v4470
  %v4504 = vunpack.c.l.b16 %v4471
  %v4505 = vunpack.c.l.b16 %v4472
  %v4506 = vunpack.c.h.b16 %v4472
  %v4507 = vunpack.c.l.b16 %v4473
  %v4508 = vunpack.c.l.b16 %v4474
  %v4509 = vunpack.c.h.b16 %v4474
  %v4510 = vunpack.c.l.b16 %v4475
  %v4511 = vpack.c.b16 %v4493, %v4490
  %v4512 = vpack.c.b16 %v4494, %v4491
  %v4513 = vpack.c.b16 %v4495, %v4492
  %v4514 = vpack.c.b16 %v4499, %v4496
  %v4515 = vpack.c.b16 %v4500, %v4497
  %v4516 = vpack.c.b16 %v4501, %v4498
  %v4517 = vpack.c.b16 %v4505, %v4502
  %v4518 = vpack.c.b16 %v4506, %v4503
  %v4519 = vpack.c.b16 %v4507, %v4504
  %v4520 = vpack.c.b16 %v4508, %v4508
  %v4521 = vpack.c.b16 %v4509, %v4509
  %v4522 = vpack.c.b16 %v4510, %v4510
  %4523 = vrot.lane.b32.xlu0 %v4511, 80
  %v4524 = vpop.permute.xlu0 %4523
  %4525 = vrot.lane.b32.xlu0 %v4512, 80
  %v4526 = vpop.permute.xlu0 %4525
  %4527 = vrot.lane.b32.xlu0 %v4513, 80
  %v4528 = vpop.permute.xlu0 %4527
  %4529 = vrot.lane.b32.xlu0 %v4514, 80
  %v4530 = vpop.permute.xlu0 %4529
  %4531 = vrot.lane.b32.xlu0 %v4515, 80
  %v4532 = vpop.permute.xlu0 %4531
  %4533 = vrot.lane.b32.xlu0 %v4516, 80
  %v4534 = vpop.permute.xlu0 %4533
  %4535 = vrot.lane.b32.xlu0 %v4517, 80
  %v4536 = vpop.permute.xlu0 %4535
  %4537 = vrot.lane.b32.xlu0 %v4518, 80
  %v4538 = vpop.permute.xlu0 %4537
  %4539 = vrot.lane.b32.xlu0 %v4519, 80
  %v4540 = vpop.permute.xlu0 %4539
  %4541 = vrot.lane.b32.xlu0 %v4520, 80
  %v4542 = vpop.permute.xlu0 %4541
  %4543 = vrot.lane.b32.xlu0 %v4521, 80
  %v4544 = vpop.permute.xlu0 %4543
  %4545 = vrot.lane.b32.xlu0 %v4522, 80
  %v4546 = vpop.permute.xlu0 %4545
  %vm4547 = vcmask 654336
  %v4548 = vsel %vm4547, %v4524, %v4526
  %v4549 = vsel %vm4547, %v4526, %v4528
  %v4550 = vsel %vm4547, %v4530, %v4532
  %v4551 = vsel %vm4547, %v4532, %v4534
  %v4552 = vsel %vm4547, %v4536, %v4538
  %v4553 = vsel %vm4547, %v4538, %v4540
  %v4554 = vsel %vm4547, %v4542, %v4544
  %v4555 = vsel %vm4547, %v4544, %v4546
  %v4565 = vsel %vm1642, %v4528, 0
  %v4568 = vsel %vm1642, %v4534, 0
  %v4571 = vsel %vm1642, %v4540, 0
  %v4574 = vsel %vm1642, %v4546, 0
  %v4577 = vsel %vm301, %v4216, 0
  %v4580 = vsel %vm301, %v4217, 0
  %v4583 = vsel %vm301, %v4218, 0
  %v4586 = vsel %vm301, %v4255, 0
  %v4589 = vsel %vm301, %v4256, 0
  %v4592 = vsel %vm301, %v4257, 0
  %4594 = vmatprep.subr.bf16.mxu0 %v3731
  %4595 = vmatpush1.bf16.msra.mxu0 %v3730
  %4596 = vmatprep.subr.bf16.mxu0 %v3734
  %4597 = vmatpush1.bf16.msra.mxu0 %v3733
  %4598 = vmatprep.subr.bf16.mxu0 %v4396
  %4599 = vmatpush1.bf16.msra.mxu0 %v4392
  %4600 = vmatprep.subr.bf16.mxu0 %v4273
  %4601 = vmatpush1.bf16.msra.mxu0 %v4271
  %4602 = vmatprep.subr.bf16.mxu0 %v4285
  %4603 = vmatpush1.bf16.msra.mxu0 %v4283
  %4604 = vmatprep.subr.bf16.mxu0 %v3919
  %4605 = vmatpush1.bf16.msra.mxu0 %v3918
  %4606 = vmatprep.subr.bf16.mxu0 %v3922
  %4607 = vmatpush1.bf16.msra.mxu0 %v3921
  %4608 = vmatprep.subr.bf16.mxu0 %v4420
  %4609 = vmatpush1.bf16.msra.mxu0 %v4416
  %4610 = vmatprep.subr.bf16.mxu0 %v4315
  %4611 = vmatpush1.bf16.msra.mxu0 %v4313
  %4612 = vmatprep.subr.bf16.mxu0 %v4327
  %4613 = vmatpush1.bf16.msra.mxu0 %v4325
  %4614 = vmatprep.subr.bf16.mxu0 %v4065
  %4615 = vmatpush1.bf16.msra.mxu0 %v4064
  %4616 = vmatprep.subr.bf16.mxu0 %v4068
  %4617 = vmatpush1.bf16.msra.mxu0 %v4067
  %4618 = vmatprep.subr.bf16.mxu0 %v4444
  %4619 = vmatpush1.bf16.msra.mxu0 %v4440
  %4620 = vmatprep.subr.bf16.mxu0 %v4357
  %4621 = vmatpush1.bf16.msra.mxu0 %v4355
  %4622 = vmatprep.subr.bf16.mxu0 %v4369
  %4623 = vmatpush1.bf16.msra.mxu0 %v4367
  %4624 = vmatprep.subr.bf16.mxu0 %v4211
  %4625 = vmatpush1.bf16.msra.mxu0 %v4210
  %4626 = vmatprep.mubr.bf16.mxu0 %v4549
  %4627 = vmatmul.mubr.bf16.gmra.mrb[0].mxu0 %v4548
  %v4628 = vpop.f32.mrb[0].mxu0
  %v4629 = vadd.f32 0.0, %v4628
  %v4630 = vpop.f32.mrb[0].mxu0
  %v4631 = vadd.f32 0.0, %v4630
  %v4632 = vpop.f32.mrb[0].mxu0
  %v4633 = vadd.f32 0.0, %v4632
  %v4634 = vpop.f32.mrb[0].mxu0
  %v4635 = vadd.f32 0.0, %v4634
  %4636 = vmatprep.mubr.bf16.mxu0 %v4551
  %4637 = vmatmul.mubr.bf16.gmra.mrb[0].mxu0 %v4550
  %v4638 = vpop.f32.mrb[0].mxu0
  %v4639 = vadd.f32 0.0, %v4638
  %v4640 = vpop.f32.mrb[0].mxu0
  %v4641 = vadd.f32 0.0, %v4640
  %v4642 = vpop.f32.mrb[0].mxu0
  %v4643 = vadd.f32 0.0, %v4642
  %v4644 = vpop.f32.mrb[0].mxu0
  %v4645 = vadd.f32 0.0, %v4644
  %4646 = vmatprep.mubr.bf16.mxu0 %v4553
  %4647 = vmatmul.mubr.bf16.gmra.mrb[0].mxu0 %v4552
  %v4648 = vpop.f32.mrb[0].mxu0
  %v4649 = vadd.f32 0.0, %v4648
  %v4650 = vpop.f32.mrb[0].mxu0
  %v4651 = vadd.f32 0.0, %v4650
  %v4652 = vpop.f32.mrb[0].mxu0
  %v4653 = vadd.f32 0.0, %v4652
  %v4654 = vpop.f32.mrb[0].mxu0
  %v4655 = vadd.f32 0.0, %v4654
  %4656 = vmatprep.mubr.bf16.mxu0 %v4555
  %4657 = vmatmul.mubr.bf16.gmra.mrb[0].mxu0 %v4554
  %v4658 = vpop.f32.mrb[0].mxu0
  %v4659 = vadd.f32 0.0, %v4658
  %v4660 = vpop.f32.mrb[0].mxu0
  %v4661 = vadd.f32 0.0, %v4660
  %v4662 = vpop.f32.mrb[0].mxu0
  %v4663 = vpop.f32.mrb[0].mxu0
  %4664 = vdwg.mxu0
  %4665 = vmatprep.subr.bf16.mxu0 %v4214
  %4666 = vmatpush1.bf16.msra.mxu0 %v4213
  %4667 = vmatprep.subr.bf16.mxu0 %v4580
  %4668 = vmatpush1.bf16.msra.mxu0 %v4577
  %4669 = vmatprep.subr.bf16.mxu0 0
  %4670 = vmatpush1.bf16.msra.mxu0 0
  %4671 = vmatprep.subr.bf16.mxu0 0
  %4672 = vmatpush1.bf16.msra.mxu0 0
  %4673 = vmatprep.subr.bf16.mxu0 0
  %4674 = vmatpush1.bf16.msra.mxu0 0
  %4675 = vmatprep.subr.bf16.mxu0 0
  %4676 = vmatpush1.bf16.msra.mxu0 0
  %4677 = vmatprep.subr.bf16.mxu0 0
  %4678 = vmatpush1.bf16.msra.mxu0 0
  %4679 = vmatprep.subr.bf16.mxu0 0
  %4680 = vmatpush1.bf16.msra.mxu0 0
  %4681 = vmatprep.subr.bf16.mxu0 0
  %4682 = vmatpush1.bf16.msra.mxu0 0
  %4683 = vmatprep.subr.bf16.mxu0 0
  %4684 = vmatpush1.bf16.msra.mxu0 0
  %4685 = vmatprep.subr.bf16.mxu0 0
  %4686 = vmatpush1.bf16.msra.mxu0 0
  %4687 = vmatprep.subr.bf16.mxu0 0
  %4688 = vmatpush1.bf16.msra.mxu0 0
  %4689 = vmatprep.subr.bf16.mxu0 0
  %4690 = vmatpush1.bf16.msra.mxu0 0
  %4691 = vmatprep.subr.bf16.mxu0 0
  %4692 = vmatpush1.bf16.msra.mxu0 0
  %4693 = vmatprep.subr.bf16.mxu0 0
  %4694 = vmatpush1.bf16.msra.mxu0 0
  %4695 = vmatprep.subr.bf16.mxu0 0
  %4696 = vmatpush1.bf16.msra.mxu0 0
  %4697 = vmatprep.mubr.bf16.mxu0 0
  %4698 = vmatmul.mubr.bf16.gmra.mrb[0].mxu0 %v4565
  %v4699 = vpop.f32.mrb[0].mxu0
  %v4700 = vadd.f32 %v4629, %v4699
  %v4701 = vpop.f32.mrb[0].mxu0
  %v4702 = vadd.f32 %v4631, %v4701
  %v4703 = vpop.f32.mrb[0].mxu0
  %v4704 = vadd.f32 %v4633, %v4703
  %v4705 = vpop.f32.mrb[0].mxu0
  %v4706 = vadd.f32 %v4635, %v4705
  %4707 = vmatprep.mubr.bf16.mxu0 0
  %4708 = vmatmul.mubr.bf16.gmra.mrb[0].mxu0 %v4568
  %v4709 = vpop.f32.mrb[0].mxu0
  %v4710 = vadd.f32 %v4639, %v4709
  %v4711 = vpop.f32.mrb[0].mxu0
  %v4712 = vadd.f32 %v4641, %v4711
  %v4713 = vpop.f32.mrb[0].mxu0
  %v4714 = vadd.f32 %v4643, %v4713
  %v4715 = vpop.f32.mrb[0].mxu0
  %v4716 = vadd.f32 %v4645, %v4715
  %4717 = vmatprep.mubr.bf16.mxu0 0
  %4718 = vmatmul.mubr.bf16.gmra.mrb[0].mxu0 %v4571
  %v4719 = vpop.f32.mrb[0].mxu0
  %v4720 = vadd.f32 %v4649, %v4719
  %v4721 = vpop.f32.mrb[0].mxu0
  %v4722 = vadd.f32 %v4651, %v4721
  %v4723 = vpop.f32.mrb[0].mxu0
  %v4724 = vadd.f32 %v4653, %v4723
  %v4725 = vpop.f32.mrb[0].mxu0
  %v4726 = vadd.f32 %v4655, %v4725
  %4727 = vmatprep.mubr.bf16.mxu0 0
  %4728 = vmatmul.mubr.bf16.gmra.mrb[0].mxu0 %v4574
  %v4729 = vpop.f32.mrb[0].mxu0
  %v4730 = vadd.f32 %v4659, %v4729
  %v4731 = vpop.f32.mrb[0].mxu0
  %v4732 = vadd.f32 %v4661, %v4731
  %v4733 = vpop.f32.mrb[0].mxu0
  %v4734 = vpop.f32.mrb[0].mxu0
  %4735 = vdwg.mxu0
  %4736 = vmatprep.subr.bf16.mxu0 %v3811
  %4737 = vmatpush1.bf16.msra.mxu0 %v3732
  %4738 = vmatprep.subr.bf16.mxu0 %v3814
  %4739 = vmatpush1.bf16.msra.mxu0 %v3735
  %4740 = vmatprep.subr.bf16.mxu0 %v4404
  %4741 = vmatpush1.bf16.msra.mxu0 %v4400
  %4742 = vmatprep.subr.bf16.mxu0 %v4277
  %4743 = vmatpush1.bf16.msra.mxu0 %v4275
  %4744 = vmatprep.subr.bf16.mxu0 %v4289
  %4745 = vmatpush1.bf16.msra.mxu0 %v4287
  %4746 = vmatprep.subr.bf16.mxu0 %v3957
  %4747 = vmatpush1.bf16.msra.mxu0 %v3920
  %4748 = vmatprep.subr.bf16.mxu0 %v3960
  %4749 = vmatpush1.bf16.msra.mxu0 %v3923
  %4750 = vmatprep.subr.bf16.mxu0 %v4428
  %4751 = vmatpush1.bf16.msra.mxu0 %v4424
  %4752 = vmatprep.subr.bf16.mxu0 %v4319
  %4753 = vmatpush1.bf16.msra.mxu0 %v4317
  %4754 = vmatprep.subr.bf16.mxu0 %v4331
  %4755 = vmatpush1.bf16.msra.mxu0 %v4329
  %4756 = vmatprep.subr.bf16.mxu0 %v4103
  %4757 = vmatpush1.bf16.msra.mxu0 %v4066
  %4758 = vmatprep.subr.bf16.mxu0 %v4106
  %4759 = vmatpush1.bf16.msra.mxu0 %v4069
  %4760 = vmatprep.subr.bf16.mxu0 %v4452
  %4761 = vmatpush1.bf16.msra.mxu0 %v4448
  %4762 = vmatprep.subr.bf16.mxu0 %v4361
  %4763 = vmatpush1.bf16.msra.mxu0 %v4359
  %4764 = vmatprep.subr.bf16.mxu0 %v4373
  %4765 = vmatpush1.bf16.msra.mxu0 %v4371
  %4766 = vmatprep.subr.bf16.mxu0 %v4249
  %4767 = vmatpush1.bf16.msra.mxu0 %v4212
  %4768 = vmatprep.mubr.bf16.mxu0 %v4549
  %4769 = vmatmul.mubr.bf16.gmra.mrb[0].mxu0 %v4548
  %v4770 = vpop.f32.mrb[0].mxu0
  %v4771 = vadd.f32 0.0, %v4770
  %v4772 = vpop.f32.mrb[0].mxu0
  %v4773 = vadd.f32 0.0, %v4772
  %v4774 = vpop.f32.mrb[0].mxu0
  %v4775 = vadd.f32 0.0, %v4774
  %v4776 = vpop.f32.mrb[0].mxu0
  %v4777 = vadd.f32 0.0, %v4776
  %4778 = vmatprep.mubr.bf16.mxu0 %v4551
  %4779 = vmatmul.mubr.bf16.gmra.mrb[0].mxu0 %v4550
  %v4780 = vpop.f32.mrb[0].mxu0
  %v4781 = vadd.f32 0.0, %v4780
  %v4782 = vpop.f32.mrb[0].mxu0
  %v4783 = vadd.f32 0.0, %v4782
  %v4784 = vpop.f32.mrb[0].mxu0
  %v4785 = vadd.f32 0.0, %v4784
  %v4786 = vpop.f32.mrb[0].mxu0
  %v4787 = vadd.f32 0.0, %v4786
  %4788 = vmatprep.mubr.bf16.mxu0 %v4553
  %4789 = vmatmul.mubr.bf16.gmra.mrb[0].mxu0 %v4552
  %v4790 = vpop.f32.mrb[0].mxu0
  %v4791 = vadd.f32 0.0, %v4790
  %v4792 = vpop.f32.mrb[0].mxu0
  %v4793 = vadd.f32 0.0, %v4792
  %v4794 = vpop.f32.mrb[0].mxu0
  %v4795 = vadd.f32 0.0, %v4794
  %v4796 = vpop.f32.mrb[0].mxu0
  %v4797 = vadd.f32 0.0, %v4796
  %4798 = vmatprep.mubr.bf16.mxu0 %v4555
  %4799 = vmatmul.mubr.bf16.gmra.mrb[0].mxu0 %v4554
  %v4800 = vpop.f32.mrb[0].mxu0
  %v4801 = vadd.f32 0.0, %v4800
  %v4802 = vpop.f32.mrb[0].mxu0
  %v4803 = vadd.f32 0.0, %v4802
  %v4804 = vpop.f32.mrb[0].mxu0
  %v4805 = vpop.f32.mrb[0].mxu0
  %4806 = vdwg.mxu0
  %4807 = vmatprep.subr.bf16.mxu0 %v4252
  %4808 = vmatpush1.bf16.msra.mxu0 %v4215
  %4809 = vmatprep.subr.bf16.mxu0 %v4586
  %4810 = vmatpush1.bf16.msra.mxu0 %v4583
  %4811 = vmatprep.subr.bf16.mxu0 0
  %4812 = vmatpush1.bf16.msra.mxu0 0
  %4813 = vmatprep.subr.bf16.mxu0 0
  %4814 = vmatpush1.bf16.msra.mxu0 0
  %4815 = vmatprep.subr.bf16.mxu0 0
  %4816 = vmatpush1.bf16.msra.mxu0 0
  %4817 = vmatprep.subr.bf16.mxu0 0
  %4818 = vmatpush1.bf16.msra.mxu0 0
  %4819 = vmatprep.subr.bf16.mxu0 0
  %4820 = vmatpush1.bf16.msra.mxu0 0
  %4821 = vmatprep.subr.bf16.mxu0 0
  %4822 = vmatpush1.bf16.msra.mxu0 0
  %4823 = vmatprep.subr.bf16.mxu0 0
  %4824 = vmatpush1.bf16.msra.mxu0 0
  %4825 = vmatprep.subr.bf16.mxu0 0
  %4826 = vmatpush1.bf16.msra.mxu0 0
  %4827 = vmatprep.subr.bf16.mxu0 0
  %4828 = vmatpush1.bf16.msra.mxu0 0
  %4829 = vmatprep.subr.bf16.mxu0 0
  %4830 = vmatpush1.bf16.msra.mxu0 0
  %4831 = vmatprep.subr.bf16.mxu0 0
  %4832 = vmatpush1.bf16.msra.mxu0 0
  %4833 = vmatprep.subr.bf16.mxu0 0
  %4834 = vmatpush1.bf16.msra.mxu0 0
  %4835 = vmatprep.subr.bf16.mxu0 0
  %4836 = vmatpush1.bf16.msra.mxu0 0
  %4837 = vmatprep.subr.bf16.mxu0 0
  %4838 = vmatpush1.bf16.msra.mxu0 0
  %4839 = vmatprep.mubr.bf16.mxu0 0
  %4840 = vmatmul.mubr.bf16.gmra.mrb[0].mxu0 %v4565
  %v4841 = vpop.f32.mrb[0].mxu0
  %v4842 = vadd.f32 %v4771, %v4841
  %v4843 = vpop.f32.mrb[0].mxu0
  %v4844 = vadd.f32 %v4773, %v4843
  %v4845 = vpop.f32.mrb[0].mxu0
  %v4846 = vadd.f32 %v4775, %v4845
  %v4847 = vpop.f32.mrb[0].mxu0
  %v4848 = vadd.f32 %v4777, %v4847
  %4849 = vmatprep.mubr.bf16.mxu0 0
  %4850 = vmatmul.mubr.bf16.gmra.mrb[0].mxu0 %v4568
  %v4851 = vpop.f32.mrb[0].mxu0
  %v4852 = vadd.f32 %v4781, %v4851
  %v4853 = vpop.f32.mrb[0].mxu0
  %v4854 = vadd.f32 %v4783, %v4853
  %v4855 = vpop.f32.mrb[0].mxu0
  %v4856 = vadd.f32 %v4785, %v4855
  %v4857 = vpop.f32.mrb[0].mxu0
  %v4858 = vadd.f32 %v4787, %v4857
  %4859 = vmatprep.mubr.bf16.mxu0 0
  %4860 = vmatmul.mubr.bf16.gmra.mrb[0].mxu0 %v4571
  %v4861 = vpop.f32.mrb[0].mxu0
  %v4862 = vadd.f32 %v4791, %v4861
  %v4863 = vpop.f32.mrb[0].mxu0
  %v4864 = vadd.f32 %v4793, %v4863
  %v4865 = vpop.f32.mrb[0].mxu0
  %v4866 = vadd.f32 %v4795, %v4865
  %v4867 = vpop.f32.mrb[0].mxu0
  %v4868 = vadd.f32 %v4797, %v4867
  %4869 = vmatprep.mubr.bf16.mxu0 0
  %4870 = vmatmul.mubr.bf16.gmra.mrb[0].mxu0 %v4574
  %v4871 = vpop.f32.mrb[0].mxu0
  %v4872 = vadd.f32 %v4801, %v4871
  %v4873 = vpop.f32.mrb[0].mxu0
  %v4874 = vadd.f32 %v4803, %v4873
  %v4875 = vpop.f32.mrb[0].mxu0
  %v4876 = vpop.f32.mrb[0].mxu0
  %4877 = vdwg.mxu0
  %4878 = vmatprep.subr.bf16.mxu0 %v3813
  %4879 = vmatpush1.bf16.msra.mxu0 %v3812
  %4880 = vmatprep.subr.bf16.mxu0 %v3816
  %4881 = vmatpush1.bf16.msra.mxu0 %v3815
  %4882 = vmatprep.subr.bf16.mxu0 %v4412
  %4883 = vmatpush1.bf16.msra.mxu0 %v4408
  %4884 = vmatprep.subr.bf16.mxu0 %v4281
  %4885 = vmatpush1.bf16.msra.mxu0 %v4279
  %4886 = vmatprep.subr.bf16.mxu0 %v4293
  %4887 = vmatpush1.bf16.msra.mxu0 %v4291
  %4888 = vmatprep.subr.bf16.mxu0 %v3959
  %4889 = vmatpush1.bf16.msra.mxu0 %v3958
  %4890 = vmatprep.subr.bf16.mxu0 %v3962
  %4891 = vmatpush1.bf16.msra.mxu0 %v3961
  %4892 = vmatprep.subr.bf16.mxu0 %v4436
  %4893 = vmatpush1.bf16.msra.mxu0 %v4432
  %4894 = vmatprep.subr.bf16.mxu0 %v4323
  %4895 = vmatpush1.bf16.msra.mxu0 %v4321
  %4896 = vmatprep.subr.bf16.mxu0 %v4335
  %4897 = vmatpush1.bf16.msra.mxu0 %v4333
  %4898 = vmatprep.subr.bf16.mxu0 %v4105
  %4899 = vmatpush1.bf16.msra.mxu0 %v4104
  %4900 = vmatprep.subr.bf16.mxu0 %v4108
  %4901 = vmatpush1.bf16.msra.mxu0 %v4107
  %4902 = vmatprep.subr.bf16.mxu0 %v4460
  %4903 = vmatpush1.bf16.msra.mxu0 %v4456
  %4904 = vmatprep.subr.bf16.mxu0 %v4365
  %4905 = vmatpush1.bf16.msra.mxu0 %v4363
  %4906 = vmatprep.subr.bf16.mxu0 %v4377
  %4907 = vmatpush1.bf16.msra.mxu0 %v4375
  %4908 = vmatprep.subr.bf16.mxu0 %v4251
  %4909 = vmatpush1.bf16.msra.mxu0 %v4250
  %4910 = vmatprep.mubr.bf16.mxu0 %v4549
  %4911 = vmatmul.mubr.bf16.gmra.mrb[0].mxu0 %v4548
  %v4912 = vpop.f32.mrb[0].mxu0
  %v4913 = vadd.f32 0.0, %v4912
  %v4914 = vpop.f32.mrb[0].mxu0
  %v4915 = vadd.f32 0.0, %v4914
  %v4916 = vpop.f32.mrb[0].mxu0
  %v4917 = vadd.f32 0.0, %v4916
  %v4918 = vpop.f32.mrb[0].mxu0
  %v4919 = vadd.f32 0.0, %v4918
  %4920 = vmatprep.mubr.bf16.mxu0 %v4551
  %4921 = vmatmul.mubr.bf16.gmra.mrb[0].mxu0 %v4550
  %v4922 = vpop.f32.mrb[0].mxu0
  %v4923 = vadd.f32 0.0, %v4922
  %v4924 = vpop.f32.mrb[0].mxu0
  %v4925 = vadd.f32 0.0, %v4924
  %v4926 = vpop.f32.mrb[0].mxu0
  %v4927 = vadd.f32 0.0, %v4926
  %v4928 = vpop.f32.mrb[0].mxu0
  %v4929 = vadd.f32 0.0, %v4928
  %4930 = vmatprep.mubr.bf16.mxu0 %v4553
  %4931 = vmatmul.mubr.bf16.gmra.mrb[0].mxu0 %v4552
  %v4932 = vpop.f32.mrb[0].mxu0
  %v4933 = vadd.f32 0.0, %v4932
  %v4934 = vpop.f32.mrb[0].mxu0
  %v4935 = vadd.f32 0.0, %v4934
  %v4936 = vpop.f32.mrb[0].mxu0
  %v4937 = vadd.f32 0.0, %v4936
  %v4938 = vpop.f32.mrb[0].mxu0
  %v4939 = vadd.f32 0.0, %v4938
  %4940 = vmatprep.mubr.bf16.mxu0 %v4555
  %4941 = vmatmul.mubr.bf16.gmra.mrb[0].mxu0 %v4554
  %v4942 = vpop.f32.mrb[0].mxu0
  %v4943 = vadd.f32 0.0, %v4942
  %v4944 = vpop.f32.mrb[0].mxu0
  %v4945 = vadd.f32 0.0, %v4944
  %v4946 = vpop.f32.mrb[0].mxu0
  %v4947 = vpop.f32.mrb[0].mxu0
  %4948 = vdwg.mxu0
  %4949 = vmatprep.subr.bf16.mxu0 %v4254
  %4950 = vmatpush1.bf16.msra.mxu0 %v4253
  %4951 = vmatprep.subr.bf16.mxu0 %v4592
  %4952 = vmatpush1.bf16.msra.mxu0 %v4589
  %4953 = vmatprep.subr.bf16.mxu0 0
  %4954 = vmatpush1.bf16.msra.mxu0 0
  %4955 = vmatprep.subr.bf16.mxu0 0
  %4956 = vmatpush1.bf16.msra.mxu0 0
  %4957 = vmatprep.subr.bf16.mxu0 0
  %4958 = vmatpush1.bf16.msra.mxu0 0
  %4959 = vmatprep.subr.bf16.mxu0 0
  %4960 = vmatpush1.bf16.msra.mxu0 0
  %4961 = vmatprep.subr.bf16.mxu0 0
  %4962 = vmatpush1.bf16.msra.mxu0 0
  %4963 = vmatprep.subr.bf16.mxu0 0
  %4964 = vmatpush1.bf16.msra.mxu0 0
  %4965 = vmatprep.subr.bf16.mxu0 0
  %4966 = vmatpush1.bf16.msra.mxu0 0
  %4967 = vmatprep.subr.bf16.mxu0 0
  %4968 = vmatpush1.bf16.msra.mxu0 0
  %4969 = vmatprep.subr.bf16.mxu0 0
  %4970 = vmatpush1.bf16.msra.mxu0 0
  %4971 = vmatprep.subr.bf16.mxu0 0
  %4972 = vmatpush1.bf16.msra.mxu0 0
  %4973 = vmatprep.subr.bf16.mxu0 0
  %4974 = vmatpush1.bf16.msra.mxu0 0
  %4975 = vmatprep.subr.bf16.mxu0 0
  %4976 = vmatpush1.bf16.msra.mxu0 0
  %4977 = vmatprep.subr.bf16.mxu0 0
  %4978 = vmatpush1.bf16.msra.mxu0 0
  %4979 = vmatprep.subr.bf16.mxu0 0
  %4980 = vmatpush1.bf16.msra.mxu0 0
  %4981 = vmatprep.mubr.bf16.mxu0 0
  %4982 = vmatmul.mubr.bf16.gmra.mrb[0].mxu0 %v4565
  %v4983 = vpop.f32.mrb[0].mxu0
  %v4984 = vadd.f32 %v4913, %v4983
  %v4985 = vpop.f32.mrb[0].mxu0
  %v4986 = vadd.f32 %v4915, %v4985
  %v4987 = vpop.f32.mrb[0].mxu0
  %v4988 = vadd.f32 %v4917, %v4987
  %v4989 = vpop.f32.mrb[0].mxu0
  %v4990 = vadd.f32 %v4919, %v4989
  %4991 = vmatprep.mubr.bf16.mxu0 0
  %4992 = vmatmul.mubr.bf16.gmra.mrb[0].mxu0 %v4568
  %v4993 = vpop.f32.mrb[0].mxu0
  %v4994 = vadd.f32 %v4923, %v4993
  %v4995 = vpop.f32.mrb[0].mxu0
  %v4996 = vadd.f32 %v4925, %v4995
  %v4997 = vpop.f32.mrb[0].mxu0
  %v4998 = vadd.f32 %v4927, %v4997
  %v4999 = vpop.f32.mrb[0].mxu0
  %v5000 = vadd.f32 %v4929, %v4999
  %5001 = vmatprep.mubr.bf16.mxu0 0
  %5002 = vmatmul.mubr.bf16.gmra.mrb[0].mxu0 %v4571
  %v5003 = vpop.f32.mrb[0].mxu0
  %v5004 = vadd.f32 %v4933, %v5003
  %v5005 = vpop.f32.mrb[0].mxu0
  %v5006 = vadd.f32 %v4935, %v5005
  %v5007 = vpop.f32.mrb[0].mxu0
  %v5008 = vadd.f32 %v4937, %v5007
  %v5009 = vpop.f32.mrb[0].mxu0
  %v5010 = vadd.f32 %v4939, %v5009
  %5011 = vmatprep.mubr.bf16.mxu0 0
  %5012 = vmatmul.mubr.bf16.gmra.mrb[0].mxu0 %v4574
  %v5013 = vpop.f32.mrb[0].mxu0
  %v5014 = vadd.f32 %v4943, %v5013
  %v5015 = vpop.f32.mrb[0].mxu0
  %v5016 = vadd.f32 %v4945, %v5015
  %v5017 = vpop.f32.mrb[0].mxu0
  %v5018 = vpop.f32.mrb[0].mxu0
  %5019 = vdwg.mxu0
  %v5020 = vld [vmem:[#allocation3] sm:$0xff]
  %v5021 = vld [vmem:[#allocation3 + $0x8] sm:$0xff]
  %v5022 = vld [vmem:[#allocation3 + $0x10] sm:$0xff]
  %v5023 = vld [vmem:[#allocation3 + $0x18] sm:$0xff]
  %v5024 = vld [vmem:[#allocation3 + $0x20] sm:$0xff]
  %v5025 = vld [vmem:[#allocation3 + $0x28] sm:$0xff]
  %v5026 = vld [vmem:[#allocation3 + $0x30] sm:$0xff]
  %v5027 = vld [vmem:[#allocation3 + $0x38] sm:$0xff]
  %v5028 = vld [vmem:[#allocation3 + $0x40] sm:$0xff]
  %v5029 = vld [vmem:[#allocation3 + $0x48] sm:$0xff]
  %v5030 = vld [vmem:[#allocation3 + $0x50] sm:$0xff]
  %v5031 = vld [vmem:[#allocation3 + $0x58] sm:$0xff]
  %v5032 = vld [vmem:[#allocation3 + $0x60] sm:$0xff]
  %v5033 = vld [vmem:[#allocation3 + $0x68] sm:$0xff]
  %v5034 = vld [vmem:[#allocation3 + $0x70] sm:$0xff]
  %v5035 = vld [vmem:[#allocation3 + $0x78] sm:$0xff]
  %v5036 = vld [vmem:[#allocation3 + $0x80] sm:$0xff]
  %v5037 = vld [vmem:[#allocation3 + $0x88] sm:$0xff]
  %v5038 = vld [vmem:[#allocation3 + $0x90] sm:$0xff]
  %v5039 = vld [vmem:[#allocation3 + $0x98] sm:$0xff]
  %v5040 = vld [vmem:[#allocation3 + $0xa0] sm:$0xff]
  %v5041 = vld [vmem:[#allocation3 + $0xa8] sm:$0xff]
  %v5042 = vld [vmem:[#allocation3 + $0xb0] sm:$0xff]
  %v5043 = vld [vmem:[#allocation3 + $0xb8] sm:$0xff]
  %v5044 = vld [vmem:[#allocation3 + $0xc0] sm:$0xff]
  %v5045 = vld [vmem:[#allocation3 + $0xc8] sm:$0xff]
  %v5046 = vld [vmem:[#allocation3 + $0xd0] sm:$0xff]
  %v5047 = vld [vmem:[#allocation3 + $0xd8] sm:$0xff]
  %v5048 = vld [vmem:[#allocation3 + $0xe0] sm:$0xff]
  %v5049 = vld [vmem:[#allocation3 + $0xe8] sm:$0xff]
  %v5050 = vld [vmem:[#allocation3 + $0xf0] sm:$0xff]
  %v5051 = vld [vmem:[#allocation3 + $0xf8] sm:$0xff]
  %v5052 = vld [vmem:[#allocation3 + $0x100] sm:$0xff]
  %v5053 = vld [vmem:[#allocation3 + $0x108] sm:$0xff]
  %v5054 = vld [vmem:[#allocation3 + $0x110] sm:$0xff]
  %v5055 = vld [vmem:[#allocation3 + $0x118] sm:$0xff]
  %v5056 = vld [vmem:[#allocation3 + $0x120] sm:$0x3]
  %v5057 = vld [vmem:[#allocation3 + $0x128] sm:$0x3]
  %v5058 = vld [vmem:[#allocation3 + $0x130] sm:$0x3]
  %v5059 = vld [vmem:[#allocation3 + $0x138] sm:$0x3]
  %v5060 = vld [vmem:[#allocation3 + $0x140] sm:$0x3]
  %v5061 = vld [vmem:[#allocation3 + $0x148] sm:$0x3]
  %v5062 = vadd.f32 %v5020, %v4700
  %v5063 = vadd.f32 %v5021, %v4702
  %v5064 = vadd.f32 %v5022, %v4842
  %v5065 = vadd.f32 %v5023, %v4844
  %v5066 = vadd.f32 %v5024, %v4984
  %v5067 = vadd.f32 %v5025, %v4986
  %v5068 = vadd.f32 %v5026, %v4704
  %v5069 = vadd.f32 %v5027, %v4706
  %v5070 = vadd.f32 %v5028, %v4846
  %v5071 = vadd.f32 %v5029, %v4848
  %v5072 = vadd.f32 %v5030, %v4988
  %v5073 = vadd.f32 %v5031, %v4990
  %v5074 = vadd.f32 %v5032, %v4710
  %v5075 = vadd.f32 %v5033, %v4712
  %v5076 = vadd.f32 %v5034, %v4852
  %v5077 = vadd.f32 %v5035, %v4854
  %v5078 = vadd.f32 %v5036, %v4994
  %v5079 = vadd.f32 %v5037, %v4996
  %v5080 = vadd.f32 %v5038, %v4714
  %v5081 = vadd.f32 %v5039, %v4716
  %v5082 = vadd.f32 %v5040, %v4856
  %v5083 = vadd.f32 %v5041, %v4858
  %v5084 = vadd.f32 %v5042, %v4998
  %v5085 = vadd.f32 %v5043, %v5000
  %v5086 = vadd.f32 %v5044, %v4720
  %v5087 = vadd.f32 %v5045, %v4722
  %v5088 = vadd.f32 %v5046, %v4862
  %v5089 = vadd.f32 %v5047, %v4864
  %v5090 = vadd.f32 %v5048, %v5004
  %v5091 = vadd.f32 %v5049, %v5006
  %v5092 = vadd.f32 %v5050, %v4724
  %v5093 = vadd.f32 %v5051, %v4726
  %v5094 = vadd.f32 %v5052, %v4866
  %v5095 = vadd.f32 %v5053, %v4868
  %v5096 = vadd.f32 %v5054, %v5008
  %v5097 = vadd.f32 %v5055, %v5010
  %v5098 = vadd.f32 %v5056, %v4730
  %v5099 = vadd.f32 %v5057, %v4732
  %v5100 = vadd.f32 %v5058, %v4872
  %v5101 = vadd.f32 %v5059, %v4874
  %v5102 = vadd.f32 %v5060, %v5014
  %v5103 = vadd.f32 %v5061, %v5016
  %5104 = vst [vmem:[#allocation3] sm:$0xff] %v5062
  %5105 = vst [vmem:[#allocation3 + $0x8] sm:$0xff] %v5063
  %5106 = vst [vmem:[#allocation3 + $0x10] sm:$0xff] %v5064
  %5107 = vst [vmem:[#allocation3 + $0x18] sm:$0xff] %v5065
  %5108 = vst [vmem:[#allocation3 + $0x20] sm:$0xff] %v5066
  %5109 = vst [vmem:[#allocation3 + $0x28] sm:$0xff] %v5067
  %5110 = vst [vmem:[#allocation3 + $0x30] sm:$0xff] %v5068
  %5111 = vst [vmem:[#allocation3 + $0x38] sm:$0xff] %v5069
  %5112 = vst [vmem:[#allocation3 + $0x40] sm:$0xff] %v5070
  %5113 = vst [vmem:[#allocation3 + $0x48] sm:$0xff] %v5071
  %5114 = vst [vmem:[#allocation3 + $0x50] sm:$0xff] %v5072
  %5115 = vst [vmem:[#allocation3 + $0x58] sm:$0xff] %v5073
  %5116 = vst [vmem:[#allocation3 + $0x60] sm:$0xff] %v5074
  %5117 = vst [vmem:[#allocation3 + $0x68] sm:$0xff] %v5075
  %5118 = vst [vmem:[#allocation3 + $0x70] sm:$0xff] %v5076
  %5119 = vst [vmem:[#allocation3 + $0x78] sm:$0xff] %v5077
  %5120 = vst [vmem:[#allocation3 + $0x80] sm:$0xff] %v5078
  %5121 = vst [vmem:[#allocation3 + $0x88] sm:$0xff] %v5079
  %5122 = vst [vmem:[#allocation3 + $0x90] sm:$0xff] %v5080
  %5123 = vst [vmem:[#allocation3 + $0x98] sm:$0xff] %v5081
  %5124 = vst [vmem:[#allocation3 + $0xa0] sm:$0xff] %v5082
  %5125 = vst [vmem:[#allocation3 + $0xa8] sm:$0xff] %v5083
  %5126 = vst [vmem:[#allocation3 + $0xb0] sm:$0xff] %v5084
  %5127 = vst [vmem:[#allocation3 + $0xb8] sm:$0xff] %v5085
  %5128 = vst [vmem:[#allocation3 + $0xc0] sm:$0xff] %v5086
  %5129 = vst [vmem:[#allocation3 + $0xc8] sm:$0xff] %v5087
  %5130 = vst [vmem:[#allocation3 + $0xd0] sm:$0xff] %v5088
  %5131 = vst [vmem:[#allocation3 + $0xd8] sm:$0xff] %v5089
  %5132 = vst [vmem:[#allocation3 + $0xe0] sm:$0xff] %v5090
  %5133 = vst [vmem:[#allocation3 + $0xe8] sm:$0xff] %v5091
  %5134 = vst [vmem:[#allocation3 + $0xf0] sm:$0xff] %v5092
  %5135 = vst [vmem:[#allocation3 + $0xf8] sm:$0xff] %v5093
  %5136 = vst [vmem:[#allocation3 + $0x100] sm:$0xff] %v5094
  %5137 = vst [vmem:[#allocation3 + $0x108] sm:$0xff] %v5095
  %5138 = vst [vmem:[#allocation3 + $0x110] sm:$0xff] %v5096
  %5139 = vst [vmem:[#allocation3 + $0x118] sm:$0xff] %v5097
  %5140 = vst [vmem:[#allocation3 + $0x120] sm:$0x3] %v5098
  %5141 = vst [vmem:[#allocation3 + $0x128] sm:$0x3] %v5099
  %5142 = vst [vmem:[#allocation3 + $0x130] sm:$0x3] %v5100
  %5143 = vst [vmem:[#allocation3 + $0x138] sm:$0x3] %v5101
  %5144 = vst [vmem:[#allocation3 + $0x140] sm:$0x3] %v5102
  %5145 = vst [vmem:[#allocation3 + $0x148] sm:$0x3] %v5103
  %v5146 = vld [vmem:[#allocation2] sm:$0xff]
  %v5147 = vld [vmem:[#allocation2 + $0x8] sm:$0xff]
  %v5148 = vld [vmem:[#allocation2 + $0x20] sm:$0xff]
  %v5149 = vld [vmem:[#allocation2 + $0x28] sm:$0xff]
  %v5150 = vld [vmem:[#allocation2 + $0x40] sm:$0xff]
  %v5151 = vld [vmem:[#allocation2 + $0x48] sm:$0xff]
  %v5152 = vld [vmem:[#allocation2 + $0x60] sm:$0xff]
  %v5153 = vld [vmem:[#allocation2 + $0x68] sm:$0xff]
  %v5154 = vld [vmem:[#allocation2 + $0x80] sm:$0xff]
  %v5155 = vld [vmem:[#allocation2 + $0x88] sm:$0xff]
  %v5156 = vld [vmem:[#allocation2 + $0x10] sm:$0xff]
  %v5157 = vld [vmem:[#allocation2 + $0x18] sm:$0xff]
  %v5158 = vld [vmem:[#allocation2 + $0x30] sm:$0xff]
  %v5159 = vld [vmem:[#allocation2 + $0x38] sm:$0xff]
  %v5160 = vld [vmem:[#allocation2 + $0x50] sm:$0xff]
  %v5161 = vld [vmem:[#allocation2 + $0x58] sm:$0xff]
  %v5162 = vld [vmem:[#allocation2 + $0x70] sm:$0xff]
  %v5163 = vld [vmem:[#allocation2 + $0x78] sm:$0xff]
  %v5164 = vld [vmem:[#allocation2 + $0x90] sm:$0xff]
  %v5165 = vld [vmem:[#allocation2 + $0x98] sm:$0xff]
  %v5176 = vunpack.c.l.b16 %v5146
  %v5177 = vunpack.c.h.b16 %v5146
  %v5178 = vunpack.c.l.b16 %v5147
  %v5179 = vunpack.c.h.b16 %v5147
  %v5180 = vunpack.c.l.b16 %v5148
  %v5181 = vunpack.c.h.b16 %v5148
  %v5182 = vunpack.c.l.b16 %v5149
  %v5183 = vunpack.c.h.b16 %v5149
  %v5184 = vunpack.c.l.b16 %v5150
  %v5185 = vunpack.c.h.b16 %v5150
  %v5186 = vunpack.c.l.b16 %v5151
  %v5187 = vunpack.c.h.b16 %v5151
  %v5188 = vunpack.c.l.b16 %v5152
  %v5189 = vunpack.c.h.b16 %v5152
  %v5190 = vunpack.c.l.b16 %v5153
  %v5191 = vunpack.c.h.b16 %v5153
  %v5192 = vunpack.c.l.b16 %v5154
  %v5193 = vunpack.c.h.b16 %v5154
  %v5194 = vunpack.c.l.b16 %v5155
  %v5195 = vunpack.c.h.b16 %v5155
  %v5196 = vpack.c.b16 %v5180, %v5176
  %v5197 = vpack.c.b16 %v5181, %v5177
  %v5198 = vpack.c.b16 %v5182, %v5178
  %v5199 = vpack.c.b16 %v5183, %v5179
  %v5200 = vpack.c.b16 %v5188, %v5184
  %v5201 = vpack.c.b16 %v5189, %v5185
  %v5202 = vpack.c.b16 %v5190, %v5186
  %v5203 = vpack.c.b16 %v5191, %v5187
  %v5204 = vpack.c.b16 %v5192, %v5192
  %v5205 = vpack.c.b16 %v5193, %v5193
  %v5206 = vpack.c.b16 %v5194, %v5194
  %v5207 = vpack.c.b16 %v5195, %v5195
  %5208 = vrot.lane.b32.xlu0 %v5196, 74
  %v5209 = vpop.permute.xlu0 %5208
  %5210 = vrot.lane.b32.xlu0 %v5197, 74
  %v5211 = vpop.permute.xlu0 %5210
  %5212 = vrot.lane.b32.xlu0 %v5198, 74
  %v5213 = vpop.permute.xlu0 %5212
  %5214 = vrot.lane.b32.xlu0 %v5199, 74
  %v5215 = vpop.permute.xlu0 %5214
  %5216 = vrot.lane.b32.xlu0 %v5200, 74
  %v5217 = vpop.permute.xlu0 %5216
  %5218 = vrot.lane.b32.xlu0 %v5201, 74
  %v5219 = vpop.permute.xlu0 %5218
  %5220 = vrot.lane.b32.xlu0 %v5202, 74
  %v5221 = vpop.permute.xlu0 %5220
  %5222 = vrot.lane.b32.xlu0 %v5203, 74
  %v5223 = vpop.permute.xlu0 %5222
  %5224 = vrot.lane.b32.xlu0 %v5204, 74
  %v5225 = vpop.permute.xlu0 %5224
  %5226 = vrot.lane.b32.xlu0 %v5205, 74
  %v5227 = vpop.permute.xlu0 %5226
  %5228 = vrot.lane.b32.xlu0 %v5206, 74
  %v5229 = vpop.permute.xlu0 %5228
  %5230 = vrot.lane.b32.xlu0 %v5207, 74
  %v5231 = vpop.permute.xlu0 %5230
  %vm5232 = vcmask 605184
  %v5233 = vsel %vm5232, %v5209, %v5211
  %v5234 = vsel %vm5232, %v5211, %v5213
  %v5235 = vsel %vm5232, %v5213, %v5215
  %v5236 = vsel %vm5232, %v5217, %v5219
  %v5237 = vsel %vm5232, %v5219, %v5221
  %v5238 = vsel %vm5232, %v5221, %v5223
  %v5239 = vsel %vm5232, %v5225, %v5227
  %v5240 = vsel %vm5232, %v5227, %v5229
  %v5241 = vsel %vm5232, %v5229, %v5231
  %v5258 = vunpack.c.l.b16 %v5156
  %v5259 = vunpack.c.h.b16 %v5156
  %v5260 = vunpack.c.l.b16 %v5157
  %v5261 = vunpack.c.h.b16 %v5157
  %v5262 = vunpack.c.l.b16 %v5158
  %v5263 = vunpack.c.h.b16 %v5158
  %v5264 = vunpack.c.l.b16 %v5159
  %v5265 = vunpack.c.h.b16 %v5159
  %v5266 = vunpack.c.l.b16 %v5160
  %v5267 = vunpack.c.h.b16 %v5160
  %v5268 = vunpack.c.l.b16 %v5161
  %v5269 = vunpack.c.h.b16 %v5161
  %v5270 = vunpack.c.l.b16 %v5162
  %v5271 = vunpack.c.h.b16 %v5162
  %v5272 = vunpack.c.l.b16 %v5163
  %v5273 = vunpack.c.h.b16 %v5163
  %v5274 = vunpack.c.l.b16 %v5164
  %v5275 = vunpack.c.h.b16 %v5164
  %v5276 = vunpack.c.l.b16 %v5165
  %v5277 = vunpack.c.h.b16 %v5165
  %v5278 = vpack.c.b16 %v5262, %v5258
  %v5279 = vpack.c.b16 %v5263, %v5259
  %v5280 = vpack.c.b16 %v5264, %v5260
  %v5281 = vpack.c.b16 %v5265, %v5261
  %v5282 = vpack.c.b16 %v5270, %v5266
  %v5283 = vpack.c.b16 %v5271, %v5267
  %v5284 = vpack.c.b16 %v5272, %v5268
  %v5285 = vpack.c.b16 %v5273, %v5269
  %v5286 = vpack.c.b16 %v5274, %v5274
  %v5287 = vpack.c.b16 %v5275, %v5275
  %v5288 = vpack.c.b16 %v5276, %v5276
  %v5289 = vpack.c.b16 %v5277, %v5277
  %5290 = vrot.lane.b32.xlu0 %v5278, 74
  %v5291 = vpop.permute.xlu0 %5290
  %5292 = vrot.lane.b32.xlu0 %v5279, 74
  %v5293 = vpop.permute.xlu0 %5292
  %5294 = vrot.lane.b32.xlu0 %v5280, 74
  %v5295 = vpop.permute.xlu0 %5294
  %5296 = vrot.lane.b32.xlu0 %v5281, 74
  %v5297 = vpop.permute.xlu0 %5296
  %5298 = vrot.lane.b32.xlu0 %v5282, 74
  %v5299 = vpop.permute.xlu0 %5298
  %5300 = vrot.lane.b32.xlu0 %v5283, 74
  %v5301 = vpop.permute.xlu0 %5300
  %5302 = vrot.lane.b32.xlu0 %v5284, 74
  %v5303 = vpop.permute.xlu0 %5302
  %5304 = vrot.lane.b32.xlu0 %v5285, 74
  %v5305 = vpop.permute.xlu0 %5304
  %5306 = vrot.lane.b32.xlu0 %v5286, 74
  %v5307 = vpop.permute.xlu0 %5306
  %5308 = vrot.lane.b32.xlu0 %v5287, 74
  %v5309 = vpop.permute.xlu0 %5308
  %5310 = vrot.lane.b32.xlu0 %v5288, 74
  %v5311 = vpop.permute.xlu0 %5310
  %5312 = vrot.lane.b32.xlu0 %v5289, 74
  %v5313 = vpop.permute.xlu0 %5312
  %v5314 = vsel %vm5232, %v5291, %v5293
  %v5315 = vsel %vm5232, %v5293, %v5295
  %v5316 = vsel %vm5232, %v5295, %v5297
  %v5317 = vsel %vm5232, %v5299, %v5301
  %v5318 = vsel %vm5232, %v5301, %v5303
  %v5319 = vsel %vm5232, %v5303, %v5305
  %v5320 = vsel %vm5232, %v5307, %v5309
  %v5321 = vsel %vm5232, %v5309, %v5311
  %v5322 = vsel %vm5232, %v5311, %v5313
  %5329 = vrot.lane.b32.xlu0 %v5196, 73
  %v5330 = vpop.permute.xlu0 %5329
  %5331 = vrot.lane.b32.xlu0 %v5197, 73
  %v5332 = vpop.permute.xlu0 %5331
  %5333 = vrot.lane.b32.xlu0 %v5198, 73
  %v5334 = vpop.permute.xlu0 %5333
  %5335 = vrot.lane.b32.xlu0 %v5199, 73
  %v5336 = vpop.permute.xlu0 %5335
  %5337 = vrot.lane.b32.xlu0 %v5200, 73
  %v5338 = vpop.permute.xlu0 %5337
  %5339 = vrot.lane.b32.xlu0 %v5201, 73
  %v5340 = vpop.permute.xlu0 %5339
  %5341 = vrot.lane.b32.xlu0 %v5202, 73
  %v5342 = vpop.permute.xlu0 %5341
  %5343 = vrot.lane.b32.xlu0 %v5203, 73
  %v5344 = vpop.permute.xlu0 %5343
  %5345 = vrot.lane.b32.xlu0 %v5204, 73
  %v5346 = vpop.permute.xlu0 %5345
  %5347 = vrot.lane.b32.xlu0 %v5205, 73
  %v5348 = vpop.permute.xlu0 %5347
  %5349 = vrot.lane.b32.xlu0 %v5206, 73
  %v5350 = vpop.permute.xlu0 %5349
  %5351 = vrot.lane.b32.xlu0 %v5207, 73
  %v5352 = vpop.permute.xlu0 %5351
  %vm5353 = vcmask 596992
  %v5354 = vsel %vm5353, %v5330, %v5332
  %v5355 = vsel %vm5353, %v5332, %v5334
  %v5356 = vsel %vm5353, %v5334, %v5336
  %v5357 = vsel %vm5353, %v5338, %v5340
  %v5358 = vsel %vm5353, %v5340, %v5342
  %v5359 = vsel %vm5353, %v5342, %v5344
  %v5360 = vsel %vm5353, %v5346, %v5348
  %v5361 = vsel %vm5353, %v5348, %v5350
  %v5362 = vsel %vm5353, %v5350, %v5352
  %5363 = vrot.lane.b32.xlu0 %v5278, 73
  %v5364 = vpop.permute.xlu0 %5363
  %5365 = vrot.lane.b32.xlu0 %v5279, 73
  %v5366 = vpop.permute.xlu0 %5365
  %5367 = vrot.lane.b32.xlu0 %v5280, 73
  %v5368 = vpop.permute.xlu0 %5367
  %5369 = vrot.lane.b32.xlu0 %v5281, 73
  %v5370 = vpop.permute.xlu0 %5369
  %5371 = vrot.lane.b32.xlu0 %v5282, 73
  %v5372 = vpop.permute.xlu0 %5371
  %5373 = vrot.lane.b32.xlu0 %v5283, 73
  %v5374 = vpop.permute.xlu0 %5373
  %5375 = vrot.lane.b32.xlu0 %v5284, 73
  %v5376 = vpop.permute.xlu0 %5375
  %5377 = vrot.lane.b32.xlu0 %v5285, 73
  %v5378 = vpop.permute.xlu0 %5377
  %5379 = vrot.lane.b32.xlu0 %v5286, 73
  %v5380 = vpop.permute.xlu0 %5379
  %5381 = vrot.lane.b32.xlu0 %v5287, 73
  %v5382 = vpop.permute.xlu0 %5381
  %5383 = vrot.lane.b32.xlu0 %v5288, 73
  %v5384 = vpop.permute.xlu0 %5383
  %5385 = vrot.lane.b32.xlu0 %v5289, 73
  %v5386 = vpop.permute.xlu0 %5385
  %v5387 = vsel %vm5353, %v5364, %v5366
  %v5388 = vsel %vm5353, %v5366, %v5368
  %v5389 = vsel %vm5353, %v5368, %v5370
  %v5390 = vsel %vm5353, %v5372, %v5374
  %v5391 = vsel %vm5353, %v5374, %v5376
  %v5392 = vsel %vm5353, %v5376, %v5378
  %v5393 = vsel %vm5353, %v5380, %v5382
  %v5394 = vsel %vm5353, %v5382, %v5384
  %v5395 = vsel %vm5353, %v5384, %v5386
  %5396 = vrot.lane.b32.xlu0 %v5196, 72
  %v5397 = vpop.permute.xlu0 %5396
  %5398 = vrot.lane.b32.xlu0 %v5197, 72
  %v5399 = vpop.permute.xlu0 %5398
  %5400 = vrot.lane.b32.xlu0 %v5198, 72
  %v5401 = vpop.permute.xlu0 %5400
  %5402 = vrot.lane.b32.xlu0 %v5199, 72
  %v5403 = vpop.permute.xlu0 %5402
  %5404 = vrot.lane.b32.xlu0 %v5200, 72
  %v5405 = vpop.permute.xlu0 %5404
  %5406 = vrot.lane.b32.xlu0 %v5201, 72
  %v5407 = vpop.permute.xlu0 %5406
  %5408 = vrot.lane.b32.xlu0 %v5202, 72
  %v5409 = vpop.permute.xlu0 %5408
  %5410 = vrot.lane.b32.xlu0 %v5203, 72
  %v5411 = vpop.permute.xlu0 %5410
  %5412 = vrot.lane.b32.xlu0 %v5204, 72
  %v5413 = vpop.permute.xlu0 %5412
  %5414 = vrot.lane.b32.xlu0 %v5205, 72
  %v5415 = vpop.permute.xlu0 %5414
  %5416 = vrot.lane.b32.xlu0 %v5206, 72
  %v5417 = vpop.permute.xlu0 %5416
  %5418 = vrot.lane.b32.xlu0 %v5207, 72
  %v5419 = vpop.permute.xlu0 %5418
  %vm5420 = vcmask 588800
  %v5421 = vsel %vm5420, %v5397, %v5399
  %v5422 = vsel %vm5420, %v5399, %v5401
  %v5423 = vsel %vm5420, %v5401, %v5403
  %v5424 = vsel %vm5420, %v5405, %v5407
  %v5425 = vsel %vm5420, %v5407, %v5409
  %v5426 = vsel %vm5420, %v5409, %v5411
  %v5427 = vsel %vm5420, %v5413, %v5415
  %v5428 = vsel %vm5420, %v5415, %v5417
  %v5429 = vsel %vm5420, %v5417, %v5419
  %5436 = vrot.lane.b32.xlu0 %v5278, 72
  %v5437 = vpop.permute.xlu0 %5436
  %5438 = vrot.lane.b32.xlu0 %v5279, 72
  %v5439 = vpop.permute.xlu0 %5438
  %5440 = vrot.lane.b32.xlu0 %v5280, 72
  %v5441 = vpop.permute.xlu0 %5440
  %5442 = vrot.lane.b32.xlu0 %v5281, 72
  %v5443 = vpop.permute.xlu0 %5442
  %5444 = vrot.lane.b32.xlu0 %v5282, 72
  %v5445 = vpop.permute.xlu0 %5444
  %5446 = vrot.lane.b32.xlu0 %v5283, 72
  %v5447 = vpop.permute.xlu0 %5446
  %5448 = vrot.lane.b32.xlu0 %v5284, 72
  %v5449 = vpop.permute.xlu0 %5448
  %5450 = vrot.lane.b32.xlu0 %v5285, 72
  %v5451 = vpop.permute.xlu0 %5450
  %5452 = vrot.lane.b32.xlu0 %v5286, 72
  %v5453 = vpop.permute.xlu0 %5452
  %5454 = vrot.lane.b32.xlu0 %v5287, 72
  %v5455 = vpop.permute.xlu0 %5454
  %5456 = vrot.lane.b32.xlu0 %v5288, 72
  %v5457 = vpop.permute.xlu0 %5456
  %5458 = vrot.lane.b32.xlu0 %v5289, 72
  %v5459 = vpop.permute.xlu0 %5458
  %v5460 = vsel %vm5420, %v5437, %v5439
  %v5461 = vsel %vm5420, %v5439, %v5441
  %v5462 = vsel %vm5420, %v5441, %v5443
  %v5463 = vsel %vm5420, %v5445, %v5447
  %v5464 = vsel %vm5420, %v5447, %v5449
  %v5465 = vsel %vm5420, %v5449, %v5451
  %v5466 = vsel %vm5420, %v5453, %v5455
  %v5467 = vsel %vm5420, %v5455, %v5457
  %v5468 = vsel %vm5420, %v5457, %v5459
  %5475 = vrot.lane.b32.xlu0 %v5196, 71
  %v5476 = vpop.permute.xlu0 %5475
  %5477 = vrot.lane.b32.xlu0 %v5197, 71
  %v5478 = vpop.permute.xlu0 %5477
  %5479 = vrot.lane.b32.xlu0 %v5198, 71
  %v5480 = vpop.permute.xlu0 %5479
  %5481 = vrot.lane.b32.xlu0 %v5199, 71
  %v5482 = vpop.permute.xlu0 %5481
  %5483 = vrot.lane.b32.xlu0 %v5200, 71
  %v5484 = vpop.permute.xlu0 %5483
  %5485 = vrot.lane.b32.xlu0 %v5201, 71
  %v5486 = vpop.permute.xlu0 %5485
  %5487 = vrot.lane.b32.xlu0 %v5202, 71
  %v5488 = vpop.permute.xlu0 %5487
  %5489 = vrot.lane.b32.xlu0 %v5203, 71
  %v5490 = vpop.permute.xlu0 %5489
  %5491 = vrot.lane.b32.xlu0 %v5204, 71
  %v5492 = vpop.permute.xlu0 %5491
  %5493 = vrot.lane.b32.xlu0 %v5205, 71
  %v5494 = vpop.permute.xlu0 %5493
  %5495 = vrot.lane.b32.xlu0 %v5206, 71
  %v5496 = vpop.permute.xlu0 %5495
  %5497 = vrot.lane.b32.xlu0 %v5207, 71
  %v5498 = vpop.permute.xlu0 %5497
  %vm5499 = vcmask 580608
  %v5500 = vsel %vm5499, %v5476, %v5478
  %v5501 = vsel %vm5499, %v5478, %v5480
  %v5502 = vsel %vm5499, %v5480, %v5482
  %v5503 = vsel %vm5499, %v5484, %v5486
  %v5504 = vsel %vm5499, %v5486, %v5488
  %v5505 = vsel %vm5499, %v5488, %v5490
  %v5506 = vsel %vm5499, %v5492, %v5494
  %v5507 = vsel %vm5499, %v5494, %v5496
  %v5508 = vsel %vm5499, %v5496, %v5498
  %5509 = vrot.lane.b32.xlu0 %v5278, 71
  %v5510 = vpop.permute.xlu0 %5509
  %5511 = vrot.lane.b32.xlu0 %v5279, 71
  %v5512 = vpop.permute.xlu0 %5511
  %5513 = vrot.lane.b32.xlu0 %v5280, 71
  %v5514 = vpop.permute.xlu0 %5513
  %5515 = vrot.lane.b32.xlu0 %v5281, 71
  %v5516 = vpop.permute.xlu0 %5515
  %5517 = vrot.lane.b32.xlu0 %v5282, 71
  %v5518 = vpop.permute.xlu0 %5517
  %5519 = vrot.lane.b32.xlu0 %v5283, 71
  %v5520 = vpop.permute.xlu0 %5519
  %5521 = vrot.lane.b32.xlu0 %v5284, 71
  %v5522 = vpop.permute.xlu0 %5521
  %5523 = vrot.lane.b32.xlu0 %v5285, 71
  %v5524 = vpop.permute.xlu0 %5523
  %5525 = vrot.lane.b32.xlu0 %v5286, 71
  %v5526 = vpop.permute.xlu0 %5525
  %5527 = vrot.lane.b32.xlu0 %v5287, 71
  %v5528 = vpop.permute.xlu0 %5527
  %5529 = vrot.lane.b32.xlu0 %v5288, 71
  %v5530 = vpop.permute.xlu0 %5529
  %5531 = vrot.lane.b32.xlu0 %v5289, 71
  %v5532 = vpop.permute.xlu0 %5531
  %v5533 = vsel %vm5499, %v5510, %v5512
  %v5534 = vsel %vm5499, %v5512, %v5514
  %v5535 = vsel %vm5499, %v5514, %v5516
  %v5536 = vsel %vm5499, %v5518, %v5520
  %v5537 = vsel %vm5499, %v5520, %v5522
  %v5538 = vsel %vm5499, %v5522, %v5524
  %v5539 = vsel %vm5499, %v5526, %v5528
  %v5540 = vsel %vm5499, %v5528, %v5530
  %v5541 = vsel %vm5499, %v5530, %v5532
  %5542 = vrot.lane.b32.xlu0 %v5196, 70
  %v5543 = vpop.permute.xlu0 %5542
  %5544 = vrot.lane.b32.xlu0 %v5197, 70
  %v5545 = vpop.permute.xlu0 %5544
  %5546 = vrot.lane.b32.xlu0 %v5198, 70
  %v5547 = vpop.permute.xlu0 %5546
  %5548 = vrot.lane.b32.xlu0 %v5199, 70
  %v5549 = vpop.permute.xlu0 %5548
  %5550 = vrot.lane.b32.xlu0 %v5200, 70
  %v5551 = vpop.permute.xlu0 %5550
  %5552 = vrot.lane.b32.xlu0 %v5201, 70
  %v5553 = vpop.permute.xlu0 %5552
  %5554 = vrot.lane.b32.xlu0 %v5202, 70
  %v5555 = vpop.permute.xlu0 %5554
  %5556 = vrot.lane.b32.xlu0 %v5203, 70
  %v5557 = vpop.permute.xlu0 %5556
  %5558 = vrot.lane.b32.xlu0 %v5204, 70
  %v5559 = vpop.permute.xlu0 %5558
  %5560 = vrot.lane.b32.xlu0 %v5205, 70
  %v5561 = vpop.permute.xlu0 %5560
  %5562 = vrot.lane.b32.xlu0 %v5206, 70
  %v5563 = vpop.permute.xlu0 %5562
  %5564 = vrot.lane.b32.xlu0 %v5207, 70
  %v5565 = vpop.permute.xlu0 %5564
  %vm5566 = vcmask 572416
  %v5567 = vsel %vm5566, %v5543, %v5545
  %v5568 = vsel %vm5566, %v5545, %v5547
  %v5569 = vsel %vm5566, %v5547, %v5549
  %v5570 = vsel %vm5566, %v5551, %v5553
  %v5571 = vsel %vm5566, %v5553, %v5555
  %v5572 = vsel %vm5566, %v5555, %v5557
  %v5573 = vsel %vm5566, %v5559, %v5561
  %v5574 = vsel %vm5566, %v5561, %v5563
  %v5575 = vsel %vm5566, %v5563, %v5565
  %5582 = vrot.lane.b32.xlu0 %v5278, 70
  %v5583 = vpop.permute.xlu0 %5582
  %5584 = vrot.lane.b32.xlu0 %v5279, 70
  %v5585 = vpop.permute.xlu0 %5584
  %5586 = vrot.lane.b32.xlu0 %v5280, 70
  %v5587 = vpop.permute.xlu0 %5586
  %5588 = vrot.lane.b32.xlu0 %v5281, 70
  %v5589 = vpop.permute.xlu0 %5588
  %5590 = vrot.lane.b32.xlu0 %v5282, 70
  %v5591 = vpop.permute.xlu0 %5590
  %5592 = vrot.lane.b32.xlu0 %v5283, 70
  %v5593 = vpop.permute.xlu0 %5592
  %5594 = vrot.lane.b32.xlu0 %v5284, 70
  %v5595 = vpop.permute.xlu0 %5594
  %5596 = vrot.lane.b32.xlu0 %v5285, 70
  %v5597 = vpop.permute.xlu0 %5596
  %5598 = vrot.lane.b32.xlu0 %v5286, 70
  %v5599 = vpop.permute.xlu0 %5598
  %5600 = vrot.lane.b32.xlu0 %v5287, 70
  %v5601 = vpop.permute.xlu0 %5600
  %5602 = vrot.lane.b32.xlu0 %v5288, 70
  %v5603 = vpop.permute.xlu0 %5602
  %5604 = vrot.lane.b32.xlu0 %v5289, 70
  %v5605 = vpop.permute.xlu0 %5604
  %v5606 = vsel %vm5566, %v5583, %v5585
  %v5607 = vsel %vm5566, %v5585, %v5587
  %v5608 = vsel %vm5566, %v5587, %v5589
  %v5609 = vsel %vm5566, %v5591, %v5593
  %v5610 = vsel %vm5566, %v5593, %v5595
  %v5611 = vsel %vm5566, %v5595, %v5597
  %v5612 = vsel %vm5566, %v5599, %v5601
  %v5613 = vsel %vm5566, %v5601, %v5603
  %v5614 = vsel %vm5566, %v5603, %v5605
  %5621 = vrot.lane.b32.xlu0 %v5196, 69
  %v5622 = vpop.permute.xlu0 %5621
  %5623 = vrot.lane.b32.xlu0 %v5197, 69
  %v5624 = vpop.permute.xlu0 %5623
  %5625 = vrot.lane.b32.xlu0 %v5198, 69
  %v5626 = vpop.permute.xlu0 %5625
  %5627 = vrot.lane.b32.xlu0 %v5199, 69
  %v5628 = vpop.permute.xlu0 %5627
  %5629 = vrot.lane.b32.xlu0 %v5200, 69
  %v5630 = vpop.permute.xlu0 %5629
  %5631 = vrot.lane.b32.xlu0 %v5201, 69
  %v5632 = vpop.permute.xlu0 %5631
  %5633 = vrot.lane.b32.xlu0 %v5202, 69
  %v5634 = vpop.permute.xlu0 %5633
  %5635 = vrot.lane.b32.xlu0 %v5203, 69
  %v5636 = vpop.permute.xlu0 %5635
  %5637 = vrot.lane.b32.xlu0 %v5204, 69
  %v5638 = vpop.permute.xlu0 %5637
  %5639 = vrot.lane.b32.xlu0 %v5205, 69
  %v5640 = vpop.permute.xlu0 %5639
  %5641 = vrot.lane.b32.xlu0 %v5206, 69
  %v5642 = vpop.permute.xlu0 %5641
  %5643 = vrot.lane.b32.xlu0 %v5207, 69
  %v5644 = vpop.permute.xlu0 %5643
  %vm5645 = vcmask 564224
  %v5646 = vsel %vm5645, %v5622, %v5624
  %v5647 = vsel %vm5645, %v5624, %v5626
  %v5648 = vsel %vm5645, %v5626, %v5628
  %v5649 = vsel %vm5645, %v5630, %v5632
  %v5650 = vsel %vm5645, %v5632, %v5634
  %v5651 = vsel %vm5645, %v5634, %v5636
  %v5652 = vsel %vm5645, %v5638, %v5640
  %v5653 = vsel %vm5645, %v5640, %v5642
  %v5654 = vsel %vm5645, %v5642, %v5644
  %5655 = vrot.lane.b32.xlu0 %v5278, 69
  %v5656 = vpop.permute.xlu0 %5655
  %5657 = vrot.lane.b32.xlu0 %v5279, 69
  %v5658 = vpop.permute.xlu0 %5657
  %5659 = vrot.lane.b32.xlu0 %v5280, 69
  %v5660 = vpop.permute.xlu0 %5659
  %5661 = vrot.lane.b32.xlu0 %v5281, 69
  %v5662 = vpop.permute.xlu0 %5661
  %5663 = vrot.lane.b32.xlu0 %v5282, 69
  %v5664 = vpop.permute.xlu0 %5663
  %5665 = vrot.lane.b32.xlu0 %v5283, 69
  %v5666 = vpop.permute.xlu0 %5665
  %5667 = vrot.lane.b32.xlu0 %v5284, 69
  %v5668 = vpop.permute.xlu0 %5667
  %5669 = vrot.lane.b32.xlu0 %v5285, 69
  %v5670 = vpop.permute.xlu0 %5669
  %5671 = vrot.lane.b32.xlu0 %v5286, 69
  %v5672 = vpop.permute.xlu0 %5671
  %5673 = vrot.lane.b32.xlu0 %v5287, 69
  %v5674 = vpop.permute.xlu0 %5673
  %5675 = vrot.lane.b32.xlu0 %v5288, 69
  %v5676 = vpop.permute.xlu0 %5675
  %5677 = vrot.lane.b32.xlu0 %v5289, 69
  %v5678 = vpop.permute.xlu0 %5677
  %v5679 = vsel %vm5645, %v5656, %v5658
  %v5680 = vsel %vm5645, %v5658, %v5660
  %v5681 = vsel %vm5645, %v5660, %v5662
  %v5682 = vsel %vm5645, %v5664, %v5666
  %v5683 = vsel %vm5645, %v5666, %v5668
  %v5684 = vsel %vm5645, %v5668, %v5670
  %v5685 = vsel %vm5645, %v5672, %v5674
  %v5686 = vsel %vm5645, %v5674, %v5676
  %v5687 = vsel %vm5645, %v5676, %v5678
  %5688 = vrot.lane.b32.xlu0 %v5196, 68
  %v5689 = vpop.permute.xlu0 %5688
  %5690 = vrot.lane.b32.xlu0 %v5197, 68
  %v5691 = vpop.permute.xlu0 %5690
  %5692 = vrot.lane.b32.xlu0 %v5198, 68
  %v5693 = vpop.permute.xlu0 %5692
  %5694 = vrot.lane.b32.xlu0 %v5199, 68
  %v5695 = vpop.permute.xlu0 %5694
  %5696 = vrot.lane.b32.xlu0 %v5200, 68
  %v5697 = vpop.permute.xlu0 %5696
  %5698 = vrot.lane.b32.xlu0 %v5201, 68
  %v5699 = vpop.permute.xlu0 %5698
  %5700 = vrot.lane.b32.xlu0 %v5202, 68
  %v5701 = vpop.permute.xlu0 %5700
  %5702 = vrot.lane.b32.xlu0 %v5203, 68
  %v5703 = vpop.permute.xlu0 %5702
  %5704 = vrot.lane.b32.xlu0 %v5204, 68
  %v5705 = vpop.permute.xlu0 %5704
  %5706 = vrot.lane.b32.xlu0 %v5205, 68
  %v5707 = vpop.permute.xlu0 %5706
  %5708 = vrot.lane.b32.xlu0 %v5206, 68
  %v5709 = vpop.permute.xlu0 %5708
  %5710 = vrot.lane.b32.xlu0 %v5207, 68
  %v5711 = vpop.permute.xlu0 %5710
  %vm5712 = vcmask 556032
  %v5713 = vsel %vm5712, %v5689, %v5691
  %v5714 = vsel %vm5712, %v5691, %v5693
  %v5715 = vsel %vm5712, %v5693, %v5695
  %v5716 = vsel %vm5712, %v5697, %v5699
  %v5717 = vsel %vm5712, %v5699, %v5701
  %v5718 = vsel %vm5712, %v5701, %v5703
  %v5719 = vsel %vm5712, %v5705, %v5707
  %v5720 = vsel %vm5712, %v5707, %v5709
  %v5721 = vsel %vm5712, %v5709, %v5711
  %5728 = vrot.lane.b32.xlu0 %v5278, 68
  %v5729 = vpop.permute.xlu0 %5728
  %5730 = vrot.lane.b32.xlu0 %v5279, 68
  %v5731 = vpop.permute.xlu0 %5730
  %5732 = vrot.lane.b32.xlu0 %v5280, 68
  %v5733 = vpop.permute.xlu0 %5732
  %5734 = vrot.lane.b32.xlu0 %v5281, 68
  %v5735 = vpop.permute.xlu0 %5734
  %5736 = vrot.lane.b32.xlu0 %v5282, 68
  %v5737 = vpop.permute.xlu0 %5736
  %5738 = vrot.lane.b32.xlu0 %v5283, 68
  %v5739 = vpop.permute.xlu0 %5738
  %5740 = vrot.lane.b32.xlu0 %v5284, 68
  %v5741 = vpop.permute.xlu0 %5740
  %5742 = vrot.lane.b32.xlu0 %v5285, 68
  %v5743 = vpop.permute.xlu0 %5742
  %5744 = vrot.lane.b32.xlu0 %v5286, 68
  %v5745 = vpop.permute.xlu0 %5744
  %5746 = vrot.lane.b32.xlu0 %v5287, 68
  %v5747 = vpop.permute.xlu0 %5746
  %5748 = vrot.lane.b32.xlu0 %v5288, 68
  %v5749 = vpop.permute.xlu0 %5748
  %5750 = vrot.lane.b32.xlu0 %v5289, 68
  %v5751 = vpop.permute.xlu0 %5750
  %v5752 = vsel %vm5712, %v5729, %v5731
  %v5753 = vsel %vm5712, %v5731, %v5733
  %v5754 = vsel %vm5712, %v5733, %v5735
  %v5755 = vsel %vm5712, %v5737, %v5739
  %v5756 = vsel %vm5712, %v5739, %v5741
  %v5757 = vsel %vm5712, %v5741, %v5743
  %v5758 = vsel %vm5712, %v5745, %v5747
  %v5759 = vsel %vm5712, %v5747, %v5749
  %v5760 = vsel %vm5712, %v5749, %v5751
  %v5767 = vrot.slane %v5354, 4
  %v5768 = vrot.slane %v5355, 4
  %v5769 = vrot.slane %v5356, 4
  %v5770 = vrot.slane %v5387, 4
  %v5771 = vrot.slane %v5388, 4
  %v5772 = vrot.slane %v5389, 4
  %v5773 = vrot.slane %v5357, 4
  %v5774 = vsel %vm1374, %v5767, %v5773
  %v5775 = vrot.slane %v5358, 4
  %v5776 = vsel %vm1374, %v5768, %v5775
  %v5777 = vrot.slane %v5359, 4
  %v5778 = vsel %vm1374, %v5769, %v5777
  %v5779 = vrot.slane %v5390, 4
  %v5780 = vsel %vm1374, %v5770, %v5779
  %v5781 = vrot.slane %v5391, 4
  %v5782 = vsel %vm1374, %v5771, %v5781
  %v5783 = vrot.slane %v5392, 4
  %v5784 = vsel %vm1374, %v5772, %v5783
  %v5785 = vrot.slane %v5360, 4
  %v5786 = vsel %vm1374, %v5773, %v5785
  %v5787 = vrot.slane %v5361, 4
  %v5788 = vsel %vm1374, %v5775, %v5787
  %v5789 = vrot.slane %v5362, 4
  %v5790 = vsel %vm1374, %v5777, %v5789
  %v5791 = vrot.slane %v5393, 4
  %v5792 = vsel %vm1374, %v5779, %v5791
  %v5793 = vrot.slane %v5394, 4
  %v5794 = vsel %vm1374, %v5781, %v5793
  %v5795 = vrot.slane %v5395, 4
  %v5796 = vsel %vm1374, %v5783, %v5795
  %v5809 = vrot.slane %v5500, 4
  %v5810 = vrot.slane %v5501, 4
  %v5811 = vrot.slane %v5502, 4
  %v5812 = vrot.slane %v5533, 4
  %v5813 = vrot.slane %v5534, 4
  %v5814 = vrot.slane %v5535, 4
  %v5815 = vrot.slane %v5503, 4
  %v5816 = vsel %vm1374, %v5809, %v5815
  %v5817 = vrot.slane %v5504, 4
  %v5818 = vsel %vm1374, %v5810, %v5817
  %v5819 = vrot.slane %v5505, 4
  %v5820 = vsel %vm1374, %v5811, %v5819
  %v5821 = vrot.slane %v5536, 4
  %v5822 = vsel %vm1374, %v5812, %v5821
  %v5823 = vrot.slane %v5537, 4
  %v5824 = vsel %vm1374, %v5813, %v5823
  %v5825 = vrot.slane %v5538, 4
  %v5826 = vsel %vm1374, %v5814, %v5825
  %v5827 = vrot.slane %v5506, 4
  %v5828 = vsel %vm1374, %v5815, %v5827
  %v5829 = vrot.slane %v5507, 4
  %v5830 = vsel %vm1374, %v5817, %v5829
  %v5831 = vrot.slane %v5508, 4
  %v5832 = vsel %vm1374, %v5819, %v5831
  %v5833 = vrot.slane %v5539, 4
  %v5834 = vsel %vm1374, %v5821, %v5833
  %v5835 = vrot.slane %v5540, 4
  %v5836 = vsel %vm1374, %v5823, %v5835
  %v5837 = vrot.slane %v5541, 4
  %v5838 = vsel %vm1374, %v5825, %v5837
  %v5851 = vrot.slane %v5646, 4
  %v5852 = vrot.slane %v5647, 4
  %v5853 = vrot.slane %v5648, 4
  %v5854 = vrot.slane %v5679, 4
  %v5855 = vrot.slane %v5680, 4
  %v5856 = vrot.slane %v5681, 4
  %v5857 = vrot.slane %v5649, 4
  %v5858 = vsel %vm1374, %v5851, %v5857
  %v5859 = vrot.slane %v5650, 4
  %v5860 = vsel %vm1374, %v5852, %v5859
  %v5861 = vrot.slane %v5651, 4
  %v5862 = vsel %vm1374, %v5853, %v5861
  %v5863 = vrot.slane %v5682, 4
  %v5864 = vsel %vm1374, %v5854, %v5863
  %v5865 = vrot.slane %v5683, 4
  %v5866 = vsel %vm1374, %v5855, %v5865
  %v5867 = vrot.slane %v5684, 4
  %v5868 = vsel %vm1374, %v5856, %v5867
  %v5869 = vrot.slane %v5652, 4
  %v5870 = vsel %vm1374, %v5857, %v5869
  %v5871 = vrot.slane %v5653, 4
  %v5872 = vsel %vm1374, %v5859, %v5871
  %v5873 = vrot.slane %v5654, 4
  %v5874 = vsel %vm1374, %v5861, %v5873
  %v5875 = vrot.slane %v5685, 4
  %v5876 = vsel %vm1374, %v5863, %v5875
  %v5877 = vrot.slane %v5686, 4
  %v5878 = vsel %vm1374, %v5865, %v5877
  %v5879 = vrot.slane %v5687, 4
  %v5880 = vsel %vm1374, %v5867, %v5879
  %v5895 = vsel %vm301, %v5239, %v5767
  %v5899 = vsel %vm301, %v5240, %v5768
  %v5903 = vsel %vm301, %v5241, %v5769
  %v5907 = vsel %vm301, %v5320, %v5770
  %v5911 = vsel %vm301, %v5321, %v5771
  %v5915 = vsel %vm301, %v5322, %v5772
  %v5919 = vsel %vm301, %v5427, %v5809
  %v5923 = vsel %vm301, %v5428, %v5810
  %v5927 = vsel %vm301, %v5429, %v5811
  %v5931 = vsel %vm301, %v5466, %v5812
  %v5935 = vsel %vm301, %v5467, %v5813
  %v5939 = vsel %vm301, %v5468, %v5814
  %v5943 = vsel %vm301, %v5573, %v5851
  %v5947 = vsel %vm301, %v5574, %v5852
  %v5951 = vsel %vm301, %v5575, %v5853
  %v5955 = vsel %vm301, %v5612, %v5854
  %v5959 = vsel %vm301, %v5613, %v5855
  %v5963 = vsel %vm301, %v5614, %v5856
  %v5965 = vld [vmem:[%s3 + $0x18] sm:$0xff]
  %v5966 = vld [vmem:[%s3 + $0x20] sm:$0xf]
  %v5967 = vld [vmem:[%s3 + $0x58] sm:$0xff]
  %v5968 = vld [vmem:[%s3 + $0x60] sm:$0xf]
  %v5969 = vld [vmem:[%s3 + $0x98] sm:$0xff]
  %v5970 = vld [vmem:[%s3 + $0xa0] sm:$0xf]
  %v5971 = vld [vmem:[%s3 + $0xd8] sm:$0xff]
  %v5972 = vld [vmem:[%s3 + $0xe0] sm:$0xf]
  %v5973 = vld [vmem:[%s3 + $0x118] sm:$0xff]
  %v5974 = vld [vmem:[%s3 + $0x120] sm:$0xf]
  %v5975 = vld [vmem:[%s3 + $0x158] sm:$0xff]
  %v5976 = vld [vmem:[%s3 + $0x160] sm:$0xf]
  %v5977 = vld [vmem:[%s3 + $0x198] sm:$0x11]
  %v5978 = vld [vmem:[%s3 + $0x1a0] sm:$0x1]
  %v5993 = vunpack.c.l.b16 %v5965
  %v5994 = vunpack.c.h.b16 %v5965
  %v5995 = vunpack.c.l.b16 %v5966
  %v5996 = vunpack.c.l.b16 %v5967
  %v5997 = vunpack.c.h.b16 %v5967
  %v5998 = vunpack.c.l.b16 %v5968
  %v5999 = vunpack.c.l.b16 %v5969
  %v6000 = vunpack.c.h.b16 %v5969
  %v6001 = vunpack.c.l.b16 %v5970
  %v6002 = vunpack.c.l.b16 %v5971
  %v6003 = vunpack.c.h.b16 %v5971
  %v6004 = vunpack.c.l.b16 %v5972
  %v6005 = vunpack.c.l.b16 %v5973
  %v6006 = vunpack.c.h.b16 %v5973
  %v6007 = vunpack.c.l.b16 %v5974
  %v6008 = vunpack.c.l.b16 %v5975
  %v6009 = vunpack.c.h.b16 %v5975
  %v6010 = vunpack.c.l.b16 %v5976
  %v6011 = vunpack.c.l.b16 %v5977
  %v6012 = vunpack.c.h.b16 %v5977
  %v6013 = vunpack.c.l.b16 %v5978
  %v6014 = vpack.c.b16 %v5996, %v5993
  %v6015 = vpack.c.b16 %v5997, %v5994
  %v6016 = vpack.c.b16 %v5998, %v5995
  %v6017 = vpack.c.b16 %v6002, %v5999
  %v6018 = vpack.c.b16 %v6003, %v6000
  %v6019 = vpack.c.b16 %v6004, %v6001
  %v6020 = vpack.c.b16 %v6008, %v6005
  %v6021 = vpack.c.b16 %v6009, %v6006
  %v6022 = vpack.c.b16 %v6010, %v6007
  %v6023 = vpack.c.b16 %v6011, %v6011
  %v6024 = vpack.c.b16 %v6012, %v6012
  %v6025 = vpack.c.b16 %v6013, %v6013
  %6026 = vrot.lane.b32.xlu0 %v6014, 56
  %v6027 = vpop.permute.xlu0 %6026
  %6028 = vrot.lane.b32.xlu0 %v6015, 56
  %v6029 = vpop.permute.xlu0 %6028
  %6030 = vrot.lane.b32.xlu0 %v6016, 56
  %v6031 = vpop.permute.xlu0 %6030
  %6032 = vrot.lane.b32.xlu0 %v6017, 56
  %v6033 = vpop.permute.xlu0 %6032
  %6034 = vrot.lane.b32.xlu0 %v6018, 56
  %v6035 = vpop.permute.xlu0 %6034
  %6036 = vrot.lane.b32.xlu0 %v6019, 56
  %v6037 = vpop.permute.xlu0 %6036
  %6038 = vrot.lane.b32.xlu0 %v6020, 56
  %v6039 = vpop.permute.xlu0 %6038
  %6040 = vrot.lane.b32.xlu0 %v6021, 56
  %v6041 = vpop.permute.xlu0 %6040
  %6042 = vrot.lane.b32.xlu0 %v6022, 56
  %v6043 = vpop.permute.xlu0 %6042
  %6044 = vrot.lane.b32.xlu0 %v6023, 56
  %v6045 = vpop.permute.xlu0 %6044
  %6046 = vrot.lane.b32.xlu0 %v6024, 56
  %v6047 = vpop.permute.xlu0 %6046
  %6048 = vrot.lane.b32.xlu0 %v6025, 56
  %v6049 = vpop.permute.xlu0 %6048
  %vm6050 = vcmask 457728
  %v6051 = vsel %vm6050, %v6027, %v6029
  %v6052 = vsel %vm6050, %v6029, %v6031
  %v6053 = vsel %vm6050, %v6033, %v6035
  %v6054 = vsel %vm6050, %v6035, %v6037
  %v6055 = vsel %vm6050, %v6039, %v6041
  %v6056 = vsel %vm6050, %v6041, %v6043
  %v6057 = vsel %vm6050, %v6045, %v6047
  %v6058 = vsel %vm6050, %v6047, %v6049
  %v6068 = vsel %vm1642, %v6031, 0
  %v6071 = vsel %vm1642, %v6037, 0
  %v6074 = vsel %vm1642, %v6043, 0
  %v6077 = vsel %vm1642, %v6049, 0
  %v6080 = vsel %vm301, %v5719, 0
  %v6083 = vsel %vm301, %v5720, 0
  %v6086 = vsel %vm301, %v5721, 0
  %v6089 = vsel %vm301, %v5758, 0
  %v6092 = vsel %vm301, %v5759, 0
  %v6095 = vsel %vm301, %v5760, 0
  %6097 = vmatprep.subr.bf16.mxu0 %v5234
  %6098 = vmatpush1.bf16.msra.mxu0 %v5233
  %6099 = vmatprep.subr.bf16.mxu0 %v5237
  %6100 = vmatpush1.bf16.msra.mxu0 %v5236
  %6101 = vmatprep.subr.bf16.mxu0 %v5899
  %6102 = vmatpush1.bf16.msra.mxu0 %v5895
  %6103 = vmatprep.subr.bf16.mxu0 %v5776
  %6104 = vmatpush1.bf16.msra.mxu0 %v5774
  %6105 = vmatprep.subr.bf16.mxu0 %v5788
  %6106 = vmatpush1.bf16.msra.mxu0 %v5786
  %6107 = vmatprep.subr.bf16.mxu0 %v5422
  %6108 = vmatpush1.bf16.msra.mxu0 %v5421
  %6109 = vmatprep.subr.bf16.mxu0 %v5425
  %6110 = vmatpush1.bf16.msra.mxu0 %v5424
  %6111 = vmatprep.subr.bf16.mxu0 %v5923
  %6112 = vmatpush1.bf16.msra.mxu0 %v5919
  %6113 = vmatprep.subr.bf16.mxu0 %v5818
  %6114 = vmatpush1.bf16.msra.mxu0 %v5816
  %6115 = vmatprep.subr.bf16.mxu0 %v5830
  %6116 = vmatpush1.bf16.msra.mxu0 %v5828
  %6117 = vmatprep.subr.bf16.mxu0 %v5568
  %6118 = vmatpush1.bf16.msra.mxu0 %v5567
  %6119 = vmatprep.subr.bf16.mxu0 %v5571
  %6120 = vmatpush1.bf16.msra.mxu0 %v5570
  %6121 = vmatprep.subr.bf16.mxu0 %v5947
  %6122 = vmatpush1.bf16.msra.mxu0 %v5943
  %6123 = vmatprep.subr.bf16.mxu0 %v5860
  %6124 = vmatpush1.bf16.msra.mxu0 %v5858
  %6125 = vmatprep.subr.bf16.mxu0 %v5872
  %6126 = vmatpush1.bf16.msra.mxu0 %v5870
  %6127 = vmatprep.subr.bf16.mxu0 %v5714
  %6128 = vmatpush1.bf16.msra.mxu0 %v5713
  %6129 = vmatprep.mubr.bf16.mxu0 %v6052
  %6130 = vmatmul.mubr.bf16.gmra.mrb[0].mxu0 %v6051
  %v6131 = vpop.f32.mrb[0].mxu0
  %v6132 = vadd.f32 0.0, %v6131
  %v6133 = vpop.f32.mrb[0].mxu0
  %v6134 = vadd.f32 0.0, %v6133
  %v6135 = vpop.f32.mrb[0].mxu0
  %v6136 = vadd.f32 0.0, %v6135
  %v6137 = vpop.f32.mrb[0].mxu0
  %v6138 = vadd.f32 0.0, %v6137
  %6139 = vmatprep.mubr.bf16.mxu0 %v6054
  %6140 = vmatmul.mubr.bf16.gmra.mrb[0].mxu0 %v6053
  %v6141 = vpop.f32.mrb[0].mxu0
  %v6142 = vadd.f32 0.0, %v6141
  %v6143 = vpop.f32.mrb[0].mxu0
  %v6144 = vadd.f32 0.0, %v6143
  %v6145 = vpop.f32.mrb[0].mxu0
  %v6146 = vadd.f32 0.0, %v6145
  %v6147 = vpop.f32.mrb[0].mxu0
  %v6148 = vadd.f32 0.0, %v6147
  %6149 = vmatprep.mubr.bf16.mxu0 %v6056
  %6150 = vmatmul.mubr.bf16.gmra.mrb[0].mxu0 %v6055
  %v6151 = vpop.f32.mrb[0].mxu0
  %v6152 = vadd.f32 0.0, %v6151
  %v6153 = vpop.f32.mrb[0].mxu0
  %v6154 = vadd.f32 0.0, %v6153
  %v6155 = vpop.f32.mrb[0].mxu0
  %v6156 = vadd.f32 0.0, %v6155
  %v6157 = vpop.f32.mrb[0].mxu0
  %v6158 = vadd.f32 0.0, %v6157
  %6159 = vmatprep.mubr.bf16.mxu0 %v6058
  %6160 = vmatmul.mubr.bf16.gmra.mrb[0].mxu0 %v6057
  %v6161 = vpop.f32.mrb[0].mxu0
  %v6162 = vadd.f32 0.0, %v6161
  %v6163 = vpop.f32.mrb[0].mxu0
  %v6164 = vadd.f32 0.0, %v6163
  %v6165 = vpop.f32.mrb[0].mxu0
  %v6166 = vpop.f32.mrb[0].mxu0
  %6167 = vdwg.mxu0
  %6168 = vmatprep.subr.bf16.mxu0 %v5717
  %6169 = vmatpush1.bf16.msra.mxu0 %v5716
  %6170 = vmatprep.subr.bf16.mxu0 %v6083
  %6171 = vmatpush1.bf16.msra.mxu0 %v6080
  %6172 = vmatprep.subr.bf16.mxu0 0
  %6173 = vmatpush1.bf16.msra.mxu0 0
  %6174 = vmatprep.subr.bf16.mxu0 0
  %6175 = vmatpush1.bf16.msra.mxu0 0
  %6176 = vmatprep.subr.bf16.mxu0 0
  %6177 = vmatpush1.bf16.msra.mxu0 0
  %6178 = vmatprep.subr.bf16.mxu0 0
  %6179 = vmatpush1.bf16.msra.mxu0 0
  %6180 = vmatprep.subr.bf16.mxu0 0
  %6181 = vmatpush1.bf16.msra.mxu0 0
  %6182 = vmatprep.subr.bf16.mxu0 0
  %6183 = vmatpush1.bf16.msra.mxu0 0
  %6184 = vmatprep.subr.bf16.mxu0 0
  %6185 = vmatpush1.bf16.msra.mxu0 0
  %6186 = vmatprep.subr.bf16.mxu0 0
  %6187 = vmatpush1.bf16.msra.mxu0 0
  %6188 = vmatprep.subr.bf16.mxu0 0
  %6189 = vmatpush1.bf16.msra.mxu0 0
  %6190 = vmatprep.subr.bf16.mxu0 0
  %6191 = vmatpush1.bf16.msra.mxu0 0
  %6192 = vmatprep.subr.bf16.mxu0 0
  %6193 = vmatpush1.bf16.msra.mxu0 0
  %6194 = vmatprep.subr.bf16.mxu0 0
  %6195 = vmatpush1.bf16.msra.mxu0 0
  %6196 = vmatprep.subr.bf16.mxu0 0
  %6197 = vmatpush1.bf16.msra.mxu0 0
  %6198 = vmatprep.subr.bf16.mxu0 0
  %6199 = vmatpush1.bf16.msra.mxu0 0
  %6200 = vmatprep.mubr.bf16.mxu0 0
  %6201 = vmatmul.mubr.bf16.gmra.mrb[0].mxu0 %v6068
  %v6202 = vpop.f32.mrb[0].mxu0
  %v6203 = vadd.f32 %v6132, %v6202
  %v6204 = vpop.f32.mrb[0].mxu0
  %v6205 = vadd.f32 %v6134, %v6204
  %v6206 = vpop.f32.mrb[0].mxu0
  %v6207 = vadd.f32 %v6136, %v6206
  %v6208 = vpop.f32.mrb[0].mxu0
  %v6209 = vadd.f32 %v6138, %v6208
  %6210 = vmatprep.mubr.bf16.mxu0 0
  %6211 = vmatmul.mubr.bf16.gmra.mrb[0].mxu0 %v6071
  %v6212 = vpop.f32.mrb[0].mxu0
  %v6213 = vadd.f32 %v6142, %v6212
  %v6214 = vpop.f32.mrb[0].mxu0
  %v6215 = vadd.f32 %v6144, %v6214
  %v6216 = vpop.f32.mrb[0].mxu0
  %v6217 = vadd.f32 %v6146, %v6216
  %v6218 = vpop.f32.mrb[0].mxu0
  %v6219 = vadd.f32 %v6148, %v6218
  %6220 = vmatprep.mubr.bf16.mxu0 0
  %6221 = vmatmul.mubr.bf16.gmra.mrb[0].mxu0 %v6074
  %v6222 = vpop.f32.mrb[0].mxu0
  %v6223 = vadd.f32 %v6152, %v6222
  %v6224 = vpop.f32.mrb[0].mxu0
  %v6225 = vadd.f32 %v6154, %v6224
  %v6226 = vpop.f32.mrb[0].mxu0
  %v6227 = vadd.f32 %v6156, %v6226
  %v6228 = vpop.f32.mrb[0].mxu0
  %v6229 = vadd.f32 %v6158, %v6228
  %6230 = vmatprep.mubr.bf16.mxu0 0
  %6231 = vmatmul.mubr.bf16.gmra.mrb[0].mxu0 %v6077
  %v6232 = vpop.f32.mrb[0].mxu0
  %v6233 = vadd.f32 %v6162, %v6232
  %v6234 = vpop.f32.mrb[0].mxu0
  %v6235 = vadd.f32 %v6164, %v6234
  %v6236 = vpop.f32.mrb[0].mxu0
  %v6237 = vpop.f32.mrb[0].mxu0
  %6238 = vdwg.mxu0
  %6239 = vmatprep.subr.bf16.mxu0 %v5314
  %6240 = vmatpush1.bf16.msra.mxu0 %v5235
  %6241 = vmatprep.subr.bf16.mxu0 %v5317
  %6242 = vmatpush1.bf16.msra.mxu0 %v5238
  %6243 = vmatprep.subr.bf16.mxu0 %v5907
  %6244 = vmatpush1.bf16.msra.mxu0 %v5903
  %6245 = vmatprep.subr.bf16.mxu0 %v5780
  %6246 = vmatpush1.bf16.msra.mxu0 %v5778
  %6247 = vmatprep.subr.bf16.mxu0 %v5792
  %6248 = vmatpush1.bf16.msra.mxu0 %v5790
  %6249 = vmatprep.subr.bf16.mxu0 %v5460
  %6250 = vmatpush1.bf16.msra.mxu0 %v5423
  %6251 = vmatprep.subr.bf16.mxu0 %v5463
  %6252 = vmatpush1.bf16.msra.mxu0 %v5426
  %6253 = vmatprep.subr.bf16.mxu0 %v5931
  %6254 = vmatpush1.bf16.msra.mxu0 %v5927
  %6255 = vmatprep.subr.bf16.mxu0 %v5822
  %6256 = vmatpush1.bf16.msra.mxu0 %v5820
  %6257 = vmatprep.subr.bf16.mxu0 %v5834
  %6258 = vmatpush1.bf16.msra.mxu0 %v5832
  %6259 = vmatprep.subr.bf16.mxu0 %v5606
  %6260 = vmatpush1.bf16.msra.mxu0 %v5569
  %6261 = vmatprep.subr.bf16.mxu0 %v5609
  %6262 = vmatpush1.bf16.msra.mxu0 %v5572
  %6263 = vmatprep.subr.bf16.mxu0 %v5955
  %6264 = vmatpush1.bf16.msra.mxu0 %v5951
  %6265 = vmatprep.subr.bf16.mxu0 %v5864
  %6266 = vmatpush1.bf16.msra.mxu0 %v5862
  %6267 = vmatprep.subr.bf16.mxu0 %v5876
  %6268 = vmatpush1.bf16.msra.mxu0 %v5874
  %6269 = vmatprep.subr.bf16.mxu0 %v5752
  %6270 = vmatpush1.bf16.msra.mxu0 %v5715
  %6271 = vmatprep.mubr.bf16.mxu0 %v6052
  %6272 = vmatmul.mubr.bf16.gmra.mrb[0].mxu0 %v6051
  %v6273 = vpop.f32.mrb[0].mxu0
  %v6274 = vadd.f32 0.0, %v6273
  %v6275 = vpop.f32.mrb[0].mxu0
  %v6276 = vadd.f32 0.0, %v6275
  %v6277 = vpop.f32.mrb[0].mxu0
  %v6278 = vadd.f32 0.0, %v6277
  %v6279 = vpop.f32.mrb[0].mxu0
  %v6280 = vadd.f32 0.0, %v6279
  %6281 = vmatprep.mubr.bf16.mxu0 %v6054
  %6282 = vmatmul.mubr.bf16.gmra.mrb[0].mxu0 %v6053
  %v6283 = vpop.f32.mrb[0].mxu0
  %v6284 = vadd.f32 0.0, %v6283
  %v6285 = vpop.f32.mrb[0].mxu0
  %v6286 = vadd.f32 0.0, %v6285
  %v6287 = vpop.f32.mrb[0].mxu0
  %v6288 = vadd.f32 0.0, %v6287
  %v6289 = vpop.f32.mrb[0].mxu0
  %v6290 = vadd.f32 0.0, %v6289
  %6291 = vmatprep.mubr.bf16.mxu0 %v6056
  %6292 = vmatmul.mubr.bf16.gmra.mrb[0].mxu0 %v6055
  %v6293 = vpop.f32.mrb[0].mxu0
  %v6294 = vadd.f32 0.0, %v6293
  %v6295 = vpop.f32.mrb[0].mxu0
  %v6296 = vadd.f32 0.0, %v6295
  %v6297 = vpop.f32.mrb[0].mxu0
  %v6298 = vadd.f32 0.0, %v6297
  %v6299 = vpop.f32.mrb[0].mxu0
  %v6300 = vadd.f32 0.0, %v6299
  %6301 = vmatprep.mubr.bf16.mxu0 %v6058
  %6302 = vmatmul.mubr.bf16.gmra.mrb[0].mxu0 %v6057
  %v6303 = vpop.f32.mrb[0].mxu0
  %v6304 = vadd.f32 0.0, %v6303
  %v6305 = vpop.f32.mrb[0].mxu0
  %v6306 = vadd.f32 0.0, %v6305
  %v6307 = vpop.f32.mrb[0].mxu0
  %v6308 = vpop.f32.mrb[0].mxu0
  %6309 = vdwg.mxu0
  %6310 = vmatprep.subr.bf16.mxu0 %v5755
  %6311 = vmatpush1.bf16.msra.mxu0 %v5718
  %6312 = vmatprep.subr.bf16.mxu0 %v6089
  %6313 = vmatpush1.bf16.msra.mxu0 %v6086
  %6314 = vmatprep.subr.bf16.mxu0 0
  %6315 = vmatpush1.bf16.msra.mxu0 0
  %6316 = vmatprep.subr.bf16.mxu0 0
  %6317 = vmatpush1.bf16.msra.mxu0 0
  %6318 = vmatprep.subr.bf16.mxu0 0
  %6319 = vmatpush1.bf16.msra.mxu0 0
  %6320 = vmatprep.subr.bf16.mxu0 0
  %6321 = vmatpush1.bf16.msra.mxu0 0
  %6322 = vmatprep.subr.bf16.mxu0 0
  %6323 = vmatpush1.bf16.msra.mxu0 0
  %6324 = vmatprep.subr.bf16.mxu0 0
  %6325 = vmatpush1.bf16.msra.mxu0 0
  %6326 = vmatprep.subr.bf16.mxu0 0
  %6327 = vmatpush1.bf16.msra.mxu0 0
  %6328 = vmatprep.subr.bf16.mxu0 0
  %6329 = vmatpush1.bf16.msra.mxu0 0
  %6330 = vmatprep.subr.bf16.mxu0 0
  %6331 = vmatpush1.bf16.msra.mxu0 0
  %6332 = vmatprep.subr.bf16.mxu0 0
  %6333 = vmatpush1.bf16.msra.mxu0 0
  %6334 = vmatprep.subr.bf16.mxu0 0
  %6335 = vmatpush1.bf16.msra.mxu0 0
  %6336 = vmatprep.subr.bf16.mxu0 0
  %6337 = vmatpush1.bf16.msra.mxu0 0
  %6338 = vmatprep.subr.bf16.mxu0 0
  %6339 = vmatpush1.bf16.msra.mxu0 0
  %6340 = vmatprep.subr.bf16.mxu0 0
  %6341 = vmatpush1.bf16.msra.mxu0 0
  %6342 = vmatprep.mubr.bf16.mxu0 0
  %6343 = vmatmul.mubr.bf16.gmra.mrb[0].mxu0 %v6068
  %v6344 = vpop.f32.mrb[0].mxu0
  %v6345 = vadd.f32 %v6274, %v6344
  %v6346 = vpop.f32.mrb[0].mxu0
  %v6347 = vadd.f32 %v6276, %v6346
  %v6348 = vpop.f32.mrb[0].mxu0
  %v6349 = vadd.f32 %v6278, %v6348
  %v6350 = vpop.f32.mrb[0].mxu0
  %v6351 = vadd.f32 %v6280, %v6350
  %6352 = vmatprep.mubr.bf16.mxu0 0
  %6353 = vmatmul.mubr.bf16.gmra.mrb[0].mxu0 %v6071
  %v6354 = vpop.f32.mrb[0].mxu0
  %v6355 = vadd.f32 %v6284, %v6354
  %v6356 = vpop.f32.mrb[0].mxu0
  %v6357 = vadd.f32 %v6286, %v6356
  %v6358 = vpop.f32.mrb[0].mxu0
  %v6359 = vadd.f32 %v6288, %v6358
  %v6360 = vpop.f32.mrb[0].mxu0
  %v6361 = vadd.f32 %v6290, %v6360
  %6362 = vmatprep.mubr.bf16.mxu0 0
  %6363 = vmatmul.mubr.bf16.gmra.mrb[0].mxu0 %v6074
  %v6364 = vpop.f32.mrb[0].mxu0
  %v6365 = vadd.f32 %v6294, %v6364
  %v6366 = vpop.f32.mrb[0].mxu0
  %v6367 = vadd.f32 %v6296, %v6366
  %v6368 = vpop.f32.mrb[0].mxu0
  %v6369 = vadd.f32 %v6298, %v6368
  %v6370 = vpop.f32.mrb[0].mxu0
  %v6371 = vadd.f32 %v6300, %v6370
  %6372 = vmatprep.mubr.bf16.mxu0 0
  %6373 = vmatmul.mubr.bf16.gmra.mrb[0].mxu0 %v6077
  %v6374 = vpop.f32.mrb[0].mxu0
  %v6375 = vadd.f32 %v6304, %v6374
  %v6376 = vpop.f32.mrb[0].mxu0
  %v6377 = vadd.f32 %v6306, %v6376
  %v6378 = vpop.f32.mrb[0].mxu0
  %v6379 = vpop.f32.mrb[0].mxu0
  %6380 = vdwg.mxu0
  %6381 = vmatprep.subr.bf16.mxu0 %v5316
  %6382 = vmatpush1.bf16.msra.mxu0 %v5315
  %6383 = vmatprep.subr.bf16.mxu0 %v5319
  %6384 = vmatpush1.bf16.msra.mxu0 %v5318
  %6385 = vmatprep.subr.bf16.mxu0 %v5915
  %6386 = vmatpush1.bf16.msra.mxu0 %v5911
  %6387 = vmatprep.subr.bf16.mxu0 %v5784
  %6388 = vmatpush1.bf16.msra.mxu0 %v5782
  %6389 = vmatprep.subr.bf16.mxu0 %v5796
  %6390 = vmatpush1.bf16.msra.mxu0 %v5794
  %6391 = vmatprep.subr.bf16.mxu0 %v5462
  %6392 = vmatpush1.bf16.msra.mxu0 %v5461
  %6393 = vmatprep.subr.bf16.mxu0 %v5465
  %6394 = vmatpush1.bf16.msra.mxu0 %v5464
  %6395 = vmatprep.subr.bf16.mxu0 %v5939
  %6396 = vmatpush1.bf16.msra.mxu0 %v5935
  %6397 = vmatprep.subr.bf16.mxu0 %v5826
  %6398 = vmatpush1.bf16.msra.mxu0 %v5824
  %6399 = vmatprep.subr.bf16.mxu0 %v5838
  %6400 = vmatpush1.bf16.msra.mxu0 %v5836
  %6401 = vmatprep.subr.bf16.mxu0 %v5608
  %6402 = vmatpush1.bf16.msra.mxu0 %v5607
  %6403 = vmatprep.subr.bf16.mxu0 %v5611
  %6404 = vmatpush1.bf16.msra.mxu0 %v5610
  %6405 = vmatprep.subr.bf16.mxu0 %v5963
  %6406 = vmatpush1.bf16.msra.mxu0 %v5959
  %6407 = vmatprep.subr.bf16.mxu0 %v5868
  %6408 = vmatpush1.bf16.msra.mxu0 %v5866
  %6409 = vmatprep.subr.bf16.mxu0 %v5880
  %6410 = vmatpush1.bf16.msra.mxu0 %v5878
  %6411 = vmatprep.subr.bf16.mxu0 %v5754
  %6412 = vmatpush1.bf16.msra.mxu0 %v5753
  %6413 = vmatprep.mubr.bf16.mxu0 %v6052
  %6414 = vmatmul.mubr.bf16.gmra.mrb[0].mxu0 %v6051
  %v6415 = vpop.f32.mrb[0].mxu0
  %v6416 = vadd.f32 0.0, %v6415
  %v6417 = vpop.f32.mrb[0].mxu0
  %v6418 = vadd.f32 0.0, %v6417
  %v6419 = vpop.f32.mrb[0].mxu0
  %v6420 = vadd.f32 0.0, %v6419
  %v6421 = vpop.f32.mrb[0].mxu0
  %v6422 = vadd.f32 0.0, %v6421
  %6423 = vmatprep.mubr.bf16.mxu0 %v6054
  %6424 = vmatmul.mubr.bf16.gmra.mrb[0].mxu0 %v6053
  %v6425 = vpop.f32.mrb[0].mxu0
  %v6426 = vadd.f32 0.0, %v6425
  %v6427 = vpop.f32.mrb[0].mxu0
  %v6428 = vadd.f32 0.0, %v6427
  %v6429 = vpop.f32.mrb[0].mxu0
  %v6430 = vadd.f32 0.0, %v6429
  %v6431 = vpop.f32.mrb[0].mxu0
  %v6432 = vadd.f32 0.0, %v6431
  %6433 = vmatprep.mubr.bf16.mxu0 %v6056
  %6434 = vmatmul.mubr.bf16.gmra.mrb[0].mxu0 %v6055
  %v6435 = vpop.f32.mrb[0].mxu0
  %v6436 = vadd.f32 0.0, %v6435
  %v6437 = vpop.f32.mrb[0].mxu0
  %v6438 = vadd.f32 0.0, %v6437
  %v6439 = vpop.f32.mrb[0].mxu0
  %v6440 = vadd.f32 0.0, %v6439
  %v6441 = vpop.f32.mrb[0].mxu0
  %v6442 = vadd.f32 0.0, %v6441
  %6443 = vmatprep.mubr.bf16.mxu0 %v6058
  %6444 = vmatmul.mubr.bf16.gmra.mrb[0].mxu0 %v6057
  %v6445 = vpop.f32.mrb[0].mxu0
  %v6446 = vadd.f32 0.0, %v6445
  %v6447 = vpop.f32.mrb[0].mxu0
  %v6448 = vadd.f32 0.0, %v6447
  %v6449 = vpop.f32.mrb[0].mxu0
  %v6450 = vpop.f32.mrb[0].mxu0
  %6451 = vdwg.mxu0
  %6452 = vmatprep.subr.bf16.mxu0 %v5757
  %6453 = vmatpush1.bf16.msra.mxu0 %v5756
  %6454 = vmatprep.subr.bf16.mxu0 %v6095
  %6455 = vmatpush1.bf16.msra.mxu0 %v6092
  %6456 = vmatprep.subr.bf16.mxu0 0
  %6457 = vmatpush1.bf16.msra.mxu0 0
  %6458 = vmatprep.subr.bf16.mxu0 0
  %6459 = vmatpush1.bf16.msra.mxu0 0
  %6460 = vmatprep.subr.bf16.mxu0 0
  %6461 = vmatpush1.bf16.msra.mxu0 0
  %6462 = vmatprep.subr.bf16.mxu0 0
  %6463 = vmatpush1.bf16.msra.mxu0 0
  %6464 = vmatprep.subr.bf16.mxu0 0
  %6465 = vmatpush1.bf16.msra.mxu0 0
  %6466 = vmatprep.subr.bf16.mxu0 0
  %6467 = vmatpush1.bf16.msra.mxu0 0
  %6468 = vmatprep.subr.bf16.mxu0 0
  %6469 = vmatpush1.bf16.msra.mxu0 0
  %6470 = vmatprep.subr.bf16.mxu0 0
  %6471 = vmatpush1.bf16.msra.mxu0 0
  %6472 = vmatprep.subr.bf16.mxu0 0
  %6473 = vmatpush1.bf16.msra.mxu0 0
  %6474 = vmatprep.subr.bf16.mxu0 0
  %6475 = vmatpush1.bf16.msra.mxu0 0
  %6476 = vmatprep.subr.bf16.mxu0 0
  %6477 = vmatpush1.bf16.msra.mxu0 0
  %6478 = vmatprep.subr.bf16.mxu0 0
  %6479 = vmatpush1.bf16.msra.mxu0 0
  %6480 = vmatprep.subr.bf16.mxu0 0
  %6481 = vmatpush1.bf16.msra.mxu0 0
  %6482 = vmatprep.subr.bf16.mxu0 0
  %6483 = vmatpush1.bf16.msra.mxu0 0
  %6484 = vmatprep.mubr.bf16.mxu0 0
  %6485 = vmatmul.mubr.bf16.gmra.mrb[0].mxu0 %v6068
  %v6486 = vpop.f32.mrb[0].mxu0
  %v6487 = vadd.f32 %v6416, %v6486
  %v6488 = vpop.f32.mrb[0].mxu0
  %v6489 = vadd.f32 %v6418, %v6488
  %v6490 = vpop.f32.mrb[0].mxu0
  %v6491 = vadd.f32 %v6420, %v6490
  %v6492 = vpop.f32.mrb[0].mxu0
  %v6493 = vadd.f32 %v6422, %v6492
  %6494 = vmatprep.mubr.bf16.mxu0 0
  %6495 = vmatmul.mubr.bf16.gmra.mrb[0].mxu0 %v6071
  %v6496 = vpop.f32.mrb[0].mxu0
  %v6497 = vadd.f32 %v6426, %v6496
  %v6498 = vpop.f32.mrb[0].mxu0
  %v6499 = vadd.f32 %v6428, %v6498
  %v6500 = vpop.f32.mrb[0].mxu0
  %v6501 = vadd.f32 %v6430, %v6500
  %v6502 = vpop.f32.mrb[0].mxu0
  %v6503 = vadd.f32 %v6432, %v6502
  %6504 = vmatprep.mubr.bf16.mxu0 0
  %6505 = vmatmul.mubr.bf16.gmra.mrb[0].mxu0 %v6074
  %v6506 = vpop.f32.mrb[0].mxu0
  %v6507 = vadd.f32 %v6436, %v6506
  %v6508 = vpop.f32.mrb[0].mxu0
  %v6509 = vadd.f32 %v6438, %v6508
  %v6510 = vpop.f32.mrb[0].mxu0
  %v6511 = vadd.f32 %v6440, %v6510
  %v6512 = vpop.f32.mrb[0].mxu0
  %v6513 = vadd.f32 %v6442, %v6512
  %6514 = vmatprep.mubr.bf16.mxu0 0
  %6515 = vmatmul.mubr.bf16.gmra.mrb[0].mxu0 %v6077
  %v6516 = vpop.f32.mrb[0].mxu0
  %v6517 = vadd.f32 %v6446, %v6516
  %v6518 = vpop.f32.mrb[0].mxu0
  %v6519 = vadd.f32 %v6448, %v6518
  %v6520 = vpop.f32.mrb[0].mxu0
  %v6521 = vpop.f32.mrb[0].mxu0
  %6522 = vdwg.mxu0
  %v6523 = vld [vmem:[#allocation3] sm:$0xff]
  %v6524 = vld [vmem:[#allocation3 + $0x8] sm:$0xff]
  %v6525 = vld [vmem:[#allocation3 + $0x10] sm:$0xff]
  %v6526 = vld [vmem:[#allocation3 + $0x18] sm:$0xff]
  %v6527 = vld [vmem:[#allocation3 + $0x20] sm:$0xff]
  %v6528 = vld [vmem:[#allocation3 + $0x28] sm:$0xff]
  %v6529 = vld [vmem:[#allocation3 + $0x30] sm:$0xff]
  %v6530 = vld [vmem:[#allocation3 + $0x38] sm:$0xff]
  %v6531 = vld [vmem:[#allocation3 + $0x40] sm:$0xff]
  %v6532 = vld [vmem:[#allocation3 + $0x48] sm:$0xff]
  %v6533 = vld [vmem:[#allocation3 + $0x50] sm:$0xff]
  %v6534 = vld [vmem:[#allocation3 + $0x58] sm:$0xff]
  %v6535 = vld [vmem:[#allocation3 + $0x60] sm:$0xff]
  %v6536 = vld [vmem:[#allocation3 + $0x68] sm:$0xff]
  %v6537 = vld [vmem:[#allocation3 + $0x70] sm:$0xff]
  %v6538 = vld [vmem:[#allocation3 + $0x78] sm:$0xff]
  %v6539 = vld [vmem:[#allocation3 + $0x80] sm:$0xff]
  %v6540 = vld [vmem:[#allocation3 + $0x88] sm:$0xff]
  %v6541 = vld [vmem:[#allocation3 + $0x90] sm:$0xff]
  %v6542 = vld [vmem:[#allocation3 + $0x98] sm:$0xff]
  %v6543 = vld [vmem:[#allocation3 + $0xa0] sm:$0xff]
  %v6544 = vld [vmem:[#allocation3 + $0xa8] sm:$0xff]
  %v6545 = vld [vmem:[#allocation3 + $0xb0] sm:$0xff]
  %v6546 = vld [vmem:[#allocation3 + $0xb8] sm:$0xff]
  %v6547 = vld [vmem:[#allocation3 + $0xc0] sm:$0xff]
  %v6548 = vld [vmem:[#allocation3 + $0xc8] sm:$0xff]
  %v6549 = vld [vmem:[#allocation3 + $0xd0] sm:$0xff]
  %v6550 = vld [vmem:[#allocation3 + $0xd8] sm:$0xff]
  %v6551 = vld [vmem:[#allocation3 + $0xe0] sm:$0xff]
  %v6552 = vld [vmem:[#allocation3 + $0xe8] sm:$0xff]
  %v6553 = vld [vmem:[#allocation3 + $0xf0] sm:$0xff]
  %v6554 = vld [vmem:[#allocation3 + $0xf8] sm:$0xff]
  %v6555 = vld [vmem:[#allocation3 + $0x100] sm:$0xff]
  %v6556 = vld [vmem:[#allocation3 + $0x108] sm:$0xff]
  %v6557 = vld [vmem:[#allocation3 + $0x110] sm:$0xff]
  %v6558 = vld [vmem:[#allocation3 + $0x118] sm:$0xff]
  %v6559 = vld [vmem:[#allocation3 + $0x120] sm:$0x3]
  %v6560 = vld [vmem:[#allocation3 + $0x128] sm:$0x3]
  %v6561 = vld [vmem:[#allocation3 + $0x130] sm:$0x3]
  %v6562 = vld [vmem:[#allocation3 + $0x138] sm:$0x3]
  %v6563 = vld [vmem:[#allocation3 + $0x140] sm:$0x3]
  %v6564 = vld [vmem:[#allocation3 + $0x148] sm:$0x3]
  %v6565 = vadd.f32 %v6523, %v6203
  %v6566 = vadd.f32 %v6524, %v6205
  %v6567 = vadd.f32 %v6525, %v6345
  %v6568 = vadd.f32 %v6526, %v6347
  %v6569 = vadd.f32 %v6527, %v6487
  %v6570 = vadd.f32 %v6528, %v6489
  %v6571 = vadd.f32 %v6529, %v6207
  %v6572 = vadd.f32 %v6530, %v6209
  %v6573 = vadd.f32 %v6531, %v6349
  %v6574 = vadd.f32 %v6532, %v6351
  %v6575 = vadd.f32 %v6533, %v6491
  %v6576 = vadd.f32 %v6534, %v6493
  %v6577 = vadd.f32 %v6535, %v6213
  %v6578 = vadd.f32 %v6536, %v6215
  %v6579 = vadd.f32 %v6537, %v6355
  %v6580 = vadd.f32 %v6538, %v6357
  %v6581 = vadd.f32 %v6539, %v6497
  %v6582 = vadd.f32 %v6540, %v6499
  %v6583 = vadd.f32 %v6541, %v6217
  %v6584 = vadd.f32 %v6542, %v6219
  %v6585 = vadd.f32 %v6543, %v6359
  %v6586 = vadd.f32 %v6544, %v6361
  %v6587 = vadd.f32 %v6545, %v6501
  %v6588 = vadd.f32 %v6546, %v6503
  %v6589 = vadd.f32 %v6547, %v6223
  %v6590 = vadd.f32 %v6548, %v6225
  %v6591 = vadd.f32 %v6549, %v6365
  %v6592 = vadd.f32 %v6550, %v6367
  %v6593 = vadd.f32 %v6551, %v6507
  %v6594 = vadd.f32 %v6552, %v6509
  %v6595 = vadd.f32 %v6553, %v6227
  %v6596 = vadd.f32 %v6554, %v6229
  %v6597 = vadd.f32 %v6555, %v6369
  %v6598 = vadd.f32 %v6556, %v6371
  %v6599 = vadd.f32 %v6557, %v6511
  %v6600 = vadd.f32 %v6558, %v6513
  %v6601 = vadd.f32 %v6559, %v6233
  %v6602 = vadd.f32 %v6560, %v6235
  %v6603 = vadd.f32 %v6561, %v6375
  %v6604 = vadd.f32 %v6562, %v6377
  %v6605 = vadd.f32 %v6563, %v6517
  %v6606 = vadd.f32 %v6564, %v6519
  %6607 = vst [vmem:[#allocation3] sm:$0xff] %v6565
  %6608 = vst [vmem:[#allocation3 + $0x8] sm:$0xff] %v6566
  %6609 = vst [vmem:[#allocation3 + $0x10] sm:$0xff] %v6567
  %6610 = vst [vmem:[#allocation3 + $0x18] sm:$0xff] %v6568
  %6611 = vst [vmem:[#allocation3 + $0x20] sm:$0xff] %v6569
  %6612 = vst [vmem:[#allocation3 + $0x28] sm:$0xff] %v6570
  %6613 = vst [vmem:[#allocation3 + $0x30] sm:$0xff] %v6571
  %6614 = vst [vmem:[#allocation3 + $0x38] sm:$0xff] %v6572
  %6615 = vst [vmem:[#allocation3 + $0x40] sm:$0xff] %v6573
  %6616 = vst [vmem:[#allocation3 + $0x48] sm:$0xff] %v6574
  %6617 = vst [vmem:[#allocation3 + $0x50] sm:$0xff] %v6575
  %6618 = vst [vmem:[#allocation3 + $0x58] sm:$0xff] %v6576
  %6619 = vst [vmem:[#allocation3 + $0x60] sm:$0xff] %v6577
  %6620 = vst [vmem:[#allocation3 + $0x68] sm:$0xff] %v6578
  %6621 = vst [vmem:[#allocation3 + $0x70] sm:$0xff] %v6579
  %6622 = vst [vmem:[#allocation3 + $0x78] sm:$0xff] %v6580
  %6623 = vst [vmem:[#allocation3 + $0x80] sm:$0xff] %v6581
  %6624 = vst [vmem:[#allocation3 + $0x88] sm:$0xff] %v6582
  %6625 = vst [vmem:[#allocation3 + $0x90] sm:$0xff] %v6583
  %6626 = vst [vmem:[#allocation3 + $0x98] sm:$0xff] %v6584
  %6627 = vst [vmem:[#allocation3 + $0xa0] sm:$0xff] %v6585
  %6628 = vst [vmem:[#allocation3 + $0xa8] sm:$0xff] %v6586
  %6629 = vst [vmem:[#allocation3 + $0xb0] sm:$0xff] %v6587
  %6630 = vst [vmem:[#allocation3 + $0xb8] sm:$0xff] %v6588
  %6631 = vst [vmem:[#allocation3 + $0xc0] sm:$0xff] %v6589
  %6632 = vst [vmem:[#allocation3 + $0xc8] sm:$0xff] %v6590
  %6633 = vst [vmem:[#allocation3 + $0xd0] sm:$0xff] %v6591
  %6634 = vst [vmem:[#allocation3 + $0xd8] sm:$0xff] %v6592
  %6635 = vst [vmem:[#allocation3 + $0xe0] sm:$0xff] %v6593
  %6636 = vst [vmem:[#allocation3 + $0xe8] sm:$0xff] %v6594
  %6637 = vst [vmem:[#allocation3 + $0xf0] sm:$0xff] %v6595
  %6638 = vst [vmem:[#allocation3 + $0xf8] sm:$0xff] %v6596
  %6639 = vst [vmem:[#allocation3 + $0x100] sm:$0xff] %v6597
  %6640 = vst [vmem:[#allocation3 + $0x108] sm:$0xff] %v6598
  %6641 = vst [vmem:[#allocation3 + $0x110] sm:$0xff] %v6599
  %6642 = vst [vmem:[#allocation3 + $0x118] sm:$0xff] %v6600
  %6643 = vst [vmem:[#allocation3 + $0x120] sm:$0x3] %v6601
  %6644 = vst [vmem:[#allocation3 + $0x128] sm:$0x3] %v6602
  %6645 = vst [vmem:[#allocation3 + $0x130] sm:$0x3] %v6603
  %6646 = vst [vmem:[#allocation3 + $0x138] sm:$0x3] %v6604
  %6647 = vst [vmem:[#allocation3 + $0x140] sm:$0x3] %v6605
  %6648 = vst [vmem:[#allocation3 + $0x148] sm:$0x3] %v6606
  %v6649 = vld [vmem:[#allocation2] sm:$0xff]
  %v6650 = vld [vmem:[#allocation2 + $0x8] sm:$0xff]
  %v6651 = vld [vmem:[#allocation2 + $0x20] sm:$0xff]
  %v6652 = vld [vmem:[#allocation2 + $0x28] sm:$0xff]
  %v6653 = vld [vmem:[#allocation2 + $0x40] sm:$0xff]
  %v6654 = vld [vmem:[#allocation2 + $0x48] sm:$0xff]
  %v6655 = vld [vmem:[#allocation2 + $0x60] sm:$0xff]
  %v6656 = vld [vmem:[#allocation2 + $0x68] sm:$0xff]
  %v6657 = vld [vmem:[#allocation2 + $0x80] sm:$0xff]
  %v6658 = vld [vmem:[#allocation2 + $0x88] sm:$0xff]
  %v6659 = vld [vmem:[#allocation2 + $0x10] sm:$0xff]
  %v6660 = vld [vmem:[#allocation2 + $0x18] sm:$0xff]
  %v6661 = vld [vmem:[#allocation2 + $0x30] sm:$0xff]
  %v6662 = vld [vmem:[#allocation2 + $0x38] sm:$0xff]
  %v6663 = vld [vmem:[#allocation2 + $0x50] sm:$0xff]
  %v6664 = vld [vmem:[#allocation2 + $0x58] sm:$0xff]
  %v6665 = vld [vmem:[#allocation2 + $0x70] sm:$0xff]
  %v6666 = vld [vmem:[#allocation2 + $0x78] sm:$0xff]
  %v6667 = vld [vmem:[#allocation2 + $0x90] sm:$0xff]
  %v6668 = vld [vmem:[#allocation2 + $0x98] sm:$0xff]
  %v6679 = vunpack.c.l.b16 %v6649
  %v6680 = vunpack.c.h.b16 %v6649
  %v6681 = vunpack.c.l.b16 %v6650
  %v6682 = vunpack.c.h.b16 %v6650
  %v6683 = vunpack.c.l.b16 %v6651
  %v6684 = vunpack.c.h.b16 %v6651
  %v6685 = vunpack.c.l.b16 %v6652
  %v6686 = vunpack.c.h.b16 %v6652
  %v6687 = vunpack.c.l.b16 %v6653
  %v6688 = vunpack.c.h.b16 %v6653
  %v6689 = vunpack.c.l.b16 %v6654
  %v6690 = vunpack.c.h.b16 %v6654
  %v6691 = vunpack.c.l.b16 %v6655
  %v6692 = vunpack.c.h.b16 %v6655
  %v6693 = vunpack.c.l.b16 %v6656
  %v6694 = vunpack.c.h.b16 %v6656
  %v6695 = vunpack.c.l.b16 %v6657
  %v6696 = vunpack.c.h.b16 %v6657
  %v6697 = vunpack.c.l.b16 %v6658
  %v6698 = vunpack.c.h.b16 %v6658
  %v6699 = vpack.c.b16 %v6683, %v6679
  %v6700 = vpack.c.b16 %v6684, %v6680
  %v6701 = vpack.c.b16 %v6685, %v6681
  %v6702 = vpack.c.b16 %v6686, %v6682
  %v6703 = vpack.c.b16 %v6691, %v6687
  %v6704 = vpack.c.b16 %v6692, %v6688
  %v6705 = vpack.c.b16 %v6693, %v6689
  %v6706 = vpack.c.b16 %v6694, %v6690
  %v6707 = vpack.c.b16 %v6695, %v6695
  %v6708 = vpack.c.b16 %v6696, %v6696
  %v6709 = vpack.c.b16 %v6697, %v6697
  %v6710 = vpack.c.b16 %v6698, %v6698
  %6711 = vrot.lane.b32.xlu0 %v6699, 56
  %v6712 = vpop.permute.xlu0 %6711
  %6713 = vrot.lane.b32.xlu0 %v6700, 56
  %v6714 = vpop.permute.xlu0 %6713
  %6715 = vrot.lane.b32.xlu0 %v6701, 56
  %v6716 = vpop.permute.xlu0 %6715
  %6717 = vrot.lane.b32.xlu0 %v6702, 56
  %v6718 = vpop.permute.xlu0 %6717
  %6719 = vrot.lane.b32.xlu0 %v6703, 56
  %v6720 = vpop.permute.xlu0 %6719
  %6721 = vrot.lane.b32.xlu0 %v6704, 56
  %v6722 = vpop.permute.xlu0 %6721
  %6723 = vrot.lane.b32.xlu0 %v6705, 56
  %v6724 = vpop.permute.xlu0 %6723
  %6725 = vrot.lane.b32.xlu0 %v6706, 56
  %v6726 = vpop.permute.xlu0 %6725
  %6727 = vrot.lane.b32.xlu0 %v6707, 56
  %v6728 = vpop.permute.xlu0 %6727
  %6729 = vrot.lane.b32.xlu0 %v6708, 56
  %v6730 = vpop.permute.xlu0 %6729
  %6731 = vrot.lane.b32.xlu0 %v6709, 56
  %v6732 = vpop.permute.xlu0 %6731
  %6733 = vrot.lane.b32.xlu0 %v6710, 56
  %v6734 = vpop.permute.xlu0 %6733
  %v6735 = vsel %vm6050, %v6712, %v6714
  %v6736 = vsel %vm6050, %v6714, %v6716
  %v6737 = vsel %vm6050, %v6716, %v6718
  %v6738 = vsel %vm6050, %v6720, %v6722
  %v6739 = vsel %vm6050, %v6722, %v6724
  %v6740 = vsel %vm6050, %v6724, %v6726
  %v6741 = vsel %vm6050, %v6728, %v6730
  %v6742 = vsel %vm6050, %v6730, %v6732
  %v6743 = vsel %vm6050, %v6732, %v6734
  %v6760 = vunpack.c.l.b16 %v6659
  %v6761 = vunpack.c.h.b16 %v6659
  %v6762 = vunpack.c.l.b16 %v6660
  %v6763 = vunpack.c.h.b16 %v6660
  %v6764 = vunpack.c.l.b16 %v6661
  %v6765 = vunpack.c.h.b16 %v6661
  %v6766 = vunpack.c.l.b16 %v6662
  %v6767 = vunpack.c.h.b16 %v6662
  %v6768 = vunpack.c.l.b16 %v6663
  %v6769 = vunpack.c.h.b16 %v6663
  %v6770 = vunpack.c.l.b16 %v6664
  %v6771 = vunpack.c.h.b16 %v6664
  %v6772 = vunpack.c.l.b16 %v6665
  %v6773 = vunpack.c.h.b16 %v6665
  %v6774 = vunpack.c.l.b16 %v6666
  %v6775 = vunpack.c.h.b16 %v6666
  %v6776 = vunpack.c.l.b16 %v6667
  %v6777 = vunpack.c.h.b16 %v6667
  %v6778 = vunpack.c.l.b16 %v6668
  %v6779 = vunpack.c.h.b16 %v6668
  %v6780 = vpack.c.b16 %v6764, %v6760
  %v6781 = vpack.c.b16 %v6765, %v6761
  %v6782 = vpack.c.b16 %v6766, %v6762
  %v6783 = vpack.c.b16 %v6767, %v6763
  %v6784 = vpack.c.b16 %v6772, %v6768
  %v6785 = vpack.c.b16 %v6773, %v6769
  %v6786 = vpack.c.b16 %v6774, %v6770
  %v6787 = vpack.c.b16 %v6775, %v6771
  %v6788 = vpack.c.b16 %v6776, %v6776
  %v6789 = vpack.c.b16 %v6777, %v6777
  %v6790 = vpack.c.b16 %v6778, %v6778
  %v6791 = vpack.c.b16 %v6779, %v6779
  %6792 = vrot.lane.b32.xlu0 %v6780, 56
  %v6793 = vpop.permute.xlu0 %6792
  %6794 = vrot.lane.b32.xlu0 %v6781, 56
  %v6795 = vpop.permute.xlu0 %6794
  %6796 = vrot.lane.b32.xlu0 %v6782, 56
  %v6797 = vpop.permute.xlu0 %6796
  %6798 = vrot.lane.b32.xlu0 %v6783, 56
  %v6799 = vpop.permute.xlu0 %6798
  %6800 = vrot.lane.b32.xlu0 %v6784, 56
  %v6801 = vpop.permute.xlu0 %6800
  %6802 = vrot.lane.b32.xlu0 %v6785, 56
  %v6803 = vpop.permute.xlu0 %6802
  %6804 = vrot.lane.b32.xlu0 %v6786, 56
  %v6805 = vpop.permute.xlu0 %6804
  %6806 = vrot.lane.b32.xlu0 %v6787, 56
  %v6807 = vpop.permute.xlu0 %6806
  %6808 = vrot.lane.b32.xlu0 %v6788, 56
  %v6809 = vpop.permute.xlu0 %6808
  %6810 = vrot.lane.b32.xlu0 %v6789, 56
  %v6811 = vpop.permute.xlu0 %6810
  %6812 = vrot.lane.b32.xlu0 %v6790, 56
  %v6813 = vpop.permute.xlu0 %6812
  %6814 = vrot.lane.b32.xlu0 %v6791, 56
  %v6815 = vpop.permute.xlu0 %6814
  %v6816 = vsel %vm6050, %v6793, %v6795
  %v6817 = vsel %vm6050, %v6795, %v6797
  %v6818 = vsel %vm6050, %v6797, %v6799
  %v6819 = vsel %vm6050, %v6801, %v6803
  %v6820 = vsel %vm6050, %v6803, %v6805
  %v6821 = vsel %vm6050, %v6805, %v6807
  %v6822 = vsel %vm6050, %v6809, %v6811
  %v6823 = vsel %vm6050, %v6811, %v6813
  %v6824 = vsel %vm6050, %v6813, %v6815
  %6831 = vrot.lane.b32.xlu0 %v6699, 55
  %v6832 = vpop.permute.xlu0 %6831
  %6833 = vrot.lane.b32.xlu0 %v6700, 55
  %v6834 = vpop.permute.xlu0 %6833
  %6835 = vrot.lane.b32.xlu0 %v6701, 55
  %v6836 = vpop.permute.xlu0 %6835
  %6837 = vrot.lane.b32.xlu0 %v6702, 55
  %v6838 = vpop.permute.xlu0 %6837
  %6839 = vrot.lane.b32.xlu0 %v6703, 55
  %v6840 = vpop.permute.xlu0 %6839
  %6841 = vrot.lane.b32.xlu0 %v6704, 55
  %v6842 = vpop.permute.xlu0 %6841
  %6843 = vrot.lane.b32.xlu0 %v6705, 55
  %v6844 = vpop.permute.xlu0 %6843
  %6845 = vrot.lane.b32.xlu0 %v6706, 55
  %v6846 = vpop.permute.xlu0 %6845
  %6847 = vrot.lane.b32.xlu0 %v6707, 55
  %v6848 = vpop.permute.xlu0 %6847
  %6849 = vrot.lane.b32.xlu0 %v6708, 55
  %v6850 = vpop.permute.xlu0 %6849
  %6851 = vrot.lane.b32.xlu0 %v6709, 55
  %v6852 = vpop.permute.xlu0 %6851
  %6853 = vrot.lane.b32.xlu0 %v6710, 55
  %v6854 = vpop.permute.xlu0 %6853
  %vm6855 = vcmask 449536
  %v6856 = vsel %vm6855, %v6832, %v6834
  %v6857 = vsel %vm6855, %v6834, %v6836
  %v6858 = vsel %vm6855, %v6836, %v6838
  %v6859 = vsel %vm6855, %v6840, %v6842
  %v6860 = vsel %vm6855, %v6842, %v6844
  %v6861 = vsel %vm6855, %v6844, %v6846
  %v6862 = vsel %vm6855, %v6848, %v6850
  %v6863 = vsel %vm6855, %v6850, %v6852
  %v6864 = vsel %vm6855, %v6852, %v6854
  %6865 = vrot.lane.b32.xlu0 %v6780, 55
  %v6866 = vpop.permute.xlu0 %6865
  %6867 = vrot.lane.b32.xlu0 %v6781, 55
  %v6868 = vpop.permute.xlu0 %6867
  %6869 = vrot.lane.b32.xlu0 %v6782, 55
  %v6870 = vpop.permute.xlu0 %6869
  %6871 = vrot.lane.b32.xlu0 %v6783, 55
  %v6872 = vpop.permute.xlu0 %6871
  %6873 = vrot.lane.b32.xlu0 %v6784, 55
  %v6874 = vpop.permute.xlu0 %6873
  %6875 = vrot.lane.b32.xlu0 %v6785, 55
  %v6876 = vpop.permute.xlu0 %6875
  %6877 = vrot.lane.b32.xlu0 %v6786, 55
  %v6878 = vpop.permute.xlu0 %6877
  %6879 = vrot.lane.b32.xlu0 %v6787, 55
  %v6880 = vpop.permute.xlu0 %6879
  %6881 = vrot.lane.b32.xlu0 %v6788, 55
  %v6882 = vpop.permute.xlu0 %6881
  %6883 = vrot.lane.b32.xlu0 %v6789, 55
  %v6884 = vpop.permute.xlu0 %6883
  %6885 = vrot.lane.b32.xlu0 %v6790, 55
  %v6886 = vpop.permute.xlu0 %6885
  %6887 = vrot.lane.b32.xlu0 %v6791, 55
  %v6888 = vpop.permute.xlu0 %6887
  %v6889 = vsel %vm6855, %v6866, %v6868
  %v6890 = vsel %vm6855, %v6868, %v6870
  %v6891 = vsel %vm6855, %v6870, %v6872
  %v6892 = vsel %vm6855, %v6874, %v6876
  %v6893 = vsel %vm6855, %v6876, %v6878
  %v6894 = vsel %vm6855, %v6878, %v6880
  %v6895 = vsel %vm6855, %v6882, %v6884
  %v6896 = vsel %vm6855, %v6884, %v6886
  %v6897 = vsel %vm6855, %v6886, %v6888
  %6898 = vrot.lane.b32.xlu0 %v6699, 54
  %v6899 = vpop.permute.xlu0 %6898
  %6900 = vrot.lane.b32.xlu0 %v6700, 54
  %v6901 = vpop.permute.xlu0 %6900
  %6902 = vrot.lane.b32.xlu0 %v6701, 54
  %v6903 = vpop.permute.xlu0 %6902
  %6904 = vrot.lane.b32.xlu0 %v6702, 54
  %v6905 = vpop.permute.xlu0 %6904
  %6906 = vrot.lane.b32.xlu0 %v6703, 54
  %v6907 = vpop.permute.xlu0 %6906
  %6908 = vrot.lane.b32.xlu0 %v6704, 54
  %v6909 = vpop.permute.xlu0 %6908
  %6910 = vrot.lane.b32.xlu0 %v6705, 54
  %v6911 = vpop.permute.xlu0 %6910
  %6912 = vrot.lane.b32.xlu0 %v6706, 54
  %v6913 = vpop.permute.xlu0 %6912
  %6914 = vrot.lane.b32.xlu0 %v6707, 54
  %v6915 = vpop.permute.xlu0 %6914
  %6916 = vrot.lane.b32.xlu0 %v6708, 54
  %v6917 = vpop.permute.xlu0 %6916
  %6918 = vrot.lane.b32.xlu0 %v6709, 54
  %v6919 = vpop.permute.xlu0 %6918
  %6920 = vrot.lane.b32.xlu0 %v6710, 54
  %v6921 = vpop.permute.xlu0 %6920
  %vm6922 = vcmask 441344
  %v6923 = vsel %vm6922, %v6899, %v6901
  %v6924 = vsel %vm6922, %v6901, %v6903
  %v6925 = vsel %vm6922, %v6903, %v6905
  %v6926 = vsel %vm6922, %v6907, %v6909
  %v6927 = vsel %vm6922, %v6909, %v6911
  %v6928 = vsel %vm6922, %v6911, %v6913
  %v6929 = vsel %vm6922, %v6915, %v6917
  %v6930 = vsel %vm6922, %v6917, %v6919
  %v6931 = vsel %vm6922, %v6919, %v6921
  %6938 = vrot.lane.b32.xlu0 %v6780, 54
  %v6939 = vpop.permute.xlu0 %6938
  %6940 = vrot.lane.b32.xlu0 %v6781, 54
  %v6941 = vpop.permute.xlu0 %6940
  %6942 = vrot.lane.b32.xlu0 %v6782, 54
  %v6943 = vpop.permute.xlu0 %6942
  %6944 = vrot.lane.b32.xlu0 %v6783, 54
  %v6945 = vpop.permute.xlu0 %6944
  %6946 = vrot.lane.b32.xlu0 %v6784, 54
  %v6947 = vpop.permute.xlu0 %6946
  %6948 = vrot.lane.b32.xlu0 %v6785, 54
  %v6949 = vpop.permute.xlu0 %6948
  %6950 = vrot.lane.b32.xlu0 %v6786, 54
  %v6951 = vpop.permute.xlu0 %6950
  %6952 = vrot.lane.b32.xlu0 %v6787, 54
  %v6953 = vpop.permute.xlu0 %6952
  %6954 = vrot.lane.b32.xlu0 %v6788, 54
  %v6955 = vpop.permute.xlu0 %6954
  %6956 = vrot.lane.b32.xlu0 %v6789, 54
  %v6957 = vpop.permute.xlu0 %6956
  %6958 = vrot.lane.b32.xlu0 %v6790, 54
  %v6959 = vpop.permute.xlu0 %6958
  %6960 = vrot.lane.b32.xlu0 %v6791, 54
  %v6961 = vpop.permute.xlu0 %6960
  %v6962 = vsel %vm6922, %v6939, %v6941
  %v6963 = vsel %vm6922, %v6941, %v6943
  %v6964 = vsel %vm6922, %v6943, %v6945
  %v6965 = vsel %vm6922, %v6947, %v6949
  %v6966 = vsel %vm6922, %v6949, %v6951
  %v6967 = vsel %vm6922, %v6951, %v6953
  %v6968 = vsel %vm6922, %v6955, %v6957
  %v6969 = vsel %vm6922, %v6957, %v6959
  %v6970 = vsel %vm6922, %v6959, %v6961
  %6977 = vrot.lane.b32.xlu0 %v6699, 53
  %v6978 = vpop.permute.xlu0 %6977
  %6979 = vrot.lane.b32.xlu0 %v6700, 53
  %v6980 = vpop.permute.xlu0 %6979
  %6981 = vrot.lane.b32.xlu0 %v6701, 53
  %v6982 = vpop.permute.xlu0 %6981
  %6983 = vrot.lane.b32.xlu0 %v6702, 53
  %v6984 = vpop.permute.xlu0 %6983
  %6985 = vrot.lane.b32.xlu0 %v6703, 53
  %v6986 = vpop.permute.xlu0 %6985
  %6987 = vrot.lane.b32.xlu0 %v6704, 53
  %v6988 = vpop.permute.xlu0 %6987
  %6989 = vrot.lane.b32.xlu0 %v6705, 53
  %v6990 = vpop.permute.xlu0 %6989
  %6991 = vrot.lane.b32.xlu0 %v6706, 53
  %v6992 = vpop.permute.xlu0 %6991
  %6993 = vrot.lane.b32.xlu0 %v6707, 53
  %v6994 = vpop.permute.xlu0 %6993
  %6995 = vrot.lane.b32.xlu0 %v6708, 53
  %v6996 = vpop.permute.xlu0 %6995
  %6997 = vrot.lane.b32.xlu0 %v6709, 53
  %v6998 = vpop.permute.xlu0 %6997
  %6999 = vrot.lane.b32.xlu0 %v6710, 53
  %v7000 = vpop.permute.xlu0 %6999
  %vm7001 = vcmask 433152
  %v7002 = vsel %vm7001, %v6978, %v6980
  %v7003 = vsel %vm7001, %v6980, %v6982
  %v7004 = vsel %vm7001, %v6982, %v6984
  %v7005 = vsel %vm7001, %v6986, %v6988
  %v7006 = vsel %vm7001, %v6988, %v6990
  %v7007 = vsel %vm7001, %v6990, %v6992
  %v7008 = vsel %vm7001, %v6994, %v6996
  %v7009 = vsel %vm7001, %v6996, %v6998
  %v7010 = vsel %vm7001, %v6998, %v7000
  %7011 = vrot.lane.b32.xlu0 %v6780, 53
  %v7012 = vpop.permute.xlu0 %7011
  %7013 = vrot.lane.b32.xlu0 %v6781, 53
  %v7014 = vpop.permute.xlu0 %7013
  %7015 = vrot.lane.b32.xlu0 %v6782, 53
  %v7016 = vpop.permute.xlu0 %7015
  %7017 = vrot.lane.b32.xlu0 %v6783, 53
  %v7018 = vpop.permute.xlu0 %7017
  %7019 = vrot.lane.b32.xlu0 %v6784, 53
  %v7020 = vpop.permute.xlu0 %7019
  %7021 = vrot.lane.b32.xlu0 %v6785, 53
  %v7022 = vpop.permute.xlu0 %7021
  %7023 = vrot.lane.b32.xlu0 %v6786, 53
  %v7024 = vpop.permute.xlu0 %7023
  %7025 = vrot.lane.b32.xlu0 %v6787, 53
  %v7026 = vpop.permute.xlu0 %7025
  %7027 = vrot.lane.b32.xlu0 %v6788, 53
  %v7028 = vpop.permute.xlu0 %7027
  %7029 = vrot.lane.b32.xlu0 %v6789, 53
  %v7030 = vpop.permute.xlu0 %7029
  %7031 = vrot.lane.b32.xlu0 %v6790, 53
  %v7032 = vpop.permute.xlu0 %7031
  %7033 = vrot.lane.b32.xlu0 %v6791, 53
  %v7034 = vpop.permute.xlu0 %7033
  %v7035 = vsel %vm7001, %v7012, %v7014
  %v7036 = vsel %vm7001, %v7014, %v7016
  %v7037 = vsel %vm7001, %v7016, %v7018
  %v7038 = vsel %vm7001, %v7020, %v7022
  %v7039 = vsel %vm7001, %v7022, %v7024
  %v7040 = vsel %vm7001, %v7024, %v7026
  %v7041 = vsel %vm7001, %v7028, %v7030
  %v7042 = vsel %vm7001, %v7030, %v7032
  %v7043 = vsel %vm7001, %v7032, %v7034
  %7044 = vrot.lane.b32.xlu0 %v6699, 52
  %v7045 = vpop.permute.xlu0 %7044
  %7046 = vrot.lane.b32.xlu0 %v6700, 52
  %v7047 = vpop.permute.xlu0 %7046
  %7048 = vrot.lane.b32.xlu0 %v6701, 52
  %v7049 = vpop.permute.xlu0 %7048
  %7050 = vrot.lane.b32.xlu0 %v6702, 52
  %v7051 = vpop.permute.xlu0 %7050
  %7052 = vrot.lane.b32.xlu0 %v6703, 52
  %v7053 = vpop.permute.xlu0 %7052
  %7054 = vrot.lane.b32.xlu0 %v6704, 52
  %v7055 = vpop.permute.xlu0 %7054
  %7056 = vrot.lane.b32.xlu0 %v6705, 52
  %v7057 = vpop.permute.xlu0 %7056
  %7058 = vrot.lane.b32.xlu0 %v6706, 52
  %v7059 = vpop.permute.xlu0 %7058
  %7060 = vrot.lane.b32.xlu0 %v6707, 52
  %v7061 = vpop.permute.xlu0 %7060
  %7062 = vrot.lane.b32.xlu0 %v6708, 52
  %v7063 = vpop.permute.xlu0 %7062
  %7064 = vrot.lane.b32.xlu0 %v6709, 52
  %v7065 = vpop.permute.xlu0 %7064
  %7066 = vrot.lane.b32.xlu0 %v6710, 52
  %v7067 = vpop.permute.xlu0 %7066
  %vm7068 = vcmask 424960
  %v7069 = vsel %vm7068, %v7045, %v7047
  %v7070 = vsel %vm7068, %v7047, %v7049
  %v7071 = vsel %vm7068, %v7049, %v7051
  %v7072 = vsel %vm7068, %v7053, %v7055
  %v7073 = vsel %vm7068, %v7055, %v7057
  %v7074 = vsel %vm7068, %v7057, %v7059
  %v7075 = vsel %vm7068, %v7061, %v7063
  %v7076 = vsel %vm7068, %v7063, %v7065
  %v7077 = vsel %vm7068, %v7065, %v7067
  %7084 = vrot.lane.b32.xlu0 %v6780, 52
  %v7085 = vpop.permute.xlu0 %7084
  %7086 = vrot.lane.b32.xlu0 %v6781, 52
  %v7087 = vpop.permute.xlu0 %7086
  %7088 = vrot.lane.b32.xlu0 %v6782, 52
  %v7089 = vpop.permute.xlu0 %7088
  %7090 = vrot.lane.b32.xlu0 %v6783, 52
  %v7091 = vpop.permute.xlu0 %7090
  %7092 = vrot.lane.b32.xlu0 %v6784, 52
  %v7093 = vpop.permute.xlu0 %7092
  %7094 = vrot.lane.b32.xlu0 %v6785, 52
  %v7095 = vpop.permute.xlu0 %7094
  %7096 = vrot.lane.b32.xlu0 %v6786, 52
  %v7097 = vpop.permute.xlu0 %7096
  %7098 = vrot.lane.b32.xlu0 %v6787, 52
  %v7099 = vpop.permute.xlu0 %7098
  %7100 = vrot.lane.b32.xlu0 %v6788, 52
  %v7101 = vpop.permute.xlu0 %7100
  %7102 = vrot.lane.b32.xlu0 %v6789, 52
  %v7103 = vpop.permute.xlu0 %7102
  %7104 = vrot.lane.b32.xlu0 %v6790, 52
  %v7105 = vpop.permute.xlu0 %7104
  %7106 = vrot.lane.b32.xlu0 %v6791, 52
  %v7107 = vpop.permute.xlu0 %7106
  %v7108 = vsel %vm7068, %v7085, %v7087
  %v7109 = vsel %vm7068, %v7087, %v7089
  %v7110 = vsel %vm7068, %v7089, %v7091
  %v7111 = vsel %vm7068, %v7093, %v7095
  %v7112 = vsel %vm7068, %v7095, %v7097
  %v7113 = vsel %vm7068, %v7097, %v7099
  %v7114 = vsel %vm7068, %v7101, %v7103
  %v7115 = vsel %vm7068, %v7103, %v7105
  %v7116 = vsel %vm7068, %v7105, %v7107
  %7123 = vrot.lane.b32.xlu0 %v6699, 51
  %v7124 = vpop.permute.xlu0 %7123
  %7125 = vrot.lane.b32.xlu0 %v6700, 51
  %v7126 = vpop.permute.xlu0 %7125
  %7127 = vrot.lane.b32.xlu0 %v6701, 51
  %v7128 = vpop.permute.xlu0 %7127
  %7129 = vrot.lane.b32.xlu0 %v6702, 51
  %v7130 = vpop.permute.xlu0 %7129
  %7131 = vrot.lane.b32.xlu0 %v6703, 51
  %v7132 = vpop.permute.xlu0 %7131
  %7133 = vrot.lane.b32.xlu0 %v6704, 51
  %v7134 = vpop.permute.xlu0 %7133
  %7135 = vrot.lane.b32.xlu0 %v6705, 51
  %v7136 = vpop.permute.xlu0 %7135
  %7137 = vrot.lane.b32.xlu0 %v6706, 51
  %v7138 = vpop.permute.xlu0 %7137
  %7139 = vrot.lane.b32.xlu0 %v6707, 51
  %v7140 = vpop.permute.xlu0 %7139
  %7141 = vrot.lane.b32.xlu0 %v6708, 51
  %v7142 = vpop.permute.xlu0 %7141
  %7143 = vrot.lane.b32.xlu0 %v6709, 51
  %v7144 = vpop.permute.xlu0 %7143
  %7145 = vrot.lane.b32.xlu0 %v6710, 51
  %v7146 = vpop.permute.xlu0 %7145
  %vm7147 = vcmask 416768
  %v7148 = vsel %vm7147, %v7124, %v7126
  %v7149 = vsel %vm7147, %v7126, %v7128
  %v7150 = vsel %vm7147, %v7128, %v7130
  %v7151 = vsel %vm7147, %v7132, %v7134
  %v7152 = vsel %vm7147, %v7134, %v7136
  %v7153 = vsel %vm7147, %v7136, %v7138
  %v7154 = vsel %vm7147, %v7140, %v7142
  %v7155 = vsel %vm7147, %v7142, %v7144
  %v7156 = vsel %vm7147, %v7144, %v7146
  %7157 = vrot.lane.b32.xlu0 %v6780, 51
  %v7158 = vpop.permute.xlu0 %7157
  %7159 = vrot.lane.b32.xlu0 %v6781, 51
  %v7160 = vpop.permute.xlu0 %7159
  %7161 = vrot.lane.b32.xlu0 %v6782, 51
  %v7162 = vpop.permute.xlu0 %7161
  %7163 = vrot.lane.b32.xlu0 %v6783, 51
  %v7164 = vpop.permute.xlu0 %7163
  %7165 = vrot.lane.b32.xlu0 %v6784, 51
  %v7166 = vpop.permute.xlu0 %7165
  %7167 = vrot.lane.b32.xlu0 %v6785, 51
  %v7168 = vpop.permute.xlu0 %7167
  %7169 = vrot.lane.b32.xlu0 %v6786, 51
  %v7170 = vpop.permute.xlu0 %7169
  %7171 = vrot.lane.b32.xlu0 %v6787, 51
  %v7172 = vpop.permute.xlu0 %7171
  %7173 = vrot.lane.b32.xlu0 %v6788, 51
  %v7174 = vpop.permute.xlu0 %7173
  %7175 = vrot.lane.b32.xlu0 %v6789, 51
  %v7176 = vpop.permute.xlu0 %7175
  %7177 = vrot.lane.b32.xlu0 %v6790, 51
  %v7178 = vpop.permute.xlu0 %7177
  %7179 = vrot.lane.b32.xlu0 %v6791, 51
  %v7180 = vpop.permute.xlu0 %7179
  %v7181 = vsel %vm7147, %v7158, %v7160
  %v7182 = vsel %vm7147, %v7160, %v7162
  %v7183 = vsel %vm7147, %v7162, %v7164
  %v7184 = vsel %vm7147, %v7166, %v7168
  %v7185 = vsel %vm7147, %v7168, %v7170
  %v7186 = vsel %vm7147, %v7170, %v7172
  %v7187 = vsel %vm7147, %v7174, %v7176
  %v7188 = vsel %vm7147, %v7176, %v7178
  %v7189 = vsel %vm7147, %v7178, %v7180
  %7190 = vrot.lane.b32.xlu0 %v6699, 50
  %v7191 = vpop.permute.xlu0 %7190
  %7192 = vrot.lane.b32.xlu0 %v6700, 50
  %v7193 = vpop.permute.xlu0 %7192
  %7194 = vrot.lane.b32.xlu0 %v6701, 50
  %v7195 = vpop.permute.xlu0 %7194
  %7196 = vrot.lane.b32.xlu0 %v6702, 50
  %v7197 = vpop.permute.xlu0 %7196
  %7198 = vrot.lane.b32.xlu0 %v6703, 50
  %v7199 = vpop.permute.xlu0 %7198
  %7200 = vrot.lane.b32.xlu0 %v6704, 50
  %v7201 = vpop.permute.xlu0 %7200
  %7202 = vrot.lane.b32.xlu0 %v6705, 50
  %v7203 = vpop.permute.xlu0 %7202
  %7204 = vrot.lane.b32.xlu0 %v6706, 50
  %v7205 = vpop.permute.xlu0 %7204
  %7206 = vrot.lane.b32.xlu0 %v6707, 50
  %v7207 = vpop.permute.xlu0 %7206
  %7208 = vrot.lane.b32.xlu0 %v6708, 50
  %v7209 = vpop.permute.xlu0 %7208
  %7210 = vrot.lane.b32.xlu0 %v6709, 50
  %v7211 = vpop.permute.xlu0 %7210
  %7212 = vrot.lane.b32.xlu0 %v6710, 50
  %v7213 = vpop.permute.xlu0 %7212
  %vm7214 = vcmask 408576
  %v7215 = vsel %vm7214, %v7191, %v7193
  %v7216 = vsel %vm7214, %v7193, %v7195
  %v7217 = vsel %vm7214, %v7195, %v7197
  %v7218 = vsel %vm7214, %v7199, %v7201
  %v7219 = vsel %vm7214, %v7201, %v7203
  %v7220 = vsel %vm7214, %v7203, %v7205
  %v7221 = vsel %vm7214, %v7207, %v7209
  %v7222 = vsel %vm7214, %v7209, %v7211
  %v7223 = vsel %vm7214, %v7211, %v7213
  %7230 = vrot.lane.b32.xlu0 %v6780, 50
  %v7231 = vpop.permute.xlu0 %7230
  %7232 = vrot.lane.b32.xlu0 %v6781, 50
  %v7233 = vpop.permute.xlu0 %7232
  %7234 = vrot.lane.b32.xlu0 %v6782, 50
  %v7235 = vpop.permute.xlu0 %7234
  %7236 = vrot.lane.b32.xlu0 %v6783, 50
  %v7237 = vpop.permute.xlu0 %7236
  %7238 = vrot.lane.b32.xlu0 %v6784, 50
  %v7239 = vpop.permute.xlu0 %7238
  %7240 = vrot.lane.b32.xlu0 %v6785, 50
  %v7241 = vpop.permute.xlu0 %7240
  %7242 = vrot.lane.b32.xlu0 %v6786, 50
  %v7243 = vpop.permute.xlu0 %7242
  %7244 = vrot.lane.b32.xlu0 %v6787, 50
  %v7245 = vpop.permute.xlu0 %7244
  %7246 = vrot.lane.b32.xlu0 %v6788, 50
  %v7247 = vpop.permute.xlu0 %7246
  %7248 = vrot.lane.b32.xlu0 %v6789, 50
  %v7249 = vpop.permute.xlu0 %7248
  %7250 = vrot.lane.b32.xlu0 %v6790, 50
  %v7251 = vpop.permute.xlu0 %7250
  %7252 = vrot.lane.b32.xlu0 %v6791, 50
  %v7253 = vpop.permute.xlu0 %7252
  %v7254 = vsel %vm7214, %v7231, %v7233
  %v7255 = vsel %vm7214, %v7233, %v7235
  %v7256 = vsel %vm7214, %v7235, %v7237
  %v7257 = vsel %vm7214, %v7239, %v7241
  %v7258 = vsel %vm7214, %v7241, %v7243
  %v7259 = vsel %vm7214, %v7243, %v7245
  %v7260 = vsel %vm7214, %v7247, %v7249
  %v7261 = vsel %vm7214, %v7249, %v7251
  %v7262 = vsel %vm7214, %v7251, %v7253
  %v7269 = vrot.slane %v6856, 4
  %v7270 = vrot.slane %v6857, 4
  %v7271 = vrot.slane %v6858, 4
  %v7272 = vrot.slane %v6889, 4
  %v7273 = vrot.slane %v6890, 4
  %v7274 = vrot.slane %v6891, 4
  %v7275 = vrot.slane %v6859, 4
  %v7276 = vsel %vm1374, %v7269, %v7275
  %v7277 = vrot.slane %v6860, 4
  %v7278 = vsel %vm1374, %v7270, %v7277
  %v7279 = vrot.slane %v6861, 4
  %v7280 = vsel %vm1374, %v7271, %v7279
  %v7281 = vrot.slane %v6892, 4
  %v7282 = vsel %vm1374, %v7272, %v7281
  %v7283 = vrot.slane %v6893, 4
  %v7284 = vsel %vm1374, %v7273, %v7283
  %v7285 = vrot.slane %v6894, 4
  %v7286 = vsel %vm1374, %v7274, %v7285
  %v7287 = vrot.slane %v6862, 4
  %v7288 = vsel %vm1374, %v7275, %v7287
  %v7289 = vrot.slane %v6863, 4
  %v7290 = vsel %vm1374, %v7277, %v7289
  %v7291 = vrot.slane %v6864, 4
  %v7292 = vsel %vm1374, %v7279, %v7291
  %v7293 = vrot.slane %v6895, 4
  %v7294 = vsel %vm1374, %v7281, %v7293
  %v7295 = vrot.slane %v6896, 4
  %v7296 = vsel %vm1374, %v7283, %v7295
  %v7297 = vrot.slane %v6897, 4
  %v7298 = vsel %vm1374, %v7285, %v7297
  %v7311 = vrot.slane %v7002, 4
  %v7312 = vrot.slane %v7003, 4
  %v7313 = vrot.slane %v7004, 4
  %v7314 = vrot.slane %v7035, 4
  %v7315 = vrot.slane %v7036, 4
  %v7316 = vrot.slane %v7037, 4
  %v7317 = vrot.slane %v7005, 4
  %v7318 = vsel %vm1374, %v7311, %v7317
  %v7319 = vrot.slane %v7006, 4
  %v7320 = vsel %vm1374, %v7312, %v7319
  %v7321 = vrot.slane %v7007, 4
  %v7322 = vsel %vm1374, %v7313, %v7321
  %v7323 = vrot.slane %v7038, 4
  %v7324 = vsel %vm1374, %v7314, %v7323
  %v7325 = vrot.slane %v7039, 4
  %v7326 = vsel %vm1374, %v7315, %v7325
  %v7327 = vrot.slane %v7040, 4
  %v7328 = vsel %vm1374, %v7316, %v7327
  %v7329 = vrot.slane %v7008, 4
  %v7330 = vsel %vm1374, %v7317, %v7329
  %v7331 = vrot.slane %v7009, 4
  %v7332 = vsel %vm1374, %v7319, %v7331
  %v7333 = vrot.slane %v7010, 4
  %v7334 = vsel %vm1374, %v7321, %v7333
  %v7335 = vrot.slane %v7041, 4
  %v7336 = vsel %vm1374, %v7323, %v7335
  %v7337 = vrot.slane %v7042, 4
  %v7338 = vsel %vm1374, %v7325, %v7337
  %v7339 = vrot.slane %v7043, 4
  %v7340 = vsel %vm1374, %v7327, %v7339
  %v7353 = vrot.slane %v7148, 4
  %v7354 = vrot.slane %v7149, 4
  %v7355 = vrot.slane %v7150, 4
  %v7356 = vrot.slane %v7181, 4
  %v7357 = vrot.slane %v7182, 4
  %v7358 = vrot.slane %v7183, 4
  %v7359 = vrot.slane %v7151, 4
  %v7360 = vsel %vm1374, %v7353, %v7359
  %v7361 = vrot.slane %v7152, 4
  %v7362 = vsel %vm1374, %v7354, %v7361
  %v7363 = vrot.slane %v7153, 4
  %v7364 = vsel %vm1374, %v7355, %v7363
  %v7365 = vrot.slane %v7184, 4
  %v7366 = vsel %vm1374, %v7356, %v7365
  %v7367 = vrot.slane %v7185, 4
  %v7368 = vsel %vm1374, %v7357, %v7367
  %v7369 = vrot.slane %v7186, 4
  %v7370 = vsel %vm1374, %v7358, %v7369
  %v7371 = vrot.slane %v7154, 4
  %v7372 = vsel %vm1374, %v7359, %v7371
  %v7373 = vrot.slane %v7155, 4
  %v7374 = vsel %vm1374, %v7361, %v7373
  %v7375 = vrot.slane %v7156, 4
  %v7376 = vsel %vm1374, %v7363, %v7375
  %v7377 = vrot.slane %v7187, 4
  %v7378 = vsel %vm1374, %v7365, %v7377
  %v7379 = vrot.slane %v7188, 4
  %v7380 = vsel %vm1374, %v7367, %v7379
  %v7381 = vrot.slane %v7189, 4
  %v7382 = vsel %vm1374, %v7369, %v7381
  %v7397 = vsel %vm301, %v6741, %v7269
  %v7401 = vsel %vm301, %v6742, %v7270
  %v7405 = vsel %vm301, %v6743, %v7271
  %v7409 = vsel %vm301, %v6822, %v7272
  %v7413 = vsel %vm301, %v6823, %v7273
  %v7417 = vsel %vm301, %v6824, %v7274
  %v7421 = vsel %vm301, %v6929, %v7311
  %v7425 = vsel %vm301, %v6930, %v7312
  %v7429 = vsel %vm301, %v6931, %v7313
  %v7433 = vsel %vm301, %v6968, %v7314
  %v7437 = vsel %vm301, %v6969, %v7315
  %v7441 = vsel %vm301, %v6970, %v7316
  %v7445 = vsel %vm301, %v7075, %v7353
  %v7449 = vsel %vm301, %v7076, %v7354
  %v7453 = vsel %vm301, %v7077, %v7355
  %v7457 = vsel %vm301, %v7114, %v7356
  %v7461 = vsel %vm301, %v7115, %v7357
  %v7465 = vsel %vm301, %v7116, %v7358
  %v7467 = vld [vmem:[%s3 + $0x20] sm:$0xff]
  %v7468 = vld [vmem:[%s3 + $0x28] sm:$0xf]
  %v7469 = vld [vmem:[%s3 + $0x60] sm:$0xff]
  %v7470 = vld [vmem:[%s3 + $0x68] sm:$0xf]
  %v7471 = vld [vmem:[%s3 + $0xa0] sm:$0xff]
  %v7472 = vld [vmem:[%s3 + $0xa8] sm:$0xf]
  %v7473 = vld [vmem:[%s3 + $0xe0] sm:$0xff]
  %v7474 = vld [vmem:[%s3 + $0xe8] sm:$0xf]
  %v7475 = vld [vmem:[%s3 + $0x120] sm:$0xff]
  %v7476 = vld [vmem:[%s3 + $0x128] sm:$0xf]
  %v7477 = vld [vmem:[%s3 + $0x160] sm:$0xff]
  %v7478 = vld [vmem:[%s3 + $0x168] sm:$0xf]
  %v7479 = vld [vmem:[%s3 + $0x1a0] sm:$0x11]
  %v7480 = vld [vmem:[%s3 + $0x1a8] sm:$0x1]
  %v7495 = vunpack.c.l.b16 %v7467
  %v7496 = vunpack.c.h.b16 %v7467
  %v7497 = vunpack.c.l.b16 %v7468
  %v7498 = vunpack.c.l.b16 %v7469
  %v7499 = vunpack.c.h.b16 %v7469
  %v7500 = vunpack.c.l.b16 %v7470
  %v7501 = vunpack.c.l.b16 %v7471
  %v7502 = vunpack.c.h.b16 %v7471
  %v7503 = vunpack.c.l.b16 %v7472
  %v7504 = vunpack.c.l.b16 %v7473
  %v7505 = vunpack.c.h.b16 %v7473
  %v7506 = vunpack.c.l.b16 %v7474
  %v7507 = vunpack.c.l.b16 %v7475
  %v7508 = vunpack.c.h.b16 %v7475
  %v7509 = vunpack.c.l.b16 %v7476
  %v7510 = vunpack.c.l.b16 %v7477
  %v7511 = vunpack.c.h.b16 %v7477
  %v7512 = vunpack.c.l.b16 %v7478
  %v7513 = vunpack.c.l.b16 %v7479
  %v7514 = vunpack.c.h.b16 %v7479
  %v7515 = vunpack.c.l.b16 %v7480
  %v7516 = vpack.c.b16 %v7498, %v7495
  %v7517 = vpack.c.b16 %v7499, %v7496
  %v7518 = vpack.c.b16 %v7500, %v7497
  %v7519 = vpack.c.b16 %v7504, %v7501
  %v7520 = vpack.c.b16 %v7505, %v7502
  %v7521 = vpack.c.b16 %v7506, %v7503
  %v7522 = vpack.c.b16 %v7510, %v7507
  %v7523 = vpack.c.b16 %v7511, %v7508
  %v7524 = vpack.c.b16 %v7512, %v7509
  %v7525 = vpack.c.b16 %v7513, %v7513
  %v7526 = vpack.c.b16 %v7514, %v7514
  %v7527 = vpack.c.b16 %v7515, %v7515
  %7528 = vrot.lane.b32.xlu0 %v7516, 32
  %v7529 = vpop.permute.xlu0 %7528
  %7530 = vrot.lane.b32.xlu0 %v7517, 32
  %v7531 = vpop.permute.xlu0 %7530
  %7532 = vrot.lane.b32.xlu0 %v7518, 32
  %v7533 = vpop.permute.xlu0 %7532
  %7534 = vrot.lane.b32.xlu0 %v7519, 32
  %v7535 = vpop.permute.xlu0 %7534
  %7536 = vrot.lane.b32.xlu0 %v7520, 32
  %v7537 = vpop.permute.xlu0 %7536
  %7538 = vrot.lane.b32.xlu0 %v7521, 32
  %v7539 = vpop.permute.xlu0 %7538
  %7540 = vrot.lane.b32.xlu0 %v7522, 32
  %v7541 = vpop.permute.xlu0 %7540
  %7542 = vrot.lane.b32.xlu0 %v7523, 32
  %v7543 = vpop.permute.xlu0 %7542
  %7544 = vrot.lane.b32.xlu0 %v7524, 32
  %v7545 = vpop.permute.xlu0 %7544
  %7546 = vrot.lane.b32.xlu0 %v7525, 32
  %v7547 = vpop.permute.xlu0 %7546
  %7548 = vrot.lane.b32.xlu0 %v7526, 32
  %v7549 = vpop.permute.xlu0 %7548
  %7550 = vrot.lane.b32.xlu0 %v7527, 32
  %v7551 = vpop.permute.xlu0 %7550
  %vm7552 = vcmask 261120
  %v7553 = vsel %vm7552, %v7529, %v7531
  %v7554 = vsel %vm7552, %v7531, %v7533
  %v7555 = vsel %vm7552, %v7535, %v7537
  %v7556 = vsel %vm7552, %v7537, %v7539
  %v7557 = vsel %vm7552, %v7541, %v7543
  %v7558 = vsel %vm7552, %v7543, %v7545
  %v7559 = vsel %vm7552, %v7547, %v7549
  %v7560 = vsel %vm7552, %v7549, %v7551
  %v7570 = vsel %vm1642, %v7533, 0
  %v7573 = vsel %vm1642, %v7539, 0
  %v7576 = vsel %vm1642, %v7545, 0
  %v7579 = vsel %vm1642, %v7551, 0
  %v7582 = vsel %vm301, %v7221, 0
  %v7585 = vsel %vm301, %v7222, 0
  %v7588 = vsel %vm301, %v7223, 0
  %v7591 = vsel %vm301, %v7260, 0
  %v7594 = vsel %vm301, %v7261, 0
  %v7597 = vsel %vm301, %v7262, 0
  %7599 = vmatprep.subr.bf16.mxu0 %v6736
  %7600 = vmatpush1.bf16.msra.mxu0 %v6735
  %7601 = vmatprep.subr.bf16.mxu0 %v6739
  %7602 = vmatpush1.bf16.msra.mxu0 %v6738
  %7603 = vmatprep.subr.bf16.mxu0 %v7401
  %7604 = vmatpush1.bf16.msra.mxu0 %v7397
  %7605 = vmatprep.subr.bf16.mxu0 %v7278
  %7606 = vmatpush1.bf16.msra.mxu0 %v7276
  %7607 = vmatprep.subr.bf16.mxu0 %v7290
  %7608 = vmatpush1.bf16.msra.mxu0 %v7288
  %7609 = vmatprep.subr.bf16.mxu0 %v6924
  %7610 = vmatpush1.bf16.msra.mxu0 %v6923
  %7611 = vmatprep.subr.bf16.mxu0 %v6927
  %7612 = vmatpush1.bf16.msra.mxu0 %v6926
  %7613 = vmatprep.subr.bf16.mxu0 %v7425
  %7614 = vmatpush1.bf16.msra.mxu0 %v7421
  %7615 = vmatprep.subr.bf16.mxu0 %v7320
  %7616 = vmatpush1.bf16.msra.mxu0 %v7318
  %7617 = vmatprep.subr.bf16.mxu0 %v7332
  %7618 = vmatpush1.bf16.msra.mxu0 %v7330
  %7619 = vmatprep.subr.bf16.mxu0 %v7070
  %7620 = vmatpush1.bf16.msra.mxu0 %v7069
  %7621 = vmatprep.subr.bf16.mxu0 %v7073
  %7622 = vmatpush1.bf16.msra.mxu0 %v7072
  %7623 = vmatprep.subr.bf16.mxu0 %v7449
  %7624 = vmatpush1.bf16.msra.mxu0 %v7445
  %7625 = vmatprep.subr.bf16.mxu0 %v7362
  %7626 = vmatpush1.bf16.msra.mxu0 %v7360
  %7627 = vmatprep.subr.bf16.mxu0 %v7374
  %7628 = vmatpush1.bf16.msra.mxu0 %v7372
  %7629 = vmatprep.subr.bf16.mxu0 %v7216
  %7630 = vmatpush1.bf16.msra.mxu0 %v7215
  %7631 = vmatprep.mubr.bf16.mxu0 %v7554
  %7632 = vmatmul.mubr.bf16.gmra.mrb[0].mxu0 %v7553
  %v7633 = vpop.f32.mrb[0].mxu0
  %v7634 = vadd.f32 0.0, %v7633
  %v7635 = vpop.f32.mrb[0].mxu0
  %v7636 = vadd.f32 0.0, %v7635
  %v7637 = vpop.f32.mrb[0].mxu0
  %v7638 = vadd.f32 0.0, %v7637
  %v7639 = vpop.f32.mrb[0].mxu0
  %v7640 = vadd.f32 0.0, %v7639
  %7641 = vmatprep.mubr.bf16.mxu0 %v7556
  %7642 = vmatmul.mubr.bf16.gmra.mrb[0].mxu0 %v7555
  %v7643 = vpop.f32.mrb[0].mxu0
  %v7644 = vadd.f32 0.0, %v7643
  %v7645 = vpop.f32.mrb[0].mxu0
  %v7646 = vadd.f32 0.0, %v7645
  %v7647 = vpop.f32.mrb[0].mxu0
  %v7648 = vadd.f32 0.0, %v7647
  %v7649 = vpop.f32.mrb[0].mxu0
  %v7650 = vadd.f32 0.0, %v7649
  %7651 = vmatprep.mubr.bf16.mxu0 %v7558
  %7652 = vmatmul.mubr.bf16.gmra.mrb[0].mxu0 %v7557
  %v7653 = vpop.f32.mrb[0].mxu0
  %v7654 = vadd.f32 0.0, %v7653
  %v7655 = vpop.f32.mrb[0].mxu0
  %v7656 = vadd.f32 0.0, %v7655
  %v7657 = vpop.f32.mrb[0].mxu0
  %v7658 = vadd.f32 0.0, %v7657
  %v7659 = vpop.f32.mrb[0].mxu0
  %v7660 = vadd.f32 0.0, %v7659
  %7661 = vmatprep.mubr.bf16.mxu0 %v7560
  %7662 = vmatmul.mubr.bf16.gmra.mrb[0].mxu0 %v7559
  %v7663 = vpop.f32.mrb[0].mxu0
  %v7664 = vadd.f32 0.0, %v7663
  %v7665 = vpop.f32.mrb[0].mxu0
  %v7666 = vadd.f32 0.0, %v7665
  %v7667 = vpop.f32.mrb[0].mxu0
  %v7668 = vpop.f32.mrb[0].mxu0
  %7669 = vdwg.mxu0
  %7670 = vmatprep.subr.bf16.mxu0 %v7219
  %7671 = vmatpush1.bf16.msra.mxu0 %v7218
  %7672 = vmatprep.subr.bf16.mxu0 %v7585
  %7673 = vmatpush1.bf16.msra.mxu0 %v7582
  %7674 = vmatprep.subr.bf16.mxu0 0
  %7675 = vmatpush1.bf16.msra.mxu0 0
  %7676 = vmatprep.subr.bf16.mxu0 0
  %7677 = vmatpush1.bf16.msra.mxu0 0
  %7678 = vmatprep.subr.bf16.mxu0 0
  %7679 = vmatpush1.bf16.msra.mxu0 0
  %7680 = vmatprep.subr.bf16.mxu0 0
  %7681 = vmatpush1.bf16.msra.mxu0 0
  %7682 = vmatprep.subr.bf16.mxu0 0
  %7683 = vmatpush1.bf16.msra.mxu0 0
  %7684 = vmatprep.subr.bf16.mxu0 0
  %7685 = vmatpush1.bf16.msra.mxu0 0
  %7686 = vmatprep.subr.bf16.mxu0 0
  %7687 = vmatpush1.bf16.msra.mxu0 0
  %7688 = vmatprep.subr.bf16.mxu0 0
  %7689 = vmatpush1.bf16.msra.mxu0 0
  %7690 = vmatprep.subr.bf16.mxu0 0
  %7691 = vmatpush1.bf16.msra.mxu0 0
  %7692 = vmatprep.subr.bf16.mxu0 0
  %7693 = vmatpush1.bf16.msra.mxu0 0
  %7694 = vmatprep.subr.bf16.mxu0 0
  %7695 = vmatpush1.bf16.msra.mxu0 0
  %7696 = vmatprep.subr.bf16.mxu0 0
  %7697 = vmatpush1.bf16.msra.mxu0 0
  %7698 = vmatprep.subr.bf16.mxu0 0
  %7699 = vmatpush1.bf16.msra.mxu0 0
  %7700 = vmatprep.subr.bf16.mxu0 0
  %7701 = vmatpush1.bf16.msra.mxu0 0
  %7702 = vmatprep.mubr.bf16.mxu0 0
  %7703 = vmatmul.mubr.bf16.gmra.mrb[0].mxu0 %v7570
  %v7704 = vpop.f32.mrb[0].mxu0
  %v7705 = vadd.f32 %v7634, %v7704
  %v7706 = vpop.f32.mrb[0].mxu0
  %v7707 = vadd.f32 %v7636, %v7706
  %v7708 = vpop.f32.mrb[0].mxu0
  %v7709 = vadd.f32 %v7638, %v7708
  %v7710 = vpop.f32.mrb[0].mxu0
  %v7711 = vadd.f32 %v7640, %v7710
  %7712 = vmatprep.mubr.bf16.mxu0 0
  %7713 = vmatmul.mubr.bf16.gmra.mrb[0].mxu0 %v7573
  %v7714 = vpop.f32.mrb[0].mxu0
  %v7715 = vadd.f32 %v7644, %v7714
  %v7716 = vpop.f32.mrb[0].mxu0
  %v7717 = vadd.f32 %v7646, %v7716
  %v7718 = vpop.f32.mrb[0].mxu0
  %v7719 = vadd.f32 %v7648, %v7718
  %v7720 = vpop.f32.mrb[0].mxu0
  %v7721 = vadd.f32 %v7650, %v7720
  %7722 = vmatprep.mubr.bf16.mxu0 0
  %7723 = vmatmul.mubr.bf16.gmra.mrb[0].mxu0 %v7576
  %v7724 = vpop.f32.mrb[0].mxu0
  %v7725 = vadd.f32 %v7654, %v7724
  %v7726 = vpop.f32.mrb[0].mxu0
  %v7727 = vadd.f32 %v7656, %v7726
  %v7728 = vpop.f32.mrb[0].mxu0
  %v7729 = vadd.f32 %v7658, %v7728
  %v7730 = vpop.f32.mrb[0].mxu0
  %v7731 = vadd.f32 %v7660, %v7730
  %7732 = vmatprep.mubr.bf16.mxu0 0
  %7733 = vmatmul.mubr.bf16.gmra.mrb[0].mxu0 %v7579
  %v7734 = vpop.f32.mrb[0].mxu0
  %v7735 = vadd.f32 %v7664, %v7734
  %v7736 = vpop.f32.mrb[0].mxu0
  %v7737 = vadd.f32 %v7666, %v7736
  %v7738 = vpop.f32.mrb[0].mxu0
  %v7739 = vpop.f32.mrb[0].mxu0
  %7740 = vdwg.mxu0
  %7741 = vmatprep.subr.bf16.mxu0 %v6816
  %7742 = vmatpush1.bf16.msra.mxu0 %v6737
  %7743 = vmatprep.subr.bf16.mxu0 %v6819
  %7744 = vmatpush1.bf16.msra.mxu0 %v6740
  %7745 = vmatprep.subr.bf16.mxu0 %v7409
  %7746 = vmatpush1.bf16.msra.mxu0 %v7405
  %7747 = vmatprep.subr.bf16.mxu0 %v7282
  %7748 = vmatpush1.bf16.msra.mxu0 %v7280
  %7749 = vmatprep.subr.bf16.mxu0 %v7294
  %7750 = vmatpush1.bf16.msra.mxu0 %v7292
  %7751 = vmatprep.subr.bf16.mxu0 %v6962
  %7752 = vmatpush1.bf16.msra.mxu0 %v6925
  %7753 = vmatprep.subr.bf16.mxu0 %v6965
  %7754 = vmatpush1.bf16.msra.mxu0 %v6928
  %7755 = vmatprep.subr.bf16.mxu0 %v7433
  %7756 = vmatpush1.bf16.msra.mxu0 %v7429
  %7757 = vmatprep.subr.bf16.mxu0 %v7324
  %7758 = vmatpush1.bf16.msra.mxu0 %v7322
  %7759 = vmatprep.subr.bf16.mxu0 %v7336
  %7760 = vmatpush1.bf16.msra.mxu0 %v7334
  %7761 = vmatprep.subr.bf16.mxu0 %v7108
  %7762 = vmatpush1.bf16.msra.mxu0 %v7071
  %7763 = vmatprep.subr.bf16.mxu0 %v7111
  %7764 = vmatpush1.bf16.msra.mxu0 %v7074
  %7765 = vmatprep.subr.bf16.mxu0 %v7457
  %7766 = vmatpush1.bf16.msra.mxu0 %v7453
  %7767 = vmatprep.subr.bf16.mxu0 %v7366
  %7768 = vmatpush1.bf16.msra.mxu0 %v7364
  %7769 = vmatprep.subr.bf16.mxu0 %v7378
  %7770 = vmatpush1.bf16.msra.mxu0 %v7376
  %7771 = vmatprep.subr.bf16.mxu0 %v7254
  %7772 = vmatpush1.bf16.msra.mxu0 %v7217
  %7773 = vmatprep.mubr.bf16.mxu0 %v7554
  %7774 = vmatmul.mubr.bf16.gmra.mrb[0].mxu0 %v7553
  %v7775 = vpop.f32.mrb[0].mxu0
  %v7776 = vadd.f32 0.0, %v7775
  %v7777 = vpop.f32.mrb[0].mxu0
  %v7778 = vadd.f32 0.0, %v7777
  %v7779 = vpop.f32.mrb[0].mxu0
  %v7780 = vadd.f32 0.0, %v7779
  %v7781 = vpop.f32.mrb[0].mxu0
  %v7782 = vadd.f32 0.0, %v7781
  %7783 = vmatprep.mubr.bf16.mxu0 %v7556
  %7784 = vmatmul.mubr.bf16.gmra.mrb[0].mxu0 %v7555
  %v7785 = vpop.f32.mrb[0].mxu0
  %v7786 = vadd.f32 0.0, %v7785
  %v7787 = vpop.f32.mrb[0].mxu0
  %v7788 = vadd.f32 0.0, %v7787
  %v7789 = vpop.f32.mrb[0].mxu0
  %v7790 = vadd.f32 0.0, %v7789
  %v7791 = vpop.f32.mrb[0].mxu0
  %v7792 = vadd.f32 0.0, %v7791
  %7793 = vmatprep.mubr.bf16.mxu0 %v7558
  %7794 = vmatmul.mubr.bf16.gmra.mrb[0].mxu0 %v7557
  %v7795 = vpop.f32.mrb[0].mxu0
  %v7796 = vadd.f32 0.0, %v7795
  %v7797 = vpop.f32.mrb[0].mxu0
  %v7798 = vadd.f32 0.0, %v7797
  %v7799 = vpop.f32.mrb[0].mxu0
  %v7800 = vadd.f32 0.0, %v7799
  %v7801 = vpop.f32.mrb[0].mxu0
  %v7802 = vadd.f32 0.0, %v7801
  %7803 = vmatprep.mubr.bf16.mxu0 %v7560
  %7804 = vmatmul.mubr.bf16.gmra.mrb[0].mxu0 %v7559
  %v7805 = vpop.f32.mrb[0].mxu0
  %v7806 = vadd.f32 0.0, %v7805
  %v7807 = vpop.f32.mrb[0].mxu0
  %v7808 = vadd.f32 0.0, %v7807
  %v7809 = vpop.f32.mrb[0].mxu0
  %v7810 = vpop.f32.mrb[0].mxu0
  %7811 = vdwg.mxu0
  %7812 = vmatprep.subr.bf16.mxu0 %v7257
  %7813 = vmatpush1.bf16.msra.mxu0 %v7220
  %7814 = vmatprep.subr.bf16.mxu0 %v7591
  %7815 = vmatpush1.bf16.msra.mxu0 %v7588
  %7816 = vmatprep.subr.bf16.mxu0 0
  %7817 = vmatpush1.bf16.msra.mxu0 0
  %7818 = vmatprep.subr.bf16.mxu0 0
  %7819 = vmatpush1.bf16.msra.mxu0 0
  %7820 = vmatprep.subr.bf16.mxu0 0
  %7821 = vmatpush1.bf16.msra.mxu0 0
  %7822 = vmatprep.subr.bf16.mxu0 0
  %7823 = vmatpush1.bf16.msra.mxu0 0
  %7824 = vmatprep.subr.bf16.mxu0 0
  %7825 = vmatpush1.bf16.msra.mxu0 0
  %7826 = vmatprep.subr.bf16.mxu0 0
  %7827 = vmatpush1.bf16.msra.mxu0 0
  %7828 = vmatprep.subr.bf16.mxu0 0
  %7829 = vmatpush1.bf16.msra.mxu0 0
  %7830 = vmatprep.subr.bf16.mxu0 0
  %7831 = vmatpush1.bf16.msra.mxu0 0
  %7832 = vmatprep.subr.bf16.mxu0 0
  %7833 = vmatpush1.bf16.msra.mxu0 0
  %7834 = vmatprep.subr.bf16.mxu0 0
  %7835 = vmatpush1.bf16.msra.mxu0 0
  %7836 = vmatprep.subr.bf16.mxu0 0
  %7837 = vmatpush1.bf16.msra.mxu0 0
  %7838 = vmatprep.subr.bf16.mxu0 0
  %7839 = vmatpush1.bf16.msra.mxu0 0
  %7840 = vmatprep.subr.bf16.mxu0 0
  %7841 = vmatpush1.bf16.msra.mxu0 0
  %7842 = vmatprep.subr.bf16.mxu0 0
  %7843 = vmatpush1.bf16.msra.mxu0 0
  %7844 = vmatprep.mubr.bf16.mxu0 0
  %7845 = vmatmul.mubr.bf16.gmra.mrb[0].mxu0 %v7570
  %v7846 = vpop.f32.mrb[0].mxu0
  %v7847 = vadd.f32 %v7776, %v7846
  %v7848 = vpop.f32.mrb[0].mxu0
  %v7849 = vadd.f32 %v7778, %v7848
  %v7850 = vpop.f32.mrb[0].mxu0
  %v7851 = vadd.f32 %v7780, %v7850
  %v7852 = vpop.f32.mrb[0].mxu0
  %v7853 = vadd.f32 %v7782, %v7852
  %7854 = vmatprep.mubr.bf16.mxu0 0
  %7855 = vmatmul.mubr.bf16.gmra.mrb[0].mxu0 %v7573
  %v7856 = vpop.f32.mrb[0].mxu0
  %v7857 = vadd.f32 %v7786, %v7856
  %v7858 = vpop.f32.mrb[0].mxu0
  %v7859 = vadd.f32 %v7788, %v7858
  %v7860 = vpop.f32.mrb[0].mxu0
  %v7861 = vadd.f32 %v7790, %v7860
  %v7862 = vpop.f32.mrb[0].mxu0
  %v7863 = vadd.f32 %v7792, %v7862
  %7864 = vmatprep.mubr.bf16.mxu0 0
  %7865 = vmatmul.mubr.bf16.gmra.mrb[0].mxu0 %v7576
  %v7866 = vpop.f32.mrb[0].mxu0
  %v7867 = vadd.f32 %v7796, %v7866
  %v7868 = vpop.f32.mrb[0].mxu0
  %v7869 = vadd.f32 %v7798, %v7868
  %v7870 = vpop.f32.mrb[0].mxu0
  %v7871 = vadd.f32 %v7800, %v7870
  %v7872 = vpop.f32.mrb[0].mxu0
  %v7873 = vadd.f32 %v7802, %v7872
  %7874 = vmatprep.mubr.bf16.mxu0 0
  %7875 = vmatmul.mubr.bf16.gmra.mrb[0].mxu0 %v7579
  %v7876 = vpop.f32.mrb[0].mxu0
  %v7877 = vadd.f32 %v7806, %v7876
  %v7878 = vpop.f32.mrb[0].mxu0
  %v7879 = vadd.f32 %v7808, %v7878
  %v7880 = vpop.f32.mrb[0].mxu0
  %v7881 = vpop.f32.mrb[0].mxu0
  %7882 = vdwg.mxu0
  %7883 = vmatprep.subr.bf16.mxu0 %v6818
  %7884 = vmatpush1.bf16.msra.mxu0 %v6817
  %7885 = vmatprep.subr.bf16.mxu0 %v6821
  %7886 = vmatpush1.bf16.msra.mxu0 %v6820
  %7887 = vmatprep.subr.bf16.mxu0 %v7417
  %7888 = vmatpush1.bf16.msra.mxu0 %v7413
  %7889 = vmatprep.subr.bf16.mxu0 %v7286
  %7890 = vmatpush1.bf16.msra.mxu0 %v7284
  %7891 = vmatprep.subr.bf16.mxu0 %v7298
  %7892 = vmatpush1.bf16.msra.mxu0 %v7296
  %7893 = vmatprep.subr.bf16.mxu0 %v6964
  %7894 = vmatpush1.bf16.msra.mxu0 %v6963
  %7895 = vmatprep.subr.bf16.mxu0 %v6967
  %7896 = vmatpush1.bf16.msra.mxu0 %v6966
  %7897 = vmatprep.subr.bf16.mxu0 %v7441
  %7898 = vmatpush1.bf16.msra.mxu0 %v7437
  %7899 = vmatprep.subr.bf16.mxu0 %v7328
  %7900 = vmatpush1.bf16.msra.mxu0 %v7326
  %7901 = vmatprep.subr.bf16.mxu0 %v7340
  %7902 = vmatpush1.bf16.msra.mxu0 %v7338
  %7903 = vmatprep.subr.bf16.mxu0 %v7110
  %7904 = vmatpush1.bf16.msra.mxu0 %v7109
  %7905 = vmatprep.subr.bf16.mxu0 %v7113
  %7906 = vmatpush1.bf16.msra.mxu0 %v7112
  %7907 = vmatprep.subr.bf16.mxu0 %v7465
  %7908 = vmatpush1.bf16.msra.mxu0 %v7461
  %7909 = vmatprep.subr.bf16.mxu0 %v7370
  %7910 = vmatpush1.bf16.msra.mxu0 %v7368
  %7911 = vmatprep.subr.bf16.mxu0 %v7382
  %7912 = vmatpush1.bf16.msra.mxu0 %v7380
  %7913 = vmatprep.subr.bf16.mxu0 %v7256
  %7914 = vmatpush1.bf16.msra.mxu0 %v7255
  %7915 = vmatprep.mubr.bf16.mxu0 %v7554
  %7916 = vmatmul.mubr.bf16.gmra.mrb[0].mxu0 %v7553
  %v7917 = vpop.f32.mrb[0].mxu0
  %v7918 = vadd.f32 0.0, %v7917
  %v7919 = vpop.f32.mrb[0].mxu0
  %v7920 = vadd.f32 0.0, %v7919
  %v7921 = vpop.f32.mrb[0].mxu0
  %v7922 = vadd.f32 0.0, %v7921
  %v7923 = vpop.f32.mrb[0].mxu0
  %v7924 = vadd.f32 0.0, %v7923
  %7925 = vmatprep.mubr.bf16.mxu0 %v7556
  %7926 = vmatmul.mubr.bf16.gmra.mrb[0].mxu0 %v7555
  %v7927 = vpop.f32.mrb[0].mxu0
  %v7928 = vadd.f32 0.0, %v7927
  %v7929 = vpop.f32.mrb[0].mxu0
  %v7930 = vadd.f32 0.0, %v7929
  %v7931 = vpop.f32.mrb[0].mxu0
  %v7932 = vadd.f32 0.0, %v7931
  %v7933 = vpop.f32.mrb[0].mxu0
  %v7934 = vadd.f32 0.0, %v7933
  %7935 = vmatprep.mubr.bf16.mxu0 %v7558
  %7936 = vmatmul.mubr.bf16.gmra.mrb[0].mxu0 %v7557
  %v7937 = vpop.f32.mrb[0].mxu0
  %v7938 = vadd.f32 0.0, %v7937
  %v7939 = vpop.f32.mrb[0].mxu0
  %v7940 = vadd.f32 0.0, %v7939
  %v7941 = vpop.f32.mrb[0].mxu0
  %v7942 = vadd.f32 0.0, %v7941
  %v7943 = vpop.f32.mrb[0].mxu0
  %v7944 = vadd.f32 0.0, %v7943
  %7945 = vmatprep.mubr.bf16.mxu0 %v7560
  %7946 = vmatmul.mubr.bf16.gmra.mrb[0].mxu0 %v7559
  %v7947 = vpop.f32.mrb[0].mxu0
  %v7948 = vadd.f32 0.0, %v7947
  %v7949 = vpop.f32.mrb[0].mxu0
  %v7950 = vadd.f32 0.0, %v7949
  %v7951 = vpop.f32.mrb[0].mxu0
  %v7952 = vpop.f32.mrb[0].mxu0
  %7953 = vdwg.mxu0
  %7954 = vmatprep.subr.bf16.mxu0 %v7259
  %7955 = vmatpush1.bf16.msra.mxu0 %v7258
  %7956 = vmatprep.subr.bf16.mxu0 %v7597
  %7957 = vmatpush1.bf16.msra.mxu0 %v7594
  %7958 = vmatprep.subr.bf16.mxu0 0
  %7959 = vmatpush1.bf16.msra.mxu0 0
  %7960 = vmatprep.subr.bf16.mxu0 0
  %7961 = vmatpush1.bf16.msra.mxu0 0
  %7962 = vmatprep.subr.bf16.mxu0 0
  %7963 = vmatpush1.bf16.msra.mxu0 0
  %7964 = vmatprep.subr.bf16.mxu0 0
  %7965 = vmatpush1.bf16.msra.mxu0 0
  %7966 = vmatprep.subr.bf16.mxu0 0
  %7967 = vmatpush1.bf16.msra.mxu0 0
  %7968 = vmatprep.subr.bf16.mxu0 0
  %7969 = vmatpush1.bf16.msra.mxu0 0
  %7970 = vmatprep.subr.bf16.mxu0 0
  %7971 = vmatpush1.bf16.msra.mxu0 0
  %7972 = vmatprep.subr.bf16.mxu0 0
  %7973 = vmatpush1.bf16.msra.mxu0 0
  %7974 = vmatprep.subr.bf16.mxu0 0
  %7975 = vmatpush1.bf16.msra.mxu0 0
  %7976 = vmatprep.subr.bf16.mxu0 0
  %7977 = vmatpush1.bf16.msra.mxu0 0
  %7978 = vmatprep.subr.bf16.mxu0 0
  %7979 = vmatpush1.bf16.msra.mxu0 0
  %7980 = vmatprep.subr.bf16.mxu0 0
  %7981 = vmatpush1.bf16.msra.mxu0 0
  %7982 = vmatprep.subr.bf16.mxu0 0
  %7983 = vmatpush1.bf16.msra.mxu0 0
  %7984 = vmatprep.subr.bf16.mxu0 0
  %7985 = vmatpush1.bf16.msra.mxu0 0
  %7986 = vmatprep.mubr.bf16.mxu0 0
  %7987 = vmatmul.mubr.bf16.gmra.mrb[0].mxu0 %v7570
  %v7988 = vpop.f32.mrb[0].mxu0
  %v7989 = vadd.f32 %v7918, %v7988
  %v7990 = vpop.f32.mrb[0].mxu0
  %v7991 = vadd.f32 %v7920, %v7990
  %v7992 = vpop.f32.mrb[0].mxu0
  %v7993 = vadd.f32 %v7922, %v7992
  %v7994 = vpop.f32.mrb[0].mxu0
  %v7995 = vadd.f32 %v7924, %v7994
  %7996 = vmatprep.mubr.bf16.mxu0 0
  %7997 = vmatmul.mubr.bf16.gmra.mrb[0].mxu0 %v7573
  %v7998 = vpop.f32.mrb[0].mxu0
  %v7999 = vadd.f32 %v7928, %v7998
  %v8000 = vpop.f32.mrb[0].mxu0
  %v8001 = vadd.f32 %v7930, %v8000
  %v8002 = vpop.f32.mrb[0].mxu0
  %v8003 = vadd.f32 %v7932, %v8002
  %v8004 = vpop.f32.mrb[0].mxu0
  %v8005 = vadd.f32 %v7934, %v8004
  %8006 = vmatprep.mubr.bf16.mxu0 0
  %8007 = vmatmul.mubr.bf16.gmra.mrb[0].mxu0 %v7576
  %v8008 = vpop.f32.mrb[0].mxu0
  %v8009 = vadd.f32 %v7938, %v8008
  %v8010 = vpop.f32.mrb[0].mxu0
  %v8011 = vadd.f32 %v7940, %v8010
  %v8012 = vpop.f32.mrb[0].mxu0
  %v8013 = vadd.f32 %v7942, %v8012
  %v8014 = vpop.f32.mrb[0].mxu0
  %v8015 = vadd.f32 %v7944, %v8014
  %8016 = vmatprep.mubr.bf16.mxu0 0
  %8017 = vmatmul.mubr.bf16.gmra.mrb[0].mxu0 %v7579
  %v8018 = vpop.f32.mrb[0].mxu0
  %v8019 = vadd.f32 %v7948, %v8018
  %v8020 = vpop.f32.mrb[0].mxu0
  %v8021 = vadd.f32 %v7950, %v8020
  %v8022 = vpop.f32.mrb[0].mxu0
  %v8023 = vpop.f32.mrb[0].mxu0
  %8024 = vdwg.mxu0
  %v8025 = vld [vmem:[#allocation3] sm:$0xff]
  %v8026 = vld [vmem:[#allocation3 + $0x8] sm:$0xff]
  %v8027 = vld [vmem:[#allocation3 + $0x10] sm:$0xff]
  %v8028 = vld [vmem:[#allocation3 + $0x18] sm:$0xff]
  %v8029 = vld [vmem:[#allocation3 + $0x20] sm:$0xff]
  %v8030 = vld [vmem:[#allocation3 + $0x28] sm:$0xff]
  %v8031 = vld [vmem:[#allocation3 + $0x30] sm:$0xff]
  %v8032 = vld [vmem:[#allocation3 + $0x38] sm:$0xff]
  %v8033 = vld [vmem:[#allocation3 + $0x40] sm:$0xff]
  %v8034 = vld [vmem:[#allocation3 + $0x48] sm:$0xff]
  %v8035 = vld [vmem:[#allocation3 + $0x50] sm:$0xff]
  %v8036 = vld [vmem:[#allocation3 + $0x58] sm:$0xff]
  %v8037 = vld [vmem:[#allocation3 + $0x60] sm:$0xff]
  %v8038 = vld [vmem:[#allocation3 + $0x68] sm:$0xff]
  %v8039 = vld [vmem:[#allocation3 + $0x70] sm:$0xff]
  %v8040 = vld [vmem:[#allocation3 + $0x78] sm:$0xff]
  %v8041 = vld [vmem:[#allocation3 + $0x80] sm:$0xff]
  %v8042 = vld [vmem:[#allocation3 + $0x88] sm:$0xff]
  %v8043 = vld [vmem:[#allocation3 + $0x90] sm:$0xff]
  %v8044 = vld [vmem:[#allocation3 + $0x98] sm:$0xff]
  %v8045 = vld [vmem:[#allocation3 + $0xa0] sm:$0xff]
  %v8046 = vld [vmem:[#allocation3 + $0xa8] sm:$0xff]
  %v8047 = vld [vmem:[#allocation3 + $0xb0] sm:$0xff]
  %v8048 = vld [vmem:[#allocation3 + $0xb8] sm:$0xff]
  %v8049 = vld [vmem:[#allocation3 + $0xc0] sm:$0xff]
  %v8050 = vld [vmem:[#allocation3 + $0xc8] sm:$0xff]
  %v8051 = vld [vmem:[#allocation3 + $0xd0] sm:$0xff]
  %v8052 = vld [vmem:[#allocation3 + $0xd8] sm:$0xff]
  %v8053 = vld [vmem:[#allocation3 + $0xe0] sm:$0xff]
  %v8054 = vld [vmem:[#allocation3 + $0xe8] sm:$0xff]
  %v8055 = vld [vmem:[#allocation3 + $0xf0] sm:$0xff]
  %v8056 = vld [vmem:[#allocation3 + $0xf8] sm:$0xff]
  %v8057 = vld [vmem:[#allocation3 + $0x100] sm:$0xff]
  %v8058 = vld [vmem:[#allocation3 + $0x108] sm:$0xff]
  %v8059 = vld [vmem:[#allocation3 + $0x110] sm:$0xff]
  %v8060 = vld [vmem:[#allocation3 + $0x118] sm:$0xff]
  %v8061 = vld [vmem:[#allocation3 + $0x120] sm:$0x3]
  %v8062 = vld [vmem:[#allocation3 + $0x128] sm:$0x3]
  %v8063 = vld [vmem:[#allocation3 + $0x130] sm:$0x3]
  %v8064 = vld [vmem:[#allocation3 + $0x138] sm:$0x3]
  %v8065 = vld [vmem:[#allocation3 + $0x140] sm:$0x3]
  %v8066 = vld [vmem:[#allocation3 + $0x148] sm:$0x3]
  %v8067 = vadd.f32 %v8025, %v7705
  %v8068 = vadd.f32 %v8026, %v7707
  %v8069 = vadd.f32 %v8027, %v7847
  %v8070 = vadd.f32 %v8028, %v7849
  %v8071 = vadd.f32 %v8029, %v7989
  %v8072 = vadd.f32 %v8030, %v7991
  %v8073 = vadd.f32 %v8031, %v7709
  %v8074 = vadd.f32 %v8032, %v7711
  %v8075 = vadd.f32 %v8033, %v7851
  %v8076 = vadd.f32 %v8034, %v7853
  %v8077 = vadd.f32 %v8035, %v7993
  %v8078 = vadd.f32 %v8036, %v7995
  %v8079 = vadd.f32 %v8037, %v7715
  %v8080 = vadd.f32 %v8038, %v7717
  %v8081 = vadd.f32 %v8039, %v7857
  %v8082 = vadd.f32 %v8040, %v7859
  %v8083 = vadd.f32 %v8041, %v7999
  %v8084 = vadd.f32 %v8042, %v8001
  %v8085 = vadd.f32 %v8043, %v7719
  %v8086 = vadd.f32 %v8044, %v7721
  %v8087 = vadd.f32 %v8045, %v7861
  %v8088 = vadd.f32 %v8046, %v7863
  %v8089 = vadd.f32 %v8047, %v8003
  %v8090 = vadd.f32 %v8048, %v8005
  %v8091 = vadd.f32 %v8049, %v7725
  %v8092 = vadd.f32 %v8050, %v7727
  %v8093 = vadd.f32 %v8051, %v7867
  %v8094 = vadd.f32 %v8052, %v7869
  %v8095 = vadd.f32 %v8053, %v8009
  %v8096 = vadd.f32 %v8054, %v8011
  %v8097 = vadd.f32 %v8055, %v7729
  %v8098 = vadd.f32 %v8056, %v7731
  %v8099 = vadd.f32 %v8057, %v7871
  %v8100 = vadd.f32 %v8058, %v7873
  %v8101 = vadd.f32 %v8059, %v8013
  %v8102 = vadd.f32 %v8060, %v8015
  %v8103 = vadd.f32 %v8061, %v7735
  %v8104 = vadd.f32 %v8062, %v7737
  %v8105 = vadd.f32 %v8063, %v7877
  %v8106 = vadd.f32 %v8064, %v7879
  %v8107 = vadd.f32 %v8065, %v8019
  %v8108 = vadd.f32 %v8066, %v8021
  %8109 = vst [vmem:[#allocation3] sm:$0xff] %v8067
  %8110 = vst [vmem:[#allocation3 + $0x8] sm:$0xff] %v8068
  %8111 = vst [vmem:[#allocation3 + $0x10] sm:$0xff] %v8069
  %8112 = vst [vmem:[#allocation3 + $0x18] sm:$0xff] %v8070
  %8113 = vst [vmem:[#allocation3 + $0x20] sm:$0xff] %v8071
  %8114 = vst [vmem:[#allocation3 + $0x28] sm:$0xff] %v8072
  %8115 = vst [vmem:[#allocation3 + $0x30] sm:$0xff] %v8073
  %8116 = vst [vmem:[#allocation3 + $0x38] sm:$0xff] %v8074
  %8117 = vst [vmem:[#allocation3 + $0x40] sm:$0xff] %v8075
  %8118 = vst [vmem:[#allocation3 + $0x48] sm:$0xff] %v8076
  %8119 = vst [vmem:[#allocation3 + $0x50] sm:$0xff] %v8077
  %8120 = vst [vmem:[#allocation3 + $0x58] sm:$0xff] %v8078
  %8121 = vst [vmem:[#allocation3 + $0x60] sm:$0xff] %v8079
  %8122 = vst [vmem:[#allocation3 + $0x68] sm:$0xff] %v8080
  %8123 = vst [vmem:[#allocation3 + $0x70] sm:$0xff] %v8081
  %8124 = vst [vmem:[#allocation3 + $0x78] sm:$0xff] %v8082
  %8125 = vst [vmem:[#allocation3 + $0x80] sm:$0xff] %v8083
  %8126 = vst [vmem:[#allocation3 + $0x88] sm:$0xff] %v8084
  %8127 = vst [vmem:[#allocation3 + $0x90] sm:$0xff] %v8085
  %8128 = vst [vmem:[#allocation3 + $0x98] sm:$0xff] %v8086
  %8129 = vst [vmem:[#allocation3 + $0xa0] sm:$0xff] %v8087
  %8130 = vst [vmem:[#allocation3 + $0xa8] sm:$0xff] %v8088
  %8131 = vst [vmem:[#allocation3 + $0xb0] sm:$0xff] %v8089
  %8132 = vst [vmem:[#allocation3 + $0xb8] sm:$0xff] %v8090
  %8133 = vst [vmem:[#allocation3 + $0xc0] sm:$0xff] %v8091
  %8134 = vst [vmem:[#allocation3 + $0xc8] sm:$0xff] %v8092
  %8135 = vst [vmem:[#allocation3 + $0xd0] sm:$0xff] %v8093
  %8136 = vst [vmem:[#allocation3 + $0xd8] sm:$0xff] %v8094
  %8137 = vst [vmem:[#allocation3 + $0xe0] sm:$0xff] %v8095
  %8138 = vst [vmem:[#allocation3 + $0xe8] sm:$0xff] %v8096
  %8139 = vst [vmem:[#allocation3 + $0xf0] sm:$0xff] %v8097
  %8140 = vst [vmem:[#allocation3 + $0xf8] sm:$0xff] %v8098
  %8141 = vst [vmem:[#allocation3 + $0x100] sm:$0xff] %v8099
  %8142 = vst [vmem:[#allocation3 + $0x108] sm:$0xff] %v8100
  %8143 = vst [vmem:[#allocation3 + $0x110] sm:$0xff] %v8101
  %8144 = vst [vmem:[#allocation3 + $0x118] sm:$0xff] %v8102
  %8145 = vst [vmem:[#allocation3 + $0x120] sm:$0x3] %v8103
  %8146 = vst [vmem:[#allocation3 + $0x128] sm:$0x3] %v8104
  %8147 = vst [vmem:[#allocation3 + $0x130] sm:$0x3] %v8105
  %8148 = vst [vmem:[#allocation3 + $0x138] sm:$0x3] %v8106
  %8149 = vst [vmem:[#allocation3 + $0x140] sm:$0x3] %v8107
  %8150 = vst [vmem:[#allocation3 + $0x148] sm:$0x3] %v8108
  %v8151 = vld [vmem:[#allocation2] sm:$0xff]
  %v8152 = vld [vmem:[#allocation2 + $0x8] sm:$0xff]
  %v8153 = vld [vmem:[#allocation2 + $0x20] sm:$0xff]
  %v8154 = vld [vmem:[#allocation2 + $0x28] sm:$0xff]
  %v8155 = vld [vmem:[#allocation2 + $0x40] sm:$0xff]
  %v8156 = vld [vmem:[#allocation2 + $0x48] sm:$0xff]
  %v8157 = vld [vmem:[#allocation2 + $0x60] sm:$0xff]
  %v8158 = vld [vmem:[#allocation2 + $0x68] sm:$0xff]
  %v8159 = vld [vmem:[#allocation2 + $0x80] sm:$0xff]
  %v8160 = vld [vmem:[#allocation2 + $0x88] sm:$0xff]
  %v8161 = vld [vmem:[#allocation2 + $0x10] sm:$0xff]
  %v8162 = vld [vmem:[#allocation2 + $0x18] sm:$0xff]
  %v8163 = vld [vmem:[#allocation2 + $0x30] sm:$0xff]
  %v8164 = vld [vmem:[#allocation2 + $0x38] sm:$0xff]
  %v8165 = vld [vmem:[#allocation2 + $0x50] sm:$0xff]
  %v8166 = vld [vmem:[#allocation2 + $0x58] sm:$0xff]
  %v8167 = vld [vmem:[#allocation2 + $0x70] sm:$0xff]
  %v8168 = vld [vmem:[#allocation2 + $0x78] sm:$0xff]
  %v8169 = vld [vmem:[#allocation2 + $0x90] sm:$0xff]
  %v8170 = vld [vmem:[#allocation2 + $0x98] sm:$0xff]
  %v8181 = vunpack.c.l.b16 %v8151
  %v8182 = vunpack.c.h.b16 %v8151
  %v8183 = vunpack.c.l.b16 %v8152
  %v8184 = vunpack.c.h.b16 %v8152
  %v8185 = vunpack.c.l.b16 %v8153
  %v8186 = vunpack.c.h.b16 %v8153
  %v8187 = vunpack.c.l.b16 %v8154
  %v8188 = vunpack.c.h.b16 %v8154
  %v8189 = vunpack.c.l.b16 %v8155
  %v8190 = vunpack.c.h.b16 %v8155
  %v8191 = vunpack.c.l.b16 %v8156
  %v8192 = vunpack.c.h.b16 %v8156
  %v8193 = vunpack.c.l.b16 %v8157
  %v8194 = vunpack.c.h.b16 %v8157
  %v8195 = vunpack.c.l.b16 %v8158
  %v8196 = vunpack.c.h.b16 %v8158
  %v8197 = vunpack.c.l.b16 %v8159
  %v8198 = vunpack.c.h.b16 %v8159
  %v8199 = vunpack.c.l.b16 %v8160
  %v8200 = vunpack.c.h.b16 %v8160
  %v8201 = vpack.c.b16 %v8185, %v8181
  %v8202 = vpack.c.b16 %v8186, %v8182
  %v8203 = vpack.c.b16 %v8187, %v8183
  %v8204 = vpack.c.b16 %v8188, %v8184
  %v8205 = vpack.c.b16 %v8193, %v8189
  %v8206 = vpack.c.b16 %v8194, %v8190
  %v8207 = vpack.c.b16 %v8195, %v8191
  %v8208 = vpack.c.b16 %v8196, %v8192
  %v8209 = vpack.c.b16 %v8197, %v8197
  %v8210 = vpack.c.b16 %v8198, %v8198
  %v8211 = vpack.c.b16 %v8199, %v8199
  %v8212 = vpack.c.b16 %v8200, %v8200
  %8213 = vrot.lane.b32.xlu0 %v8201, 38
  %v8214 = vpop.permute.xlu0 %8213
  %8215 = vrot.lane.b32.xlu0 %v8202, 38
  %v8216 = vpop.permute.xlu0 %8215
  %8217 = vrot.lane.b32.xlu0 %v8203, 38
  %v8218 = vpop.permute.xlu0 %8217
  %8219 = vrot.lane.b32.xlu0 %v8204, 38
  %v8220 = vpop.permute.xlu0 %8219
  %8221 = vrot.lane.b32.xlu0 %v8205, 38
  %v8222 = vpop.permute.xlu0 %8221
  %8223 = vrot.lane.b32.xlu0 %v8206, 38
  %v8224 = vpop.permute.xlu0 %8223
  %8225 = vrot.lane.b32.xlu0 %v8207, 38
  %v8226 = vpop.permute.xlu0 %8225
  %8227 = vrot.lane.b32.xlu0 %v8208, 38
  %v8228 = vpop.permute.xlu0 %8227
  %8229 = vrot.lane.b32.xlu0 %v8209, 38
  %v8230 = vpop.permute.xlu0 %8229
  %8231 = vrot.lane.b32.xlu0 %v8210, 38
  %v8232 = vpop.permute.xlu0 %8231
  %8233 = vrot.lane.b32.xlu0 %v8211, 38
  %v8234 = vpop.permute.xlu0 %8233
  %8235 = vrot.lane.b32.xlu0 %v8212, 38
  %v8236 = vpop.permute.xlu0 %8235
  %vm8237 = vcmask 310272
  %v8238 = vsel %vm8237, %v8214, %v8216
  %v8239 = vsel %vm8237, %v8216, %v8218
  %v8240 = vsel %vm8237, %v8218, %v8220
  %v8241 = vsel %vm8237, %v8222, %v8224
  %v8242 = vsel %vm8237, %v8224, %v8226
  %v8243 = vsel %vm8237, %v8226, %v8228
  %v8244 = vsel %vm8237, %v8230, %v8232
  %v8245 = vsel %vm8237, %v8232, %v8234
  %v8246 = vsel %vm8237, %v8234, %v8236
  %v8263 = vunpack.c.l.b16 %v8161
  %v8264 = vunpack.c.h.b16 %v8161
  %v8265 = vunpack.c.l.b16 %v8162
  %v8266 = vunpack.c.h.b16 %v8162
  %v8267 = vunpack.c.l.b16 %v8163
  %v8268 = vunpack.c.h.b16 %v8163
  %v8269 = vunpack.c.l.b16 %v8164
  %v8270 = vunpack.c.h.b16 %v8164
  %v8271 = vunpack.c.l.b16 %v8165
  %v8272 = vunpack.c.h.b16 %v8165
  %v8273 = vunpack.c.l.b16 %v8166
  %v8274 = vunpack.c.h.b16 %v8166
  %v8275 = vunpack.c.l.b16 %v8167
  %v8276 = vunpack.c.h.b16 %v8167
  %v8277 = vunpack.c.l.b16 %v8168
  %v8278 = vunpack.c.h.b16 %v8168
  %v8279 = vunpack.c.l.b16 %v8169
  %v8280 = vunpack.c.h.b16 %v8169
  %v8281 = vunpack.c.l.b16 %v8170
  %v8282 = vunpack.c.h.b16 %v8170
  %v8283 = vpack.c.b16 %v8267, %v8263
  %v8284 = vpack.c.b16 %v8268, %v8264
  %v8285 = vpack.c.b16 %v8269, %v8265
  %v8286 = vpack.c.b16 %v8270, %v8266
  %v8287 = vpack.c.b16 %v8275, %v8271
  %v8288 = vpack.c.b16 %v8276, %v8272
  %v8289 = vpack.c.b16 %v8277, %v8273
  %v8290 = vpack.c.b16 %v8278, %v8274
  %v8291 = vpack.c.b16 %v8279, %v8279
  %v8292 = vpack.c.b16 %v8280, %v8280
  %v8293 = vpack.c.b16 %v8281, %v8281
  %v8294 = vpack.c.b16 %v8282, %v8282
  %8295 = vrot.lane.b32.xlu0 %v8283, 38
  %v8296 = vpop.permute.xlu0 %8295
  %8297 = vrot.lane.b32.xlu0 %v8284, 38
  %v8298 = vpop.permute.xlu0 %8297
  %8299 = vrot.lane.b32.xlu0 %v8285, 38
  %v8300 = vpop.permute.xlu0 %8299
  %8301 = vrot.lane.b32.xlu0 %v8286, 38
  %v8302 = vpop.permute.xlu0 %8301
  %8303 = vrot.lane.b32.xlu0 %v8287, 38
  %v8304 = vpop.permute.xlu0 %8303
  %8305 = vrot.lane.b32.xlu0 %v8288, 38
  %v8306 = vpop.permute.xlu0 %8305
  %8307 = vrot.lane.b32.xlu0 %v8289, 38
  %v8308 = vpop.permute.xlu0 %8307
  %8309 = vrot.lane.b32.xlu0 %v8290, 38
  %v8310 = vpop.permute.xlu0 %8309
  %8311 = vrot.lane.b32.xlu0 %v8291, 38
  %v8312 = vpop.permute.xlu0 %8311
  %8313 = vrot.lane.b32.xlu0 %v8292, 38
  %v8314 = vpop.permute.xlu0 %8313
  %8315 = vrot.lane.b32.xlu0 %v8293, 38
  %v8316 = vpop.permute.xlu0 %8315
  %8317 = vrot.lane.b32.xlu0 %v8294, 38
  %v8318 = vpop.permute.xlu0 %8317
  %v8319 = vsel %vm8237, %v8296, %v8298
  %v8320 = vsel %vm8237, %v8298, %v8300
  %v8321 = vsel %vm8237, %v8300, %v8302
  %v8322 = vsel %vm8237, %v8304, %v8306
  %v8323 = vsel %vm8237, %v8306, %v8308
  %v8324 = vsel %vm8237, %v8308, %v8310
  %v8325 = vsel %vm8237, %v8312, %v8314
  %v8326 = vsel %vm8237, %v8314, %v8316
  %v8327 = vsel %vm8237, %v8316, %v8318
  %8334 = vrot.lane.b32.xlu0 %v8201, 37
  %v8335 = vpop.permute.xlu0 %8334
  %8336 = vrot.lane.b32.xlu0 %v8202, 37
  %v8337 = vpop.permute.xlu0 %8336
  %8338 = vrot.lane.b32.xlu0 %v8203, 37
  %v8339 = vpop.permute.xlu0 %8338
  %8340 = vrot.lane.b32.xlu0 %v8204, 37
  %v8341 = vpop.permute.xlu0 %8340
  %8342 = vrot.lane.b32.xlu0 %v8205, 37
  %v8343 = vpop.permute.xlu0 %8342
  %8344 = vrot.lane.b32.xlu0 %v8206, 37
  %v8345 = vpop.permute.xlu0 %8344
  %8346 = vrot.lane.b32.xlu0 %v8207, 37
  %v8347 = vpop.permute.xlu0 %8346
  %8348 = vrot.lane.b32.xlu0 %v8208, 37
  %v8349 = vpop.permute.xlu0 %8348
  %8350 = vrot.lane.b32.xlu0 %v8209, 37
  %v8351 = vpop.permute.xlu0 %8350
  %8352 = vrot.lane.b32.xlu0 %v8210, 37
  %v8353 = vpop.permute.xlu0 %8352
  %8354 = vrot.lane.b32.xlu0 %v8211, 37
  %v8355 = vpop.permute.xlu0 %8354
  %8356 = vrot.lane.b32.xlu0 %v8212, 37
  %v8357 = vpop.permute.xlu0 %8356
  %vm8358 = vcmask 302080
  %v8359 = vsel %vm8358, %v8335, %v8337
  %v8360 = vsel %vm8358, %v8337, %v8339
  %v8361 = vsel %vm8358, %v8339, %v8341
  %v8362 = vsel %vm8358, %v8343, %v8345
  %v8363 = vsel %vm8358, %v8345, %v8347
  %v8364 = vsel %vm8358, %v8347, %v8349
  %v8365 = vsel %vm8358, %v8351, %v8353
  %v8366 = vsel %vm8358, %v8353, %v8355
  %v8367 = vsel %vm8358, %v8355, %v8357
  %8368 = vrot.lane.b32.xlu0 %v8283, 37
  %v8369 = vpop.permute.xlu0 %8368
  %8370 = vrot.lane.b32.xlu0 %v8284, 37
  %v8371 = vpop.permute.xlu0 %8370
  %8372 = vrot.lane.b32.xlu0 %v8285, 37
  %v8373 = vpop.permute.xlu0 %8372
  %8374 = vrot.lane.b32.xlu0 %v8286, 37
  %v8375 = vpop.permute.xlu0 %8374
  %8376 = vrot.lane.b32.xlu0 %v8287, 37
  %v8377 = vpop.permute.xlu0 %8376
  %8378 = vrot.lane.b32.xlu0 %v8288, 37
  %v8379 = vpop.permute.xlu0 %8378
  %8380 = vrot.lane.b32.xlu0 %v8289, 37
  %v8381 = vpop.permute.xlu0 %8380
  %8382 = vrot.lane.b32.xlu0 %v8290, 37
  %v8383 = vpop.permute.xlu0 %8382
  %8384 = vrot.lane.b32.xlu0 %v8291, 37
  %v8385 = vpop.permute.xlu0 %8384
  %8386 = vrot.lane.b32.xlu0 %v8292, 37
  %v8387 = vpop.permute.xlu0 %8386
  %8388 = vrot.lane.b32.xlu0 %v8293, 37
  %v8389 = vpop.permute.xlu0 %8388
  %8390 = vrot.lane.b32.xlu0 %v8294, 37
  %v8391 = vpop.permute.xlu0 %8390
  %v8392 = vsel %vm8358, %v8369, %v8371
  %v8393 = vsel %vm8358, %v8371, %v8373
  %v8394 = vsel %vm8358, %v8373, %v8375
  %v8395 = vsel %vm8358, %v8377, %v8379
  %v8396 = vsel %vm8358, %v8379, %v8381
  %v8397 = vsel %vm8358, %v8381, %v8383
  %v8398 = vsel %vm8358, %v8385, %v8387
  %v8399 = vsel %vm8358, %v8387, %v8389
  %v8400 = vsel %vm8358, %v8389, %v8391
  %8401 = vrot.lane.b32.xlu0 %v8201, 36
  %v8402 = vpop.permute.xlu0 %8401
  %8403 = vrot.lane.b32.xlu0 %v8202, 36
  %v8404 = vpop.permute.xlu0 %8403
  %8405 = vrot.lane.b32.xlu0 %v8203, 36
  %v8406 = vpop.permute.xlu0 %8405
  %8407 = vrot.lane.b32.xlu0 %v8204, 36
  %v8408 = vpop.permute.xlu0 %8407
  %8409 = vrot.lane.b32.xlu0 %v8205, 36
  %v8410 = vpop.permute.xlu0 %8409
  %8411 = vrot.lane.b32.xlu0 %v8206, 36
  %v8412 = vpop.permute.xlu0 %8411
  %8413 = vrot.lane.b32.xlu0 %v8207, 36
  %v8414 = vpop.permute.xlu0 %8413
  %8415 = vrot.lane.b32.xlu0 %v8208, 36
  %v8416 = vpop.permute.xlu0 %8415
  %8417 = vrot.lane.b32.xlu0 %v8209, 36
  %v8418 = vpop.permute.xlu0 %8417
  %8419 = vrot.lane.b32.xlu0 %v8210, 36
  %v8420 = vpop.permute.xlu0 %8419
  %8421 = vrot.lane.b32.xlu0 %v8211, 36
  %v8422 = vpop.permute.xlu0 %8421
  %8423 = vrot.lane.b32.xlu0 %v8212, 36
  %v8424 = vpop.permute.xlu0 %8423
  %vm8425 = vcmask 293888
  %v8426 = vsel %vm8425, %v8402, %v8404
  %v8427 = vsel %vm8425, %v8404, %v8406
  %v8428 = vsel %vm8425, %v8406, %v8408
  %v8429 = vsel %vm8425, %v8410, %v8412
  %v8430 = vsel %vm8425, %v8412, %v8414
  %v8431 = vsel %vm8425, %v8414, %v8416
  %v8432 = vsel %vm8425, %v8418, %v8420
  %v8433 = vsel %vm8425, %v8420, %v8422
  %v8434 = vsel %vm8425, %v8422, %v8424
  %8441 = vrot.lane.b32.xlu0 %v8283, 36
  %v8442 = vpop.permute.xlu0 %8441
  %8443 = vrot.lane.b32.xlu0 %v8284, 36
  %v8444 = vpop.permute.xlu0 %8443
  %8445 = vrot.lane.b32.xlu0 %v8285, 36
  %v8446 = vpop.permute.xlu0 %8445
  %8447 = vrot.lane.b32.xlu0 %v8286, 36
  %v8448 = vpop.permute.xlu0 %8447
  %8449 = vrot.lane.b32.xlu0 %v8287, 36
  %v8450 = vpop.permute.xlu0 %8449
  %8451 = vrot.lane.b32.xlu0 %v8288, 36
  %v8452 = vpop.permute.xlu0 %8451
  %8453 = vrot.lane.b32.xlu0 %v8289, 36
  %v8454 = vpop.permute.xlu0 %8453
  %8455 = vrot.lane.b32.xlu0 %v8290, 36
  %v8456 = vpop.permute.xlu0 %8455
  %8457 = vrot.lane.b32.xlu0 %v8291, 36
  %v8458 = vpop.permute.xlu0 %8457
  %8459 = vrot.lane.b32.xlu0 %v8292, 36
  %v8460 = vpop.permute.xlu0 %8459
  %8461 = vrot.lane.b32.xlu0 %v8293, 36
  %v8462 = vpop.permute.xlu0 %8461
  %8463 = vrot.lane.b32.xlu0 %v8294, 36
  %v8464 = vpop.permute.xlu0 %8463
  %v8465 = vsel %vm8425, %v8442, %v8444
  %v8466 = vsel %vm8425, %v8444, %v8446
  %v8467 = vsel %vm8425, %v8446, %v8448
  %v8468 = vsel %vm8425, %v8450, %v8452
  %v8469 = vsel %vm8425, %v8452, %v8454
  %v8470 = vsel %vm8425, %v8454, %v8456
  %v8471 = vsel %vm8425, %v8458, %v8460
  %v8472 = vsel %vm8425, %v8460, %v8462
  %v8473 = vsel %vm8425, %v8462, %v8464
  %8480 = vrot.lane.b32.xlu0 %v8201, 35
  %v8481 = vpop.permute.xlu0 %8480
  %8482 = vrot.lane.b32.xlu0 %v8202, 35
  %v8483 = vpop.permute.xlu0 %8482
  %8484 = vrot.lane.b32.xlu0 %v8203, 35
  %v8485 = vpop.permute.xlu0 %8484
  %8486 = vrot.lane.b32.xlu0 %v8204, 35
  %v8487 = vpop.permute.xlu0 %8486
  %8488 = vrot.lane.b32.xlu0 %v8205, 35
  %v8489 = vpop.permute.xlu0 %8488
  %8490 = vrot.lane.b32.xlu0 %v8206, 35
  %v8491 = vpop.permute.xlu0 %8490
  %8492 = vrot.lane.b32.xlu0 %v8207, 35
  %v8493 = vpop.permute.xlu0 %8492
  %8494 = vrot.lane.b32.xlu0 %v8208, 35
  %v8495 = vpop.permute.xlu0 %8494
  %8496 = vrot.lane.b32.xlu0 %v8209, 35
  %v8497 = vpop.permute.xlu0 %8496
  %8498 = vrot.lane.b32.xlu0 %v8210, 35
  %v8499 = vpop.permute.xlu0 %8498
  %8500 = vrot.lane.b32.xlu0 %v8211, 35
  %v8501 = vpop.permute.xlu0 %8500
  %8502 = vrot.lane.b32.xlu0 %v8212, 35
  %v8503 = vpop.permute.xlu0 %8502
  %vm8504 = vcmask 285696
  %v8505 = vsel %vm8504, %v8481, %v8483
  %v8506 = vsel %vm8504, %v8483, %v8485
  %v8507 = vsel %vm8504, %v8485, %v8487
  %v8508 = vsel %vm8504, %v8489, %v8491
  %v8509 = vsel %vm8504, %v8491, %v8493
  %v8510 = vsel %vm8504, %v8493, %v8495
  %v8511 = vsel %vm8504, %v8497, %v8499
  %v8512 = vsel %vm8504, %v8499, %v8501
  %v8513 = vsel %vm8504, %v8501, %v8503
  %8514 = vrot.lane.b32.xlu0 %v8283, 35
  %v8515 = vpop.permute.xlu0 %8514
  %8516 = vrot.lane.b32.xlu0 %v8284, 35
  %v8517 = vpop.permute.xlu0 %8516
  %8518 = vrot.lane.b32.xlu0 %v8285, 35
  %v8519 = vpop.permute.xlu0 %8518
  %8520 = vrot.lane.b32.xlu0 %v8286, 35
  %v8521 = vpop.permute.xlu0 %8520
  %8522 = vrot.lane.b32.xlu0 %v8287, 35
  %v8523 = vpop.permute.xlu0 %8522
  %8524 = vrot.lane.b32.xlu0 %v8288, 35
  %v8525 = vpop.permute.xlu0 %8524
  %8526 = vrot.lane.b32.xlu0 %v8289, 35
  %v8527 = vpop.permute.xlu0 %8526
  %8528 = vrot.lane.b32.xlu0 %v8290, 35
  %v8529 = vpop.permute.xlu0 %8528
  %8530 = vrot.lane.b32.xlu0 %v8291, 35
  %v8531 = vpop.permute.xlu0 %8530
  %8532 = vrot.lane.b32.xlu0 %v8292, 35
  %v8533 = vpop.permute.xlu0 %8532
  %8534 = vrot.lane.b32.xlu0 %v8293, 35
  %v8535 = vpop.permute.xlu0 %8534
  %8536 = vrot.lane.b32.xlu0 %v8294, 35
  %v8537 = vpop.permute.xlu0 %8536
  %v8538 = vsel %vm8504, %v8515, %v8517
  %v8539 = vsel %vm8504, %v8517, %v8519
  %v8540 = vsel %vm8504, %v8519, %v8521
  %v8541 = vsel %vm8504, %v8523, %v8525
  %v8542 = vsel %vm8504, %v8525, %v8527
  %v8543 = vsel %vm8504, %v8527, %v8529
  %v8544 = vsel %vm8504, %v8531, %v8533
  %v8545 = vsel %vm8504, %v8533, %v8535
  %v8546 = vsel %vm8504, %v8535, %v8537
  %8547 = vrot.lane.b32.xlu0 %v8201, 34
  %v8548 = vpop.permute.xlu0 %8547
  %8549 = vrot.lane.b32.xlu0 %v8202, 34
  %v8550 = vpop.permute.xlu0 %8549
  %8551 = vrot.lane.b32.xlu0 %v8203, 34
  %v8552 = vpop.permute.xlu0 %8551
  %8553 = vrot.lane.b32.xlu0 %v8204, 34
  %v8554 = vpop.permute.xlu0 %8553
  %8555 = vrot.lane.b32.xlu0 %v8205, 34
  %v8556 = vpop.permute.xlu0 %8555
  %8557 = vrot.lane.b32.xlu0 %v8206, 34
  %v8558 = vpop.permute.xlu0 %8557
  %8559 = vrot.lane.b32.xlu0 %v8207, 34
  %v8560 = vpop.permute.xlu0 %8559
  %8561 = vrot.lane.b32.xlu0 %v8208, 34
  %v8562 = vpop.permute.xlu0 %8561
  %8563 = vrot.lane.b32.xlu0 %v8209, 34
  %v8564 = vpop.permute.xlu0 %8563
  %8565 = vrot.lane.b32.xlu0 %v8210, 34
  %v8566 = vpop.permute.xlu0 %8565
  %8567 = vrot.lane.b32.xlu0 %v8211, 34
  %v8568 = vpop.permute.xlu0 %8567
  %8569 = vrot.lane.b32.xlu0 %v8212, 34
  %v8570 = vpop.permute.xlu0 %8569
  %vm8571 = vcmask 277504
  %v8572 = vsel %vm8571, %v8548, %v8550
  %v8573 = vsel %vm8571, %v8550, %v8552
  %v8574 = vsel %vm8571, %v8552, %v8554
  %v8575 = vsel %vm8571, %v8556, %v8558
  %v8576 = vsel %vm8571, %v8558, %v8560
  %v8577 = vsel %vm8571, %v8560, %v8562
  %v8578 = vsel %vm8571, %v8564, %v8566
  %v8579 = vsel %vm8571, %v8566, %v8568
  %v8580 = vsel %vm8571, %v8568, %v8570
  %8587 = vrot.lane.b32.xlu0 %v8283, 34
  %v8588 = vpop.permute.xlu0 %8587
  %8589 = vrot.lane.b32.xlu0 %v8284, 34
  %v8590 = vpop.permute.xlu0 %8589
  %8591 = vrot.lane.b32.xlu0 %v8285, 34
  %v8592 = vpop.permute.xlu0 %8591
  %8593 = vrot.lane.b32.xlu0 %v8286, 34
  %v8594 = vpop.permute.xlu0 %8593
  %8595 = vrot.lane.b32.xlu0 %v8287, 34
  %v8596 = vpop.permute.xlu0 %8595
  %8597 = vrot.lane.b32.xlu0 %v8288, 34
  %v8598 = vpop.permute.xlu0 %8597
  %8599 = vrot.lane.b32.xlu0 %v8289, 34
  %v8600 = vpop.permute.xlu0 %8599
  %8601 = vrot.lane.b32.xlu0 %v8290, 34
  %v8602 = vpop.permute.xlu0 %8601
  %8603 = vrot.lane.b32.xlu0 %v8291, 34
  %v8604 = vpop.permute.xlu0 %8603
  %8605 = vrot.lane.b32.xlu0 %v8292, 34
  %v8606 = vpop.permute.xlu0 %8605
  %8607 = vrot.lane.b32.xlu0 %v8293, 34
  %v8608 = vpop.permute.xlu0 %8607
  %8609 = vrot.lane.b32.xlu0 %v8294, 34
  %v8610 = vpop.permute.xlu0 %8609
  %v8611 = vsel %vm8571, %v8588, %v8590
  %v8612 = vsel %vm8571, %v8590, %v8592
  %v8613 = vsel %vm8571, %v8592, %v8594
  %v8614 = vsel %vm8571, %v8596, %v8598
  %v8615 = vsel %vm8571, %v8598, %v8600
  %v8616 = vsel %vm8571, %v8600, %v8602
  %v8617 = vsel %vm8571, %v8604, %v8606
  %v8618 = vsel %vm8571, %v8606, %v8608
  %v8619 = vsel %vm8571, %v8608, %v8610
  %8626 = vrot.lane.b32.xlu0 %v8201, 33
  %v8627 = vpop.permute.xlu0 %8626
  %8628 = vrot.lane.b32.xlu0 %v8202, 33
  %v8629 = vpop.permute.xlu0 %8628
  %8630 = vrot.lane.b32.xlu0 %v8203, 33
  %v8631 = vpop.permute.xlu0 %8630
  %8632 = vrot.lane.b32.xlu0 %v8204, 33
  %v8633 = vpop.permute.xlu0 %8632
  %8634 = vrot.lane.b32.xlu0 %v8205, 33
  %v8635 = vpop.permute.xlu0 %8634
  %8636 = vrot.lane.b32.xlu0 %v8206, 33
  %v8637 = vpop.permute.xlu0 %8636
  %8638 = vrot.lane.b32.xlu0 %v8207, 33
  %v8639 = vpop.permute.xlu0 %8638
  %8640 = vrot.lane.b32.xlu0 %v8208, 33
  %v8641 = vpop.permute.xlu0 %8640
  %8642 = vrot.lane.b32.xlu0 %v8209, 33
  %v8643 = vpop.permute.xlu0 %8642
  %8644 = vrot.lane.b32.xlu0 %v8210, 33
  %v8645 = vpop.permute.xlu0 %8644
  %8646 = vrot.lane.b32.xlu0 %v8211, 33
  %v8647 = vpop.permute.xlu0 %8646
  %8648 = vrot.lane.b32.xlu0 %v8212, 33
  %v8649 = vpop.permute.xlu0 %8648
  %vm8650 = vcmask 269312
  %v8651 = vsel %vm8650, %v8627, %v8629
  %v8652 = vsel %vm8650, %v8629, %v8631
  %v8653 = vsel %vm8650, %v8631, %v8633
  %v8654 = vsel %vm8650, %v8635, %v8637
  %v8655 = vsel %vm8650, %v8637, %v8639
  %v8656 = vsel %vm8650, %v8639, %v8641
  %v8657 = vsel %vm8650, %v8643, %v8645
  %v8658 = vsel %vm8650, %v8645, %v8647
  %v8659 = vsel %vm8650, %v8647, %v8649
  %8660 = vrot.lane.b32.xlu0 %v8283, 33
  %v8661 = vpop.permute.xlu0 %8660
  %8662 = vrot.lane.b32.xlu0 %v8284, 33
  %v8663 = vpop.permute.xlu0 %8662
  %8664 = vrot.lane.b32.xlu0 %v8285, 33
  %v8665 = vpop.permute.xlu0 %8664
  %8666 = vrot.lane.b32.xlu0 %v8286, 33
  %v8667 = vpop.permute.xlu0 %8666
  %8668 = vrot.lane.b32.xlu0 %v8287, 33
  %v8669 = vpop.permute.xlu0 %8668
  %8670 = vrot.lane.b32.xlu0 %v8288, 33
  %v8671 = vpop.permute.xlu0 %8670
  %8672 = vrot.lane.b32.xlu0 %v8289, 33
  %v8673 = vpop.permute.xlu0 %8672
  %8674 = vrot.lane.b32.xlu0 %v8290, 33
  %v8675 = vpop.permute.xlu0 %8674
  %8676 = vrot.lane.b32.xlu0 %v8291, 33
  %v8677 = vpop.permute.xlu0 %8676
  %8678 = vrot.lane.b32.xlu0 %v8292, 33
  %v8679 = vpop.permute.xlu0 %8678
  %8680 = vrot.lane.b32.xlu0 %v8293, 33
  %v8681 = vpop.permute.xlu0 %8680
  %8682 = vrot.lane.b32.xlu0 %v8294, 33
  %v8683 = vpop.permute.xlu0 %8682
  %v8684 = vsel %vm8650, %v8661, %v8663
  %v8685 = vsel %vm8650, %v8663, %v8665
  %v8686 = vsel %vm8650, %v8665, %v8667
  %v8687 = vsel %vm8650, %v8669, %v8671
  %v8688 = vsel %vm8650, %v8671, %v8673
  %v8689 = vsel %vm8650, %v8673, %v8675
  %v8690 = vsel %vm8650, %v8677, %v8679
  %v8691 = vsel %vm8650, %v8679, %v8681
  %v8692 = vsel %vm8650, %v8681, %v8683
  %8693 = vrot.lane.b32.xlu0 %v8201, 32
  %v8694 = vpop.permute.xlu0 %8693
  %8695 = vrot.lane.b32.xlu0 %v8202, 32
  %v8696 = vpop.permute.xlu0 %8695
  %8697 = vrot.lane.b32.xlu0 %v8203, 32
  %v8698 = vpop.permute.xlu0 %8697
  %8699 = vrot.lane.b32.xlu0 %v8204, 32
  %v8700 = vpop.permute.xlu0 %8699
  %8701 = vrot.lane.b32.xlu0 %v8205, 32
  %v8702 = vpop.permute.xlu0 %8701
  %8703 = vrot.lane.b32.xlu0 %v8206, 32
  %v8704 = vpop.permute.xlu0 %8703
  %8705 = vrot.lane.b32.xlu0 %v8207, 32
  %v8706 = vpop.permute.xlu0 %8705
  %8707 = vrot.lane.b32.xlu0 %v8208, 32
  %v8708 = vpop.permute.xlu0 %8707
  %8709 = vrot.lane.b32.xlu0 %v8209, 32
  %v8710 = vpop.permute.xlu0 %8709
  %8711 = vrot.lane.b32.xlu0 %v8210, 32
  %v8712 = vpop.permute.xlu0 %8711
  %8713 = vrot.lane.b32.xlu0 %v8211, 32
  %v8714 = vpop.permute.xlu0 %8713
  %8715 = vrot.lane.b32.xlu0 %v8212, 32
  %v8716 = vpop.permute.xlu0 %8715
  %v8717 = vsel %vm7552, %v8694, %v8696
  %v8718 = vsel %vm7552, %v8696, %v8698
  %v8719 = vsel %vm7552, %v8698, %v8700
  %v8720 = vsel %vm7552, %v8702, %v8704
  %v8721 = vsel %vm7552, %v8704, %v8706
  %v8722 = vsel %vm7552, %v8706, %v8708
  %v8723 = vsel %vm7552, %v8710, %v8712
  %v8724 = vsel %vm7552, %v8712, %v8714
  %v8725 = vsel %vm7552, %v8714, %v8716
  %8732 = vrot.lane.b32.xlu0 %v8283, 32
  %v8733 = vpop.permute.xlu0 %8732
  %8734 = vrot.lane.b32.xlu0 %v8284, 32
  %v8735 = vpop.permute.xlu0 %8734
  %8736 = vrot.lane.b32.xlu0 %v8285, 32
  %v8737 = vpop.permute.xlu0 %8736
  %8738 = vrot.lane.b32.xlu0 %v8286, 32
  %v8739 = vpop.permute.xlu0 %8738
  %8740 = vrot.lane.b32.xlu0 %v8287, 32
  %v8741 = vpop.permute.xlu0 %8740
  %8742 = vrot.lane.b32.xlu0 %v8288, 32
  %v8743 = vpop.permute.xlu0 %8742
  %8744 = vrot.lane.b32.xlu0 %v8289, 32
  %v8745 = vpop.permute.xlu0 %8744
  %8746 = vrot.lane.b32.xlu0 %v8290, 32
  %v8747 = vpop.permute.xlu0 %8746
  %8748 = vrot.lane.b32.xlu0 %v8291, 32
  %v8749 = vpop.permute.xlu0 %8748
  %8750 = vrot.lane.b32.xlu0 %v8292, 32
  %v8751 = vpop.permute.xlu0 %8750
  %8752 = vrot.lane.b32.xlu0 %v8293, 32
  %v8753 = vpop.permute.xlu0 %8752
  %8754 = vrot.lane.b32.xlu0 %v8294, 32
  %v8755 = vpop.permute.xlu0 %8754
  %v8756 = vsel %vm7552, %v8733, %v8735
  %v8757 = vsel %vm7552, %v8735, %v8737
  %v8758 = vsel %vm7552, %v8737, %v8739
  %v8759 = vsel %vm7552, %v8741, %v8743
  %v8760 = vsel %vm7552, %v8743, %v8745
  %v8761 = vsel %vm7552, %v8745, %v8747
  %v8762 = vsel %vm7552, %v8749, %v8751
  %v8763 = vsel %vm7552, %v8751, %v8753
  %v8764 = vsel %vm7552, %v8753, %v8755
  %v8771 = vrot.slane %v8359, 4
  %v8772 = vrot.slane %v8360, 4
  %v8773 = vrot.slane %v8361, 4
  %v8774 = vrot.slane %v8392, 4
  %v8775 = vrot.slane %v8393, 4
  %v8776 = vrot.slane %v8394, 4
  %v8777 = vrot.slane %v8362, 4
  %v8778 = vsel %vm1374, %v8771, %v8777
  %v8779 = vrot.slane %v8363, 4
  %v8780 = vsel %vm1374, %v8772, %v8779
  %v8781 = vrot.slane %v8364, 4
  %v8782 = vsel %vm1374, %v8773, %v8781
  %v8783 = vrot.slane %v8395, 4
  %v8784 = vsel %vm1374, %v8774, %v8783
  %v8785 = vrot.slane %v8396, 4
  %v8786 = vsel %vm1374, %v8775, %v8785
  %v8787 = vrot.slane %v8397, 4
  %v8788 = vsel %vm1374, %v8776, %v8787
  %v8789 = vrot.slane %v8365, 4
  %v8790 = vsel %vm1374, %v8777, %v8789
  %v8791 = vrot.slane %v8366, 4
  %v8792 = vsel %vm1374, %v8779, %v8791
  %v8793 = vrot.slane %v8367, 4
  %v8794 = vsel %vm1374, %v8781, %v8793
  %v8795 = vrot.slane %v8398, 4
  %v8796 = vsel %vm1374, %v8783, %v8795
  %v8797 = vrot.slane %v8399, 4
  %v8798 = vsel %vm1374, %v8785, %v8797
  %v8799 = vrot.slane %v8400, 4
  %v8800 = vsel %vm1374, %v8787, %v8799
  %v8813 = vrot.slane %v8505, 4
  %v8814 = vrot.slane %v8506, 4
  %v8815 = vrot.slane %v8507, 4
  %v8816 = vrot.slane %v8538, 4
  %v8817 = vrot.slane %v8539, 4
  %v8818 = vrot.slane %v8540, 4
  %v8819 = vrot.slane %v8508, 4
  %v8820 = vsel %vm1374, %v8813, %v8819
  %v8821 = vrot.slane %v8509, 4
  %v8822 = vsel %vm1374, %v8814, %v8821
  %v8823 = vrot.slane %v8510, 4
  %v8824 = vsel %vm1374, %v8815, %v8823
  %v8825 = vrot.slane %v8541, 4
  %v8826 = vsel %vm1374, %v8816, %v8825
  %v8827 = vrot.slane %v8542, 4
  %v8828 = vsel %vm1374, %v8817, %v8827
  %v8829 = vrot.slane %v8543, 4
  %v8830 = vsel %vm1374, %v8818, %v8829
  %v8831 = vrot.slane %v8511, 4
  %v8832 = vsel %vm1374, %v8819, %v8831
  %v8833 = vrot.slane %v8512, 4
  %v8834 = vsel %vm1374, %v8821, %v8833
  %v8835 = vrot.slane %v8513, 4
  %v8836 = vsel %vm1374, %v8823, %v8835
  %v8837 = vrot.slane %v8544, 4
  %v8838 = vsel %vm1374, %v8825, %v8837
  %v8839 = vrot.slane %v8545, 4
  %v8840 = vsel %vm1374, %v8827, %v8839
  %v8841 = vrot.slane %v8546, 4
  %v8842 = vsel %vm1374, %v8829, %v8841
  %v8855 = vrot.slane %v8651, 4
  %v8856 = vrot.slane %v8652, 4
  %v8857 = vrot.slane %v8653, 4
  %v8858 = vrot.slane %v8684, 4
  %v8859 = vrot.slane %v8685, 4
  %v8860 = vrot.slane %v8686, 4
  %v8861 = vrot.slane %v8654, 4
  %v8862 = vsel %vm1374, %v8855, %v8861
  %v8863 = vrot.slane %v8655, 4
  %v8864 = vsel %vm1374, %v8856, %v8863
  %v8865 = vrot.slane %v8656, 4
  %v8866 = vsel %vm1374, %v8857, %v8865
  %v8867 = vrot.slane %v8687, 4
  %v8868 = vsel %vm1374, %v8858, %v8867
  %v8869 = vrot.slane %v8688, 4
  %v8870 = vsel %vm1374, %v8859, %v8869
  %v8871 = vrot.slane %v8689, 4
  %v8872 = vsel %vm1374, %v8860, %v8871
  %v8873 = vrot.slane %v8657, 4
  %v8874 = vsel %vm1374, %v8861, %v8873
  %v8875 = vrot.slane %v8658, 4
  %v8876 = vsel %vm1374, %v8863, %v8875
  %v8877 = vrot.slane %v8659, 4
  %v8878 = vsel %vm1374, %v8865, %v8877
  %v8879 = vrot.slane %v8690, 4
  %v8880 = vsel %vm1374, %v8867, %v8879
  %v8881 = vrot.slane %v8691, 4
  %v8882 = vsel %vm1374, %v8869, %v8881
  %v8883 = vrot.slane %v8692, 4
  %v8884 = vsel %vm1374, %v8871, %v8883
  %v8899 = vsel %vm301, %v8244, %v8771
  %v8903 = vsel %vm301, %v8245, %v8772
  %v8907 = vsel %vm301, %v8246, %v8773
  %v8911 = vsel %vm301, %v8325, %v8774
  %v8915 = vsel %vm301, %v8326, %v8775
  %v8919 = vsel %vm301, %v8327, %v8776
  %v8923 = vsel %vm301, %v8432, %v8813
  %v8927 = vsel %vm301, %v8433, %v8814
  %v8931 = vsel %vm301, %v8434, %v8815
  %v8935 = vsel %vm301, %v8471, %v8816
  %v8939 = vsel %vm301, %v8472, %v8817
  %v8943 = vsel %vm301, %v8473, %v8818
  %v8947 = vsel %vm301, %v8578, %v8855
  %v8951 = vsel %vm301, %v8579, %v8856
  %v8955 = vsel %vm301, %v8580, %v8857
  %v8959 = vsel %vm301, %v8617, %v8858
  %v8963 = vsel %vm301, %v8618, %v8859
  %v8967 = vsel %vm301, %v8619, %v8860
  %v8969 = vld [vmem:[%s3 + $0x28] sm:$0xff]
  %v8970 = vld [vmem:[%s3 + $0x30] sm:$0xff]
  %v8971 = vld [vmem:[%s3 + $0x68] sm:$0xff]
  %v8972 = vld [vmem:[%s3 + $0x70] sm:$0xff]
  %v8973 = vld [vmem:[%s3 + $0xa8] sm:$0xff]
  %v8974 = vld [vmem:[%s3 + $0xb0] sm:$0xff]
  %v8975 = vld [vmem:[%s3 + $0xe8] sm:$0xff]
  %v8976 = vld [vmem:[%s3 + $0xf0] sm:$0xff]
  %v8977 = vld [vmem:[%s3 + $0x128] sm:$0xff]
  %v8978 = vld [vmem:[%s3 + $0x130] sm:$0xff]
  %v8979 = vld [vmem:[%s3 + $0x168] sm:$0xff]
  %v8980 = vld [vmem:[%s3 + $0x170] sm:$0xff]
  %v8981 = vld [vmem:[%s3 + $0x1a8] sm:$0x11]
  %v8982 = vld [vmem:[%s3 + $0x1b0] sm:$0x11]
  %v8997 = vunpack.c.l.b16 %v8969
  %v8998 = vunpack.c.h.b16 %v8969
  %v8999 = vunpack.c.l.b16 %v8970
  %v9000 = vunpack.c.h.b16 %v8970
  %v9001 = vunpack.c.l.b16 %v8971
  %v9002 = vunpack.c.h.b16 %v8971
  %v9003 = vunpack.c.l.b16 %v8972
  %v9004 = vunpack.c.h.b16 %v8972
  %v9005 = vunpack.c.l.b16 %v8973
  %v9006 = vunpack.c.h.b16 %v8973
  %v9007 = vunpack.c.l.b16 %v8974
  %v9008 = vunpack.c.h.b16 %v8974
  %v9009 = vunpack.c.l.b16 %v8975
  %v9010 = vunpack.c.h.b16 %v8975
  %v9011 = vunpack.c.l.b16 %v8976
  %v9012 = vunpack.c.h.b16 %v8976
  %v9013 = vunpack.c.l.b16 %v8977
  %v9014 = vunpack.c.h.b16 %v8977
  %v9015 = vunpack.c.l.b16 %v8978
  %v9016 = vunpack.c.h.b16 %v8978
  %v9017 = vunpack.c.l.b16 %v8979
  %v9018 = vunpack.c.h.b16 %v8979
  %v9019 = vunpack.c.l.b16 %v8980
  %v9020 = vunpack.c.h.b16 %v8980
  %v9021 = vunpack.c.l.b16 %v8981
  %v9022 = vunpack.c.h.b16 %v8981
  %v9023 = vunpack.c.l.b16 %v8982
  %v9024 = vunpack.c.h.b16 %v8982
  %v9025 = vpack.c.b16 %v9001, %v8997
  %v9026 = vpack.c.b16 %v9002, %v8998
  %v9027 = vpack.c.b16 %v9003, %v8999
  %v9028 = vpack.c.b16 %v9004, %v9000
  %v9029 = vpack.c.b16 %v9009, %v9005
  %v9030 = vpack.c.b16 %v9010, %v9006
  %v9031 = vpack.c.b16 %v9011, %v9007
  %v9032 = vpack.c.b16 %v9012, %v9008
  %v9033 = vpack.c.b16 %v9017, %v9013
  %v9034 = vpack.c.b16 %v9018, %v9014
  %v9035 = vpack.c.b16 %v9019, %v9015
  %v9036 = vpack.c.b16 %v9020, %v9016
  %v9037 = vpack.c.b16 %v9021, %v9021
  %v9038 = vpack.c.b16 %v9022, %v9022
  %v9039 = vpack.c.b16 %v9023, %v9023
  %v9040 = vpack.c.b16 %v9024, %v9024
  %9041 = vrot.lane.b32.xlu0 %v9025, 8
  %v9042 = vpop.permute.xlu0 %9041
  %9043 = vrot.lane.b32.xlu0 %v9026, 8
  %v9044 = vpop.permute.xlu0 %9043
  %9045 = vrot.lane.b32.xlu0 %v9027, 8
  %v9046 = vpop.permute.xlu0 %9045
  %9047 = vrot.lane.b32.xlu0 %v9028, 8
  %v9048 = vpop.permute.xlu0 %9047
  %9049 = vrot.lane.b32.xlu0 %v9029, 8
  %v9050 = vpop.permute.xlu0 %9049
  %9051 = vrot.lane.b32.xlu0 %v9030, 8
  %v9052 = vpop.permute.xlu0 %9051
  %9053 = vrot.lane.b32.xlu0 %v9031, 8
  %v9054 = vpop.permute.xlu0 %9053
  %9055 = vrot.lane.b32.xlu0 %v9032, 8
  %v9056 = vpop.permute.xlu0 %9055
  %9057 = vrot.lane.b32.xlu0 %v9033, 8
  %v9058 = vpop.permute.xlu0 %9057
  %9059 = vrot.lane.b32.xlu0 %v9034, 8
  %v9060 = vpop.permute.xlu0 %9059
  %9061 = vrot.lane.b32.xlu0 %v9035, 8
  %v9062 = vpop.permute.xlu0 %9061
  %9063 = vrot.lane.b32.xlu0 %v9036, 8
  %v9064 = vpop.permute.xlu0 %9063
  %9065 = vrot.lane.b32.xlu0 %v9037, 8
  %v9066 = vpop.permute.xlu0 %9065
  %9067 = vrot.lane.b32.xlu0 %v9038, 8
  %v9068 = vpop.permute.xlu0 %9067
  %9069 = vrot.lane.b32.xlu0 %v9039, 8
  %v9070 = vpop.permute.xlu0 %9069
  %9071 = vrot.lane.b32.xlu0 %v9040, 8
  %v9072 = vpop.permute.xlu0 %9071
  %vm9073 = vcmask 64512
  %v9074 = vsel %vm9073, %v9042, %v9044
  %v9075 = vsel %vm9073, %v9044, %v9046
  %v9076 = vsel %vm9073, %v9046, %v9048
  %v9077 = vsel %vm9073, %v9050, %v9052
  %v9078 = vsel %vm9073, %v9052, %v9054
  %v9079 = vsel %vm9073, %v9054, %v9056
  %v9080 = vsel %vm9073, %v9058, %v9060
  %v9081 = vsel %vm9073, %v9060, %v9062
  %v9082 = vsel %vm9073, %v9062, %v9064
  %v9083 = vsel %vm9073, %v9066, %v9068
  %v9084 = vsel %vm9073, %v9068, %v9070
  %v9085 = vsel %vm9073, %v9070, %v9072
  %v9095 = vsel %vm1642, %v9076, 0
  %v9098 = vsel %vm1642, %v9079, 0
  %v9101 = vsel %vm1642, %v9082, 0
  %v9104 = vsel %vm1642, %v9085, 0
  %v9107 = vsel %vm301, %v8723, 0
  %v9110 = vsel %vm301, %v8724, 0
  %v9113 = vsel %vm301, %v8725, 0
  %v9116 = vsel %vm301, %v8762, 0
  %v9119 = vsel %vm301, %v8763, 0
  %v9122 = vsel %vm301, %v8764, 0
  %9124 = vmatprep.subr.bf16.mxu0 %v8239
  %9125 = vmatpush1.bf16.msra.mxu0 %v8238
  %9126 = vmatprep.subr.bf16.mxu0 %v8242
  %9127 = vmatpush1.bf16.msra.mxu0 %v8241
  %9128 = vmatprep.subr.bf16.mxu0 %v8903
  %9129 = vmatpush1.bf16.msra.mxu0 %v8899
  %9130 = vmatprep.subr.bf16.mxu0 %v8780
  %9131 = vmatpush1.bf16.msra.mxu0 %v8778
  %9132 = vmatprep.subr.bf16.mxu0 %v8792
  %9133 = vmatpush1.bf16.msra.mxu0 %v8790
  %9134 = vmatprep.subr.bf16.mxu0 %v8427
  %9135 = vmatpush1.bf16.msra.mxu0 %v8426
  %9136 = vmatprep.subr.bf16.mxu0 %v8430
  %9137 = vmatpush1.bf16.msra.mxu0 %v8429
  %9138 = vmatprep.subr.bf16.mxu0 %v8927
  %9139 = vmatpush1.bf16.msra.mxu0 %v8923
  %9140 = vmatprep.subr.bf16.mxu0 %v8822
  %9141 = vmatpush1.bf16.msra.mxu0 %v8820
  %9142 = vmatprep.subr.bf16.mxu0 %v8834
  %9143 = vmatpush1.bf16.msra.mxu0 %v8832
  %9144 = vmatprep.subr.bf16.mxu0 %v8573
  %9145 = vmatpush1.bf16.msra.mxu0 %v8572
  %9146 = vmatprep.subr.bf16.mxu0 %v8576
  %9147 = vmatpush1.bf16.msra.mxu0 %v8575
  %9148 = vmatprep.subr.bf16.mxu0 %v8951
  %9149 = vmatpush1.bf16.msra.mxu0 %v8947
  %9150 = vmatprep.subr.bf16.mxu0 %v8864
  %9151 = vmatpush1.bf16.msra.mxu0 %v8862
  %9152 = vmatprep.subr.bf16.mxu0 %v8876
  %9153 = vmatpush1.bf16.msra.mxu0 %v8874
  %9154 = vmatprep.subr.bf16.mxu0 %v8718
  %9155 = vmatpush1.bf16.msra.mxu0 %v8717
  %9156 = vmatprep.mubr.bf16.mxu0 %v9075
  %9157 = vmatmul.mubr.bf16.gmra.mrb[0].mxu0 %v9074
  %v9158 = vpop.f32.mrb[0].mxu0
  %v9159 = vadd.f32 0.0, %v9158
  %v9160 = vpop.f32.mrb[0].mxu0
  %v9161 = vadd.f32 0.0, %v9160
  %v9162 = vpop.f32.mrb[0].mxu0
  %v9163 = vadd.f32 0.0, %v9162
  %v9164 = vpop.f32.mrb[0].mxu0
  %v9165 = vadd.f32 0.0, %v9164
  %9166 = vmatprep.mubr.bf16.mxu0 %v9078
  %9167 = vmatmul.mubr.bf16.gmra.mrb[0].mxu0 %v9077
  %v9168 = vpop.f32.mrb[0].mxu0
  %v9169 = vadd.f32 0.0, %v9168
  %v9170 = vpop.f32.mrb[0].mxu0
  %v9171 = vadd.f32 0.0, %v9170
  %v9172 = vpop.f32.mrb[0].mxu0
  %v9173 = vadd.f32 0.0, %v9172
  %v9174 = vpop.f32.mrb[0].mxu0
  %v9175 = vadd.f32 0.0, %v9174
  %9176 = vmatprep.mubr.bf16.mxu0 %v9081
  %9177 = vmatmul.mubr.bf16.gmra.mrb[0].mxu0 %v9080
  %v9178 = vpop.f32.mrb[0].mxu0
  %v9179 = vadd.f32 0.0, %v9178
  %v9180 = vpop.f32.mrb[0].mxu0
  %v9181 = vadd.f32 0.0, %v9180
  %v9182 = vpop.f32.mrb[0].mxu0
  %v9183 = vadd.f32 0.0, %v9182
  %v9184 = vpop.f32.mrb[0].mxu0
  %v9185 = vadd.f32 0.0, %v9184
  %9186 = vmatprep.mubr.bf16.mxu0 %v9084
  %9187 = vmatmul.mubr.bf16.gmra.mrb[0].mxu0 %v9083
  %v9188 = vpop.f32.mrb[0].mxu0
  %v9189 = vadd.f32 0.0, %v9188
  %v9190 = vpop.f32.mrb[0].mxu0
  %v9191 = vadd.f32 0.0, %v9190
  %v9192 = vpop.f32.mrb[0].mxu0
  %v9193 = vpop.f32.mrb[0].mxu0
  %9194 = vdwg.mxu0
  %9195 = vmatprep.subr.bf16.mxu0 %v8721
  %9196 = vmatpush1.bf16.msra.mxu0 %v8720
  %9197 = vmatprep.subr.bf16.mxu0 %v9110
  %9198 = vmatpush1.bf16.msra.mxu0 %v9107
  %9199 = vmatprep.subr.bf16.mxu0 0
  %9200 = vmatpush1.bf16.msra.mxu0 0
  %9201 = vmatprep.subr.bf16.mxu0 0
  %9202 = vmatpush1.bf16.msra.mxu0 0
  %9203 = vmatprep.subr.bf16.mxu0 0
  %9204 = vmatpush1.bf16.msra.mxu0 0
  %9205 = vmatprep.subr.bf16.mxu0 0
  %9206 = vmatpush1.bf16.msra.mxu0 0
  %9207 = vmatprep.subr.bf16.mxu0 0
  %9208 = vmatpush1.bf16.msra.mxu0 0
  %9209 = vmatprep.subr.bf16.mxu0 0
  %9210 = vmatpush1.bf16.msra.mxu0 0
  %9211 = vmatprep.subr.bf16.mxu0 0
  %9212 = vmatpush1.bf16.msra.mxu0 0
  %9213 = vmatprep.subr.bf16.mxu0 0
  %9214 = vmatpush1.bf16.msra.mxu0 0
  %9215 = vmatprep.subr.bf16.mxu0 0
  %9216 = vmatpush1.bf16.msra.mxu0 0
  %9217 = vmatprep.subr.bf16.mxu0 0
  %9218 = vmatpush1.bf16.msra.mxu0 0
  %9219 = vmatprep.subr.bf16.mxu0 0
  %9220 = vmatpush1.bf16.msra.mxu0 0
  %9221 = vmatprep.subr.bf16.mxu0 0
  %9222 = vmatpush1.bf16.msra.mxu0 0
  %9223 = vmatprep.subr.bf16.mxu0 0
  %9224 = vmatpush1.bf16.msra.mxu0 0
  %9225 = vmatprep.subr.bf16.mxu0 0
  %9226 = vmatpush1.bf16.msra.mxu0 0
  %9227 = vmatprep.mubr.bf16.mxu0 0
  %9228 = vmatmul.mubr.bf16.gmra.mrb[0].mxu0 %v9095
  %v9229 = vpop.f32.mrb[0].mxu0
  %v9230 = vadd.f32 %v9159, %v9229
  %v9231 = vpop.f32.mrb[0].mxu0
  %v9232 = vadd.f32 %v9161, %v9231
  %v9233 = vpop.f32.mrb[0].mxu0
  %v9234 = vadd.f32 %v9163, %v9233
  %v9235 = vpop.f32.mrb[0].mxu0
  %v9236 = vadd.f32 %v9165, %v9235
  %9237 = vmatprep.mubr.bf16.mxu0 0
  %9238 = vmatmul.mubr.bf16.gmra.mrb[0].mxu0 %v9098
  %v9239 = vpop.f32.mrb[0].mxu0
  %v9240 = vadd.f32 %v9169, %v9239
  %v9241 = vpop.f32.mrb[0].mxu0
  %v9242 = vadd.f32 %v9171, %v9241
  %v9243 = vpop.f32.mrb[0].mxu0
  %v9244 = vadd.f32 %v9173, %v9243
  %v9245 = vpop.f32.mrb[0].mxu0
  %v9246 = vadd.f32 %v9175, %v9245
  %9247 = vmatprep.mubr.bf16.mxu0 0
  %9248 = vmatmul.mubr.bf16.gmra.mrb[0].mxu0 %v9101
  %v9249 = vpop.f32.mrb[0].mxu0
  %v9250 = vadd.f32 %v9179, %v9249
  %v9251 = vpop.f32.mrb[0].mxu0
  %v9252 = vadd.f32 %v9181, %v9251
  %v9253 = vpop.f32.mrb[0].mxu0
  %v9254 = vadd.f32 %v9183, %v9253
  %v9255 = vpop.f32.mrb[0].mxu0
  %v9256 = vadd.f32 %v9185, %v9255
  %9257 = vmatprep.mubr.bf16.mxu0 0
  %9258 = vmatmul.mubr.bf16.gmra.mrb[0].mxu0 %v9104
  %v9259 = vpop.f32.mrb[0].mxu0
  %v9260 = vadd.f32 %v9189, %v9259
  %v9261 = vpop.f32.mrb[0].mxu0
  %v9262 = vadd.f32 %v9191, %v9261
  %v9263 = vpop.f32.mrb[0].mxu0
  %v9264 = vpop.f32.mrb[0].mxu0
  %9265 = vdwg.mxu0
  %9266 = vmatprep.subr.bf16.mxu0 %v8319
  %9267 = vmatpush1.bf16.msra.mxu0 %v8240
  %9268 = vmatprep.subr.bf16.mxu0 %v8322
  %9269 = vmatpush1.bf16.msra.mxu0 %v8243
  %9270 = vmatprep.subr.bf16.mxu0 %v8911
  %9271 = vmatpush1.bf16.msra.mxu0 %v8907
  %9272 = vmatprep.subr.bf16.mxu0 %v8784
  %9273 = vmatpush1.bf16.msra.mxu0 %v8782
  %9274 = vmatprep.subr.bf16.mxu0 %v8796
  %9275 = vmatpush1.bf16.msra.mxu0 %v8794
  %9276 = vmatprep.subr.bf16.mxu0 %v8465
  %9277 = vmatpush1.bf16.msra.mxu0 %v8428
  %9278 = vmatprep.subr.bf16.mxu0 %v8468
  %9279 = vmatpush1.bf16.msra.mxu0 %v8431
  %9280 = vmatprep.subr.bf16.mxu0 %v8935
  %9281 = vmatpush1.bf16.msra.mxu0 %v8931
  %9282 = vmatprep.subr.bf16.mxu0 %v8826
  %9283 = vmatpush1.bf16.msra.mxu0 %v8824
  %9284 = vmatprep.subr.bf16.mxu0 %v8838
  %9285 = vmatpush1.bf16.msra.mxu0 %v8836
  %9286 = vmatprep.subr.bf16.mxu0 %v8611
  %9287 = vmatpush1.bf16.msra.mxu0 %v8574
  %9288 = vmatprep.subr.bf16.mxu0 %v8614
  %9289 = vmatpush1.bf16.msra.mxu0 %v8577
  %9290 = vmatprep.subr.bf16.mxu0 %v8959
  %9291 = vmatpush1.bf16.msra.mxu0 %v8955
  %9292 = vmatprep.subr.bf16.mxu0 %v8868
  %9293 = vmatpush1.bf16.msra.mxu0 %v8866
  %9294 = vmatprep.subr.bf16.mxu0 %v8880
  %9295 = vmatpush1.bf16.msra.mxu0 %v8878
  %9296 = vmatprep.subr.bf16.mxu0 %v8756
  %9297 = vmatpush1.bf16.msra.mxu0 %v8719
  %9298 = vmatprep.mubr.bf16.mxu0 %v9075
  %9299 = vmatmul.mubr.bf16.gmra.mrb[0].mxu0 %v9074
  %v9300 = vpop.f32.mrb[0].mxu0
  %v9301 = vadd.f32 0.0, %v9300
  %v9302 = vpop.f32.mrb[0].mxu0
  %v9303 = vadd.f32 0.0, %v9302
  %v9304 = vpop.f32.mrb[0].mxu0
  %v9305 = vadd.f32 0.0, %v9304
  %v9306 = vpop.f32.mrb[0].mxu0
  %v9307 = vadd.f32 0.0, %v9306
  %9308 = vmatprep.mubr.bf16.mxu0 %v9078
  %9309 = vmatmul.mubr.bf16.gmra.mrb[0].mxu0 %v9077
  %v9310 = vpop.f32.mrb[0].mxu0
  %v9311 = vadd.f32 0.0, %v9310
  %v9312 = vpop.f32.mrb[0].mxu0
  %v9313 = vadd.f32 0.0, %v9312
  %v9314 = vpop.f32.mrb[0].mxu0
  %v9315 = vadd.f32 0.0, %v9314
  %v9316 = vpop.f32.mrb[0].mxu0
  %v9317 = vadd.f32 0.0, %v9316
  %9318 = vmatprep.mubr.bf16.mxu0 %v9081
  %9319 = vmatmul.mubr.bf16.gmra.mrb[0].mxu0 %v9080
  %v9320 = vpop.f32.mrb[0].mxu0
  %v9321 = vadd.f32 0.0, %v9320
  %v9322 = vpop.f32.mrb[0].mxu0
  %v9323 = vadd.f32 0.0, %v9322
  %v9324 = vpop.f32.mrb[0].mxu0
  %v9325 = vadd.f32 0.0, %v9324
  %v9326 = vpop.f32.mrb[0].mxu0
  %v9327 = vadd.f32 0.0, %v9326
  %9328 = vmatprep.mubr.bf16.mxu0 %v9084
  %9329 = vmatmul.mubr.bf16.gmra.mrb[0].mxu0 %v9083
  %v9330 = vpop.f32.mrb[0].mxu0
  %v9331 = vadd.f32 0.0, %v9330
  %v9332 = vpop.f32.mrb[0].mxu0
  %v9333 = vadd.f32 0.0, %v9332
  %v9334 = vpop.f32.mrb[0].mxu0
  %v9335 = vpop.f32.mrb[0].mxu0
  %9336 = vdwg.mxu0
  %9337 = vmatprep.subr.bf16.mxu0 %v8759
  %9338 = vmatpush1.bf16.msra.mxu0 %v8722
  %9339 = vmatprep.subr.bf16.mxu0 %v9116
  %9340 = vmatpush1.bf16.msra.mxu0 %v9113
  %9341 = vmatprep.subr.bf16.mxu0 0
  %9342 = vmatpush1.bf16.msra.mxu0 0
  %9343 = vmatprep.subr.bf16.mxu0 0
  %9344 = vmatpush1.bf16.msra.mxu0 0
  %9345 = vmatprep.subr.bf16.mxu0 0
  %9346 = vmatpush1.bf16.msra.mxu0 0
  %9347 = vmatprep.subr.bf16.mxu0 0
  %9348 = vmatpush1.bf16.msra.mxu0 0
  %9349 = vmatprep.subr.bf16.mxu0 0
  %9350 = vmatpush1.bf16.msra.mxu0 0
  %9351 = vmatprep.subr.bf16.mxu0 0
  %9352 = vmatpush1.bf16.msra.mxu0 0
  %9353 = vmatprep.subr.bf16.mxu0 0
  %9354 = vmatpush1.bf16.msra.mxu0 0
  %9355 = vmatprep.subr.bf16.mxu0 0
  %9356 = vmatpush1.bf16.msra.mxu0 0
  %9357 = vmatprep.subr.bf16.mxu0 0
  %9358 = vmatpush1.bf16.msra.mxu0 0
  %9359 = vmatprep.subr.bf16.mxu0 0
  %9360 = vmatpush1.bf16.msra.mxu0 0
  %9361 = vmatprep.subr.bf16.mxu0 0
  %9362 = vmatpush1.bf16.msra.mxu0 0
  %9363 = vmatprep.subr.bf16.mxu0 0
  %9364 = vmatpush1.bf16.msra.mxu0 0
  %9365 = vmatprep.subr.bf16.mxu0 0
  %9366 = vmatpush1.bf16.msra.mxu0 0
  %9367 = vmatprep.subr.bf16.mxu0 0
  %9368 = vmatpush1.bf16.msra.mxu0 0
  %9369 = vmatprep.mubr.bf16.mxu0 0
  %9370 = vmatmul.mubr.bf16.gmra.mrb[0].mxu0 %v9095
  %v9371 = vpop.f32.mrb[0].mxu0
  %v9372 = vadd.f32 %v9301, %v9371
  %v9373 = vpop.f32.mrb[0].mxu0
  %v9374 = vadd.f32 %v9303, %v9373
  %v9375 = vpop.f32.mrb[0].mxu0
  %v9376 = vadd.f32 %v9305, %v9375
  %v9377 = vpop.f32.mrb[0].mxu0
  %v9378 = vadd.f32 %v9307, %v9377
  %9379 = vmatprep.mubr.bf16.mxu0 0
  %9380 = vmatmul.mubr.bf16.gmra.mrb[0].mxu0 %v9098
  %v9381 = vpop.f32.mrb[0].mxu0
  %v9382 = vadd.f32 %v9311, %v9381
  %v9383 = vpop.f32.mrb[0].mxu0
  %v9384 = vadd.f32 %v9313, %v9383
  %v9385 = vpop.f32.mrb[0].mxu0
  %v9386 = vadd.f32 %v9315, %v9385
  %v9387 = vpop.f32.mrb[0].mxu0
  %v9388 = vadd.f32 %v9317, %v9387
  %9389 = vmatprep.mubr.bf16.mxu0 0
  %9390 = vmatmul.mubr.bf16.gmra.mrb[0].mxu0 %v9101
  %v9391 = vpop.f32.mrb[0].mxu0
  %v9392 = vadd.f32 %v9321, %v9391
  %v9393 = vpop.f32.mrb[0].mxu0
  %v9394 = vadd.f32 %v9323, %v9393
  %v9395 = vpop.f32.mrb[0].mxu0
  %v9396 = vadd.f32 %v9325, %v9395
  %v9397 = vpop.f32.mrb[0].mxu0
  %v9398 = vadd.f32 %v9327, %v9397
  %9399 = vmatprep.mubr.bf16.mxu0 0
  %9400 = vmatmul.mubr.bf16.gmra.mrb[0].mxu0 %v9104
  %v9401 = vpop.f32.mrb[0].mxu0
  %v9402 = vadd.f32 %v9331, %v9401
  %v9403 = vpop.f32.mrb[0].mxu0
  %v9404 = vadd.f32 %v9333, %v9403
  %v9405 = vpop.f32.mrb[0].mxu0
  %v9406 = vpop.f32.mrb[0].mxu0
  %9407 = vdwg.mxu0
  %9408 = vmatprep.subr.bf16.mxu0 %v8321
  %9409 = vmatpush1.bf16.msra.mxu0 %v8320
  %9410 = vmatprep.subr.bf16.mxu0 %v8324
  %9411 = vmatpush1.bf16.msra.mxu0 %v8323
  %9412 = vmatprep.subr.bf16.mxu0 %v8919
  %9413 = vmatpush1.bf16.msra.mxu0 %v8915
  %9414 = vmatprep.subr.bf16.mxu0 %v8788
  %9415 = vmatpush1.bf16.msra.mxu0 %v8786
  %9416 = vmatprep.subr.bf16.mxu0 %v8800
  %9417 = vmatpush1.bf16.msra.mxu0 %v8798
  %9418 = vmatprep.subr.bf16.mxu0 %v8467
  %9419 = vmatpush1.bf16.msra.mxu0 %v8466
  %9420 = vmatprep.subr.bf16.mxu0 %v8470
  %9421 = vmatpush1.bf16.msra.mxu0 %v8469
  %9422 = vmatprep.subr.bf16.mxu0 %v8943
  %9423 = vmatpush1.bf16.msra.mxu0 %v8939
  %9424 = vmatprep.subr.bf16.mxu0 %v8830
  %9425 = vmatpush1.bf16.msra.mxu0 %v8828
  %9426 = vmatprep.subr.bf16.mxu0 %v8842
  %9427 = vmatpush1.bf16.msra.mxu0 %v8840
  %9428 = vmatprep.subr.bf16.mxu0 %v8613
  %9429 = vmatpush1.bf16.msra.mxu0 %v8612
  %9430 = vmatprep.subr.bf16.mxu0 %v8616
  %9431 = vmatpush1.bf16.msra.mxu0 %v8615
  %9432 = vmatprep.subr.bf16.mxu0 %v8967
  %9433 = vmatpush1.bf16.msra.mxu0 %v8963
  %9434 = vmatprep.subr.bf16.mxu0 %v8872
  %9435 = vmatpush1.bf16.msra.mxu0 %v8870
  %9436 = vmatprep.subr.bf16.mxu0 %v8884
  %9437 = vmatpush1.bf16.msra.mxu0 %v8882
  %9438 = vmatprep.subr.bf16.mxu0 %v8758
  %9439 = vmatpush1.bf16.msra.mxu0 %v8757
  %9440 = vmatprep.mubr.bf16.mxu0 %v9075
  %9441 = vmatmul.mubr.bf16.gmra.mrb[0].mxu0 %v9074
  %v9442 = vpop.f32.mrb[0].mxu0
  %v9443 = vadd.f32 0.0, %v9442
  %v9444 = vpop.f32.mrb[0].mxu0
  %v9445 = vadd.f32 0.0, %v9444
  %v9446 = vpop.f32.mrb[0].mxu0
  %v9447 = vadd.f32 0.0, %v9446
  %v9448 = vpop.f32.mrb[0].mxu0
  %v9449 = vadd.f32 0.0, %v9448
  %9450 = vmatprep.mubr.bf16.mxu0 %v9078
  %9451 = vmatmul.mubr.bf16.gmra.mrb[0].mxu0 %v9077
  %v9452 = vpop.f32.mrb[0].mxu0
  %v9453 = vadd.f32 0.0, %v9452
  %v9454 = vpop.f32.mrb[0].mxu0
  %v9455 = vadd.f32 0.0, %v9454
  %v9456 = vpop.f32.mrb[0].mxu0
  %v9457 = vadd.f32 0.0, %v9456
  %v9458 = vpop.f32.mrb[0].mxu0
  %v9459 = vadd.f32 0.0, %v9458
  %9460 = vmatprep.mubr.bf16.mxu0 %v9081
  %9461 = vmatmul.mubr.bf16.gmra.mrb[0].mxu0 %v9080
  %v9462 = vpop.f32.mrb[0].mxu0
  %v9463 = vadd.f32 0.0, %v9462
  %v9464 = vpop.f32.mrb[0].mxu0
  %v9465 = vadd.f32 0.0, %v9464
  %v9466 = vpop.f32.mrb[0].mxu0
  %v9467 = vadd.f32 0.0, %v9466
  %v9468 = vpop.f32.mrb[0].mxu0
  %v9469 = vadd.f32 0.0, %v9468
  %9470 = vmatprep.mubr.bf16.mxu0 %v9084
  %9471 = vmatmul.mubr.bf16.gmra.mrb[0].mxu0 %v9083
  %v9472 = vpop.f32.mrb[0].mxu0
  %v9473 = vadd.f32 0.0, %v9472
  %v9474 = vpop.f32.mrb[0].mxu0
  %v9475 = vadd.f32 0.0, %v9474
  %v9476 = vpop.f32.mrb[0].mxu0
  %v9477 = vpop.f32.mrb[0].mxu0
  %9478 = vdwg.mxu0
  %9479 = vmatprep.subr.bf16.mxu0 %v8761
  %9480 = vmatpush1.bf16.msra.mxu0 %v8760
  %9481 = vmatprep.subr.bf16.mxu0 %v9122
  %9482 = vmatpush1.bf16.msra.mxu0 %v9119
  %9483 = vmatprep.subr.bf16.mxu0 0
  %9484 = vmatpush1.bf16.msra.mxu0 0
  %9485 = vmatprep.subr.bf16.mxu0 0
  %9486 = vmatpush1.bf16.msra.mxu0 0
  %9487 = vmatprep.subr.bf16.mxu0 0
  %9488 = vmatpush1.bf16.msra.mxu0 0
  %9489 = vmatprep.subr.bf16.mxu0 0
  %9490 = vmatpush1.bf16.msra.mxu0 0
  %9491 = vmatprep.subr.bf16.mxu0 0
  %9492 = vmatpush1.bf16.msra.mxu0 0
  %9493 = vmatprep.subr.bf16.mxu0 0
  %9494 = vmatpush1.bf16.msra.mxu0 0
  %9495 = vmatprep.subr.bf16.mxu0 0
  %9496 = vmatpush1.bf16.msra.mxu0 0
  %9497 = vmatprep.subr.bf16.mxu0 0
  %9498 = vmatpush1.bf16.msra.mxu0 0
  %9499 = vmatprep.subr.bf16.mxu0 0
  %9500 = vmatpush1.bf16.msra.mxu0 0
  %9501 = vmatprep.subr.bf16.mxu0 0
  %9502 = vmatpush1.bf16.msra.mxu0 0
  %9503 = vmatprep.subr.bf16.mxu0 0
  %9504 = vmatpush1.bf16.msra.mxu0 0
  %9505 = vmatprep.subr.bf16.mxu0 0
  %9506 = vmatpush1.bf16.msra.mxu0 0
  %9507 = vmatprep.subr.bf16.mxu0 0
  %9508 = vmatpush1.bf16.msra.mxu0 0
  %9509 = vmatprep.subr.bf16.mxu0 0
  %9510 = vmatpush1.bf16.msra.mxu0 0
  %9511 = vmatprep.mubr.bf16.mxu0 0
  %9512 = vmatmul.mubr.bf16.gmra.mrb[0].mxu0 %v9095
  %v9513 = vpop.f32.mrb[0].mxu0
  %v9514 = vadd.f32 %v9443, %v9513
  %v9515 = vpop.f32.mrb[0].mxu0
  %v9516 = vadd.f32 %v9445, %v9515
  %v9517 = vpop.f32.mrb[0].mxu0
  %v9518 = vadd.f32 %v9447, %v9517
  %v9519 = vpop.f32.mrb[0].mxu0
  %v9520 = vadd.f32 %v9449, %v9519
  %9521 = vmatprep.mubr.bf16.mxu0 0
  %9522 = vmatmul.mubr.bf16.gmra.mrb[0].mxu0 %v9098
  %v9523 = vpop.f32.mrb[0].mxu0
  %v9524 = vadd.f32 %v9453, %v9523
  %v9525 = vpop.f32.mrb[0].mxu0
  %v9526 = vadd.f32 %v9455, %v9525
  %v9527 = vpop.f32.mrb[0].mxu0
  %v9528 = vadd.f32 %v9457, %v9527
  %v9529 = vpop.f32.mrb[0].mxu0
  %v9530 = vadd.f32 %v9459, %v9529
  %9531 = vmatprep.mubr.bf16.mxu0 0
  %9532 = vmatmul.mubr.bf16.gmra.mrb[0].mxu0 %v9101
  %v9533 = vpop.f32.mrb[0].mxu0
  %v9534 = vadd.f32 %v9463, %v9533
  %v9535 = vpop.f32.mrb[0].mxu0
  %v9536 = vadd.f32 %v9465, %v9535
  %v9537 = vpop.f32.mrb[0].mxu0
  %v9538 = vadd.f32 %v9467, %v9537
  %v9539 = vpop.f32.mrb[0].mxu0
  %v9540 = vadd.f32 %v9469, %v9539
  %9541 = vmatprep.mubr.bf16.mxu0 0
  %9542 = vmatmul.mubr.bf16.gmra.mrb[0].mxu0 %v9104
  %v9543 = vpop.f32.mrb[0].mxu0
  %v9544 = vadd.f32 %v9473, %v9543
  %v9545 = vpop.f32.mrb[0].mxu0
  %v9546 = vadd.f32 %v9475, %v9545
  %v9547 = vpop.f32.mrb[0].mxu0
  %v9548 = vpop.f32.mrb[0].mxu0
  %9549 = vdwg.mxu0
  %v9550 = vld [vmem:[#allocation3] sm:$0xff]
  %v9551 = vld [vmem:[#allocation3 + $0x8] sm:$0xff]
  %v9552 = vld [vmem:[#allocation3 + $0x10] sm:$0xff]
  %v9553 = vld [vmem:[#allocation3 + $0x18] sm:$0xff]
  %v9554 = vld [vmem:[#allocation3 + $0x20] sm:$0xff]
  %v9555 = vld [vmem:[#allocation3 + $0x28] sm:$0xff]
  %v9556 = vld [vmem:[#allocation3 + $0x30] sm:$0xff]
  %v9557 = vld [vmem:[#allocation3 + $0x38] sm:$0xff]
  %v9558 = vld [vmem:[#allocation3 + $0x40] sm:$0xff]
  %v9559 = vld [vmem:[#allocation3 + $0x48] sm:$0xff]
  %v9560 = vld [vmem:[#allocation3 + $0x50] sm:$0xff]
  %v9561 = vld [vmem:[#allocation3 + $0x58] sm:$0xff]
  %v9562 = vld [vmem:[#allocation3 + $0x60] sm:$0xff]
  %v9563 = vld [vmem:[#allocation3 + $0x68] sm:$0xff]
  %v9564 = vld [vmem:[#allocation3 + $0x70] sm:$0xff]
  %v9565 = vld [vmem:[#allocation3 + $0x78] sm:$0xff]
  %v9566 = vld [vmem:[#allocation3 + $0x80] sm:$0xff]
  %v9567 = vld [vmem:[#allocation3 + $0x88] sm:$0xff]
  %v9568 = vld [vmem:[#allocation3 + $0x90] sm:$0xff]
  %v9569 = vld [vmem:[#allocation3 + $0x98] sm:$0xff]
  %v9570 = vld [vmem:[#allocation3 + $0xa0] sm:$0xff]
  %v9571 = vld [vmem:[#allocation3 + $0xa8] sm:$0xff]
  %v9572 = vld [vmem:[#allocation3 + $0xb0] sm:$0xff]
  %v9573 = vld [vmem:[#allocation3 + $0xb8] sm:$0xff]
  %v9574 = vld [vmem:[#allocation3 + $0xc0] sm:$0xff]
  %v9575 = vld [vmem:[#allocation3 + $0xc8] sm:$0xff]
  %v9576 = vld [vmem:[#allocation3 + $0xd0] sm:$0xff]
  %v9577 = vld [vmem:[#allocation3 + $0xd8] sm:$0xff]
  %v9578 = vld [vmem:[#allocation3 + $0xe0] sm:$0xff]
  %v9579 = vld [vmem:[#allocation3 + $0xe8] sm:$0xff]
  %v9580 = vld [vmem:[#allocation3 + $0xf0] sm:$0xff]
  %v9581 = vld [vmem:[#allocation3 + $0xf8] sm:$0xff]
  %v9582 = vld [vmem:[#allocation3 + $0x100] sm:$0xff]
  %v9583 = vld [vmem:[#allocation3 + $0x108] sm:$0xff]
  %v9584 = vld [vmem:[#allocation3 + $0x110] sm:$0xff]
  %v9585 = vld [vmem:[#allocation3 + $0x118] sm:$0xff]
  %v9586 = vld [vmem:[#allocation3 + $0x120] sm:$0x3]
  %v9587 = vld [vmem:[#allocation3 + $0x128] sm:$0x3]
  %v9588 = vld [vmem:[#allocation3 + $0x130] sm:$0x3]
  %v9589 = vld [vmem:[#allocation3 + $0x138] sm:$0x3]
  %v9590 = vld [vmem:[#allocation3 + $0x140] sm:$0x3]
  %v9591 = vld [vmem:[#allocation3 + $0x148] sm:$0x3]
  %v9592 = vadd.f32 %v9550, %v9230
  %v9593 = vadd.f32 %v9551, %v9232
  %v9594 = vadd.f32 %v9552, %v9372
  %v9595 = vadd.f32 %v9553, %v9374
  %v9596 = vadd.f32 %v9554, %v9514
  %v9597 = vadd.f32 %v9555, %v9516
  %v9598 = vadd.f32 %v9556, %v9234
  %v9599 = vadd.f32 %v9557, %v9236
  %v9600 = vadd.f32 %v9558, %v9376
  %v9601 = vadd.f32 %v9559, %v9378
  %v9602 = vadd.f32 %v9560, %v9518
  %v9603 = vadd.f32 %v9561, %v9520
  %v9604 = vadd.f32 %v9562, %v9240
  %v9605 = vadd.f32 %v9563, %v9242
  %v9606 = vadd.f32 %v9564, %v9382
  %v9607 = vadd.f32 %v9565, %v9384
  %v9608 = vadd.f32 %v9566, %v9524
  %v9609 = vadd.f32 %v9567, %v9526
  %v9610 = vadd.f32 %v9568, %v9244
  %v9611 = vadd.f32 %v9569, %v9246
  %v9612 = vadd.f32 %v9570, %v9386
  %v9613 = vadd.f32 %v9571, %v9388
  %v9614 = vadd.f32 %v9572, %v9528
  %v9615 = vadd.f32 %v9573, %v9530
  %v9616 = vadd.f32 %v9574, %v9250
  %v9617 = vadd.f32 %v9575, %v9252
  %v9618 = vadd.f32 %v9576, %v9392
  %v9619 = vadd.f32 %v9577, %v9394
  %v9620 = vadd.f32 %v9578, %v9534
  %v9621 = vadd.f32 %v9579, %v9536
  %v9622 = vadd.f32 %v9580, %v9254
  %v9623 = vadd.f32 %v9581, %v9256
  %v9624 = vadd.f32 %v9582, %v9396
  %v9625 = vadd.f32 %v9583, %v9398
  %v9626 = vadd.f32 %v9584, %v9538
  %v9627 = vadd.f32 %v9585, %v9540
  %v9628 = vadd.f32 %v9586, %v9260
  %v9629 = vadd.f32 %v9587, %v9262
  %v9630 = vadd.f32 %v9588, %v9402
  %v9631 = vadd.f32 %v9589, %v9404
  %v9632 = vadd.f32 %v9590, %v9544
  %v9633 = vadd.f32 %v9591, %v9546
  %9634 = vst [vmem:[#allocation3] sm:$0xff] %v9592
  %9635 = vst [vmem:[#allocation3 + $0x8] sm:$0xff] %v9593
  %9636 = vst [vmem:[#allocation3 + $0x10] sm:$0xff] %v9594
  %9637 = vst [vmem:[#allocation3 + $0x18] sm:$0xff] %v9595
  %9638 = vst [vmem:[#allocation3 + $0x20] sm:$0xff] %v9596
  %9639 = vst [vmem:[#allocation3 + $0x28] sm:$0xff] %v9597
  %9640 = vst [vmem:[#allocation3 + $0x30] sm:$0xff] %v9598
  %9641 = vst [vmem:[#allocation3 + $0x38] sm:$0xff] %v9599
  %9642 = vst [vmem:[#allocation3 + $0x40] sm:$0xff] %v9600
  %9643 = vst [vmem:[#allocation3 + $0x48] sm:$0xff] %v9601
  %9644 = vst [vmem:[#allocation3 + $0x50] sm:$0xff] %v9602
  %9645 = vst [vmem:[#allocation3 + $0x58] sm:$0xff] %v9603
  %9646 = vst [vmem:[#allocation3 + $0x60] sm:$0xff] %v9604
  %9647 = vst [vmem:[#allocation3 + $0x68] sm:$0xff] %v9605
  %9648 = vst [vmem:[#allocation3 + $0x70] sm:$0xff] %v9606
  %9649 = vst [vmem:[#allocation3 + $0x78] sm:$0xff] %v9607
  %9650 = vst [vmem:[#allocation3 + $0x80] sm:$0xff] %v9608
  %9651 = vst [vmem:[#allocation3 + $0x88] sm:$0xff] %v9609
  %9652 = vst [vmem:[#allocation3 + $0x90] sm:$0xff] %v9610
  %9653 = vst [vmem:[#allocation3 + $0x98] sm:$0xff] %v9611
  %9654 = vst [vmem:[#allocation3 + $0xa0] sm:$0xff] %v9612
  %9655 = vst [vmem:[#allocation3 + $0xa8] sm:$0xff] %v9613
  %9656 = vst [vmem:[#allocation3 + $0xb0] sm:$0xff] %v9614
  %9657 = vst [vmem:[#allocation3 + $0xb8] sm:$0xff] %v9615
  %9658 = vst [vmem:[#allocation3 + $0xc0] sm:$0xff] %v9616
  %9659 = vst [vmem:[#allocation3 + $0xc8] sm:$0xff] %v9617
  %9660 = vst [vmem:[#allocation3 + $0xd0] sm:$0xff] %v9618
  %9661 = vst [vmem:[#allocation3 + $0xd8] sm:$0xff] %v9619
  %9662 = vst [vmem:[#allocation3 + $0xe0] sm:$0xff] %v9620
  %9663 = vst [vmem:[#allocation3 + $0xe8] sm:$0xff] %v9621
  %9664 = vst [vmem:[#allocation3 + $0xf0] sm:$0xff] %v9622
  %9665 = vst [vmem:[#allocation3 + $0xf8] sm:$0xff] %v9623
  %9666 = vst [vmem:[#allocation3 + $0x100] sm:$0xff] %v9624
  %9667 = vst [vmem:[#allocation3 + $0x108] sm:$0xff] %v9625
  %9668 = vst [vmem:[#allocation3 + $0x110] sm:$0xff] %v9626
  %9669 = vst [vmem:[#allocation3 + $0x118] sm:$0xff] %v9627
  %9670 = vst [vmem:[#allocation3 + $0x120] sm:$0x3] %v9628
  %9671 = vst [vmem:[#allocation3 + $0x128] sm:$0x3] %v9629
  %9672 = vst [vmem:[#allocation3 + $0x130] sm:$0x3] %v9630
  %9673 = vst [vmem:[#allocation3 + $0x138] sm:$0x3] %v9631
  %9674 = vst [vmem:[#allocation3 + $0x140] sm:$0x3] %v9632
  %9675 = vst [vmem:[#allocation3 + $0x148] sm:$0x3] %v9633
  %v9676 = vld [vmem:[#allocation2] sm:$0xff]
  %v9677 = vld [vmem:[#allocation2 + $0x8] sm:$0xff]
  %v9678 = vld [vmem:[#allocation2 + $0x20] sm:$0xff]
  %v9679 = vld [vmem:[#allocation2 + $0x28] sm:$0xff]
  %v9680 = vld [vmem:[#allocation2 + $0x40] sm:$0xff]
  %v9681 = vld [vmem:[#allocation2 + $0x48] sm:$0xff]
  %v9682 = vld [vmem:[#allocation2 + $0x60] sm:$0xff]
  %v9683 = vld [vmem:[#allocation2 + $0x68] sm:$0xff]
  %v9684 = vld [vmem:[#allocation2 + $0x80] sm:$0xff]
  %v9685 = vld [vmem:[#allocation2 + $0x88] sm:$0xff]
  %v9686 = vld [vmem:[#allocation2 + $0x10] sm:$0xff]
  %v9687 = vld [vmem:[#allocation2 + $0x18] sm:$0xff]
  %v9688 = vld [vmem:[#allocation2 + $0x30] sm:$0xff]
  %v9689 = vld [vmem:[#allocation2 + $0x38] sm:$0xff]
  %v9690 = vld [vmem:[#allocation2 + $0x50] sm:$0xff]
  %v9691 = vld [vmem:[#allocation2 + $0x58] sm:$0xff]
  %v9692 = vld [vmem:[#allocation2 + $0x70] sm:$0xff]
  %v9693 = vld [vmem:[#allocation2 + $0x78] sm:$0xff]
  %v9694 = vld [vmem:[#allocation2 + $0x90] sm:$0xff]
  %v9695 = vld [vmem:[#allocation2 + $0x98] sm:$0xff]
  %v9706 = vunpack.c.l.b16 %v9676
  %v9707 = vunpack.c.h.b16 %v9676
  %v9708 = vunpack.c.l.b16 %v9677
  %v9709 = vunpack.c.h.b16 %v9677
  %v9710 = vunpack.c.l.b16 %v9678
  %v9711 = vunpack.c.h.b16 %v9678
  %v9712 = vunpack.c.l.b16 %v9679
  %v9713 = vunpack.c.h.b16 %v9679
  %v9714 = vunpack.c.l.b16 %v9680
  %v9715 = vunpack.c.h.b16 %v9680
  %v9716 = vunpack.c.l.b16 %v9681
  %v9717 = vunpack.c.h.b16 %v9681
  %v9718 = vunpack.c.l.b16 %v9682
  %v9719 = vunpack.c.h.b16 %v9682
  %v9720 = vunpack.c.l.b16 %v9683
  %v9721 = vunpack.c.h.b16 %v9683
  %v9722 = vunpack.c.l.b16 %v9684
  %v9723 = vunpack.c.h.b16 %v9684
  %v9724 = vunpack.c.l.b16 %v9685
  %v9725 = vunpack.c.h.b16 %v9685
  %v9726 = vpack.c.b16 %v9710, %v9706
  %v9727 = vpack.c.b16 %v9711, %v9707
  %v9728 = vpack.c.b16 %v9712, %v9708
  %v9729 = vpack.c.b16 %v9713, %v9709
  %v9730 = vpack.c.b16 %v9718, %v9714
  %v9731 = vpack.c.b16 %v9719, %v9715
  %v9732 = vpack.c.b16 %v9720, %v9716
  %v9733 = vpack.c.b16 %v9721, %v9717
  %v9734 = vpack.c.b16 %v9722, %v9722
  %v9735 = vpack.c.b16 %v9723, %v9723
  %v9736 = vpack.c.b16 %v9724, %v9724
  %v9737 = vpack.c.b16 %v9725, %v9725
  %9738 = vrot.lane.b32.xlu0 %v9726, 20
  %v9739 = vpop.permute.xlu0 %9738
  %9740 = vrot.lane.b32.xlu0 %v9727, 20
  %v9741 = vpop.permute.xlu0 %9740
  %9742 = vrot.lane.b32.xlu0 %v9728, 20
  %v9743 = vpop.permute.xlu0 %9742
  %9744 = vrot.lane.b32.xlu0 %v9729, 20
  %v9745 = vpop.permute.xlu0 %9744
  %9746 = vrot.lane.b32.xlu0 %v9730, 20
  %v9747 = vpop.permute.xlu0 %9746
  %9748 = vrot.lane.b32.xlu0 %v9731, 20
  %v9749 = vpop.permute.xlu0 %9748
  %9750 = vrot.lane.b32.xlu0 %v9732, 20
  %v9751 = vpop.permute.xlu0 %9750
  %9752 = vrot.lane.b32.xlu0 %v9733, 20
  %v9753 = vpop.permute.xlu0 %9752
  %9754 = vrot.lane.b32.xlu0 %v9734, 20
  %v9755 = vpop.permute.xlu0 %9754
  %9756 = vrot.lane.b32.xlu0 %v9735, 20
  %v9757 = vpop.permute.xlu0 %9756
  %9758 = vrot.lane.b32.xlu0 %v9736, 20
  %v9759 = vpop.permute.xlu0 %9758
  %9760 = vrot.lane.b32.xlu0 %v9737, 20
  %v9761 = vpop.permute.xlu0 %9760
  %vm9762 = vcmask 162816
  %v9763 = vsel %vm9762, %v9739, %v9741
  %v9764 = vsel %vm9762, %v9741, %v9743
  %v9765 = vsel %vm9762, %v9743, %v9745
  %v9766 = vsel %vm9762, %v9747, %v9749
  %v9767 = vsel %vm9762, %v9749, %v9751
  %v9768 = vsel %vm9762, %v9751, %v9753
  %v9769 = vsel %vm9762, %v9755, %v9757
  %v9770 = vsel %vm9762, %v9757, %v9759
  %v9771 = vsel %vm9762, %v9759, %v9761
  %v9788 = vunpack.c.l.b16 %v9686
  %v9789 = vunpack.c.h.b16 %v9686
  %v9790 = vunpack.c.l.b16 %v9687
  %v9791 = vunpack.c.h.b16 %v9687
  %v9792 = vunpack.c.l.b16 %v9688
  %v9793 = vunpack.c.h.b16 %v9688
  %v9794 = vunpack.c.l.b16 %v9689
  %v9795 = vunpack.c.h.b16 %v9689
  %v9796 = vunpack.c.l.b16 %v9690
  %v9797 = vunpack.c.h.b16 %v9690
  %v9798 = vunpack.c.l.b16 %v9691
  %v9799 = vunpack.c.h.b16 %v9691
  %v9800 = vunpack.c.l.b16 %v9692
  %v9801 = vunpack.c.h.b16 %v9692
  %v9802 = vunpack.c.l.b16 %v9693
  %v9803 = vunpack.c.h.b16 %v9693
  %v9804 = vunpack.c.l.b16 %v9694
  %v9805 = vunpack.c.h.b16 %v9694
  %v9806 = vunpack.c.l.b16 %v9695
  %v9807 = vunpack.c.h.b16 %v9695
  %v9808 = vpack.c.b16 %v9792, %v9788
  %v9809 = vpack.c.b16 %v9793, %v9789
  %v9810 = vpack.c.b16 %v9794, %v9790
  %v9811 = vpack.c.b16 %v9795, %v9791
  %v9812 = vpack.c.b16 %v9800, %v9796
  %v9813 = vpack.c.b16 %v9801, %v9797
  %v9814 = vpack.c.b16 %v9802, %v9798
  %v9815 = vpack.c.b16 %v9803, %v9799
  %v9816 = vpack.c.b16 %v9804, %v9804
  %v9817 = vpack.c.b16 %v9805, %v9805
  %v9818 = vpack.c.b16 %v9806, %v9806
  %v9819 = vpack.c.b16 %v9807, %v9807
  %9820 = vrot.lane.b32.xlu0 %v9808, 20
  %v9821 = vpop.permute.xlu0 %9820
  %9822 = vrot.lane.b32.xlu0 %v9809, 20
  %v9823 = vpop.permute.xlu0 %9822
  %9824 = vrot.lane.b32.xlu0 %v9810, 20
  %v9825 = vpop.permute.xlu0 %9824
  %9826 = vrot.lane.b32.xlu0 %v9811, 20
  %v9827 = vpop.permute.xlu0 %9826
  %9828 = vrot.lane.b32.xlu0 %v9812, 20
  %v9829 = vpop.permute.xlu0 %9828
  %9830 = vrot.lane.b32.xlu0 %v9813, 20
  %v9831 = vpop.permute.xlu0 %9830
  %9832 = vrot.lane.b32.xlu0 %v9814, 20
  %v9833 = vpop.permute.xlu0 %9832
  %9834 = vrot.lane.b32.xlu0 %v9815, 20
  %v9835 = vpop.permute.xlu0 %9834
  %9836 = vrot.lane.b32.xlu0 %v9816, 20
  %v9837 = vpop.permute.xlu0 %9836
  %9838 = vrot.lane.b32.xlu0 %v9817, 20
  %v9839 = vpop.permute.xlu0 %9838
  %9840 = vrot.lane.b32.xlu0 %v9818, 20
  %v9841 = vpop.permute.xlu0 %9840
  %9842 = vrot.lane.b32.xlu0 %v9819, 20
  %v9843 = vpop.permute.xlu0 %9842
  %v9844 = vsel %vm9762, %v9821, %v9823
  %v9845 = vsel %vm9762, %v9823, %v9825
  %v9846 = vsel %vm9762, %v9825, %v9827
  %v9847 = vsel %vm9762, %v9829, %v9831
  %v9848 = vsel %vm9762, %v9831, %v9833
  %v9849 = vsel %vm9762, %v9833, %v9835
  %v9850 = vsel %vm9762, %v9837, %v9839
  %v9851 = vsel %vm9762, %v9839, %v9841
  %v9852 = vsel %vm9762, %v9841, %v9843
  %9859 = vrot.lane.b32.xlu0 %v9726, 19
  %v9860 = vpop.permute.xlu0 %9859
  %9861 = vrot.lane.b32.xlu0 %v9727, 19
  %v9862 = vpop.permute.xlu0 %9861
  %9863 = vrot.lane.b32.xlu0 %v9728, 19
  %v9864 = vpop.permute.xlu0 %9863
  %9865 = vrot.lane.b32.xlu0 %v9729, 19
  %v9866 = vpop.permute.xlu0 %9865
  %9867 = vrot.lane.b32.xlu0 %v9730, 19
  %v9868 = vpop.permute.xlu0 %9867
  %9869 = vrot.lane.b32.xlu0 %v9731, 19
  %v9870 = vpop.permute.xlu0 %9869
  %9871 = vrot.lane.b32.xlu0 %v9732, 19
  %v9872 = vpop.permute.xlu0 %9871
  %9873 = vrot.lane.b32.xlu0 %v9733, 19
  %v9874 = vpop.permute.xlu0 %9873
  %9875 = vrot.lane.b32.xlu0 %v9734, 19
  %v9876 = vpop.permute.xlu0 %9875
  %9877 = vrot.lane.b32.xlu0 %v9735, 19
  %v9878 = vpop.permute.xlu0 %9877
  %9879 = vrot.lane.b32.xlu0 %v9736, 19
  %v9880 = vpop.permute.xlu0 %9879
  %9881 = vrot.lane.b32.xlu0 %v9737, 19
  %v9882 = vpop.permute.xlu0 %9881
  %vm9883 = vcmask 154624
  %v9884 = vsel %vm9883, %v9860, %v9862
  %v9885 = vsel %vm9883, %v9862, %v9864
  %v9886 = vsel %vm9883, %v9864, %v9866
  %v9887 = vsel %vm9883, %v9868, %v9870
  %v9888 = vsel %vm9883, %v9870, %v9872
  %v9889 = vsel %vm9883, %v9872, %v9874
  %v9890 = vsel %vm9883, %v9876, %v9878
  %v9891 = vsel %vm9883, %v9878, %v9880
  %v9892 = vsel %vm9883, %v9880, %v9882
  %9893 = vrot.lane.b32.xlu0 %v9808, 19
  %v9894 = vpop.permute.xlu0 %9893
  %9895 = vrot.lane.b32.xlu0 %v9809, 19
  %v9896 = vpop.permute.xlu0 %9895
  %9897 = vrot.lane.b32.xlu0 %v9810, 19
  %v9898 = vpop.permute.xlu0 %9897
  %9899 = vrot.lane.b32.xlu0 %v9811, 19
  %v9900 = vpop.permute.xlu0 %9899
  %9901 = vrot.lane.b32.xlu0 %v9812, 19
  %v9902 = vpop.permute.xlu0 %9901
  %9903 = vrot.lane.b32.xlu0 %v9813, 19
  %v9904 = vpop.permute.xlu0 %9903
  %9905 = vrot.lane.b32.xlu0 %v9814, 19
  %v9906 = vpop.permute.xlu0 %9905
  %9907 = vrot.lane.b32.xlu0 %v9815, 19
  %v9908 = vpop.permute.xlu0 %9907
  %9909 = vrot.lane.b32.xlu0 %v9816, 19
  %v9910 = vpop.permute.xlu0 %9909
  %9911 = vrot.lane.b32.xlu0 %v9817, 19
  %v9912 = vpop.permute.xlu0 %9911
  %9913 = vrot.lane.b32.xlu0 %v9818, 19
  %v9914 = vpop.permute.xlu0 %9913
  %9915 = vrot.lane.b32.xlu0 %v9819, 19
  %v9916 = vpop.permute.xlu0 %9915
  %v9917 = vsel %vm9883, %v9894, %v9896
  %v9918 = vsel %vm9883, %v9896, %v9898
  %v9919 = vsel %vm9883, %v9898, %v9900
  %v9920 = vsel %vm9883, %v9902, %v9904
  %v9921 = vsel %vm9883, %v9904, %v9906
  %v9922 = vsel %vm9883, %v9906, %v9908
  %v9923 = vsel %vm9883, %v9910, %v9912
  %v9924 = vsel %vm9883, %v9912, %v9914
  %v9925 = vsel %vm9883, %v9914, %v9916
  %9926 = vrot.lane.b32.xlu0 %v9726, 18
  %v9927 = vpop.permute.xlu0 %9926
  %9928 = vrot.lane.b32.xlu0 %v9727, 18
  %v9929 = vpop.permute.xlu0 %9928
  %9930 = vrot.lane.b32.xlu0 %v9728, 18
  %v9931 = vpop.permute.xlu0 %9930
  %9932 = vrot.lane.b32.xlu0 %v9729, 18
  %v9933 = vpop.permute.xlu0 %9932
  %9934 = vrot.lane.b32.xlu0 %v9730, 18
  %v9935 = vpop.permute.xlu0 %9934
  %9936 = vrot.lane.b32.xlu0 %v9731, 18
  %v9937 = vpop.permute.xlu0 %9936
  %9938 = vrot.lane.b32.xlu0 %v9732, 18
  %v9939 = vpop.permute.xlu0 %9938
  %9940 = vrot.lane.b32.xlu0 %v9733, 18
  %v9941 = vpop.permute.xlu0 %9940
  %9942 = vrot.lane.b32.xlu0 %v9734, 18
  %v9943 = vpop.permute.xlu0 %9942
  %9944 = vrot.lane.b32.xlu0 %v9735, 18
  %v9945 = vpop.permute.xlu0 %9944
  %9946 = vrot.lane.b32.xlu0 %v9736, 18
  %v9947 = vpop.permute.xlu0 %9946
  %9948 = vrot.lane.b32.xlu0 %v9737, 18
  %v9949 = vpop.permute.xlu0 %9948
  %vm9950 = vcmask 146432
  %v9951 = vsel %vm9950, %v9927, %v9929
  %v9952 = vsel %vm9950, %v9929, %v9931
  %v9953 = vsel %vm9950, %v9931, %v9933
  %v9954 = vsel %vm9950, %v9935, %v9937
  %v9955 = vsel %vm9950, %v9937, %v9939
  %v9956 = vsel %vm9950, %v9939, %v9941
  %v9957 = vsel %vm9950, %v9943, %v9945
  %v9958 = vsel %vm9950, %v9945, %v9947
  %v9959 = vsel %vm9950, %v9947, %v9949
  %9966 = vrot.lane.b32.xlu0 %v9808, 18
  %v9967 = vpop.permute.xlu0 %9966
  %9968 = vrot.lane.b32.xlu0 %v9809, 18
  %v9969 = vpop.permute.xlu0 %9968
  %9970 = vrot.lane.b32.xlu0 %v9810, 18
  %v9971 = vpop.permute.xlu0 %9970
  %9972 = vrot.lane.b32.xlu0 %v9811, 18
  %v9973 = vpop.permute.xlu0 %9972
  %9974 = vrot.lane.b32.xlu0 %v9812, 18
  %v9975 = vpop.permute.xlu0 %9974
  %9976 = vrot.lane.b32.xlu0 %v9813, 18
  %v9977 = vpop.permute.xlu0 %9976
  %9978 = vrot.lane.b32.xlu0 %v9814, 18
  %v9979 = vpop.permute.xlu0 %9978
  %9980 = vrot.lane.b32.xlu0 %v9815, 18
  %v9981 = vpop.permute.xlu0 %9980
  %9982 = vrot.lane.b32.xlu0 %v9816, 18
  %v9983 = vpop.permute.xlu0 %9982
  %9984 = vrot.lane.b32.xlu0 %v9817, 18
  %v9985 = vpop.permute.xlu0 %9984
  %9986 = vrot.lane.b32.xlu0 %v9818, 18
  %v9987 = vpop.permute.xlu0 %9986
  %9988 = vrot.lane.b32.xlu0 %v9819, 18
  %v9989 = vpop.permute.xlu0 %9988
  %v9990 = vsel %vm9950, %v9967, %v9969
  %v9991 = vsel %vm9950, %v9969, %v9971
  %v9992 = vsel %vm9950, %v9971, %v9973
  %v9993 = vsel %vm9950, %v9975, %v9977
  %v9994 = vsel %vm9950, %v9977, %v9979
  %v9995 = vsel %vm9950, %v9979, %v9981
  %v9996 = vsel %vm9950, %v9983, %v9985
  %v9997 = vsel %vm9950, %v9985, %v9987
  %v9998 = vsel %vm9950, %v9987, %v9989
  %10005 = vrot.lane.b32.xlu0 %v9726, 17
  %v10006 = vpop.permute.xlu0 %10005
  %10007 = vrot.lane.b32.xlu0 %v9727, 17
  %v10008 = vpop.permute.xlu0 %10007
  %10009 = vrot.lane.b32.xlu0 %v9728, 17
  %v10010 = vpop.permute.xlu0 %10009
  %10011 = vrot.lane.b32.xlu0 %v9729, 17
  %v10012 = vpop.permute.xlu0 %10011
  %10013 = vrot.lane.b32.xlu0 %v9730, 17
  %v10014 = vpop.permute.xlu0 %10013
  %10015 = vrot.lane.b32.xlu0 %v9731, 17
  %v10016 = vpop.permute.xlu0 %10015
  %10017 = vrot.lane.b32.xlu0 %v9732, 17
  %v10018 = vpop.permute.xlu0 %10017
  %10019 = vrot.lane.b32.xlu0 %v9733, 17
  %v10020 = vpop.permute.xlu0 %10019
  %10021 = vrot.lane.b32.xlu0 %v9734, 17
  %v10022 = vpop.permute.xlu0 %10021
  %10023 = vrot.lane.b32.xlu0 %v9735, 17
  %v10024 = vpop.permute.xlu0 %10023
  %10025 = vrot.lane.b32.xlu0 %v9736, 17
  %v10026 = vpop.permute.xlu0 %10025
  %10027 = vrot.lane.b32.xlu0 %v9737, 17
  %v10028 = vpop.permute.xlu0 %10027
  %vm10029 = vcmask 138240
  %v10030 = vsel %vm10029, %v10006, %v10008
  %v10031 = vsel %vm10029, %v10008, %v10010
  %v10032 = vsel %vm10029, %v10010, %v10012
  %v10033 = vsel %vm10029, %v10014, %v10016
  %v10034 = vsel %vm10029, %v10016, %v10018
  %v10035 = vsel %vm10029, %v10018, %v10020
  %v10036 = vsel %vm10029, %v10022, %v10024
  %v10037 = vsel %vm10029, %v10024, %v10026
  %v10038 = vsel %vm10029, %v10026, %v10028
  %10039 = vrot.lane.b32.xlu0 %v9808, 17
  %v10040 = vpop.permute.xlu0 %10039
  %10041 = vrot.lane.b32.xlu0 %v9809, 17
  %v10042 = vpop.permute.xlu0 %10041
  %10043 = vrot.lane.b32.xlu0 %v9810, 17
  %v10044 = vpop.permute.xlu0 %10043
  %10045 = vrot.lane.b32.xlu0 %v9811, 17
  %v10046 = vpop.permute.xlu0 %10045
  %10047 = vrot.lane.b32.xlu0 %v9812, 17
  %v10048 = vpop.permute.xlu0 %10047
  %10049 = vrot.lane.b32.xlu0 %v9813, 17
  %v10050 = vpop.permute.xlu0 %10049
  %10051 = vrot.lane.b32.xlu0 %v9814, 17
  %v10052 = vpop.permute.xlu0 %10051
  %10053 = vrot.lane.b32.xlu0 %v9815, 17
  %v10054 = vpop.permute.xlu0 %10053
  %10055 = vrot.lane.b32.xlu0 %v9816, 17
  %v10056 = vpop.permute.xlu0 %10055
  %10057 = vrot.lane.b32.xlu0 %v9817, 17
  %v10058 = vpop.permute.xlu0 %10057
  %10059 = vrot.lane.b32.xlu0 %v9818, 17
  %v10060 = vpop.permute.xlu0 %10059
  %10061 = vrot.lane.b32.xlu0 %v9819, 17
  %v10062 = vpop.permute.xlu0 %10061
  %v10063 = vsel %vm10029, %v10040, %v10042
  %v10064 = vsel %vm10029, %v10042, %v10044
  %v10065 = vsel %vm10029, %v10044, %v10046
  %v10066 = vsel %vm10029, %v10048, %v10050
  %v10067 = vsel %vm10029, %v10050, %v10052
  %v10068 = vsel %vm10029, %v10052, %v10054
  %v10069 = vsel %vm10029, %v10056, %v10058
  %v10070 = vsel %vm10029, %v10058, %v10060
  %v10071 = vsel %vm10029, %v10060, %v10062
  %10072 = vrot.lane.b32.xlu0 %v9726, 16
  %v10073 = vpop.permute.xlu0 %10072
  %10074 = vrot.lane.b32.xlu0 %v9727, 16
  %v10075 = vpop.permute.xlu0 %10074
  %10076 = vrot.lane.b32.xlu0 %v9728, 16
  %v10077 = vpop.permute.xlu0 %10076
  %10078 = vrot.lane.b32.xlu0 %v9729, 16
  %v10079 = vpop.permute.xlu0 %10078
  %10080 = vrot.lane.b32.xlu0 %v9730, 16
  %v10081 = vpop.permute.xlu0 %10080
  %10082 = vrot.lane.b32.xlu0 %v9731, 16
  %v10083 = vpop.permute.xlu0 %10082
  %10084 = vrot.lane.b32.xlu0 %v9732, 16
  %v10085 = vpop.permute.xlu0 %10084
  %10086 = vrot.lane.b32.xlu0 %v9733, 16
  %v10087 = vpop.permute.xlu0 %10086
  %10088 = vrot.lane.b32.xlu0 %v9734, 16
  %v10089 = vpop.permute.xlu0 %10088
  %10090 = vrot.lane.b32.xlu0 %v9735, 16
  %v10091 = vpop.permute.xlu0 %10090
  %10092 = vrot.lane.b32.xlu0 %v9736, 16
  %v10093 = vpop.permute.xlu0 %10092
  %10094 = vrot.lane.b32.xlu0 %v9737, 16
  %v10095 = vpop.permute.xlu0 %10094
  %vm10096 = vcmask 130048
  %v10097 = vsel %vm10096, %v10073, %v10075
  %v10098 = vsel %vm10096, %v10075, %v10077
  %v10099 = vsel %vm10096, %v10077, %v10079
  %v10100 = vsel %vm10096, %v10081, %v10083
  %v10101 = vsel %vm10096, %v10083, %v10085
  %v10102 = vsel %vm10096, %v10085, %v10087
  %v10103 = vsel %vm10096, %v10089, %v10091
  %v10104 = vsel %vm10096, %v10091, %v10093
  %v10105 = vsel %vm10096, %v10093, %v10095
  %10112 = vrot.lane.b32.xlu0 %v9808, 16
  %v10113 = vpop.permute.xlu0 %10112
  %10114 = vrot.lane.b32.xlu0 %v9809, 16
  %v10115 = vpop.permute.xlu0 %10114
  %10116 = vrot.lane.b32.xlu0 %v9810, 16
  %v10117 = vpop.permute.xlu0 %10116
  %10118 = vrot.lane.b32.xlu0 %v9811, 16
  %v10119 = vpop.permute.xlu0 %10118
  %10120 = vrot.lane.b32.xlu0 %v9812, 16
  %v10121 = vpop.permute.xlu0 %10120
  %10122 = vrot.lane.b32.xlu0 %v9813, 16
  %v10123 = vpop.permute.xlu0 %10122
  %10124 = vrot.lane.b32.xlu0 %v9814, 16
  %v10125 = vpop.permute.xlu0 %10124
  %10126 = vrot.lane.b32.xlu0 %v9815, 16
  %v10127 = vpop.permute.xlu0 %10126
  %10128 = vrot.lane.b32.xlu0 %v9816, 16
  %v10129 = vpop.permute.xlu0 %10128
  %10130 = vrot.lane.b32.xlu0 %v9817, 16
  %v10131 = vpop.permute.xlu0 %10130
  %10132 = vrot.lane.b32.xlu0 %v9818, 16
  %v10133 = vpop.permute.xlu0 %10132
  %10134 = vrot.lane.b32.xlu0 %v9819, 16
  %v10135 = vpop.permute.xlu0 %10134
  %v10136 = vsel %vm10096, %v10113, %v10115
  %v10137 = vsel %vm10096, %v10115, %v10117
  %v10138 = vsel %vm10096, %v10117, %v10119
  %v10139 = vsel %vm10096, %v10121, %v10123
  %v10140 = vsel %vm10096, %v10123, %v10125
  %v10141 = vsel %vm10096, %v10125, %v10127
  %v10142 = vsel %vm10096, %v10129, %v10131
  %v10143 = vsel %vm10096, %v10131, %v10133
  %v10144 = vsel %vm10096, %v10133, %v10135
  %10151 = vrot.lane.b32.xlu0 %v9726, 15
  %v10152 = vpop.permute.xlu0 %10151
  %10153 = vrot.lane.b32.xlu0 %v9727, 15
  %v10154 = vpop.permute.xlu0 %10153
  %10155 = vrot.lane.b32.xlu0 %v9728, 15
  %v10156 = vpop.permute.xlu0 %10155
  %10157 = vrot.lane.b32.xlu0 %v9729, 15
  %v10158 = vpop.permute.xlu0 %10157
  %10159 = vrot.lane.b32.xlu0 %v9730, 15
  %v10160 = vpop.permute.xlu0 %10159
  %10161 = vrot.lane.b32.xlu0 %v9731, 15
  %v10162 = vpop.permute.xlu0 %10161
  %10163 = vrot.lane.b32.xlu0 %v9732, 15
  %v10164 = vpop.permute.xlu0 %10163
  %10165 = vrot.lane.b32.xlu0 %v9733, 15
  %v10166 = vpop.permute.xlu0 %10165
  %10167 = vrot.lane.b32.xlu0 %v9734, 15
  %v10168 = vpop.permute.xlu0 %10167
  %10169 = vrot.lane.b32.xlu0 %v9735, 15
  %v10170 = vpop.permute.xlu0 %10169
  %10171 = vrot.lane.b32.xlu0 %v9736, 15
  %v10172 = vpop.permute.xlu0 %10171
  %10173 = vrot.lane.b32.xlu0 %v9737, 15
  %v10174 = vpop.permute.xlu0 %10173
  %vm10175 = vcmask 121856
  %v10176 = vsel %vm10175, %v10152, %v10154
  %v10177 = vsel %vm10175, %v10154, %v10156
  %v10178 = vsel %vm10175, %v10156, %v10158
  %v10179 = vsel %vm10175, %v10160, %v10162
  %v10180 = vsel %vm10175, %v10162, %v10164
  %v10181 = vsel %vm10175, %v10164, %v10166
  %v10182 = vsel %vm10175, %v10168, %v10170
  %v10183 = vsel %vm10175, %v10170, %v10172
  %v10184 = vsel %vm10175, %v10172, %v10174
  %10185 = vrot.lane.b32.xlu0 %v9808, 15
  %v10186 = vpop.permute.xlu0 %10185
  %10187 = vrot.lane.b32.xlu0 %v9809, 15
  %v10188 = vpop.permute.xlu0 %10187
  %10189 = vrot.lane.b32.xlu0 %v9810, 15
  %v10190 = vpop.permute.xlu0 %10189
  %10191 = vrot.lane.b32.xlu0 %v9811, 15
  %v10192 = vpop.permute.xlu0 %10191
  %10193 = vrot.lane.b32.xlu0 %v9812, 15
  %v10194 = vpop.permute.xlu0 %10193
  %10195 = vrot.lane.b32.xlu0 %v9813, 15
  %v10196 = vpop.permute.xlu0 %10195
  %10197 = vrot.lane.b32.xlu0 %v9814, 15
  %v10198 = vpop.permute.xlu0 %10197
  %10199 = vrot.lane.b32.xlu0 %v9815, 15
  %v10200 = vpop.permute.xlu0 %10199
  %10201 = vrot.lane.b32.xlu0 %v9816, 15
  %v10202 = vpop.permute.xlu0 %10201
  %10203 = vrot.lane.b32.xlu0 %v9817, 15
  %v10204 = vpop.permute.xlu0 %10203
  %10205 = vrot.lane.b32.xlu0 %v9818, 15
  %v10206 = vpop.permute.xlu0 %10205
  %10207 = vrot.lane.b32.xlu0 %v9819, 15
  %v10208 = vpop.permute.xlu0 %10207
  %v10209 = vsel %vm10175, %v10186, %v10188
  %v10210 = vsel %vm10175, %v10188, %v10190
  %v10211 = vsel %vm10175, %v10190, %v10192
  %v10212 = vsel %vm10175, %v10194, %v10196
  %v10213 = vsel %vm10175, %v10196, %v10198
  %v10214 = vsel %vm10175, %v10198, %v10200
  %v10215 = vsel %vm10175, %v10202, %v10204
  %v10216 = vsel %vm10175, %v10204, %v10206
  %v10217 = vsel %vm10175, %v10206, %v10208
  %10218 = vrot.lane.b32.xlu0 %v9726, 14
  %v10219 = vpop.permute.xlu0 %10218
  %10220 = vrot.lane.b32.xlu0 %v9727, 14
  %v10221 = vpop.permute.xlu0 %10220
  %10222 = vrot.lane.b32.xlu0 %v9728, 14
  %v10223 = vpop.permute.xlu0 %10222
  %10224 = vrot.lane.b32.xlu0 %v9729, 14
  %v10225 = vpop.permute.xlu0 %10224
  %10226 = vrot.lane.b32.xlu0 %v9730, 14
  %v10227 = vpop.permute.xlu0 %10226
  %10228 = vrot.lane.b32.xlu0 %v9731, 14
  %v10229 = vpop.permute.xlu0 %10228
  %10230 = vrot.lane.b32.xlu0 %v9732, 14
  %v10231 = vpop.permute.xlu0 %10230
  %10232 = vrot.lane.b32.xlu0 %v9733, 14
  %v10233 = vpop.permute.xlu0 %10232
  %10234 = vrot.lane.b32.xlu0 %v9734, 14
  %v10235 = vpop.permute.xlu0 %10234
  %10236 = vrot.lane.b32.xlu0 %v9735, 14
  %v10237 = vpop.permute.xlu0 %10236
  %10238 = vrot.lane.b32.xlu0 %v9736, 14
  %v10239 = vpop.permute.xlu0 %10238
  %10240 = vrot.lane.b32.xlu0 %v9737, 14
  %v10241 = vpop.permute.xlu0 %10240
  %vm10242 = vcmask 113664
  %v10243 = vsel %vm10242, %v10219, %v10221
  %v10244 = vsel %vm10242, %v10221, %v10223
  %v10245 = vsel %vm10242, %v10223, %v10225
  %v10246 = vsel %vm10242, %v10227, %v10229
  %v10247 = vsel %vm10242, %v10229, %v10231
  %v10248 = vsel %vm10242, %v10231, %v10233
  %v10249 = vsel %vm10242, %v10235, %v10237
  %v10250 = vsel %vm10242, %v10237, %v10239
  %v10251 = vsel %vm10242, %v10239, %v10241
  %10258 = vrot.lane.b32.xlu0 %v9808, 14
  %v10259 = vpop.permute.xlu0 %10258
  %10260 = vrot.lane.b32.xlu0 %v9809, 14
  %v10261 = vpop.permute.xlu0 %10260
  %10262 = vrot.lane.b32.xlu0 %v9810, 14
  %v10263 = vpop.permute.xlu0 %10262
  %10264 = vrot.lane.b32.xlu0 %v9811, 14
  %v10265 = vpop.permute.xlu0 %10264
  %10266 = vrot.lane.b32.xlu0 %v9812, 14
  %v10267 = vpop.permute.xlu0 %10266
  %10268 = vrot.lane.b32.xlu0 %v9813, 14
  %v10269 = vpop.permute.xlu0 %10268
  %10270 = vrot.lane.b32.xlu0 %v9814, 14
  %v10271 = vpop.permute.xlu0 %10270
  %10272 = vrot.lane.b32.xlu0 %v9815, 14
  %v10273 = vpop.permute.xlu0 %10272
  %10274 = vrot.lane.b32.xlu0 %v9816, 14
  %v10275 = vpop.permute.xlu0 %10274
  %10276 = vrot.lane.b32.xlu0 %v9817, 14
  %v10277 = vpop.permute.xlu0 %10276
  %10278 = vrot.lane.b32.xlu0 %v9818, 14
  %v10279 = vpop.permute.xlu0 %10278
  %10280 = vrot.lane.b32.xlu0 %v9819, 14
  %v10281 = vpop.permute.xlu0 %10280
  %v10282 = vsel %vm10242, %v10259, %v10261
  %v10283 = vsel %vm10242, %v10261, %v10263
  %v10284 = vsel %vm10242, %v10263, %v10265
  %v10285 = vsel %vm10242, %v10267, %v10269
  %v10286 = vsel %vm10242, %v10269, %v10271
  %v10287 = vsel %vm10242, %v10271, %v10273
  %v10288 = vsel %vm10242, %v10275, %v10277
  %v10289 = vsel %vm10242, %v10277, %v10279
  %v10290 = vsel %vm10242, %v10279, %v10281
  %v10297 = vrot.slane %v9884, 4
  %v10298 = vrot.slane %v9885, 4
  %v10299 = vrot.slane %v9886, 4
  %v10300 = vrot.slane %v9917, 4
  %v10301 = vrot.slane %v9918, 4
  %v10302 = vrot.slane %v9919, 4
  %v10303 = vrot.slane %v9887, 4
  %v10304 = vsel %vm1374, %v10297, %v10303
  %v10305 = vrot.slane %v9888, 4
  %v10306 = vsel %vm1374, %v10298, %v10305
  %v10307 = vrot.slane %v9889, 4
  %v10308 = vsel %vm1374, %v10299, %v10307
  %v10309 = vrot.slane %v9920, 4
  %v10310 = vsel %vm1374, %v10300, %v10309
  %v10311 = vrot.slane %v9921, 4
  %v10312 = vsel %vm1374, %v10301, %v10311
  %v10313 = vrot.slane %v9922, 4
  %v10314 = vsel %vm1374, %v10302, %v10313
  %v10315 = vrot.slane %v9890, 4
  %v10316 = vsel %vm1374, %v10303, %v10315
  %v10317 = vrot.slane %v9891, 4
  %v10318 = vsel %vm1374, %v10305, %v10317
  %v10319 = vrot.slane %v9892, 4
  %v10320 = vsel %vm1374, %v10307, %v10319
  %v10321 = vrot.slane %v9923, 4
  %v10322 = vsel %vm1374, %v10309, %v10321
  %v10323 = vrot.slane %v9924, 4
  %v10324 = vsel %vm1374, %v10311, %v10323
  %v10325 = vrot.slane %v9925, 4
  %v10326 = vsel %vm1374, %v10313, %v10325
  %v10339 = vrot.slane %v10030, 4
  %v10340 = vrot.slane %v10031, 4
  %v10341 = vrot.slane %v10032, 4
  %v10342 = vrot.slane %v10063, 4
  %v10343 = vrot.slane %v10064, 4
  %v10344 = vrot.slane %v10065, 4
  %v10345 = vrot.slane %v10033, 4
  %v10346 = vsel %vm1374, %v10339, %v10345
  %v10347 = vrot.slane %v10034, 4
  %v10348 = vsel %vm1374, %v10340, %v10347
  %v10349 = vrot.slane %v10035, 4
  %v10350 = vsel %vm1374, %v10341, %v10349
  %v10351 = vrot.slane %v10066, 4
  %v10352 = vsel %vm1374, %v10342, %v10351
  %v10353 = vrot.slane %v10067, 4
  %v10354 = vsel %vm1374, %v10343, %v10353
  %v10355 = vrot.slane %v10068, 4
  %v10356 = vsel %vm1374, %v10344, %v10355
  %v10357 = vrot.slane %v10036, 4
  %v10358 = vsel %vm1374, %v10345, %v10357
  %v10359 = vrot.slane %v10037, 4
  %v10360 = vsel %vm1374, %v10347, %v10359
  %v10361 = vrot.slane %v10038, 4
  %v10362 = vsel %vm1374, %v10349, %v10361
  %v10363 = vrot.slane %v10069, 4
  %v10364 = vsel %vm1374, %v10351, %v10363
  %v10365 = vrot.slane %v10070, 4
  %v10366 = vsel %vm1374, %v10353, %v10365
  %v10367 = vrot.slane %v10071, 4
  %v10368 = vsel %vm1374, %v10355, %v10367
  %v10381 = vrot.slane %v10176, 4
  %v10382 = vrot.slane %v10177, 4
  %v10383 = vrot.slane %v10178, 4
  %v10384 = vrot.slane %v10209, 4
  %v10385 = vrot.slane %v10210, 4
  %v10386 = vrot.slane %v10211, 4
  %v10387 = vrot.slane %v10179, 4
  %v10388 = vsel %vm1374, %v10381, %v10387
  %v10389 = vrot.slane %v10180, 4
  %v10390 = vsel %vm1374, %v10382, %v10389
  %v10391 = vrot.slane %v10181, 4
  %v10392 = vsel %vm1374, %v10383, %v10391
  %v10393 = vrot.slane %v10212, 4
  %v10394 = vsel %vm1374, %v10384, %v10393
  %v10395 = vrot.slane %v10213, 4
  %v10396 = vsel %vm1374, %v10385, %v10395
  %v10397 = vrot.slane %v10214, 4
  %v10398 = vsel %vm1374, %v10386, %v10397
  %v10399 = vrot.slane %v10182, 4
  %v10400 = vsel %vm1374, %v10387, %v10399
  %v10401 = vrot.slane %v10183, 4
  %v10402 = vsel %vm1374, %v10389, %v10401
  %v10403 = vrot.slane %v10184, 4
  %v10404 = vsel %vm1374, %v10391, %v10403
  %v10405 = vrot.slane %v10215, 4
  %v10406 = vsel %vm1374, %v10393, %v10405
  %v10407 = vrot.slane %v10216, 4
  %v10408 = vsel %vm1374, %v10395, %v10407
  %v10409 = vrot.slane %v10217, 4
  %v10410 = vsel %vm1374, %v10397, %v10409
  %v10425 = vsel %vm301, %v9769, %v10297
  %v10429 = vsel %vm301, %v9770, %v10298
  %v10433 = vsel %vm301, %v9771, %v10299
  %v10437 = vsel %vm301, %v9850, %v10300
  %v10441 = vsel %vm301, %v9851, %v10301
  %v10445 = vsel %vm301, %v9852, %v10302
  %v10449 = vsel %vm301, %v9957, %v10339
  %v10453 = vsel %vm301, %v9958, %v10340
  %v10457 = vsel %vm301, %v9959, %v10341
  %v10461 = vsel %vm301, %v9996, %v10342
  %v10465 = vsel %vm301, %v9997, %v10343
  %v10469 = vsel %vm301, %v9998, %v10344
  %v10473 = vsel %vm301, %v10103, %v10381
  %v10477 = vsel %vm301, %v10104, %v10382
  %v10481 = vsel %vm301, %v10105, %v10383
  %v10485 = vsel %vm301, %v10142, %v10384
  %v10489 = vsel %vm301, %v10143, %v10385
  %v10493 = vsel %vm301, %v10144, %v10386
  %v10495 = vld [vmem:[%s3 + $0x34] sm:$0xff]
  %v10496 = vld [vmem:[%s3 + $0x3c] sm:$0xf]
  %v10497 = vld [vmem:[%s3 + $0x74] sm:$0xff]
  %v10498 = vld [vmem:[%s3 + $0x7c] sm:$0xf]
  %v10499 = vld [vmem:[%s3 + $0xb4] sm:$0xff]
  %v10500 = vld [vmem:[%s3 + $0xbc] sm:$0xf]
  %v10501 = vld [vmem:[%s3 + $0xf4] sm:$0xff]
  %v10502 = vld [vmem:[%s3 + $0xfc] sm:$0xf]
  %v10503 = vld [vmem:[%s3 + $0x134] sm:$0xff]
  %v10504 = vld [vmem:[%s3 + $0x13c] sm:$0xf]
  %v10505 = vld [vmem:[%s3 + $0x174] sm:$0xff]
  %v10506 = vld [vmem:[%s3 + $0x17c] sm:$0xf]
  %v10507 = vld [vmem:[%s3 + $0x1b4] sm:$0x11]
  %v10508 = vld [vmem:[%s3 + $0x1bc] sm:$0x1]
  %v10523 = vunpack.c.l.b16 %v10495
  %v10524 = vunpack.c.h.b16 %v10495
  %v10525 = vunpack.c.l.b16 %v10496
  %v10526 = vunpack.c.l.b16 %v10497
  %v10527 = vunpack.c.h.b16 %v10497
  %v10528 = vunpack.c.l.b16 %v10498
  %v10529 = vunpack.c.l.b16 %v10499
  %v10530 = vunpack.c.h.b16 %v10499
  %v10531 = vunpack.c.l.b16 %v10500
  %v10532 = vunpack.c.l.b16 %v10501
  %v10533 = vunpack.c.h.b16 %v10501
  %v10534 = vunpack.c.l.b16 %v10502
  %v10535 = vunpack.c.l.b16 %v10503
  %v10536 = vunpack.c.h.b16 %v10503
  %v10537 = vunpack.c.l.b16 %v10504
  %v10538 = vunpack.c.l.b16 %v10505
  %v10539 = vunpack.c.h.b16 %v10505
  %v10540 = vunpack.c.l.b16 %v10506
  %v10541 = vunpack.c.l.b16 %v10507
  %v10542 = vunpack.c.h.b16 %v10507
  %v10543 = vunpack.c.l.b16 %v10508
  %v10544 = vpack.c.b16 %v10526, %v10523
  %v10545 = vpack.c.b16 %v10527, %v10524
  %v10546 = vpack.c.b16 %v10528, %v10525
  %v10547 = vpack.c.b16 %v10532, %v10529
  %v10548 = vpack.c.b16 %v10533, %v10530
  %v10549 = vpack.c.b16 %v10534, %v10531
  %v10550 = vpack.c.b16 %v10538, %v10535
  %v10551 = vpack.c.b16 %v10539, %v10536
  %v10552 = vpack.c.b16 %v10540, %v10537
  %v10553 = vpack.c.b16 %v10541, %v10541
  %v10554 = vpack.c.b16 %v10542, %v10542
  %v10555 = vpack.c.b16 %v10543, %v10543
  %10556 = vrot.lane.b32.xlu0 %v10544, 112
  %v10557 = vpop.permute.xlu0 %10556
  %10558 = vrot.lane.b32.xlu0 %v10545, 112
  %v10559 = vpop.permute.xlu0 %10558
  %10560 = vrot.lane.b32.xlu0 %v10546, 112
  %v10561 = vpop.permute.xlu0 %10560
  %10562 = vrot.lane.b32.xlu0 %v10547, 112
  %v10563 = vpop.permute.xlu0 %10562
  %10564 = vrot.lane.b32.xlu0 %v10548, 112
  %v10565 = vpop.permute.xlu0 %10564
  %10566 = vrot.lane.b32.xlu0 %v10549, 112
  %v10567 = vpop.permute.xlu0 %10566
  %10568 = vrot.lane.b32.xlu0 %v10550, 112
  %v10569 = vpop.permute.xlu0 %10568
  %10570 = vrot.lane.b32.xlu0 %v10551, 112
  %v10571 = vpop.permute.xlu0 %10570
  %10572 = vrot.lane.b32.xlu0 %v10552, 112
  %v10573 = vpop.permute.xlu0 %10572
  %10574 = vrot.lane.b32.xlu0 %v10553, 112
  %v10575 = vpop.permute.xlu0 %10574
  %10576 = vrot.lane.b32.xlu0 %v10554, 112
  %v10577 = vpop.permute.xlu0 %10576
  %10578 = vrot.lane.b32.xlu0 %v10555, 112
  %v10579 = vpop.permute.xlu0 %10578
  %vm10580 = vcmask 916480
  %v10581 = vsel %vm10580, %v10557, %v10559
  %v10582 = vsel %vm10580, %v10559, %v10561
  %v10583 = vsel %vm10580, %v10563, %v10565
  %v10584 = vsel %vm10580, %v10565, %v10567
  %v10585 = vsel %vm10580, %v10569, %v10571
  %v10586 = vsel %vm10580, %v10571, %v10573
  %v10587 = vsel %vm10580, %v10575, %v10577
  %v10588 = vsel %vm10580, %v10577, %v10579
  %v10598 = vsel %vm1642, %v10561, 0
  %v10601 = vsel %vm1642, %v10567, 0
  %v10604 = vsel %vm1642, %v10573, 0
  %v10607 = vsel %vm1642, %v10579, 0
  %v10610 = vsel %vm301, %v10249, 0
  %v10613 = vsel %vm301, %v10250, 0
  %v10616 = vsel %vm301, %v10251, 0
  %v10619 = vsel %vm301, %v10288, 0
  %v10622 = vsel %vm301, %v10289, 0
  %v10625 = vsel %vm301, %v10290, 0
  %10627 = vmatprep.subr.bf16.mxu0 %v9764
  %10628 = vmatpush1.bf16.msra.mxu0 %v9763
  %10629 = vmatprep.subr.bf16.mxu0 %v9767
  %10630 = vmatpush1.bf16.msra.mxu0 %v9766
  %10631 = vmatprep.subr.bf16.mxu0 %v10429
  %10632 = vmatpush1.bf16.msra.mxu0 %v10425
  %10633 = vmatprep.subr.bf16.mxu0 %v10306
  %10634 = vmatpush1.bf16.msra.mxu0 %v10304
  %10635 = vmatprep.subr.bf16.mxu0 %v10318
  %10636 = vmatpush1.bf16.msra.mxu0 %v10316
  %10637 = vmatprep.subr.bf16.mxu0 %v9952
  %10638 = vmatpush1.bf16.msra.mxu0 %v9951
  %10639 = vmatprep.subr.bf16.mxu0 %v9955
  %10640 = vmatpush1.bf16.msra.mxu0 %v9954
  %10641 = vmatprep.subr.bf16.mxu0 %v10453
  %10642 = vmatpush1.bf16.msra.mxu0 %v10449
  %10643 = vmatprep.subr.bf16.mxu0 %v10348
  %10644 = vmatpush1.bf16.msra.mxu0 %v10346
  %10645 = vmatprep.subr.bf16.mxu0 %v10360
  %10646 = vmatpush1.bf16.msra.mxu0 %v10358
  %10647 = vmatprep.subr.bf16.mxu0 %v10098
  %10648 = vmatpush1.bf16.msra.mxu0 %v10097
  %10649 = vmatprep.subr.bf16.mxu0 %v10101
  %10650 = vmatpush1.bf16.msra.mxu0 %v10100
  %10651 = vmatprep.subr.bf16.mxu0 %v10477
  %10652 = vmatpush1.bf16.msra.mxu0 %v10473
  %10653 = vmatprep.subr.bf16.mxu0 %v10390
  %10654 = vmatpush1.bf16.msra.mxu0 %v10388
  %10655 = vmatprep.subr.bf16.mxu0 %v10402
  %10656 = vmatpush1.bf16.msra.mxu0 %v10400
  %10657 = vmatprep.subr.bf16.mxu0 %v10244
  %10658 = vmatpush1.bf16.msra.mxu0 %v10243
  %10659 = vmatprep.mubr.bf16.mxu0 %v10582
  %10660 = vmatmul.mubr.bf16.gmra.mrb[0].mxu0 %v10581
  %v10661 = vpop.f32.mrb[0].mxu0
  %v10662 = vadd.f32 0.0, %v10661
  %v10663 = vpop.f32.mrb[0].mxu0
  %v10664 = vadd.f32 0.0, %v10663
  %v10665 = vpop.f32.mrb[0].mxu0
  %v10666 = vadd.f32 0.0, %v10665
  %v10667 = vpop.f32.mrb[0].mxu0
  %v10668 = vadd.f32 0.0, %v10667
  %10669 = vmatprep.mubr.bf16.mxu0 %v10584
  %10670 = vmatmul.mubr.bf16.gmra.mrb[0].mxu0 %v10583
  %v10671 = vpop.f32.mrb[0].mxu0
  %v10672 = vadd.f32 0.0, %v10671
  %v10673 = vpop.f32.mrb[0].mxu0
  %v10674 = vadd.f32 0.0, %v10673
  %v10675 = vpop.f32.mrb[0].mxu0
  %v10676 = vadd.f32 0.0, %v10675
  %v10677 = vpop.f32.mrb[0].mxu0
  %v10678 = vadd.f32 0.0, %v10677
  %10679 = vmatprep.mubr.bf16.mxu0 %v10586
  %10680 = vmatmul.mubr.bf16.gmra.mrb[0].mxu0 %v10585
  %v10681 = vpop.f32.mrb[0].mxu0
  %v10682 = vadd.f32 0.0, %v10681
  %v10683 = vpop.f32.mrb[0].mxu0
  %v10684 = vadd.f32 0.0, %v10683
  %v10685 = vpop.f32.mrb[0].mxu0
  %v10686 = vadd.f32 0.0, %v10685
  %v10687 = vpop.f32.mrb[0].mxu0
  %v10688 = vadd.f32 0.0, %v10687
  %10689 = vmatprep.mubr.bf16.mxu0 %v10588
  %10690 = vmatmul.mubr.bf16.gmra.mrb[0].mxu0 %v10587
  %v10691 = vpop.f32.mrb[0].mxu0
  %v10692 = vadd.f32 0.0, %v10691
  %v10693 = vpop.f32.mrb[0].mxu0
  %v10694 = vadd.f32 0.0, %v10693
  %v10695 = vpop.f32.mrb[0].mxu0
  %v10696 = vpop.f32.mrb[0].mxu0
  %10697 = vdwg.mxu0
  %10698 = vmatprep.subr.bf16.mxu0 %v10247
  %10699 = vmatpush1.bf16.msra.mxu0 %v10246
  %10700 = vmatprep.subr.bf16.mxu0 %v10613
  %10701 = vmatpush1.bf16.msra.mxu0 %v10610
  %10702 = vmatprep.subr.bf16.mxu0 0
  %10703 = vmatpush1.bf16.msra.mxu0 0
  %10704 = vmatprep.subr.bf16.mxu0 0
  %10705 = vmatpush1.bf16.msra.mxu0 0
  %10706 = vmatprep.subr.bf16.mxu0 0
  %10707 = vmatpush1.bf16.msra.mxu0 0
  %10708 = vmatprep.subr.bf16.mxu0 0
  %10709 = vmatpush1.bf16.msra.mxu0 0
  %10710 = vmatprep.subr.bf16.mxu0 0
  %10711 = vmatpush1.bf16.msra.mxu0 0
  %10712 = vmatprep.subr.bf16.mxu0 0
  %10713 = vmatpush1.bf16.msra.mxu0 0
  %10714 = vmatprep.subr.bf16.mxu0 0
  %10715 = vmatpush1.bf16.msra.mxu0 0
  %10716 = vmatprep.subr.bf16.mxu0 0
  %10717 = vmatpush1.bf16.msra.mxu0 0
  %10718 = vmatprep.subr.bf16.mxu0 0
  %10719 = vmatpush1.bf16.msra.mxu0 0
  %10720 = vmatprep.subr.bf16.mxu0 0
  %10721 = vmatpush1.bf16.msra.mxu0 0
  %10722 = vmatprep.subr.bf16.mxu0 0
  %10723 = vmatpush1.bf16.msra.mxu0 0
  %10724 = vmatprep.subr.bf16.mxu0 0
  %10725 = vmatpush1.bf16.msra.mxu0 0
  %10726 = vmatprep.subr.bf16.mxu0 0
  %10727 = vmatpush1.bf16.msra.mxu0 0
  %10728 = vmatprep.subr.bf16.mxu0 0
  %10729 = vmatpush1.bf16.msra.mxu0 0
  %10730 = vmatprep.mubr.bf16.mxu0 0
  %10731 = vmatmul.mubr.bf16.gmra.mrb[0].mxu0 %v10598
  %v10732 = vpop.f32.mrb[0].mxu0
  %v10733 = vadd.f32 %v10662, %v10732
  %v10734 = vpop.f32.mrb[0].mxu0
  %v10735 = vadd.f32 %v10664, %v10734
  %v10736 = vpop.f32.mrb[0].mxu0
  %v10737 = vadd.f32 %v10666, %v10736
  %v10738 = vpop.f32.mrb[0].mxu0
  %v10739 = vadd.f32 %v10668, %v10738
  %10740 = vmatprep.mubr.bf16.mxu0 0
  %10741 = vmatmul.mubr.bf16.gmra.mrb[0].mxu0 %v10601
  %v10742 = vpop.f32.mrb[0].mxu0
  %v10743 = vadd.f32 %v10672, %v10742
  %v10744 = vpop.f32.mrb[0].mxu0
  %v10745 = vadd.f32 %v10674, %v10744
  %v10746 = vpop.f32.mrb[0].mxu0
  %v10747 = vadd.f32 %v10676, %v10746
  %v10748 = vpop.f32.mrb[0].mxu0
  %v10749 = vadd.f32 %v10678, %v10748
  %10750 = vmatprep.mubr.bf16.mxu0 0
  %10751 = vmatmul.mubr.bf16.gmra.mrb[0].mxu0 %v10604
  %v10752 = vpop.f32.mrb[0].mxu0
  %v10753 = vadd.f32 %v10682, %v10752
  %v10754 = vpop.f32.mrb[0].mxu0
  %v10755 = vadd.f32 %v10684, %v10754
  %v10756 = vpop.f32.mrb[0].mxu0
  %v10757 = vadd.f32 %v10686, %v10756
  %v10758 = vpop.f32.mrb[0].mxu0
  %v10759 = vadd.f32 %v10688, %v10758
  %10760 = vmatprep.mubr.bf16.mxu0 0
  %10761 = vmatmul.mubr.bf16.gmra.mrb[0].mxu0 %v10607
  %v10762 = vpop.f32.mrb[0].mxu0
  %v10763 = vadd.f32 %v10692, %v10762
  %v10764 = vpop.f32.mrb[0].mxu0
  %v10765 = vadd.f32 %v10694, %v10764
  %v10766 = vpop.f32.mrb[0].mxu0
  %v10767 = vpop.f32.mrb[0].mxu0
  %10768 = vdwg.mxu0
  %10769 = vmatprep.subr.bf16.mxu0 %v9844
  %10770 = vmatpush1.bf16.msra.mxu0 %v9765
  %10771 = vmatprep.subr.bf16.mxu0 %v9847
  %10772 = vmatpush1.bf16.msra.mxu0 %v9768
  %10773 = vmatprep.subr.bf16.mxu0 %v10437
  %10774 = vmatpush1.bf16.msra.mxu0 %v10433
  %10775 = vmatprep.subr.bf16.mxu0 %v10310
  %10776 = vmatpush1.bf16.msra.mxu0 %v10308
  %10777 = vmatprep.subr.bf16.mxu0 %v10322
  %10778 = vmatpush1.bf16.msra.mxu0 %v10320
  %10779 = vmatprep.subr.bf16.mxu0 %v9990
  %10780 = vmatpush1.bf16.msra.mxu0 %v9953
  %10781 = vmatprep.subr.bf16.mxu0 %v9993
  %10782 = vmatpush1.bf16.msra.mxu0 %v9956
  %10783 = vmatprep.subr.bf16.mxu0 %v10461
  %10784 = vmatpush1.bf16.msra.mxu0 %v10457
  %10785 = vmatprep.subr.bf16.mxu0 %v10352
  %10786 = vmatpush1.bf16.msra.mxu0 %v10350
  %10787 = vmatprep.subr.bf16.mxu0 %v10364
  %10788 = vmatpush1.bf16.msra.mxu0 %v10362
  %10789 = vmatprep.subr.bf16.mxu0 %v10136
  %10790 = vmatpush1.bf16.msra.mxu0 %v10099
  %10791 = vmatprep.subr.bf16.mxu0 %v10139
  %10792 = vmatpush1.bf16.msra.mxu0 %v10102
  %10793 = vmatprep.subr.bf16.mxu0 %v10485
  %10794 = vmatpush1.bf16.msra.mxu0 %v10481
  %10795 = vmatprep.subr.bf16.mxu0 %v10394
  %10796 = vmatpush1.bf16.msra.mxu0 %v10392
  %10797 = vmatprep.subr.bf16.mxu0 %v10406
  %10798 = vmatpush1.bf16.msra.mxu0 %v10404
  %10799 = vmatprep.subr.bf16.mxu0 %v10282
  %10800 = vmatpush1.bf16.msra.mxu0 %v10245
  %10801 = vmatprep.mubr.bf16.mxu0 %v10582
  %10802 = vmatmul.mubr.bf16.gmra.mrb[0].mxu0 %v10581
  %v10803 = vpop.f32.mrb[0].mxu0
  %v10804 = vadd.f32 0.0, %v10803
  %v10805 = vpop.f32.mrb[0].mxu0
  %v10806 = vadd.f32 0.0, %v10805
  %v10807 = vpop.f32.mrb[0].mxu0
  %v10808 = vadd.f32 0.0, %v10807
  %v10809 = vpop.f32.mrb[0].mxu0
  %v10810 = vadd.f32 0.0, %v10809
  %10811 = vmatprep.mubr.bf16.mxu0 %v10584
  %10812 = vmatmul.mubr.bf16.gmra.mrb[0].mxu0 %v10583
  %v10813 = vpop.f32.mrb[0].mxu0
  %v10814 = vadd.f32 0.0, %v10813
  %v10815 = vpop.f32.mrb[0].mxu0
  %v10816 = vadd.f32 0.0, %v10815
  %v10817 = vpop.f32.mrb[0].mxu0
  %v10818 = vadd.f32 0.0, %v10817
  %v10819 = vpop.f32.mrb[0].mxu0
  %v10820 = vadd.f32 0.0, %v10819
  %10821 = vmatprep.mubr.bf16.mxu0 %v10586
  %10822 = vmatmul.mubr.bf16.gmra.mrb[0].mxu0 %v10585
  %v10823 = vpop.f32.mrb[0].mxu0
  %v10824 = vadd.f32 0.0, %v10823
  %v10825 = vpop.f32.mrb[0].mxu0
  %v10826 = vadd.f32 0.0, %v10825
  %v10827 = vpop.f32.mrb[0].mxu0
  %v10828 = vadd.f32 0.0, %v10827
  %v10829 = vpop.f32.mrb[0].mxu0
  %v10830 = vadd.f32 0.0, %v10829
  %10831 = vmatprep.mubr.bf16.mxu0 %v10588
  %10832 = vmatmul.mubr.bf16.gmra.mrb[0].mxu0 %v10587
  %v10833 = vpop.f32.mrb[0].mxu0
  %v10834 = vadd.f32 0.0, %v10833
  %v10835 = vpop.f32.mrb[0].mxu0
  %v10836 = vadd.f32 0.0, %v10835
  %v10837 = vpop.f32.mrb[0].mxu0
  %v10838 = vpop.f32.mrb[0].mxu0
  %10839 = vdwg.mxu0
  %10840 = vmatprep.subr.bf16.mxu0 %v10285
  %10841 = vmatpush1.bf16.msra.mxu0 %v10248
  %10842 = vmatprep.subr.bf16.mxu0 %v10619
  %10843 = vmatpush1.bf16.msra.mxu0 %v10616
  %10844 = vmatprep.subr.bf16.mxu0 0
  %10845 = vmatpush1.bf16.msra.mxu0 0
  %10846 = vmatprep.subr.bf16.mxu0 0
  %10847 = vmatpush1.bf16.msra.mxu0 0
  %10848 = vmatprep.subr.bf16.mxu0 0
  %10849 = vmatpush1.bf16.msra.mxu0 0
  %10850 = vmatprep.subr.bf16.mxu0 0
  %10851 = vmatpush1.bf16.msra.mxu0 0
  %10852 = vmatprep.subr.bf16.mxu0 0
  %10853 = vmatpush1.bf16.msra.mxu0 0
  %10854 = vmatprep.subr.bf16.mxu0 0
  %10855 = vmatpush1.bf16.msra.mxu0 0
  %10856 = vmatprep.subr.bf16.mxu0 0
  %10857 = vmatpush1.bf16.msra.mxu0 0
  %10858 = vmatprep.subr.bf16.mxu0 0
  %10859 = vmatpush1.bf16.msra.mxu0 0
  %10860 = vmatprep.subr.bf16.mxu0 0
  %10861 = vmatpush1.bf16.msra.mxu0 0
  %10862 = vmatprep.subr.bf16.mxu0 0
  %10863 = vmatpush1.bf16.msra.mxu0 0
  %10864 = vmatprep.subr.bf16.mxu0 0
  %10865 = vmatpush1.bf16.msra.mxu0 0
  %10866 = vmatprep.subr.bf16.mxu0 0
  %10867 = vmatpush1.bf16.msra.mxu0 0
  %10868 = vmatprep.subr.bf16.mxu0 0
  %10869 = vmatpush1.bf16.msra.mxu0 0
  %10870 = vmatprep.subr.bf16.mxu0 0
  %10871 = vmatpush1.bf16.msra.mxu0 0
  %10872 = vmatprep.mubr.bf16.mxu0 0
  %10873 = vmatmul.mubr.bf16.gmra.mrb[0].mxu0 %v10598
  %v10874 = vpop.f32.mrb[0].mxu0
  %v10875 = vadd.f32 %v10804, %v10874
  %v10876 = vpop.f32.mrb[0].mxu0
  %v10877 = vadd.f32 %v10806, %v10876
  %v10878 = vpop.f32.mrb[0].mxu0
  %v10879 = vadd.f32 %v10808, %v10878
  %v10880 = vpop.f32.mrb[0].mxu0
  %v10881 = vadd.f32 %v10810, %v10880
  %10882 = vmatprep.mubr.bf16.mxu0 0
  %10883 = vmatmul.mubr.bf16.gmra.mrb[0].mxu0 %v10601
  %v10884 = vpop.f32.mrb[0].mxu0
  %v10885 = vadd.f32 %v10814, %v10884
  %v10886 = vpop.f32.mrb[0].mxu0
  %v10887 = vadd.f32 %v10816, %v10886
  %v10888 = vpop.f32.mrb[0].mxu0
  %v10889 = vadd.f32 %v10818, %v10888
  %v10890 = vpop.f32.mrb[0].mxu0
  %v10891 = vadd.f32 %v10820, %v10890
  %10892 = vmatprep.mubr.bf16.mxu0 0
  %10893 = vmatmul.mubr.bf16.gmra.mrb[0].mxu0 %v10604
  %v10894 = vpop.f32.mrb[0].mxu0
  %v10895 = vadd.f32 %v10824, %v10894
  %v10896 = vpop.f32.mrb[0].mxu0
  %v10897 = vadd.f32 %v10826, %v10896
  %v10898 = vpop.f32.mrb[0].mxu0
  %v10899 = vadd.f32 %v10828, %v10898
  %v10900 = vpop.f32.mrb[0].mxu0
  %v10901 = vadd.f32 %v10830, %v10900
  %10902 = vmatprep.mubr.bf16.mxu0 0
  %10903 = vmatmul.mubr.bf16.gmra.mrb[0].mxu0 %v10607
  %v10904 = vpop.f32.mrb[0].mxu0
  %v10905 = vadd.f32 %v10834, %v10904
  %v10906 = vpop.f32.mrb[0].mxu0
  %v10907 = vadd.f32 %v10836, %v10906
  %v10908 = vpop.f32.mrb[0].mxu0
  %v10909 = vpop.f32.mrb[0].mxu0
  %10910 = vdwg.mxu0
  %10911 = vmatprep.subr.bf16.mxu0 %v9846
  %10912 = vmatpush1.bf16.msra.mxu0 %v9845
  %10913 = vmatprep.subr.bf16.mxu0 %v9849
  %10914 = vmatpush1.bf16.msra.mxu0 %v9848
  %10915 = vmatprep.subr.bf16.mxu0 %v10445
  %10916 = vmatpush1.bf16.msra.mxu0 %v10441
  %10917 = vmatprep.subr.bf16.mxu0 %v10314
  %10918 = vmatpush1.bf16.msra.mxu0 %v10312
  %10919 = vmatprep.subr.bf16.mxu0 %v10326
  %10920 = vmatpush1.bf16.msra.mxu0 %v10324
  %10921 = vmatprep.subr.bf16.mxu0 %v9992
  %10922 = vmatpush1.bf16.msra.mxu0 %v9991
  %10923 = vmatprep.subr.bf16.mxu0 %v9995
  %10924 = vmatpush1.bf16.msra.mxu0 %v9994
  %10925 = vmatprep.subr.bf16.mxu0 %v10469
  %10926 = vmatpush1.bf16.msra.mxu0 %v10465
  %10927 = vmatprep.subr.bf16.mxu0 %v10356
  %10928 = vmatpush1.bf16.msra.mxu0 %v10354
  %10929 = vmatprep.subr.bf16.mxu0 %v10368
  %10930 = vmatpush1.bf16.msra.mxu0 %v10366
  %10931 = vmatprep.subr.bf16.mxu0 %v10138
  %10932 = vmatpush1.bf16.msra.mxu0 %v10137
  %10933 = vmatprep.subr.bf16.mxu0 %v10141
  %10934 = vmatpush1.bf16.msra.mxu0 %v10140
  %10935 = vmatprep.subr.bf16.mxu0 %v10493
  %10936 = vmatpush1.bf16.msra.mxu0 %v10489
  %10937 = vmatprep.subr.bf16.mxu0 %v10398
  %10938 = vmatpush1.bf16.msra.mxu0 %v10396
  %10939 = vmatprep.subr.bf16.mxu0 %v10410
  %10940 = vmatpush1.bf16.msra.mxu0 %v10408
  %10941 = vmatprep.subr.bf16.mxu0 %v10284
  %10942 = vmatpush1.bf16.msra.mxu0 %v10283
  %10943 = vmatprep.mubr.bf16.mxu0 %v10582
  %10944 = vmatmul.mubr.bf16.gmra.mrb[0].mxu0 %v10581
  %v10945 = vpop.f32.mrb[0].mxu0
  %v10946 = vadd.f32 0.0, %v10945
  %v10947 = vpop.f32.mrb[0].mxu0
  %v10948 = vadd.f32 0.0, %v10947
  %v10949 = vpop.f32.mrb[0].mxu0
  %v10950 = vadd.f32 0.0, %v10949
  %v10951 = vpop.f32.mrb[0].mxu0
  %v10952 = vadd.f32 0.0, %v10951
  %10953 = vmatprep.mubr.bf16.mxu0 %v10584
  %10954 = vmatmul.mubr.bf16.gmra.mrb[0].mxu0 %v10583
  %v10955 = vpop.f32.mrb[0].mxu0
  %v10956 = vadd.f32 0.0, %v10955
  %v10957 = vpop.f32.mrb[0].mxu0
  %v10958 = vadd.f32 0.0, %v10957
  %v10959 = vpop.f32.mrb[0].mxu0
  %v10960 = vadd.f32 0.0, %v10959
  %v10961 = vpop.f32.mrb[0].mxu0
  %v10962 = vadd.f32 0.0, %v10961
  %10963 = vmatprep.mubr.bf16.mxu0 %v10586
  %10964 = vmatmul.mubr.bf16.gmra.mrb[0].mxu0 %v10585
  %v10965 = vpop.f32.mrb[0].mxu0
  %v10966 = vadd.f32 0.0, %v10965
  %v10967 = vpop.f32.mrb[0].mxu0
  %v10968 = vadd.f32 0.0, %v10967
  %v10969 = vpop.f32.mrb[0].mxu0
  %v10970 = vadd.f32 0.0, %v10969
  %v10971 = vpop.f32.mrb[0].mxu0
  %v10972 = vadd.f32 0.0, %v10971
  %10973 = vmatprep.mubr.bf16.mxu0 %v10588
  %10974 = vmatmul.mubr.bf16.gmra.mrb[0].mxu0 %v10587
  %v10975 = vpop.f32.mrb[0].mxu0
  %v10976 = vadd.f32 0.0, %v10975
  %v10977 = vpop.f32.mrb[0].mxu0
  %v10978 = vadd.f32 0.0, %v10977
  %v10979 = vpop.f32.mrb[0].mxu0
  %v10980 = vpop.f32.mrb[0].mxu0
  %10981 = vdwg.mxu0
  %10982 = vmatprep.subr.bf16.mxu0 %v10287
  %10983 = vmatpush1.bf16.msra.mxu0 %v10286
  %10984 = vmatprep.subr.bf16.mxu0 %v10625
  %10985 = vmatpush1.bf16.msra.mxu0 %v10622
  %10986 = vmatprep.subr.bf16.mxu0 0
  %10987 = vmatpush1.bf16.msra.mxu0 0
  %10988 = vmatprep.subr.bf16.mxu0 0
  %10989 = vmatpush1.bf16.msra.mxu0 0
  %10990 = vmatprep.subr.bf16.mxu0 0
  %10991 = vmatpush1.bf16.msra.mxu0 0
  %10992 = vmatprep.subr.bf16.mxu0 0
  %10993 = vmatpush1.bf16.msra.mxu0 0
  %10994 = vmatprep.subr.bf16.mxu0 0
  %10995 = vmatpush1.bf16.msra.mxu0 0
  %10996 = vmatprep.subr.bf16.mxu0 0
  %10997 = vmatpush1.bf16.msra.mxu0 0
  %10998 = vmatprep.subr.bf16.mxu0 0
  %10999 = vmatpush1.bf16.msra.mxu0 0
  %11000 = vmatprep.subr.bf16.mxu0 0
  %11001 = vmatpush1.bf16.msra.mxu0 0
  %11002 = vmatprep.subr.bf16.mxu0 0
  %11003 = vmatpush1.bf16.msra.mxu0 0
  %11004 = vmatprep.subr.bf16.mxu0 0
  %11005 = vmatpush1.bf16.msra.mxu0 0
  %11006 = vmatprep.subr.bf16.mxu0 0
  %11007 = vmatpush1.bf16.msra.mxu0 0
  %11008 = vmatprep.subr.bf16.mxu0 0
  %11009 = vmatpush1.bf16.msra.mxu0 0
  %11010 = vmatprep.subr.bf16.mxu0 0
  %11011 = vmatpush1.bf16.msra.mxu0 0
  %11012 = vmatprep.subr.bf16.mxu0 0
  %11013 = vmatpush1.bf16.msra.mxu0 0
  %11014 = vmatprep.mubr.bf16.mxu0 0
  %11015 = vmatmul.mubr.bf16.gmra.mrb[0].mxu0 %v10598
  %v11016 = vpop.f32.mrb[0].mxu0
  %v11017 = vadd.f32 %v10946, %v11016
  %v11018 = vpop.f32.mrb[0].mxu0
  %v11019 = vadd.f32 %v10948, %v11018
  %v11020 = vpop.f32.mrb[0].mxu0
  %v11021 = vadd.f32 %v10950, %v11020
  %v11022 = vpop.f32.mrb[0].mxu0
  %v11023 = vadd.f32 %v10952, %v11022
  %11024 = vmatprep.mubr.bf16.mxu0 0
  %11025 = vmatmul.mubr.bf16.gmra.mrb[0].mxu0 %v10601
  %v11026 = vpop.f32.mrb[0].mxu0
  %v11027 = vadd.f32 %v10956, %v11026
  %v11028 = vpop.f32.mrb[0].mxu0
  %v11029 = vadd.f32 %v10958, %v11028
  %v11030 = vpop.f32.mrb[0].mxu0
  %v11031 = vadd.f32 %v10960, %v11030
  %v11032 = vpop.f32.mrb[0].mxu0
  %v11033 = vadd.f32 %v10962, %v11032
  %11034 = vmatprep.mubr.bf16.mxu0 0
  %11035 = vmatmul.mubr.bf16.gmra.mrb[0].mxu0 %v10604
  %v11036 = vpop.f32.mrb[0].mxu0
  %v11037 = vadd.f32 %v10966, %v11036
  %v11038 = vpop.f32.mrb[0].mxu0
  %v11039 = vadd.f32 %v10968, %v11038
  %v11040 = vpop.f32.mrb[0].mxu0
  %v11041 = vadd.f32 %v10970, %v11040
  %v11042 = vpop.f32.mrb[0].mxu0
  %v11043 = vadd.f32 %v10972, %v11042
  %11044 = vmatprep.mubr.bf16.mxu0 0
  %11045 = vmatmul.mubr.bf16.gmra.mrb[0].mxu0 %v10607
  %v11046 = vpop.f32.mrb[0].mxu0
  %v11047 = vadd.f32 %v10976, %v11046
  %v11048 = vpop.f32.mrb[0].mxu0
  %v11049 = vadd.f32 %v10978, %v11048
  %v11050 = vpop.f32.mrb[0].mxu0
  %v11051 = vpop.f32.mrb[0].mxu0
  %11052 = vdwg.mxu0
  %v11053 = vld [vmem:[#allocation3] sm:$0xff]
  %v11054 = vld [vmem:[#allocation3 + $0x8] sm:$0xff]
  %v11055 = vld [vmem:[#allocation3 + $0x10] sm:$0xff]
  %v11056 = vld [vmem:[#allocation3 + $0x18] sm:$0xff]
  %v11057 = vld [vmem:[#allocation3 + $0x20] sm:$0xff]
  %v11058 = vld [vmem:[#allocation3 + $0x28] sm:$0xff]
  %v11059 = vld [vmem:[#allocation3 + $0x30] sm:$0xff]
  %v11060 = vld [vmem:[#allocation3 + $0x38] sm:$0xff]
  %v11061 = vld [vmem:[#allocation3 + $0x40] sm:$0xff]
  %v11062 = vld [vmem:[#allocation3 + $0x48] sm:$0xff]
  %v11063 = vld [vmem:[#allocation3 + $0x50] sm:$0xff]
  %v11064 = vld [vmem:[#allocation3 + $0x58] sm:$0xff]
  %v11065 = vld [vmem:[#allocation3 + $0x60] sm:$0xff]
  %v11066 = vld [vmem:[#allocation3 + $0x68] sm:$0xff]
  %v11067 = vld [vmem:[#allocation3 + $0x70] sm:$0xff]
  %v11068 = vld [vmem:[#allocation3 + $0x78] sm:$0xff]
  %v11069 = vld [vmem:[#allocation3 + $0x80] sm:$0xff]
  %v11070 = vld [vmem:[#allocation3 + $0x88] sm:$0xff]
  %v11071 = vld [vmem:[#allocation3 + $0x90] sm:$0xff]
  %v11072 = vld [vmem:[#allocation3 + $0x98] sm:$0xff]
  %v11073 = vld [vmem:[#allocation3 + $0xa0] sm:$0xff]
  %v11074 = vld [vmem:[#allocation3 + $0xa8] sm:$0xff]
  %v11075 = vld [vmem:[#allocation3 + $0xb0] sm:$0xff]
  %v11076 = vld [vmem:[#allocation3 + $0xb8] sm:$0xff]
  %v11077 = vld [vmem:[#allocation3 + $0xc0] sm:$0xff]
  %v11078 = vld [vmem:[#allocation3 + $0xc8] sm:$0xff]
  %v11079 = vld [vmem:[#allocation3 + $0xd0] sm:$0xff]
  %v11080 = vld [vmem:[#allocation3 + $0xd8] sm:$0xff]
  %v11081 = vld [vmem:[#allocation3 + $0xe0] sm:$0xff]
  %v11082 = vld [vmem:[#allocation3 + $0xe8] sm:$0xff]
  %v11083 = vld [vmem:[#allocation3 + $0xf0] sm:$0xff]
  %v11084 = vld [vmem:[#allocation3 + $0xf8] sm:$0xff]
  %v11085 = vld [vmem:[#allocation3 + $0x100] sm:$0xff]
  %v11086 = vld [vmem:[#allocation3 + $0x108] sm:$0xff]
  %v11087 = vld [vmem:[#allocation3 + $0x110] sm:$0xff]
  %v11088 = vld [vmem:[#allocation3 + $0x118] sm:$0xff]
  %v11089 = vld [vmem:[#allocation3 + $0x120] sm:$0x3]
  %v11090 = vld [vmem:[#allocation3 + $0x128] sm:$0x3]
  %v11091 = vld [vmem:[#allocation3 + $0x130] sm:$0x3]
  %v11092 = vld [vmem:[#allocation3 + $0x138] sm:$0x3]
  %v11093 = vld [vmem:[#allocation3 + $0x140] sm:$0x3]
  %v11094 = vld [vmem:[#allocation3 + $0x148] sm:$0x3]
  %v11095 = vadd.f32 %v11053, %v10733
  %v11096 = vadd.f32 %v11054, %v10735
  %v11097 = vadd.f32 %v11055, %v10875
  %v11098 = vadd.f32 %v11056, %v10877
  %v11099 = vadd.f32 %v11057, %v11017
  %v11100 = vadd.f32 %v11058, %v11019
  %v11101 = vadd.f32 %v11059, %v10737
  %v11102 = vadd.f32 %v11060, %v10739
  %v11103 = vadd.f32 %v11061, %v10879
  %v11104 = vadd.f32 %v11062, %v10881
  %v11105 = vadd.f32 %v11063, %v11021
  %v11106 = vadd.f32 %v11064, %v11023
  %v11107 = vadd.f32 %v11065, %v10743
  %v11108 = vadd.f32 %v11066, %v10745
  %v11109 = vadd.f32 %v11067, %v10885
  %v11110 = vadd.f32 %v11068, %v10887
  %v11111 = vadd.f32 %v11069, %v11027
  %v11112 = vadd.f32 %v11070, %v11029
  %v11113 = vadd.f32 %v11071, %v10747
  %v11114 = vadd.f32 %v11072, %v10749
  %v11115 = vadd.f32 %v11073, %v10889
  %v11116 = vadd.f32 %v11074, %v10891
  %v11117 = vadd.f32 %v11075, %v11031
  %v11118 = vadd.f32 %v11076, %v11033
  %v11119 = vadd.f32 %v11077, %v10753
  %v11120 = vadd.f32 %v11078, %v10755
  %v11121 = vadd.f32 %v11079, %v10895
  %v11122 = vadd.f32 %v11080, %v10897
  %v11123 = vadd.f32 %v11081, %v11037
  %v11124 = vadd.f32 %v11082, %v11039
  %v11125 = vadd.f32 %v11083, %v10757
  %v11126 = vadd.f32 %v11084, %v10759
  %v11127 = vadd.f32 %v11085, %v10899
  %v11128 = vadd.f32 %v11086, %v10901
  %v11129 = vadd.f32 %v11087, %v11041
  %v11130 = vadd.f32 %v11088, %v11043
  %v11131 = vadd.f32 %v11089, %v10763
  %v11132 = vadd.f32 %v11090, %v10765
  %v11133 = vadd.f32 %v11091, %v10905
  %v11134 = vadd.f32 %v11092, %v10907
  %v11135 = vadd.f32 %v11093, %v11047
  %v11136 = vadd.f32 %v11094, %v11049
  %11137 = vst [vmem:[#allocation3] sm:$0xff] %v11095
  %11138 = vst [vmem:[#allocation3 + $0x8] sm:$0xff] %v11096
  %11139 = vst [vmem:[#allocation3 + $0x10] sm:$0xff] %v11097
  %11140 = vst [vmem:[#allocation3 + $0x18] sm:$0xff] %v11098
  %11141 = vst [vmem:[#allocation3 + $0x20] sm:$0xff] %v11099
  %11142 = vst [vmem:[#allocation3 + $0x28] sm:$0xff] %v11100
  %11143 = vst [vmem:[#allocation3 + $0x30] sm:$0xff] %v11101
  %11144 = vst [vmem:[#allocation3 + $0x38] sm:$0xff] %v11102
  %11145 = vst [vmem:[#allocation3 + $0x40] sm:$0xff] %v11103
  %11146 = vst [vmem:[#allocation3 + $0x48] sm:$0xff] %v11104
  %11147 = vst [vmem:[#allocation3 + $0x50] sm:$0xff] %v11105
  %11148 = vst [vmem:[#allocation3 + $0x58] sm:$0xff] %v11106
  %11149 = vst [vmem:[#allocation3 + $0x60] sm:$0xff] %v11107
  %11150 = vst [vmem:[#allocation3 + $0x68] sm:$0xff] %v11108
  %11151 = vst [vmem:[#allocation3 + $0x70] sm:$0xff] %v11109
  %11152 = vst [vmem:[#allocation3 + $0x78] sm:$0xff] %v11110
  %11153 = vst [vmem:[#allocation3 + $0x80] sm:$0xff] %v11111
  %11154 = vst [vmem:[#allocation3 + $0x88] sm:$0xff] %v11112
  %11155 = vst [vmem:[#allocation3 + $0x90] sm:$0xff] %v11113
  %11156 = vst [vmem:[#allocation3 + $0x98] sm:$0xff] %v11114
  %11157 = vst [vmem:[#allocation3 + $0xa0] sm:$0xff] %v11115
  %11158 = vst [vmem:[#allocation3 + $0xa8] sm:$0xff] %v11116
  %11159 = vst [vmem:[#allocation3 + $0xb0] sm:$0xff] %v11117
  %11160 = vst [vmem:[#allocation3 + $0xb8] sm:$0xff] %v11118
  %11161 = vst [vmem:[#allocation3 + $0xc0] sm:$0xff] %v11119
  %11162 = vst [vmem:[#allocation3 + $0xc8] sm:$0xff] %v11120
  %11163 = vst [vmem:[#allocation3 + $0xd0] sm:$0xff] %v11121
  %11164 = vst [vmem:[#allocation3 + $0xd8] sm:$0xff] %v11122
  %11165 = vst [vmem:[#allocation3 + $0xe0] sm:$0xff] %v11123
  %11166 = vst [vmem:[#allocation3 + $0xe8] sm:$0xff] %v11124
  %11167 = vst [vmem:[#allocation3 + $0xf0] sm:$0xff] %v11125
  %11168 = vst [vmem:[#allocation3 + $0xf8] sm:$0xff] %v11126
  %11169 = vst [vmem:[#allocation3 + $0x100] sm:$0xff] %v11127
  %11170 = vst [vmem:[#allocation3 + $0x108] sm:$0xff] %v11128
  %11171 = vst [vmem:[#allocation3 + $0x110] sm:$0xff] %v11129
  %11172 = vst [vmem:[#allocation3 + $0x118] sm:$0xff] %v11130
  %11173 = vst [vmem:[#allocation3 + $0x120] sm:$0x3] %v11131
  %11174 = vst [vmem:[#allocation3 + $0x128] sm:$0x3] %v11132
  %11175 = vst [vmem:[#allocation3 + $0x130] sm:$0x3] %v11133
  %11176 = vst [vmem:[#allocation3 + $0x138] sm:$0x3] %v11134
  %11177 = vst [vmem:[#allocation3 + $0x140] sm:$0x3] %v11135
  %11178 = vst [vmem:[#allocation3 + $0x148] sm:$0x3] %v11136
  %v11179 = vld [vmem:[%s4] sm:$0xff]
  %v11180 = vld [vmem:[%s4 + $0x8] sm:$0xff]
  %v11181 = vld [vmem:[%s4 + $0x10] sm:$0xff]
  %v11182 = vld [vmem:[%s4 + $0x18] sm:$0xff]
  %v11183 = vld [vmem:[%s4 + $0x20] sm:$0xff]
  %v11184 = vld [vmem:[%s4 + $0x28] sm:$0xff]
  %v11185 = vld [vmem:[%s4 + $0x30] sm:$0x3]
  %v11186 = vld [vmem:[%s5] sm:$0x7]
  %v11187 = vld [vmem:[%s6] sm:$0xff]
  %v11188 = vld [vmem:[%s6 + $0x8] sm:$0xff]
  %v11189 = vld [vmem:[%s6 + $0x10] sm:$0xff]
  %v11190 = vld [vmem:[%s6 + $0x18] sm:$0xff]
  %v11191 = vld [vmem:[%s6 + $0x20] sm:$0xff]
  %v11192 = vld [vmem:[%s6 + $0x28] sm:$0xff]
  %v11193 = vld [vmem:[%s6 + $0x30] sm:$0xff]
  %v11194 = vld [vmem:[%s6 + $0x38] sm:$0xff]
  %v11195 = vld [vmem:[%s6 + $0x40] sm:$0xff]
  %v11196 = vld [vmem:[%s6 + $0x48] sm:$0xff]
  %v11197 = vld [vmem:[%s6 + $0x50] sm:$0xff]
  %v11198 = vld [vmem:[%s6 + $0x58] sm:$0xff]
  %v11199 = vld [vmem:[%s6 + $0x60] sm:$0xff]
  %v11200 = vld [vmem:[%s6 + $0x68] sm:$0xff]
  %v11201 = vld [vmem:[%s6 + $0x70] sm:$0xff]
  %v11202 = vld [vmem:[%s6 + $0x78] sm:$0xff]
  %v11203 = vld [vmem:[%s6 + $0x80] sm:$0xff]
  %v11204 = vld [vmem:[%s6 + $0x88] sm:$0xff]
  %v11205 = vld [vmem:[%s6 + $0x90] sm:$0xff]
  %v11206 = vld [vmem:[%s6 + $0x98] sm:$0xff]
  %v11207 = vld [vmem:[%s6 + $0xa0] sm:$0xff]
  %v11208 = vld [vmem:[%s6 + $0xa8] sm:$0xff]
  %v11209 = vld [vmem:[%s6 + $0xb0] sm:$0xff]
  %v11210 = vld [vmem:[%s6 + $0xb8] sm:$0xff]
  %v11211 = vld [vmem:[%s6 + $0xc0] sm:$0xff]
  %v11212 = vld [vmem:[%s6 + $0xc8] sm:$0xff]
  %v11213 = vld [vmem:[%s6 + $0xd0] sm:$0xff]
  %v11214 = vld [vmem:[%s6 + $0xd8] sm:$0xff]
  %v11215 = vld [vmem:[%s6 + $0xe0] sm:$0xff]
  %v11216 = vld [vmem:[%s6 + $0xe8] sm:$0xff]
  %v11217 = vld [vmem:[%s6 + $0xf0] sm:$0xff]
  %v11218 = vld [vmem:[%s6 + $0xf8] sm:$0xff]
  %v11219 = vld [vmem:[%s6 + $0x100] sm:$0xff]
  %v11220 = vld [vmem:[%s6 + $0x108] sm:$0xff]
  %v11221 = vld [vmem:[%s6 + $0x110] sm:$0xff]
  %v11222 = vld [vmem:[%s6 + $0x118] sm:$0xff]
  %v11223 = vld [vmem:[%s6 + $0x120] sm:$0xff]
  %v11224 = vld [vmem:[%s6 + $0x128] sm:$0xff]
  %v11225 = vld [vmem:[%s6 + $0x130] sm:$0xff]
  %v11226 = vld [vmem:[%s6 + $0x138] sm:$0xff]
  %v11227 = vld [vmem:[%s6 + $0x140] sm:$0xff]
  %v11228 = vld [vmem:[%s6 + $0x148] sm:$0xff]
  %v11229 = vld [vmem:[%s6 + $0x150] sm:$0xff]
  %v11230 = vld [vmem:[%s6 + $0x158] sm:$0xff]
  %v11231 = vld [vmem:[%s6 + $0x160] sm:$0xff]
  %v11232 = vld [vmem:[%s6 + $0x168] sm:$0xff]
  %v11233 = vld [vmem:[%s6 + $0x170] sm:$0xff]
  %v11234 = vld [vmem:[%s6 + $0x178] sm:$0xff]
  %v11235 = vld [vmem:[#allocation3 + $0xf0] sm:$0xff]
  %v11236 = vld [vmem:[#allocation3 + $0xf8] sm:$0xff]
  %v11237 = vld [vmem:[#allocation3 + $0x100] sm:$0xff]
  %v11238 = vld [vmem:[#allocation3 + $0x120] sm:$0x3]
  %v11239 = vld [vmem:[#allocation3 + $0x128] sm:$0x3]
  %v11240 = vld [vmem:[#allocation3 + $0x130] sm:$0x3]
  %11242 = vset.pattern.permute.xlu0 0
  %11243 = vperm.xlu0 %11242, %v11184
  %v11244 = vpop.permute.xlu0 %11243
  %11247 = vset.pattern.permute.xlu0 0
  %11248 = vperm.xlu0 %11247, %v11185
  %v11249 = vpop.permute.xlu0 %11248
  %v11251 = vadd.f32 %v11235, %v11244
  %v11252 = vadd.f32 %v11236, %v11244
  %v11253 = vadd.f32 %v11237, %v11244
  %v11254 = vadd.f32 %v11238, %v11249
  %v11255 = vadd.f32 %v11239, %v11249
  %v11256 = vadd.f32 %v11240, %v11249
  %v11257 = vmul.f32 %v11251, 10.0
  %v11258 = vmul.f32 %v11252, 10.0
  %v11259 = vmul.f32 %v11253, 10.0
  %v11260 = vmul.f32 %v11254, 10.0
  %v11261 = vmul.f32 %v11255, 10.0
  %v11262 = vmul.f32 %v11256, 10.0
  %v11264 = vlaneseq
  %v11265 = vshrl.u32 %v11264, 7
  %v11266 = vsub.s32 0, %v11265
  %v11267 = vrot.slane %v11186, %v11266
  %v11268 = vlaneseq
  %v11269 = vshrl.u32 %v11268, 7
  %v11270 = vsub.s32 1, %v11269
  %v11271 = vrot.slane %v11186, %v11270
  %v11272 = vlaneseq
  %v11273 = vshrl.u32 %v11272, 7
  %v11274 = vsub.s32 2, %v11273
  %v11275 = vrot.slane %v11186, %v11274
  %v11279 = vadd.f32 %v11257, %v11267
  %v11280 = vadd.f32 %v11258, %v11271
  %v11281 = vadd.f32 %v11259, %v11275
  %v11282 = vadd.f32 %v11260, %v11267
  %v11283 = vadd.f32 %v11261, %v11271
  %v11284 = vadd.f32 %v11262, %v11275
  %v11285 = vmax.f32 %v11279, %v11281
  %v11286 = vmax.f32 %v11285, %v11280
  %11287 = vmax.xlane.f32.xlu0 %v11286
  %v11288 = vpop.xlane.xlu0 %11287
  %vm11289 = vcmask 1041408
  %v11290 = vsel %vm11289, %v11282, -inf
  %v11291 = vsel %vm11289, %v11283, -inf
  %v11292 = vsel %vm11289, %v11284, -inf
  %v11293 = vmax.f32 %v11290, %v11292
  %v11294 = vmax.f32 %v11293, %v11291
  %11295 = vmax.xlane.f32.xlu0 %v11294
  %v11296 = vpop.xlane.xlu0 %11295
  %v11297 = vsub.f32 %v11279, %v11288
  %v11298 = vsub.f32 %v11280, %v11288
  %v11299 = vsub.f32 %v11281, %v11288
  %v11300 = vsub.f32 %v11282, %v11296
  %v11301 = vsub.f32 %v11283, %v11296
  %v11302 = vsub.f32 %v11284, %v11296
  %v11303 = vmul.f32 %v11297, 1.442695
  %v11304 = vpow.pop %v11303
  %v11305 = vmul.f32 %v11298, 1.442695
  %v11306 = vpow.pop %v11305
  %v11307 = vmul.f32 %v11299, 1.442695
  %v11308 = vpow.pop %v11307
  %v11309 = vmul.f32 %v11300, 1.442695
  %v11310 = vpow.pop %v11309
  %v11311 = vmul.f32 %v11301, 1.442695
  %v11312 = vpow.pop %v11311
  %v11313 = vmul.f32 %v11302, 1.442695
  %v11314 = vpow.pop %v11313
  %11315 = vmatprep.subr.mxu0 0.0
  %11316 = vmatpush1.msra.mxu0 %v11187
  %11317 = vmatprep.subr.mxu0 0.0
  %11318 = vmatpush1.msra.mxu0 %v11188
  %11319 = vmatprep.subr.mxu0 0.0
  %11320 = vmatpush1.msra.mxu0 %v11189
  %11321 = vmatprep.subr.mxu0 0.0
  %11322 = vmatpush1.msra.mxu0 %v11190
  %11323 = vmatprep.subr.mxu0 0.0
  %11324 = vmatpush1.msra.mxu0 %v11191
  %11325 = vmatprep.subr.mxu0 0.0
  %11326 = vmatpush1.msra.mxu0 %v11192
  %11327 = vmatprep.subr.mxu0 0.0
  %11328 = vmatpush1.msra.mxu0 %v11193
  %11329 = vmatprep.subr.mxu0 0.0
  %11330 = vmatpush1.msra.mxu0 %v11194
  %11331 = vmatprep.subr.mxu0 0.0
  %11332 = vmatpush1.msra.mxu0 %v11195
  %11333 = vmatprep.subr.mxu0 0.0
  %11334 = vmatpush1.msra.mxu0 %v11196
  %11335 = vmatprep.subr.mxu0 0.0
  %11336 = vmatpush1.msra.mxu0 %v11197
  %11337 = vmatprep.subr.mxu0 0.0
  %11338 = vmatpush1.msra.mxu0 %v11198
  %11339 = vmatprep.subr.mxu0 0.0
  %11340 = vmatpush1.msra.mxu0 %v11199
  %11341 = vmatprep.subr.mxu0 0.0
  %11342 = vmatpush1.msra.mxu0 %v11200
  %11343 = vmatprep.subr.mxu0 0.0
  %11344 = vmatpush1.msra.mxu0 %v11201
  %11345 = vmatprep.subr.mxu0 0.0
  %11346 = vmatpush1.msra.mxu0 %v11202
  %11347 = vmatprep.subr.mxu0 0.0
  %11348 = vmatpush1.msra.mxu0 %v11203
  %11349 = vmatprep.subr.mxu0 0.0
  %11350 = vmatpush1.msra.mxu0 %v11204
  %11351 = vmatprep.subr.mxu0 0.0
  %11352 = vmatpush1.msra.mxu0 %v11205
  %11353 = vmatprep.subr.mxu0 0.0
  %11354 = vmatpush1.msra.mxu0 %v11206
  %11355 = vmatprep.subr.mxu0 0.0
  %11356 = vmatpush1.msra.mxu0 %v11207
  %11357 = vmatprep.subr.mxu0 0.0
  %11358 = vmatpush1.msra.mxu0 %v11208
  %11359 = vmatprep.subr.mxu0 0.0
  %11360 = vmatpush1.msra.mxu0 %v11209
  %11361 = vmatprep.subr.mxu0 0.0
  %11362 = vmatpush1.msra.mxu0 %v11210
  %11363 = vmatprep.subr.mxu0 0.0
  %11364 = vmatpush1.msra.mxu0 %v11211
  %11365 = vmatprep.subr.mxu0 0.0
  %11366 = vmatpush1.msra.mxu0 %v11212
  %11367 = vmatprep.subr.mxu0 0.0
  %11368 = vmatpush1.msra.mxu0 %v11213
  %11369 = vmatprep.subr.mxu0 0.0
  %11370 = vmatpush1.msra.mxu0 %v11214
  %11371 = vmatprep.subr.mxu0 0.0
  %11372 = vmatpush1.msra.mxu0 %v11215
  %11373 = vmatprep.subr.mxu0 0.0
  %11374 = vmatpush1.msra.mxu0 %v11216
  %11375 = vmatprep.subr.mxu0 0.0
  %11376 = vmatpush1.msra.mxu0 %v11217
  %11377 = vmatprep.subr.mxu0 0.0
  %11378 = vmatpush1.msra.mxu0 %v11218
  %11379 = vmatprep.mubr.f32.mxu0 %v11306
  %11380 = vmatmul.mubr.f32.gmra.mrb[0].mxu0 %v11304
  %v11381 = vpop.f32.mrb[0].mxu0
  %v11382 = vadd.f32 0.0, %v11381
  %v11383 = vpop.f32.mrb[0].mxu0
  %11384 = vmatprep.mubr.f32.mxu0 %v11312
  %11385 = vmatmul.mubr.f32.gmra.mrb[0].mxu0 %v11310
  %v11386 = vpop.f32.mrb[0].mxu0
  %v11387 = vadd.f32 0.0, %v11386
  %v11388 = vpop.f32.mrb[0].mxu0
  %11389 = vdwg.mxu0
  %11390 = vmatprep.subr.mxu0 0.0
  %11391 = vmatpush1.msra.mxu0 %v11219
  %11392 = vmatprep.subr.mxu0 0.0
  %11393 = vmatpush1.msra.mxu0 %v11220
  %11394 = vmatprep.subr.mxu0 0.0
  %11395 = vmatpush1.msra.mxu0 %v11221
  %11396 = vmatprep.subr.mxu0 0.0
  %11397 = vmatpush1.msra.mxu0 %v11222
  %11398 = vmatprep.subr.mxu0 0.0
  %11399 = vmatpush1.msra.mxu0 %v11223
  %11400 = vmatprep.subr.mxu0 0.0
  %11401 = vmatpush1.msra.mxu0 %v11224
  %11402 = vmatprep.subr.mxu0 0.0
  %11403 = vmatpush1.msra.mxu0 %v11225
  %11404 = vmatprep.subr.mxu0 0.0
  %11405 = vmatpush1.msra.mxu0 %v11226
  %11406 = vmatprep.subr.mxu0 0.0
  %11407 = vmatpush1.msra.mxu0 %v11227
  %11408 = vmatprep.subr.mxu0 0.0
  %11409 = vmatpush1.msra.mxu0 %v11228
  %11410 = vmatprep.subr.mxu0 0.0
  %11411 = vmatpush1.msra.mxu0 %v11229
  %11412 = vmatprep.subr.mxu0 0.0
  %11413 = vmatpush1.msra.mxu0 %v11230
  %11414 = vmatprep.subr.mxu0 0.0
  %11415 = vmatpush1.msra.mxu0 %v11231
  %11416 = vmatprep.subr.mxu0 0.0
  %11417 = vmatpush1.msra.mxu0 %v11232
  %11418 = vmatprep.subr.mxu0 0.0
  %11419 = vmatpush1.msra.mxu0 %v11233
  %11420 = vmatprep.subr.mxu0 0.0
  %11421 = vmatpush1.msra.mxu0 %v11234
  %11422 = vmatprep.subr.mxu0 0.0
  %11423 = vmatpush1.msra.mxu0 0.0
  %11424 = vmatprep.subr.mxu0 0.0
  %11425 = vmatpush1.msra.mxu0 0.0
  %11426 = vmatprep.subr.mxu0 0.0
  %11427 = vmatpush1.msra.mxu0 0.0
  %11428 = vmatprep.subr.mxu0 0.0
  %11429 = vmatpush1.msra.mxu0 0.0
  %11430 = vmatprep.subr.mxu0 0.0
  %11431 = vmatpush1.msra.mxu0 0.0
  %11432 = vmatprep.subr.mxu0 0.0
  %11433 = vmatpush1.msra.mxu0 0.0
  %11434 = vmatprep.subr.mxu0 0.0
  %11435 = vmatpush1.msra.mxu0 0.0
  %11436 = vmatprep.subr.mxu0 0.0
  %11437 = vmatpush1.msra.mxu0 0.0
  %11438 = vmatprep.subr.mxu0 0.0
  %11439 = vmatpush1.msra.mxu0 0.0
  %11440 = vmatprep.subr.mxu0 0.0
  %11441 = vmatpush1.msra.mxu0 0.0
  %11442 = vmatprep.subr.mxu0 0.0
  %11443 = vmatpush1.msra.mxu0 0.0
  %11444 = vmatprep.subr.mxu0 0.0
  %11445 = vmatpush1.msra.mxu0 0.0
  %11446 = vmatprep.subr.mxu0 0.0
  %11447 = vmatpush1.msra.mxu0 0.0
  %11448 = vmatprep.subr.mxu0 0.0
  %11449 = vmatpush1.msra.mxu0 0.0
  %11450 = vmatprep.subr.mxu0 0.0
  %11451 = vmatpush1.msra.mxu0 0.0
  %11452 = vmatprep.subr.mxu0 0.0
  %11453 = vmatpush1.msra.mxu0 0.0
  %11454 = vmatprep.mubr.f32.mxu0 0.0
  %11455 = vmatmul.mubr.f32.gmra.mrb[0].mxu0 %v11308
  %v11456 = vpop.f32.mrb[0].mxu0
  %v11457 = vadd.f32 %v11382, %v11456
  %v11458 = vpop.f32.mrb[0].mxu0
  %11459 = vmatprep.mubr.f32.mxu0 0.0
  %11460 = vmatmul.mubr.f32.gmra.mrb[0].mxu0 %v11314
  %v11461 = vpop.f32.mrb[0].mxu0
  %v11462 = vadd.f32 %v11387, %v11461
  %v11463 = vpop.f32.mrb[0].mxu0
  %11464 = vdwg.mxu0
  %v11465 = vrcp.pop %v11457
  %v11466 = vrcp.pop %v11462
  %11468 = vset.pattern.permute.xlu0 0
  %11469 = vperm.xlu0 %11468, %v11465
  %v11470 = vpop.permute.xlu0 %11469
  %11473 = vset.pattern.permute.xlu0 0
  %11474 = vperm.xlu0 %11473, %v11466
  %v11475 = vpop.permute.xlu0 %11474
  %v11477 = vmul.f32 %v11457, %v11470
  %v11478 = vmul.f32 %v11462, %v11475
  %v11479 = vld [vmem:[#allocation3] sm:$0xff]
  %v11480 = vld [vmem:[#allocation3 + $0x8] sm:$0xff]
  %v11481 = vld [vmem:[#allocation3 + $0x10] sm:$0xff]
  %v11482 = vld [vmem:[#allocation3 + $0x30] sm:$0xff]
  %v11483 = vld [vmem:[#allocation3 + $0x38] sm:$0xff]
  %v11484 = vld [vmem:[#allocation3 + $0x40] sm:$0xff]
  %v11485 = vld [vmem:[#allocation3 + $0x60] sm:$0xff]
  %v11486 = vld [vmem:[#allocation3 + $0x68] sm:$0xff]
  %v11487 = vld [vmem:[#allocation3 + $0x70] sm:$0xff]
  %v11488 = vld [vmem:[#allocation3 + $0x90] sm:$0xff]
  %v11489 = vld [vmem:[#allocation3 + $0x98] sm:$0xff]
  %v11490 = vld [vmem:[#allocation3 + $0xa0] sm:$0xff]
  %v11491 = vld [vmem:[#allocation3 + $0xc0] sm:$0xff]
  %v11492 = vld [vmem:[#allocation3 + $0xc8] sm:$0xff]
  %v11493 = vld [vmem:[#allocation3 + $0xd0] sm:$0xff]
  %11495 = vset.pattern.permute.xlu0 0
  %11496 = vperm.xlu0 %11495, %v11179
  %v11497 = vpop.permute.xlu0 %11496
  %11500 = vset.pattern.permute.xlu0 0
  %11501 = vperm.xlu0 %11500, %v11180
  %v11502 = vpop.permute.xlu0 %11501
  %11505 = vset.pattern.permute.xlu0 0
  %11506 = vperm.xlu0 %11505, %v11181
  %v11507 = vpop.permute.xlu0 %11506
  %11510 = vset.pattern.permute.xlu0 0
  %11511 = vperm.xlu0 %11510, %v11182
  %v11512 = vpop.permute.xlu0 %11511
  %11515 = vset.pattern.permute.xlu0 0
  %11516 = vperm.xlu0 %11515, %v11183
  %v11517 = vpop.permute.xlu0 %11516
  %v11519 = vadd.f32 %v11479, %v11497
  %v11520 = vadd.f32 %v11480, %v11497
  %v11521 = vadd.f32 %v11481, %v11497
  %v11522 = vadd.f32 %v11482, %v11502
  %v11523 = vadd.f32 %v11483, %v11502
  %v11524 = vadd.f32 %v11484, %v11502
  %v11525 = vadd.f32 %v11485, %v11507
  %v11526 = vadd.f32 %v11486, %v11507
  %v11527 = vadd.f32 %v11487, %v11507
  %v11528 = vadd.f32 %v11488, %v11512
  %v11529 = vadd.f32 %v11489, %v11512
  %v11530 = vadd.f32 %v11490, %v11512
  %v11531 = vadd.f32 %v11491, %v11517
  %v11532 = vadd.f32 %v11492, %v11517
  %v11533 = vadd.f32 %v11493, %v11517
  %v11540 = vrot.slane %v11304, 6
  %v11541 = vrot.slane %v11306, 6
  %v11542 = vrot.slane %v11308, 6
  %v11543 = vrot.slane %v11310, 6
  %v11544 = vsel %vm11289, %v11540, %v11543
  %v11545 = vrot.slane %v11312, 6
  %v11546 = vsel %vm11289, %v11541, %v11545
  %v11547 = vrot.slane %v11314, 6
  %v11548 = vsel %vm11289, %v11542, %v11547
  %v11555 = vrot.slane %v11304, 4
  %v11556 = vrot.slane %v11306, 4
  %v11557 = vrot.slane %v11308, 4
  %v11558 = vrot.slane %v11310, 4
  %v11559 = vsel %vm301, %v11555, %v11558
  %v11560 = vrot.slane %v11312, 4
  %v11561 = vsel %vm301, %v11556, %v11560
  %v11562 = vrot.slane %v11314, 4
  %v11563 = vsel %vm301, %v11557, %v11562
  %vm11570 = vcmask 1045504
  %v11571 = vrot.slane %v11304, 2
  %v11572 = vrot.slane %v11306, 2
  %v11573 = vrot.slane %v11308, 2
  %v11574 = vrot.slane %v11310, 2
  %v11575 = vsel %vm11570, %v11571, %v11574
  %v11576 = vrot.slane %v11312, 2
  %v11577 = vsel %vm11570, %v11572, %v11576
  %v11578 = vrot.slane %v11314, 2
  %v11579 = vsel %vm11570, %v11573, %v11578
  %v11586 = vsel %vm11289, %v11310, %v11540
  %v11587 = vsel %vm11289, %v11312, %v11541
  %v11588 = vsel %vm11289, %v11314, %v11542
  %v11589 = vsel %vm301, %v11544, %v11555
  %v11590 = vsel %vm301, %v11546, %v11556
  %v11591 = vsel %vm301, %v11548, %v11557
  %v11592 = vsel %vm11570, %v11559, %v11571
  %v11593 = vsel %vm11570, %v11561, %v11572
  %v11594 = vsel %vm11570, %v11563, %v11573
  %v11595 = vmul.f32 %v11519, %v11304
  %v11596 = vmul.f32 %v11520, %v11306
  %v11597 = vmul.f32 %v11521, %v11308
  %v11598 = vmul.f32 %v11522, %v11586
  %v11599 = vmul.f32 %v11523, %v11587
  %v11600 = vmul.f32 %v11524, %v11588
  %v11601 = vmul.f32 %v11525, %v11589
  %v11602 = vmul.f32 %v11526, %v11590
  %v11603 = vmul.f32 %v11527, %v11591
  %v11604 = vmul.f32 %v11528, %v11592
  %v11605 = vmul.f32 %v11529, %v11593
  %v11606 = vmul.f32 %v11530, %v11594
  %v11607 = vmul.f32 %v11531, %v11575
  %v11608 = vmul.f32 %v11532, %v11577
  %v11609 = vmul.f32 %v11533, %v11579
  %v11610 = vadd.f32 %v11595, %v11596
  %v11611 = vadd.f32 %v11610, %v11597
  %11612 = vadd.xlane.f32.xlu0 %v11611
  %v11613 = vpop.xlane.xlu0 %11612
  %v11614 = vadd.f32 %v11598, %v11599
  %v11615 = vadd.f32 %v11614, %v11600
  %11616 = vadd.xlane.f32.xlu0 %v11615
  %v11617 = vpop.xlane.xlu0 %11616
  %v11618 = vadd.f32 %v11601, %v11602
  %v11619 = vadd.f32 %v11618, %v11603
  %11620 = vadd.xlane.f32.xlu0 %v11619
  %v11621 = vpop.xlane.xlu0 %11620
  %v11622 = vadd.f32 %v11604, %v11605
  %v11623 = vadd.f32 %v11622, %v11606
  %11624 = vadd.xlane.f32.xlu0 %v11623
  %v11625 = vpop.xlane.xlu0 %11624
  %v11626 = vadd.f32 %v11607, %v11608
  %v11627 = vadd.f32 %v11626, %v11609
  %11628 = vadd.xlane.f32.xlu0 %v11627
  %v11629 = vpop.xlane.xlu0 %11628
  %v11632 = vrot.slane %v11617, 2
  %v11633 = vrot.slane %v11621, 2
  %v11634 = vsel %vm11570, %v11632, %v11633
  %v11638 = vrot.slane %v11621, 4
  %v11639 = vrot.slane %v11625, 4
  %v11640 = vsel %vm301, %v11638, %v11639
  %v11644 = vrot.slane %v11625, 6
  %v11645 = vrot.slane %v11629, 6
  %v11646 = vsel %vm11289, %v11644, %v11645
  %vm11649 = vcmask 7168
  %v11650 = vsel %vm11649, %v11613, %v11634
  %v11651 = vsel %vm11649, %v11617, %v11633
  %vm11652 = vcmask 15360
  %v11653 = vsel %vm11652, %v11650, %v11640
  %v11654 = vsel %vm11652, %v11651, %v11639
  %vm11655 = vcmask 23552
  %v11656 = vsel %vm11655, %v11653, %v11646
  %v11657 = vsel %vm11655, %v11654, %v11645
  %v11658 = vmul.f32 %v11656, %v11470
  %v11659 = vmul.f32 %v11657, %v11475
  %11662 = vrot.lane.b32.xlu0 %v11477, 127
  %v11663 = vpop.permute.xlu0 %11662
  %11664 = vrot.lane.b32.xlu0 %v11478, 127
  %v11665 = vpop.permute.xlu0 %11664
  %11670 = vrot.lane.b32.xlu0 %v11658, 2
  %v11671 = vpop.permute.xlu0 %11670
  %11672 = vrot.lane.b32.xlu0 %v11659, 2
  %v11673 = vpop.permute.xlu0 %11672
  %v11676 = vsel %vm11652, %v11663, %v11671
  %v11677 = vsel %vm11652, %v11665, %v11673
  %vm11678 = vcmask 48128
  %v11679 = vsel %vm11678, %v11676, 0.0
  %v11680 = vsel %vm11678, %v11677, 0.0
  %vm11681 = vcmask 64512
  %11682 = vst.msk [vmem:[%s7] sm:$0xff] %vm11681, %v11679
  %vm11683 = vcmask 58368
  %11684 = vst.msk [vmem:[%s7 + $0x8] sm:$0x3] %vm11683, %v11680
  %v11685 = vld [vmem:[#allocation3 + $0x108] sm:$0xff]
  %v11686 = vld [vmem:[#allocation3 + $0x110] sm:$0xff]
  %v11687 = vld [vmem:[#allocation3 + $0x118] sm:$0xff]
  %v11688 = vld [vmem:[#allocation3 + $0x138] sm:$0x3]
  %v11689 = vld [vmem:[#allocation3 + $0x140] sm:$0x3]
  %v11690 = vld [vmem:[#allocation3 + $0x148] sm:$0x3]
  %v11691 = vadd.f32 %v11685, %v11244
  %v11692 = vadd.f32 %v11686, %v11244
  %v11693 = vadd.f32 %v11687, %v11244
  %v11694 = vadd.f32 %v11688, %v11249
  %v11695 = vadd.f32 %v11689, %v11249
  %v11696 = vadd.f32 %v11690, %v11249
  %v11697 = vmul.f32 %v11691, 10.0
  %v11698 = vmul.f32 %v11692, 10.0
  %v11699 = vmul.f32 %v11693, 10.0
  %v11700 = vmul.f32 %v11694, 10.0
  %v11701 = vmul.f32 %v11695, 10.0
  %v11702 = vmul.f32 %v11696, 10.0
  %v11703 = vadd.f32 %v11697, %v11267
  %v11704 = vadd.f32 %v11698, %v11271
  %v11705 = vadd.f32 %v11699, %v11275
  %v11706 = vadd.f32 %v11700, %v11267
  %v11707 = vadd.f32 %v11701, %v11271
  %v11708 = vadd.f32 %v11702, %v11275
  %v11709 = vmax.f32 %v11703, %v11705
  %v11710 = vmax.f32 %v11709, %v11704
  %11711 = vmax.xlane.f32.xlu0 %v11710
  %v11712 = vpop.xlane.xlu0 %11711
  %v11713 = vsel %vm11289, %v11706, -inf
  %v11714 = vsel %vm11289, %v11707, -inf
  %v11715 = vsel %vm11289, %v11708, -inf
  %v11716 = vmax.f32 %v11713, %v11715
  %v11717 = vmax.f32 %v11716, %v11714
  %11718 = vmax.xlane.f32.xlu0 %v11717
  %v11719 = vpop.xlane.xlu0 %11718
  %v11720 = vsub.f32 %v11703, %v11712
  %v11721 = vsub.f32 %v11704, %v11712
  %v11722 = vsub.f32 %v11705, %v11712
  %v11723 = vsub.f32 %v11706, %v11719
  %v11724 = vsub.f32 %v11707, %v11719
  %v11725 = vsub.f32 %v11708, %v11719
  %v11726 = vmul.f32 %v11720, 1.442695
  %v11727 = vpow.pop %v11726
  %v11728 = vmul.f32 %v11721, 1.442695
  %v11729 = vpow.pop %v11728
  %v11730 = vmul.f32 %v11722, 1.442695
  %v11731 = vpow.pop %v11730
  %v11732 = vmul.f32 %v11723, 1.442695
  %v11733 = vpow.pop %v11732
  %v11734 = vmul.f32 %v11724, 1.442695
  %v11735 = vpow.pop %v11734
  %v11736 = vmul.f32 %v11725, 1.442695
  %v11737 = vpow.pop %v11736
  %11738 = vmatprep.subr.mxu0 0.0
  %11739 = vmatpush1.msra.mxu0 %v11187
  %11740 = vmatprep.subr.mxu0 0.0
  %11741 = vmatpush1.msra.mxu0 %v11188
  %11742 = vmatprep.subr.mxu0 0.0
  %11743 = vmatpush1.msra.mxu0 %v11189
  %11744 = vmatprep.subr.mxu0 0.0
  %11745 = vmatpush1.msra.mxu0 %v11190
  %11746 = vmatprep.subr.mxu0 0.0
  %11747 = vmatpush1.msra.mxu0 %v11191
  %11748 = vmatprep.subr.mxu0 0.0
  %11749 = vmatpush1.msra.mxu0 %v11192
  %11750 = vmatprep.subr.mxu0 0.0
  %11751 = vmatpush1.msra.mxu0 %v11193
  %11752 = vmatprep.subr.mxu0 0.0
  %11753 = vmatpush1.msra.mxu0 %v11194
  %11754 = vmatprep.subr.mxu0 0.0
  %11755 = vmatpush1.msra.mxu0 %v11195
  %11756 = vmatprep.subr.mxu0 0.0
  %11757 = vmatpush1.msra.mxu0 %v11196
  %11758 = vmatprep.subr.mxu0 0.0
  %11759 = vmatpush1.msra.mxu0 %v11197
  %11760 = vmatprep.subr.mxu0 0.0
  %11761 = vmatpush1.msra.mxu0 %v11198
  %11762 = vmatprep.subr.mxu0 0.0
  %11763 = vmatpush1.msra.mxu0 %v11199
  %11764 = vmatprep.subr.mxu0 0.0
  %11765 = vmatpush1.msra.mxu0 %v11200
  %11766 = vmatprep.subr.mxu0 0.0
  %11767 = vmatpush1.msra.mxu0 %v11201
  %11768 = vmatprep.subr.mxu0 0.0
  %11769 = vmatpush1.msra.mxu0 %v11202
  %11770 = vmatprep.subr.mxu0 0.0
  %11771 = vmatpush1.msra.mxu0 %v11203
  %11772 = vmatprep.subr.mxu0 0.0
  %11773 = vmatpush1.msra.mxu0 %v11204
  %11774 = vmatprep.subr.mxu0 0.0
  %11775 = vmatpush1.msra.mxu0 %v11205
  %11776 = vmatprep.subr.mxu0 0.0
  %11777 = vmatpush1.msra.mxu0 %v11206
  %11778 = vmatprep.subr.mxu0 0.0
  %11779 = vmatpush1.msra.mxu0 %v11207
  %11780 = vmatprep.subr.mxu0 0.0
  %11781 = vmatpush1.msra.mxu0 %v11208
  %11782 = vmatprep.subr.mxu0 0.0
  %11783 = vmatpush1.msra.mxu0 %v11209
  %11784 = vmatprep.subr.mxu0 0.0
  %11785 = vmatpush1.msra.mxu0 %v11210
  %11786 = vmatprep.subr.mxu0 0.0
  %11787 = vmatpush1.msra.mxu0 %v11211
  %11788 = vmatprep.subr.mxu0 0.0
  %11789 = vmatpush1.msra.mxu0 %v11212
  %11790 = vmatprep.subr.mxu0 0.0
  %11791 = vmatpush1.msra.mxu0 %v11213
  %11792 = vmatprep.subr.mxu0 0.0
  %11793 = vmatpush1.msra.mxu0 %v11214
  %11794 = vmatprep.subr.mxu0 0.0
  %11795 = vmatpush1.msra.mxu0 %v11215
  %11796 = vmatprep.subr.mxu0 0.0
  %11797 = vmatpush1.msra.mxu0 %v11216
  %11798 = vmatprep.subr.mxu0 0.0
  %11799 = vmatpush1.msra.mxu0 %v11217
  %11800 = vmatprep.subr.mxu0 0.0
  %11801 = vmatpush1.msra.mxu0 %v11218
  %11802 = vmatprep.mubr.f32.mxu0 %v11729
  %11803 = vmatmul.mubr.f32.gmra.mrb[0].mxu0 %v11727
  %v11804 = vpop.f32.mrb[0].mxu0
  %v11805 = vadd.f32 0.0, %v11804
  %v11806 = vpop.f32.mrb[0].mxu0
  %11807 = vmatprep.mubr.f32.mxu0 %v11735
  %11808 = vmatmul.mubr.f32.gmra.mrb[0].mxu0 %v11733
  %v11809 = vpop.f32.mrb[0].mxu0
  %v11810 = vadd.f32 0.0, %v11809
  %v11811 = vpop.f32.mrb[0].mxu0
  %11812 = vdwg.mxu0
  %11813 = vmatprep.subr.mxu0 0.0
  %11814 = vmatpush1.msra.mxu0 %v11219
  %11815 = vmatprep.subr.mxu0 0.0
  %11816 = vmatpush1.msra.mxu0 %v11220
  %11817 = vmatprep.subr.mxu0 0.0
  %11818 = vmatpush1.msra.mxu0 %v11221
  %11819 = vmatprep.subr.mxu0 0.0
  %11820 = vmatpush1.msra.mxu0 %v11222
  %11821 = vmatprep.subr.mxu0 0.0
  %11822 = vmatpush1.msra.mxu0 %v11223
  %11823 = vmatprep.subr.mxu0 0.0
  %11824 = vmatpush1.msra.mxu0 %v11224
  %11825 = vmatprep.subr.mxu0 0.0
  %11826 = vmatpush1.msra.mxu0 %v11225
  %11827 = vmatprep.subr.mxu0 0.0
  %11828 = vmatpush1.msra.mxu0 %v11226
  %11829 = vmatprep.subr.mxu0 0.0
  %11830 = vmatpush1.msra.mxu0 %v11227
  %11831 = vmatprep.subr.mxu0 0.0
  %11832 = vmatpush1.msra.mxu0 %v11228
  %11833 = vmatprep.subr.mxu0 0.0
  %11834 = vmatpush1.msra.mxu0 %v11229
  %11835 = vmatprep.subr.mxu0 0.0
  %11836 = vmatpush1.msra.mxu0 %v11230
  %11837 = vmatprep.subr.mxu0 0.0
  %11838 = vmatpush1.msra.mxu0 %v11231
  %11839 = vmatprep.subr.mxu0 0.0
  %11840 = vmatpush1.msra.mxu0 %v11232
  %11841 = vmatprep.subr.mxu0 0.0
  %11842 = vmatpush1.msra.mxu0 %v11233
  %11843 = vmatprep.subr.mxu0 0.0
  %11844 = vmatpush1.msra.mxu0 %v11234
  %11845 = vmatprep.subr.mxu0 0.0
  %11846 = vmatpush1.msra.mxu0 0.0
  %11847 = vmatprep.subr.mxu0 0.0
  %11848 = vmatpush1.msra.mxu0 0.0
  %11849 = vmatprep.subr.mxu0 0.0
  %11850 = vmatpush1.msra.mxu0 0.0
  %11851 = vmatprep.subr.mxu0 0.0
  %11852 = vmatpush1.msra.mxu0 0.0
  %11853 = vmatprep.subr.mxu0 0.0
  %11854 = vmatpush1.msra.mxu0 0.0
  %11855 = vmatprep.subr.mxu0 0.0
  %11856 = vmatpush1.msra.mxu0 0.0
  %11857 = vmatprep.subr.mxu0 0.0
  %11858 = vmatpush1.msra.mxu0 0.0
  %11859 = vmatprep.subr.mxu0 0.0
  %11860 = vmatpush1.msra.mxu0 0.0
  %11861 = vmatprep.subr.mxu0 0.0
  %11862 = vmatpush1.msra.mxu0 0.0
  %11863 = vmatprep.subr.mxu0 0.0
  %11864 = vmatpush1.msra.mxu0 0.0
  %11865 = vmatprep.subr.mxu0 0.0
  %11866 = vmatpush1.msra.mxu0 0.0
  %11867 = vmatprep.subr.mxu0 0.0
  %11868 = vmatpush1.msra.mxu0 0.0
  %11869 = vmatprep.subr.mxu0 0.0
  %11870 = vmatpush1.msra.mxu0 0.0
  %11871 = vmatprep.subr.mxu0 0.0
  %11872 = vmatpush1.msra.mxu0 0.0
  %11873 = vmatprep.subr.mxu0 0.0
  %11874 = vmatpush1.msra.mxu0 0.0
  %11875 = vmatprep.subr.mxu0 0.0
  %11876 = vmatpush1.msra.mxu0 0.0
  %11877 = vmatprep.mubr.f32.mxu0 0.0
  %11878 = vmatmul.mubr.f32.gmra.mrb[0].mxu0 %v11731
  %v11879 = vpop.f32.mrb[0].mxu0
  %v11880 = vadd.f32 %v11805, %v11879
  %v11881 = vpop.f32.mrb[0].mxu0
  %11882 = vmatprep.mubr.f32.mxu0 0.0
  %11883 = vmatmul.mubr.f32.gmra.mrb[0].mxu0 %v11737
  %v11884 = vpop.f32.mrb[0].mxu0
  %v11885 = vadd.f32 %v11810, %v11884
  %v11886 = vpop.f32.mrb[0].mxu0
  %11887 = vdwg.mxu0
  %v11888 = vrcp.pop %v11880
  %v11889 = vrcp.pop %v11885
  %11891 = vset.pattern.permute.xlu0 0
  %11892 = vperm.xlu0 %11891, %v11888
  %v11893 = vpop.permute.xlu0 %11892
  %11896 = vset.pattern.permute.xlu0 0
  %11897 = vperm.xlu0 %11896, %v11889
  %v11898 = vpop.permute.xlu0 %11897
  %v11900 = vmul.f32 %v11880, %v11893
  %v11901 = vmul.f32 %v11885, %v11898
  %v11902 = vld [vmem:[#allocation3 + $0x18] sm:$0xff]
  %v11903 = vld [vmem:[#allocation3 + $0x20] sm:$0xff]
  %v11904 = vld [vmem:[#allocation3 + $0x28] sm:$0xff]
  %v11905 = vld [vmem:[#allocation3 + $0x48] sm:$0xff]
  %v11906 = vld [vmem:[#allocation3 + $0x50] sm:$0xff]
  %v11907 = vld [vmem:[#allocation3 + $0x58] sm:$0xff]
  %v11908 = vld [vmem:[#allocation3 + $0x78] sm:$0xff]
  %v11909 = vld [vmem:[#allocation3 + $0x80] sm:$0xff]
  %v11910 = vld [vmem:[#allocation3 + $0x88] sm:$0xff]
  %v11911 = vld [vmem:[#allocation3 + $0xa8] sm:$0xff]
  %v11912 = vld [vmem:[#allocation3 + $0xb0] sm:$0xff]
  %v11913 = vld [vmem:[#allocation3 + $0xb8] sm:$0xff]
  %v11914 = vld [vmem:[#allocation3 + $0xd8] sm:$0xff]
  %v11915 = vld [vmem:[#allocation3 + $0xe0] sm:$0xff]
  %v11916 = vld [vmem:[#allocation3 + $0xe8] sm:$0xff]
  %v11917 = vadd.f32 %v11902, %v11497
  %v11918 = vadd.f32 %v11903, %v11497
  %v11919 = vadd.f32 %v11904, %v11497
  %v11920 = vadd.f32 %v11905, %v11502
  %v11921 = vadd.f32 %v11906, %v11502
  %v11922 = vadd.f32 %v11907, %v11502
  %v11923 = vadd.f32 %v11908, %v11507
  %v11924 = vadd.f32 %v11909, %v11507
  %v11925 = vadd.f32 %v11910, %v11507
  %v11926 = vadd.f32 %v11911, %v11512
  %v11927 = vadd.f32 %v11912, %v11512
  %v11928 = vadd.f32 %v11913, %v11512
  %v11929 = vadd.f32 %v11914, %v11517
  %v11930 = vadd.f32 %v11915, %v11517
  %v11931 = vadd.f32 %v11916, %v11517
  %v11938 = vrot.slane %v11727, 6
  %v11939 = vrot.slane %v11729, 6
  %v11940 = vrot.slane %v11731, 6
  %v11941 = vrot.slane %v11733, 6
  %v11942 = vsel %vm11289, %v11938, %v11941
  %v11943 = vrot.slane %v11735, 6
  %v11944 = vsel %vm11289, %v11939, %v11943
  %v11945 = vrot.slane %v11737, 6
  %v11946 = vsel %vm11289, %v11940, %v11945
  %v11953 = vrot.slane %v11727, 4
  %v11954 = vrot.slane %v11729, 4
  %v11955 = vrot.slane %v11731, 4
  %v11956 = vrot.slane %v11733, 4
  %v11957 = vsel %vm301, %v11953, %v11956
  %v11958 = vrot.slane %v11735, 4
  %v11959 = vsel %vm301, %v11954, %v11958
  %v11960 = vrot.slane %v11737, 4
  %v11961 = vsel %vm301, %v11955, %v11960
  %v11968 = vrot.slane %v11727, 2
  %v11969 = vrot.slane %v11729, 2
  %v11970 = vrot.slane %v11731, 2
  %v11971 = vrot.slane %v11733, 2
  %v11972 = vsel %vm11570, %v11968, %v11971
  %v11973 = vrot.slane %v11735, 2
  %v11974 = vsel %vm11570, %v11969, %v11973
  %v11975 = vrot.slane %v11737, 2
  %v11976 = vsel %vm11570, %v11970, %v11975
  %v11983 = vsel %vm11289, %v11733, %v11938
  %v11984 = vsel %vm11289, %v11735, %v11939
  %v11985 = vsel %vm11289, %v11737, %v11940
  %v11986 = vsel %vm301, %v11942, %v11953
  %v11987 = vsel %vm301, %v11944, %v11954
  %v11988 = vsel %vm301, %v11946, %v11955
  %v11989 = vsel %vm11570, %v11957, %v11968
  %v11990 = vsel %vm11570, %v11959, %v11969
  %v11991 = vsel %vm11570, %v11961, %v11970
  %v11992 = vmul.f32 %v11917, %v11727
  %v11993 = vmul.f32 %v11918, %v11729
  %v11994 = vmul.f32 %v11919, %v11731
  %v11995 = vmul.f32 %v11920, %v11983
  %v11996 = vmul.f32 %v11921, %v11984
  %v11997 = vmul.f32 %v11922, %v11985
  %v11998 = vmul.f32 %v11923, %v11986
  %v11999 = vmul.f32 %v11924, %v11987
  %v12000 = vmul.f32 %v11925, %v11988
  %v12001 = vmul.f32 %v11926, %v11989
  %v12002 = vmul.f32 %v11927, %v11990
  %v12003 = vmul.f32 %v11928, %v11991
  %v12004 = vmul.f32 %v11929, %v11972
  %v12005 = vmul.f32 %v11930, %v11974
  %v12006 = vmul.f32 %v11931, %v11976
  %v12007 = vadd.f32 %v11992, %v11993
  %v12008 = vadd.f32 %v12007, %v11994
  %12009 = vadd.xlane.f32.xlu0 %v12008
  %v12010 = vpop.xlane.xlu0 %12009
  %v12011 = vadd.f32 %v11995, %v11996
  %v12012 = vadd.f32 %v12011, %v11997
  %12013 = vadd.xlane.f32.xlu0 %v12012
  %v12014 = vpop.xlane.xlu0 %12013
  %v12015 = vadd.f32 %v11998, %v11999
  %v12016 = vadd.f32 %v12015, %v12000
  %12017 = vadd.xlane.f32.xlu0 %v12016
  %v12018 = vpop.xlane.xlu0 %12017
  %v12019 = vadd.f32 %v12001, %v12002
  %v12020 = vadd.f32 %v12019, %v12003
  %12021 = vadd.xlane.f32.xlu0 %v12020
  %v12022 = vpop.xlane.xlu0 %12021
  %v12023 = vadd.f32 %v12004, %v12005
  %v12024 = vadd.f32 %v12023, %v12006
  %12025 = vadd.xlane.f32.xlu0 %v12024
  %v12026 = vpop.xlane.xlu0 %12025
  %v12029 = vrot.slane %v12014, 2
  %v12030 = vrot.slane %v12018, 2
  %v12031 = vsel %vm11570, %v12029, %v12030
  %v12035 = vrot.slane %v12018, 4
  %v12036 = vrot.slane %v12022, 4
  %v12037 = vsel %vm301, %v12035, %v12036
  %v12041 = vrot.slane %v12022, 6
  %v12042 = vrot.slane %v12026, 6
  %v12043 = vsel %vm11289, %v12041, %v12042
  %v12046 = vsel %vm11649, %v12010, %v12031
  %v12047 = vsel %vm11649, %v12014, %v12030
  %v12048 = vsel %vm11652, %v12046, %v12037
  %v12049 = vsel %vm11652, %v12047, %v12036
  %v12050 = vsel %vm11655, %v12048, %v12043
  %v12051 = vsel %vm11655, %v12049, %v12042
  %v12052 = vmul.f32 %v12050, %v11893
  %v12053 = vmul.f32 %v12051, %v11898
  %12056 = vrot.lane.b32.xlu0 %v11900, 127
  %v12057 = vpop.permute.xlu0 %12056
  %12058 = vrot.lane.b32.xlu0 %v11901, 127
  %v12059 = vpop.permute.xlu0 %12058
  %12064 = vrot.lane.b32.xlu0 %v12052, 2
  %v12065 = vpop.permute.xlu0 %12064
  %12066 = vrot.lane.b32.xlu0 %v12053, 2
  %v12067 = vpop.permute.xlu0 %12066
  %v12070 = vsel %vm11652, %v12057, %v12065
  %v12071 = vsel %vm11652, %v12059, %v12067
  %v12072 = vsel %vm11678, %v12070, 0.0
  %v12073 = vsel %vm11678, %v12071, 0.0
  %s12074 = scalar_lea.vmem %s7, 16
  %12075 = vst.msk [vmem:[%s12074] sm:$0xff] %vm11681, %v12072
  %12076 = vst.msk [vmem:[%s12074 + $0x8] sm:$0x3] %vm11683, %v12073
  // Predicated region
  $region30: #{stn_kp_detector_forward.1} parent=0 // pred_check
    _
  $region31: #{stn_kp_detector_forward.1} parent=0 // pred_check_branch
    %12078 = sbr.rel (0) target = $region33
  $region32: #{stn_kp_detector_forward.1} parent=0 // pred_region
    _
  $region33: #{stn_kp_detector_forward.1} parent=0 // pred_fallthru
    _
  // Predicated region
  $region34: #{stn_kp_detector_forward.1} parent=0 // pred_check
    _
  $region35: #{stn_kp_detector_forward.1} parent=0 // pred_check_branch
    %12080 = sbr.rel (0) target = $region37
  $region36: #{stn_kp_detector_forward.1} parent=0 // pred_region
    _
  $region37: #{stn_kp_detector_forward.1} parent=0 // pred_fallthru
    _

</llo_original>
